<compile_context>
chip_gen: v6e
topology: v6e:2x2x1
jax: 0.10.0
libtpu: 0.0.40
codegen_flags: <defaults>
</compile_context>

<pallas_src>
import functools

import jax
import jax.numpy as jnp
from jax.experimental import pallas as pl
from jax.experimental.pallas import tpu as pltpu

BN_EPS = 1e-5


# ---------------------------------------------------------------------------
# helpers
# ---------------------------------------------------------------------------
def _cdiv(a, b):
    return -(-a // b)


def _leaky_relu(h, slope):
    return jnp.where(h >= 0, h, slope * h)


def _batch_norm(h, gamma, beta):
    # training-mode BN: per-feature batch mean / biased variance
    mean = jnp.mean(h, axis=0, keepdims=True)
    var = jnp.mean((h - mean) * (h - mean), axis=0, keepdims=True)
    return gamma * (h - mean) * jax.lax.rsqrt(var + BN_EPS) + beta


def _fold_bn(gamma, beta, mean, var, w, b):
    """Fold BN(scale,shift) into the following Linear: returns (W', b')."""
    s = gamma.reshape(-1) * jax.lax.rsqrt(var + BN_EPS)
    w_f = s[:, None] * w
    b_f = (beta.reshape(-1) - mean * s) @ w + b.reshape(-1)
    return w_f, b_f.reshape(1, -1)


# ---------------------------------------------------------------------------
# kernels
# ---------------------------------------------------------------------------
def _first_layer_kernel(src_ref, dst_ref, ea_ref, ws_ref, wd_ref, we_ref, b_ref,
                        h_ref, st_ref, *, leakiness, n_valid, tile_n):
    """h = LeakyReLU(src@Ws + dst@Wd + ea@We + b); emits (sum, sum_sq) partials.

    Rows >= n_valid (garbage from the ragged last input block) are zeroed in
    both the stored activations and the stats; that path only runs on the
    last tile (pl.when), all other tiles are straight-line.
    """
    h = (jnp.dot(src_ref[...], ws_ref[...], preferred_element_type=jnp.float32)
         + jnp.dot(dst_ref[...], wd_ref[...], preferred_element_type=jnp.float32)
         + jnp.dot(ea_ref[...], we_ref[...], preferred_element_type=jnp.float32)
         + b_ref[...])
    h = _leaky_relu(h, leakiness)

    def emit(hv):
        h_ref[...] = hv
        st_ref[0, 0:1, :] = jnp.sum(hv, axis=0, keepdims=True)
        st_ref[0, 1:2, :] = jnp.sum(hv * hv, axis=0, keepdims=True)

    if n_valid % tile_n == 0:                      # static: no ragged tile at all
        emit(h)
    else:
        i = pl.program_id(0)
        is_last = i == pl.num_programs(0) - 1

        @pl.when(jnp.logical_not(is_last))
        def _():
            emit(h)

        @pl.when(is_last)
        def _():
            row = i * tile_n + jax.lax.broadcasted_iota(jnp.int32, h.shape, 0)
            emit(jnp.where(row < n_valid, h, 0.0))


def _mid_layer_kernel(x_ref, w_ref, b_ref, h_ref, st_ref, *, leakiness):
    """Lane-packed rows: h = LeakyReLU(x @ W_blockdiag + b_tiled); per-lane stats."""
    h = jnp.dot(x_ref[...], w_ref[...], preferred_element_type=jnp.float32) + b_ref[...]
    h = _leaky_relu(h, leakiness)
    h_ref[...] = h
    st_ref[0, 0:1, :] = jnp.sum(h, axis=0, keepdims=True)
    st_ref[0, 1:2, :] = jnp.sum(h * h, axis=0, keepdims=True)


def _last_layer_kernel(x_ref, w_ref, b_ref, o_ref):
    o_ref[...] = (jnp.dot(x_ref[...], w_ref[...], preferred_element_type=jnp.float32)
                  + b_ref[...]).astype(o_ref.dtype)


# ---------------------------------------------------------------------------
# parameters
# ---------------------------------------------------------------------------
def init_edge_layer_params(key, node_in, edge_in, edge_out):
    """Deterministic synthetic parameters matching the nn.Module shapes."""
    c_in = 2 * node_in + edge_in
    keys = jax.random.split(key, 6)

    def linear(kw, kb, fan_in, fan_out):
        bound = 1.0 / jnp.sqrt(fan_in)
        # stored already transposed: (in, out), so kernels do x @ W
        w = jax.random.uniform(kw, (fan_in, fan_out), jnp.float32, -bound, bound)
        b = jax.random.uniform(kb, (1, fan_out), jnp.float32, -bound, bound)
        return w, b

    w1, bb1 = linear(keys[0], keys[1], c_in, edge_out)
    w2, bb2 = linear(keys[2], keys[3], edge_out, edge_out)
    w3, bb3 = linear(keys[4], keys[5], edge_out, edge_out)

    return dict(
        g1=jnp.ones((1, c_in), jnp.float32), b1=jnp.zeros((1, c_in), jnp.float32),
        w1=w1, bb1=bb1,
        g2=jnp.ones((1, edge_out), jnp.float32), b2=jnp.zeros((1, edge_out), jnp.float32),
        w2=w2, bb2=bb2,
        g3=jnp.ones((1, edge_out), jnp.float32), b3=jnp.zeros((1, edge_out), jnp.float32),
        w3=w3, bb3=bb3,
    )


# ---------------------------------------------------------------------------
# pure-JAX reference (faithful to the PyTorch forward, training-mode BN)
# ---------------------------------------------------------------------------
def edge_layer_reference(src, dest, edge_attr, params, leakiness=0.0):
    h = jnp.concatenate([src, dest, edge_attr], axis=1).astype(jnp.float32)
    h = _batch_norm(h, params["g1"], params["b1"])
    h = _leaky_relu(h @ params["w1"] + params["bb1"], leakiness)
    h = _batch_norm(h, params["g2"], params["b2"])
    h = _leaky_relu(h @ params["w2"] + params["bb2"], leakiness)
    h = _batch_norm(h, params["g3"], params["b3"])
    return h @ params["w3"] + params["bb3"]


# ---------------------------------------------------------------------------
# forward
# ---------------------------------------------------------------------------
def edge_layer_forward(src, dest, edge_attr, params, leakiness=0.0,
                       tile_n=8192, min_pallas_rows=512):
    src = src.astype(jnp.float32)
    dest = dest.astype(jnp.float32)
    edge_attr = edge_attr.astype(jnp.float32)

    n, node_in = src.shape
    edge_in = edge_attr.shape[1]
    edge_out = params["w3"].shape[1]

    # lane-packing factor: `pack` consecutive edges share one 128-lane row
    pack = 128 // edge_out if (0 < edge_out <= 128 and 128 % edge_out == 0) else 1
    e_pk = pack * edge_out
    align = 8 * pack                              # row-tile alignment (sublane x pack)

    # tiny graphs: launch overhead + stats glue dominate -> plain XLA path
    # (in production raise min_pallas_rows to ~tens of thousands of edges).
    if n < max(int(min_pallas_rows), align):
        return edge_layer_reference(src, dest, edge_attr, params, leakiness)

    # static row-tile geometry; tile_n <= n so no block exceeds its array.
    tile_n = max(align, min(int(tile_n), (n // align) * align))
    n_tiles = _cdiv(n, tile_n)
    rows1 = n_tiles * tile_n                      # rows written by layers 1/2 (>= n)
    tile_p = tile_n // pack                       # packed rows per tile
    rows_p = rows1 // pack
    out_p = _cdiv(n, pack)                        # packed rows of the final output
    pad_rows = rows1 - n

    # ----- BN1 stats: one fused XLA pass per raw input; per-tensor stats
    #       concatenated == stats of the concatenated features -----
    def moments(a):
        m = jnp.mean(a, axis=0)
        v = jnp.maximum(jnp.mean(a * a, axis=0) - m * m, 0.0)
        return m, v

    m_s, v_s = moments(src)
    m_d, v_d = moments(dest)
    m_e, v_e = moments(edge_attr)
    mean1 = jnp.concatenate([m_s, m_d, m_e])
    var1 = jnp.concatenate([v_s, v_d, v_e])
    w1f, b1f = _fold_bn(params["g1"], params["b1"], mean1, var1,
                        params["w1"], params["bb1"])
    w1_s = w1f[:node_in]
    w1_d = w1f[node_in:2 * node_in]
    w1_e = w1f[2 * node_in:]

    row_spec = lambda f: pl.BlockSpec((tile_n, f), lambda i: (i, 0))
    packed_spec = pl.BlockSpec((tile_p, e_pk), lambda i: (i, 0))
    const_spec = lambda shp: pl.BlockSpec(shp, lambda i: (0,) * len(shp))
    stats_spec = lambda f: pl.BlockSpec((1, 2, f), lambda i: (i, 0, 0))
    cparams = pltpu.CompilerParams(dimension_semantics=("parallel",))

    # ----- layer 1: 3-way dot (no concat) + bias + LeakyReLU, BN2 partials -----
    h1, st1 = pl.pallas_call(
        functools.partial(_first_layer_kernel, leakiness=leakiness,
                          n_valid=n, tile_n=tile_n),
        out_shape=(jax.ShapeDtypeStruct((rows1, edge_out), jnp.float32),
                   jax.ShapeDtypeStruct((n_tiles, 2, edge_out), jnp.float32)),
        grid=(n_tiles,),
        in_specs=[row_spec(node_in), row_spec(node_in), row_spec(edge_in),
                  const_spec((node_in, edge_out)),
                  const_spec((node_in, edge_out)),
                  const_spec((edge_in, edge_out)),
                  const_spec((1, edge_out))],
        out_specs=(row_spec(edge_out), stats_spec(edge_out)),
        compiler_params=cparams,
    )(src, dest, edge_attr, w1_s, w1_d, w1_e, b1f)

    # finalize BN2 stats (padded rows of h1 were stored as exact zeros)
    sum2 = jnp.sum(st1[:, 0, :], axis=0)
    ssq2 = jnp.sum(st1[:, 1, :], axis=0)
    mean2 = sum2 / n
    var2 = jnp.maximum(ssq2 / n - mean2 * mean2, 0.0)
    w2f, b2f = _fold_bn(params["g2"], params["b2"], mean2, var2,
                        params["w2"], params["bb2"])

    # lane-dense packing: (rows1, E) -> (rows1/pack, pack*E) is a free,
    # layout-preserving reshape in HBM; block-diagonal weights keep the math
    # identical per original row.
    eye_p = jnp.eye(pack, dtype=jnp.float32)
    h1p = h1.reshape(rows_p, e_pk)
    w2p = jnp.kron(eye_p, w2f)
    b2p = jnp.tile(b2f, (1, pack))

    # ----- layer 2 (lane-dense packed rows) -----
    h2p, st2 = pl.pallas_call(
        functools.partial(_mid_layer_kernel, leakiness=leakiness),
        out_shape=(jax.ShapeDtypeStruct((rows_p, e_pk), jnp.float32),
                   jax.ShapeDtypeStruct((n_tiles, 2, e_pk), jnp.float32)),
        grid=(n_tiles,),
        in_specs=[packed_spec, const_spec((e_pk, e_pk)), const_spec((1, e_pk))],
        out_specs=(packed_spec, stats_spec(e_pk)),
        compiler_params=cparams,
    )(h1p, w2p, b2p)

    # finalize BN3 stats: fold per-lane sums back to per-feature sums and
    # subtract the known contribution of the padded rows (their h1 is exactly
    # 0, so their layer-2 activation is the constant LeakyReLU(b2f)).
    sum3 = jnp.sum(st2[:, 0, :], axis=0).reshape(pack, edge_out).sum(axis=0)
    ssq3 = jnp.sum(st2[:, 1, :], axis=0).reshape(pack, edge_out).sum(axis=0)
    if pad_rows:
        pad_val = _leaky_relu(b2f.reshape(-1), leakiness)
        sum3 = sum3 - pad_rows * pad_val
        ssq3 = ssq3 - pad_rows * pad_val * pad_val
    mean3 = sum3 / n
    var3 = jnp.maximum(ssq3 / n - mean3 * mean3, 0.0)
    w3f, b3f = _fold_bn(params["g3"], params["b3"], mean3, var3,
                        params["w3"], params["bb3"])
    w3p = jnp.kron(eye_p, w3f)
    b3p = jnp.tile(b3f, (1, pack))

    # ----- layer 3 (lane-dense; ragged last output block clipped by Pallas) -----
    outp = pl.pallas_call(
        _last_layer_kernel,
        out_shape=jax.ShapeDtypeStruct((out_p, e_pk), jnp.float32),
        grid=(n_tiles,),
        in_specs=[packed_spec, const_spec((e_pk, e_pk)), const_spec((1, e_pk))],
        out_specs=packed_spec,
        compiler_params=cparams,
    )(h2p, w3p, b3p)

    out = outp.reshape(out_p * pack, edge_out)   # free reshape (row-major bitcast)
    return out if out_p * pack == n else out[:n]


# ---------------------------------------------------------------------------
if __name__ == "__main__":
    node_in, edge_in, edge_out = 16, 16, 32
    n_edges = 1000            # deliberately not a tile multiple (exercises ragged path)
    leakiness = 0.1

    key = jax.random.PRNGKey(0)
    k_src, k_dst, k_edge, k_par = jax.random.split(key, 4)
    src = jax.random.normal(k_src, (n_edges, node_in), jnp.float32)
    dest = jax.random.normal(k_dst, (n_edges, node_in), jnp.float32)
    edge_attr = jax.random.normal(k_edge, (n_edges, edge_in), jnp.float32)

    params = init_edge_layer_params(k_par, node_in, edge_in, edge_out)

    fwd = jax.jit(edge_layer_forward,
                  static_argnames=("leakiness", "tile_n", "min_pallas_rows"))
    out = jax.block_until_ready(fwd(src, dest, edge_attr, params, leakiness=leakiness))

    ref = edge_layer_reference(src, dest, edge_attr, params, leakiness)
    assert out.shape == (n_edges, edge_out)
    err = float(jnp.max(jnp.abs(out - ref)))
    assert jnp.allclose(out, ref, atol=1e-3, rtol=1e-3), err

    print("KERNEL_OK")
</pallas_src>

<mosaic_0001>
module attributes {stable_mosaic.version = 11 : i64} {
  func.func @_mid_layer_kernel(%arg0: i32, %arg1: memref<248x128xf32, #tpu.memory_space<vmem>>, %arg2: memref<128x128xf32, #tpu.memory_space<vmem>>, %arg3: memref<1x128xf32, #tpu.memory_space<vmem>>, %arg4: memref<248x128xf32, #tpu.memory_space<vmem>>, %arg5: memref<1x2x128xf32, #tpu.memory_space<vmem>>) attributes {dimension_semantics = [#tpu.dimension_semantics<parallel>], iteration_bounds = array<i64: 2>, scalar_prefetch = 0 : i64, scratch_operands = 0 : i64, tpu.core_type = #tpu.core_type<tc>, window_params = [{transform_indices = @transform_0, window_bounds = array<i64: 248, 128>}, {pipeline_mode = #tpu.pipeline_mode<synchronous>, transform_indices = @transform_1, window_bounds = array<i64: 128, 128>}, {pipeline_mode = #tpu.pipeline_mode<synchronous>, transform_indices = @transform_2, window_bounds = array<i64: 1, 128>}, {transform_indices = @transform_3, window_bounds = array<i64: 248, 128>}, {transform_indices = @transform_4, window_bounds = array<i64: 1, 2, 128>}]} {
    %c0 = arith.constant 0 : index
    %c0_0 = arith.constant 0 : index
    %0 = vector.load %arg1[%c0, %c0_0] : memref<248x128xf32, #tpu.memory_space<vmem>>, vector<248x128xf32>
    %c0_1 = arith.constant 0 : index
    %c0_2 = arith.constant 0 : index
    %1 = vector.load %arg2[%c0_1, %c0_2] : memref<128x128xf32, #tpu.memory_space<vmem>>, vector<128x128xf32>
    %cst = arith.constant dense<0.000000e+00> : vector<248x128xf32>
    %2 = tpu.matmul %0, %1, %cst {dimension_numbers = #tpu.dot_dimension_numbers<[1], [0], [0], [1], [0, 0, 1, 1], [], []>} : vector<248x128xf32>, vector<128x128xf32>, vector<248x128xf32> -> vector<248x128xf32>
    %c0_3 = arith.constant 0 : index
    %c0_4 = arith.constant 0 : index
    %3 = vector.load %arg3[%c0_3, %c0_4] : memref<1x128xf32, #tpu.memory_space<vmem>>, vector<1x128xf32>
    %4 = vector.broadcast %3 : vector<1x128xf32> to vector<248x128xf32>
    %5 = arith.addf %2, %4 : vector<248x128xf32>
    %cst_5 = arith.constant 0.000000e+00 : f32
    %6 = vector.broadcast %cst_5 : f32 to vector<248x128xf32>
    %7 = arith.cmpf oge, %5, %6 : vector<248x128xf32>
    %cst_6 = arith.constant 1.000000e-01 : f32
    %8 = vector.broadcast %cst_6 : f32 to vector<248x128xf32>
    %9 = arith.mulf %8, %5 : vector<248x128xf32>
    %10 = arith.select %7, %5, %9 : vector<248x128xi1>, vector<248x128xf32>
    %c0_7 = arith.constant 0 : index
    %c0_8 = arith.constant 0 : index
    %11 = vector.load %arg4[%c0_7, %c0_8] : memref<248x128xf32, #tpu.memory_space<vmem>>, vector<248x128xf32>
    tpu.vector_store %arg4[%c0_7, %c0_8], %10 {strides = array<i32>} : memref<248x128xf32, #tpu.memory_space<vmem>>, vector<248x128xf32>,
    %cst_9 = arith.constant dense<0.000000e+00> : vector<128xf32>
    %12 = vector.multi_reduction <add>, %10, %cst_9 [0] : vector<248x128xf32> to vector<128xf32>
    %13 = vector.shape_cast %12 : vector<128xf32> to vector<1x128xf32>
    %c0_10 = arith.constant 0 : index
    %c0_11 = arith.constant 0 : index
    %c0_12 = arith.constant 0 : index
    %14 = vector.load %arg5[%c0_10, %c0_11, %c0_12] : memref<1x2x128xf32, #tpu.memory_space<vmem>>, vector<1x1x128xf32>
    %15 = vector.shape_cast %14 : vector<1x1x128xf32> to vector<1x128xf32>
    %16 = vector.shape_cast %13 : vector<1x128xf32> to vector<1x1x128xf32>
    tpu.vector_store %arg5[%c0_10, %c0_11, %c0_12], %16 {strides = array<i32>} : memref<1x2x128xf32, #tpu.memory_space<vmem>>, vector<1x1x128xf32>,
    %17 = arith.mulf %10, %10 : vector<248x128xf32>
    %cst_13 = arith.constant dense<0.000000e+00> : vector<128xf32>
    %18 = vector.multi_reduction <add>, %17, %cst_13 [0] : vector<248x128xf32> to vector<128xf32>
    %19 = vector.shape_cast %18 : vector<128xf32> to vector<1x128xf32>
    %c0_14 = arith.constant 0 : index
    %c1 = arith.constant 1 : index
    %c0_15 = arith.constant 0 : index
    %20 = vector.load %arg5[%c0_14, %c1, %c0_15] : memref<1x2x128xf32, #tpu.memory_space<vmem>>, vector<1x1x128xf32>
    %21 = vector.shape_cast %20 : vector<1x1x128xf32> to vector<1x128xf32>
    %22 = vector.shape_cast %19 : vector<1x128xf32> to vector<1x1x128xf32>
    tpu.vector_store %arg5[%c0_14, %c1, %c0_15], %22 {strides = array<i32>} : memref<1x2x128xf32, #tpu.memory_space<vmem>>, vector<1x1x128xf32>,
    return
  }
  func.func @transform_0(%arg0: i32) -> (i32, i32) {
    %c0_i32 = arith.constant 0 : i32
    %c0_i32_0 = arith.constant 0 : i32
    return %arg0, %c0_i32 : i32, i32
  }
  func.func @transform_1(%arg0: i32) -> (i32, i32) {
    %c0_i32 = arith.constant 0 : i32
    %c0_i32_0 = arith.constant 0 : i32
    %c0_i32_1 = arith.constant 0 : i32
    return %c0_i32, %c0_i32_0 : i32, i32
  }
  func.func @transform_2(%arg0: i32) -> (i32, i32) {
    %c0_i32 = arith.constant 0 : i32
    %c0_i32_0 = arith.constant 0 : i32
    %c0_i32_1 = arith.constant 0 : i32
    return %c0_i32, %c0_i32_0 : i32, i32
  }
  func.func @transform_3(%arg0: i32) -> (i32, i32) {
    %c0_i32 = arith.constant 0 : i32
    %c0_i32_0 = arith.constant 0 : i32
    return %arg0, %c0_i32 : i32, i32
  }
  func.func @transform_4(%arg0: i32) -> (i32, i32, i32) {
    %c0_i32 = arith.constant 0 : i32
    %c0_i32_0 = arith.constant 0 : i32
    %c0_i32_1 = arith.constant 0 : i32
    return %arg0, %c0_i32, %c0_i32_0 : i32, i32, i32
  }
}

module attributes {stable_mosaic.version = 11 : i64} {
  func.func @_first_layer_kernel(%arg0: i32, %arg1: memref<992x16xf32, #tpu.memory_space<vmem>>, %arg2: memref<992x16xf32, #tpu.memory_space<vmem>>, %arg3: memref<992x16xf32, #tpu.memory_space<vmem>>, %arg4: memref<16x32xf32, #tpu.memory_space<vmem>>, %arg5: memref<16x32xf32, #tpu.memory_space<vmem>>, %arg6: memref<16x32xf32, #tpu.memory_space<vmem>>, %arg7: memref<1x32xf32, #tpu.memory_space<vmem>>, %arg8: memref<992x32xf32, #tpu.memory_space<vmem>>, %arg9: memref<1x2x32xf32, #tpu.memory_space<vmem>>) attributes {dimension_semantics = [#tpu.dimension_semantics<parallel>], iteration_bounds = array<i64: 2>, scalar_prefetch = 0 : i64, scratch_operands = 0 : i64, tpu.core_type = #tpu.core_type<tc>, window_params = [{transform_indices = @transform_0, window_bounds = array<i64: 992, 16>}, {transform_indices = @transform_1, window_bounds = array<i64: 992, 16>}, {transform_indices = @transform_2, window_bounds = array<i64: 992, 16>}, {pipeline_mode = #tpu.pipeline_mode<synchronous>, transform_indices = @transform_3, window_bounds = array<i64: 16, 32>}, {pipeline_mode = #tpu.pipeline_mode<synchronous>, transform_indices = @transform_4, window_bounds = array<i64: 16, 32>}, {pipeline_mode = #tpu.pipeline_mode<synchronous>, transform_indices = @transform_5, window_bounds = array<i64: 16, 32>}, {pipeline_mode = #tpu.pipeline_mode<synchronous>, transform_indices = @transform_6, window_bounds = array<i64: 1, 32>}, {transform_indices = @transform_7, window_bounds = array<i64: 992, 32>}, {transform_indices = @transform_8, window_bounds = array<i64: 1, 2, 32>}]} {
    %c0 = arith.constant 0 : index
    %c0_0 = arith.constant 0 : index
    %0 = vector.load %arg1[%c0, %c0_0] : memref<992x16xf32, #tpu.memory_space<vmem>>, vector<992x16xf32>
    %c0_1 = arith.constant 0 : index
    %c0_2 = arith.constant 0 : index
    %1 = vector.load %arg4[%c0_1, %c0_2] : memref<16x32xf32, #tpu.memory_space<vmem>>, vector<16x32xf32>
    %cst = arith.constant dense<0.000000e+00> : vector<992x32xf32>
    %2 = tpu.matmul %0, %1, %cst {dimension_numbers = #tpu.dot_dimension_numbers<[1], [0], [0], [1], [0, 0, 1, 1], [], []>} : vector<992x16xf32>, vector<16x32xf32>, vector<992x32xf32> -> vector<992x32xf32>
    %c0_3 = arith.constant 0 : index
    %c0_4 = arith.constant 0 : index
    %3 = vector.load %arg2[%c0_3, %c0_4] : memref<992x16xf32, #tpu.memory_space<vmem>>, vector<992x16xf32>
    %c0_5 = arith.constant 0 : index
    %c0_6 = arith.constant 0 : index
    %4 = vector.load %arg5[%c0_5, %c0_6] : memref<16x32xf32, #tpu.memory_space<vmem>>, vector<16x32xf32>
    %cst_7 = arith.constant dense<0.000000e+00> : vector<992x32xf32>
    %5 = tpu.matmul %3, %4, %cst_7 {dimension_numbers = #tpu.dot_dimension_numbers<[1], [0], [0], [1], [0, 0, 1, 1], [], []>} : vector<992x16xf32>, vector<16x32xf32>, vector<992x32xf32> -> vector<992x32xf32>
    %6 = arith.addf %2, %5 : vector<992x32xf32>
    %c0_8 = arith.constant 0 : index
    %c0_9 = arith.constant 0 : index
    %7 = vector.load %arg3[%c0_8, %c0_9] : memref<992x16xf32, #tpu.memory_space<vmem>>, vector<992x16xf32>
    %c0_10 = arith.constant 0 : index
    %c0_11 = arith.constant 0 : index
    %8 = vector.load %arg6[%c0_10, %c0_11] : memref<16x32xf32, #tpu.memory_space<vmem>>, vector<16x32xf32>
    %cst_12 = arith.constant dense<0.000000e+00> : vector<992x32xf32>
    %9 = tpu.matmul %7, %8, %cst_12 {dimension_numbers = #tpu.dot_dimension_numbers<[1], [0], [0], [1], [0, 0, 1, 1], [], []>} : vector<992x16xf32>, vector<16x32xf32>, vector<992x32xf32> -> vector<992x32xf32>
    %10 = arith.addf %6, %9 : vector<992x32xf32>
    %c0_13 = arith.constant 0 : index
    %c0_14 = arith.constant 0 : index
    %11 = vector.load %arg7[%c0_13, %c0_14] : memref<1x32xf32, #tpu.memory_space<vmem>>, vector<1x32xf32>
    %12 = vector.broadcast %11 : vector<1x32xf32> to vector<992x32xf32>
    %13 = arith.addf %10, %12 : vector<992x32xf32>
    %cst_15 = arith.constant 0.000000e+00 : f32
    %14 = vector.broadcast %cst_15 : f32 to vector<992x32xf32>
    %15 = arith.cmpf oge, %13, %14 : vector<992x32xf32>
    %cst_16 = arith.constant 1.000000e-01 : f32
    %16 = vector.broadcast %cst_16 : f32 to vector<992x32xf32>
    %17 = arith.mulf %16, %13 : vector<992x32xf32>
    %18 = arith.select %15, %13, %17 : vector<992x32xi1>, vector<992x32xf32>
    %c1_i32 = arith.constant 1 : i32
    %19 = arith.cmpi eq, %arg0, %c1_i32 : i32
    %true = arith.constant true
    %20 = arith.xori %19, %true : i1
    %21 = arith.extui %20 : i1 to i32
    %c0_i32 = arith.constant 0 : i32
    %22 = arith.cmpi ne, %21, %c0_i32 : i32
    scf.if %22 {
      %c0_18 = arith.constant 0 : index
      %c0_19 = arith.constant 0 : index
      %25 = vector.load %arg8[%c0_18, %c0_19] : memref<992x32xf32, #tpu.memory_space<vmem>>, vector<992x32xf32>
      tpu.vector_store %arg8[%c0_18, %c0_19], %18 {strides = array<i32>} : memref<992x32xf32, #tpu.memory_space<vmem>>, vector<992x32xf32>,
      %cst_20 = arith.constant dense<0.000000e+00> : vector<32xf32>
      %26 = vector.multi_reduction <add>, %18, %cst_20 [0] : vector<992x32xf32> to vector<32xf32>
      %27 = vector.shape_cast %26 : vector<32xf32> to vector<1x32xf32>
      %c0_21 = arith.constant 0 : index
      %c0_22 = arith.constant 0 : index
      %c0_23 = arith.constant 0 : index
      %28 = vector.load %arg9[%c0_21, %c0_22, %c0_23] : memref<1x2x32xf32, #tpu.memory_space<vmem>>, vector<1x1x32xf32>
      %29 = vector.shape_cast %28 : vector<1x1x32xf32> to vector<1x32xf32>
      %30 = vector.shape_cast %27 : vector<1x32xf32> to vector<1x1x32xf32>
      tpu.vector_store %arg9[%c0_21, %c0_22, %c0_23], %30 {strides = array<i32>} : memref<1x2x32xf32, #tpu.memory_space<vmem>>, vector<1x1x32xf32>,
      %31 = arith.mulf %18, %18 : vector<992x32xf32>
      %cst_24 = arith.constant dense<0.000000e+00> : vector<32xf32>
      %32 = vector.multi_reduction <add>, %31, %cst_24 [0] : vector<992x32xf32> to vector<32xf32>
      %33 = vector.shape_cast %32 : vector<32xf32> to vector<1x32xf32>
      %c0_25 = arith.constant 0 : index
      %c1 = arith.constant 1 : index
      %c0_26 = arith.constant 0 : index
      %34 = vector.load %arg9[%c0_25, %c1, %c0_26] : memref<1x2x32xf32, #tpu.memory_space<vmem>>, vector<1x1x32xf32>
      %35 = vector.shape_cast %34 : vector<1x1x32xf32> to vector<1x32xf32>
      %36 = vector.shape_cast %33 : vector<1x32xf32> to vector<1x1x32xf32>
      tpu.vector_store %arg9[%c0_25, %c1, %c0_26], %36 {strides = array<i32>} : memref<1x2x32xf32, #tpu.memory_space<vmem>>, vector<1x1x32xf32>,
    } else {
    }
    %23 = arith.extui %19 : i1 to i32
    %c0_i32_17 = arith.constant 0 : i32
    %24 = arith.cmpi ne, %23, %c0_i32_17 : i32
    scf.if %24 {
      %c992_i32 = arith.constant 992 : i32
      %25 = arith.muli %arg0, %c992_i32 : i32
      %26 = tpu.iota {dimensions = array<i32: 0>} : vector<992x32xi32>
      %27 = vector.broadcast %25 : i32 to vector<992x32xi32>
      %28 = arith.addi %27, %26 : vector<992x32xi32>
      %c1000_i32 = arith.constant 1000 : i32
      %29 = vector.broadcast %c1000_i32 : i32 to vector<992x32xi32>
      %30 = arith.cmpi slt, %28, %29 : vector<992x32xi32>
      %cst_18 = arith.constant 0.000000e+00 : f32
      %31 = vector.broadcast %cst_18 : f32 to vector<992x32xf32>
      %32 = arith.select %30, %18, %31 : vector<992x32xi1>, vector<992x32xf32>
      %c0_19 = arith.constant 0 : index
      %c0_20 = arith.constant 0 : index
      %33 = vector.load %arg8[%c0_19, %c0_20] : memref<992x32xf32, #tpu.memory_space<vmem>>, vector<992x32xf32>
      tpu.vector_store %arg8[%c0_19, %c0_20], %32 {strides = array<i32>} : memref<992x32xf32, #tpu.memory_space<vmem>>, vector<992x32xf32>,
      %cst_21 = arith.constant dense<0.000000e+00> : vector<32xf32>
      %34 = vector.multi_reduction <add>, %32, %cst_21 [0] : vector<992x32xf32> to vector<32xf32>
      %35 = vector.shape_cast %34 : vector<32xf32> to vector<1x32xf32>
      %c0_22 = arith.constant 0 : index
      %c0_23 = arith.constant 0 : index
      %c0_24 = arith.constant 0 : index
      %36 = vector.load %arg9[%c0_22, %c0_23, %c0_24] : memref<1x2x32xf32, #tpu.memory_space<vmem>>, vector<1x1x32xf32>
      %37 = vector.shape_cast %36 : vector<1x1x32xf32> to vector<1x32xf32>
      %38 = vector.shape_cast %35 : vector<1x32xf32> to vector<1x1x32xf32>
      tpu.vector_store %arg9[%c0_22, %c0_23, %c0_24], %38 {strides = array<i32>} : memref<1x2x32xf32, #tpu.memory_space<vmem>>, vector<1x1x32xf32>,
      %39 = arith.mulf %32, %32 : vector<992x32xf32>
      %cst_25 = arith.constant dense<0.000000e+00> : vector<32xf32>
      %40 = vector.multi_reduction <add>, %39, %cst_25 [0] : vector<992x32xf32> to vector<32xf32>
      %41 = vector.shape_cast %40 : vector<32xf32> to vector<1x32xf32>
      %c0_26 = arith.constant 0 : index
      %c1 = arith.constant 1 : index
      %c0_27 = arith.constant 0 : index
      %42 = vector.load %arg9[%c0_26, %c1, %c0_27] : memref<1x2x32xf32, #tpu.memory_space<vmem>>, vector<1x1x32xf32>
      %43 = vector.shape_cast %42 : vector<1x1x32xf32> to vector<1x32xf32>
      %44 = vector.shape_cast %41 : vector<1x32xf32> to vector<1x1x32xf32>
      tpu.vector_store %arg9[%c0_26, %c1, %c0_27], %44 {strides = array<i32>} : memref<1x2x32xf32, #tpu.memory_space<vmem>>, vector<1x1x32xf32>,
    } else {
    }
    return
  }
  func.func @transform_0(%arg0: i32) -> (i32, i32) {
    %c0_i32 = arith.constant 0 : i32
    %c0_i32_0 = arith.constant 0 : i32
    return %arg0, %c0_i32 : i32, i32
  }
  func.func @transform_1(%arg0: i32) -> (i32, i32) {
    %c0_i32 = arith.constant 0 : i32
    %c0_i32_0 = arith.constant 0 : i32
    return %arg0, %c0_i32 : i32, i32
  }
  func.func @transform_2(%arg0: i32) -> (i32, i32) {
    %c0_i32 = arith.constant 0 : i32
    %c0_i32_0 = arith.constant 0 : i32
    return %arg0, %c0_i32 : i32, i32
  }
  func.func @transform_3(%arg0: i32) -> (i32, i32) {
    %c0_i32 = arith.constant 0 : i32
    %c0_i32_0 = arith.constant 0 : i32
    %c0_i32_1 = arith.constant 0 : i32
    return %c0_i32, %c0_i32_0 : i32, i32
  }
  func.func @transform_4(%arg0: i32) -> (i32, i32) {
    %c0_i32 = arith.constant 0 : i32
    %c0_i32_0 = arith.constant 0 : i32
    %c0_i32_1 = arith.constant 0 : i32
    return %c0_i32, %c0_i32_0 : i32, i32
  }
  func.func @transform_5(%arg0: i32) -> (i32, i32) {
    %c0_i32 = arith.constant 0 : i32
    %c0_i32_0 = arith.constant 0 : i32
    %c0_i32_1 = arith.constant 0 : i32
    return %c0_i32, %c0_i32_0 : i32, i32
  }
  func.func @transform_6(%arg0: i32) -> (i32, i32) {
    %c0_i32 = arith.constant 0 : i32
    %c0_i32_0 = arith.constant 0 : i32
    %c0_i32_1 = arith.constant 0 : i32
    return %c0_i32, %c0_i32_0 : i32, i32
  }
  func.func @transform_7(%arg0: i32) -> (i32, i32) {
    %c0_i32 = arith.constant 0 : i32
    %c0_i32_0 = arith.constant 0 : i32
    return %arg0, %c0_i32 : i32, i32
  }
  func.func @transform_8(%arg0: i32) -> (i32, i32, i32) {
    %c0_i32 = arith.constant 0 : i32
    %c0_i32_0 = arith.constant 0 : i32
    %c0_i32_1 = arith.constant 0 : i32
    return %arg0, %c0_i32, %c0_i32_0 : i32, i32, i32
  }
}

module attributes {stable_mosaic.version = 11 : i64} {
  func.func @_last_layer_kernel(%arg0: i32, %arg1: memref<248x128xf32, #tpu.memory_space<vmem>>, %arg2: memref<128x128xf32, #tpu.memory_space<vmem>>, %arg3: memref<1x128xf32, #tpu.memory_space<vmem>>, %arg4: memref<248x128xf32, #tpu.memory_space<vmem>>) attributes {dimension_semantics = [#tpu.dimension_semantics<parallel>], iteration_bounds = array<i64: 2>, scalar_prefetch = 0 : i64, scratch_operands = 0 : i64, tpu.core_type = #tpu.core_type<tc>, window_params = [{transform_indices = @transform_0, window_bounds = array<i64: 248, 128>}, {pipeline_mode = #tpu.pipeline_mode<synchronous>, transform_indices = @transform_1, window_bounds = array<i64: 128, 128>}, {pipeline_mode = #tpu.pipeline_mode<synchronous>, transform_indices = @transform_2, window_bounds = array<i64: 1, 128>}, {transform_indices = @transform_3, window_bounds = array<i64: 248, 128>}]} {
    %c0 = arith.constant 0 : index
    %c0_0 = arith.constant 0 : index
    %0 = vector.load %arg1[%c0, %c0_0] : memref<248x128xf32, #tpu.memory_space<vmem>>, vector<248x128xf32>
    %c0_1 = arith.constant 0 : index
    %c0_2 = arith.constant 0 : index
    %1 = vector.load %arg2[%c0_1, %c0_2] : memref<128x128xf32, #tpu.memory_space<vmem>>, vector<128x128xf32>
    %cst = arith.constant dense<0.000000e+00> : vector<248x128xf32>
    %2 = tpu.matmul %0, %1, %cst {dimension_numbers = #tpu.dot_dimension_numbers<[1], [0], [0], [1], [0, 0, 1, 1], [], []>} : vector<248x128xf32>, vector<128x128xf32>, vector<248x128xf32> -> vector<248x128xf32>
    %c0_3 = arith.constant 0 : index
    %c0_4 = arith.constant 0 : index
    %3 = vector.load %arg3[%c0_3, %c0_4] : memref<1x128xf32, #tpu.memory_space<vmem>>, vector<1x128xf32>
    %4 = vector.broadcast %3 : vector<1x128xf32> to vector<248x128xf32>
    %5 = arith.addf %2, %4 : vector<248x128xf32>
    %c0_5 = arith.constant 0 : index
    %c0_6 = arith.constant 0 : index
    %6 = vector.load %arg4[%c0_5, %c0_6] : memref<248x128xf32, #tpu.memory_space<vmem>>, vector<248x128xf32>
    tpu.vector_store %arg4[%c0_5, %c0_6], %5 {strides = array<i32>} : memref<248x128xf32, #tpu.memory_space<vmem>>, vector<248x128xf32>,
    return
  }
  func.func @transform_0(%arg0: i32) -> (i32, i32) {
    %c0_i32 = arith.constant 0 : i32
    %c0_i32_0 = arith.constant 0 : i32
    return %arg0, %c0_i32 : i32, i32
  }
  func.func @transform_1(%arg0: i32) -> (i32, i32) {
    %c0_i32 = arith.constant 0 : i32
    %c0_i32_0 = arith.constant 0 : i32
    %c0_i32_1 = arith.constant 0 : i32
    return %c0_i32, %c0_i32_0 : i32, i32
  }
  func.func @transform_2(%arg0: i32) -> (i32, i32) {
    %c0_i32 = arith.constant 0 : i32
    %c0_i32_0 = arith.constant 0 : i32
    %c0_i32_1 = arith.constant 0 : i32
    return %c0_i32, %c0_i32_0 : i32, i32
  }
  func.func @transform_3(%arg0: i32) -> (i32, i32) {
    %c0_i32 = arith.constant 0 : i32
    %c0_i32_0 = arith.constant 0 : i32
    return %arg0, %c0_i32 : i32, i32
  }
}

</mosaic_0001>

<llo_original>
// kernel: edge_layer_forward.4
$region0: #{edge_layer_forward.4}
  #allocation0 [shape = 'u32[]', space=smem, size = 0x4, offset = 0x4, fixed_abs, tag = 'smem constant byte address 0x4 - core index']
  #allocation1 [shape = 'u32[144,128]{1,0:T(1,128)}', space=vmem, size = 0x12000, scoped, tag = 'internal scratch']
  %s0 = inlined_call_operand.vmem [shape: f32[496,128], index: 0, kind: input, shape index: {}]
  %s1 = inlined_call_operand.vmem [shape: f32[128,128], index: 1, kind: input, shape index: {}]
  %s2 = inlined_call_operand.vmem [shape: f32[1,128], index: 2, kind: input, shape index: {}]
  %s3 = inlined_call_operand.vmem [shape: f32[496,128], index: 3, kind: output, shape index: {0}]
  %s4 = inlined_call_operand.vmem [shape: f32[2,2,128], index: 4, kind: output, shape index: {1}]
  %5 = xla_tuple %s3, %s4
  %s6 = sld [smem:[#allocation0]]
  $region53: #{edge_layer_forward.4} parent=0
    _
  %s8 = ssub.s32 1, %s6
  %s9 = scalar_select 0, %s8, %s6
  loop: start=0, step=1, limit=4
  $region2: #{edge_layer_forward.4} parent=0 // loop_pre_header
    _
  $region3: #{edge_layer_forward.4} parent=0 // loop_header
    %s11 = sphi 0, %s15
    %p12 = scmp.ge.s32.totalorder %s11, 4
    %s21 = sphi 0, %s23
    %s24 = sphi 0, %s21
    %s25 = sphi 0, %s24
    %s41 = sphi 0, %s25
    %s45 = sphi 0, %s45
    %s47 = sphi 0, %s45
    %s48 = sphi 0, %s47
    %s62 = sphi 0, %s48
    %s66 = sphi 0, %s66
    %s68 = sphi 0, %s66
    %s69 = sphi 0, %s68
    %s83 = sphi 0, %s69
    %s89 = sphi 0, %s91
    %s92 = sphi 0, %s89
    %s93 = sphi 0, %s92
    %s109 = sphi 0, %s93
    %s115 = sphi 0, %s117
    %s118 = sphi 0, %s115
    %s119 = sphi 0, %s118
    %s135 = sphi 0, %s119
  $region4: #{edge_layer_forward.4} parent=0 // loop_header_branch
    %14 = sbr.rel (%p12) target = $region8
  $region5: #{edge_layer_forward.4} parent=0 // loop_body
    %s16 = ssub.s32 %s11, 1
    %s17 = ssub.s32 %s11, 2
    %s18 = sadd.s32 %s11, 1
    %s19 = ssub.s32 %s11, %s18
    %p20 = scmp.eq.s32.totalorder %s19, 0
    %s22 = sadd.s32 %s21, 1
    %s23 = scalar_select %p20, %s21, %s22
    %p26 = pneg %p20
    %p27 = scmp.eq.s32.totalorder %s11, 1
    %p28 = por %p26, %p27
    %p29 = scmp.ne.s32.totalorder %s21, %s24
    %p30 = scmp.eq.s32.totalorder %s11, 0
    %p31 = por %p29, %p30
    %p32 = scmp.ne.s32.totalorder %s21, %s24
    %p33 = scmp.eq.s32.totalorder %s16, 1
    %p34 = por %p32, %p33
    %p35 = scmp.ne.s32.totalorder %s24, %s25
    %p36 = scmp.eq.s32.totalorder %s16, 0
    %p37 = por %p35, %p36
    %p38 = scmp.ne.s32.totalorder %s24, %s25
    %p39 = scmp.eq.s32.totalorder %s17, 1
    %p40 = por %p38, %p39
    %p42 = scmp.ne.s32.totalorder %s25, %s41
    %p43 = scmp.eq.s32.totalorder %s17, 0
    %p44 = por %p42, %p43
    %s46 = sadd.s32 %s45, 1
    %p49 = scmp.eq.s32.totalorder %s11, 1
    %p50 = scmp.ne.s32.totalorder %s45, %s47
    %p51 = scmp.eq.s32.totalorder %s11, 0
    %p52 = por %p50, %p51
    %p53 = scmp.ne.s32.totalorder %s45, %s47
    %p54 = scmp.eq.s32.totalorder %s16, 1
    %p55 = por %p53, %p54
    %p56 = scmp.ne.s32.totalorder %s47, %s48
    %p57 = scmp.eq.s32.totalorder %s16, 0
    %p58 = por %p56, %p57
    %p59 = scmp.ne.s32.totalorder %s47, %s48
    %p60 = scmp.eq.s32.totalorder %s17, 1
    %p61 = por %p59, %p60
    %p63 = scmp.ne.s32.totalorder %s48, %s62
    %p64 = scmp.eq.s32.totalorder %s17, 0
    %p65 = por %p63, %p64
    %s67 = sadd.s32 %s66, 1
    %p70 = scmp.eq.s32.totalorder %s11, 1
    %p71 = scmp.ne.s32.totalorder %s66, %s68
    %p72 = scmp.eq.s32.totalorder %s11, 0
    %p73 = por %p71, %p72
    %p74 = scmp.ne.s32.totalorder %s66, %s68
    %p75 = scmp.eq.s32.totalorder %s16, 1
    %p76 = por %p74, %p75
    %p77 = scmp.ne.s32.totalorder %s68, %s69
    %p78 = scmp.eq.s32.totalorder %s16, 0
    %p79 = por %p77, %p78
    %p80 = scmp.ne.s32.totalorder %s68, %s69
    %p81 = scmp.eq.s32.totalorder %s17, 1
    %p82 = por %p80, %p81
    %p84 = scmp.ne.s32.totalorder %s69, %s83
    %p85 = scmp.eq.s32.totalorder %s17, 0
    %p86 = por %p84, %p85
    %s87 = ssub.s32 %s11, %s18
    %p88 = scmp.eq.s32.totalorder %s87, 0
    %s90 = sadd.s32 %s89, 1
    %s91 = scalar_select %p88, %s89, %s90
    %p94 = pneg %p88
    %p95 = scmp.eq.s32.totalorder %s11, 1
    %p96 = por %p94, %p95
    %p97 = scmp.ne.s32.totalorder %s89, %s92
    %p98 = scmp.eq.s32.totalorder %s11, 0
    %p99 = por %p97, %p98
    %p100 = scmp.ne.s32.totalorder %s89, %s92
    %p101 = scmp.eq.s32.totalorder %s16, 1
    %p102 = por %p100, %p101
    %p103 = scmp.ne.s32.totalorder %s92, %s93
    %p104 = scmp.eq.s32.totalorder %s16, 0
    %p105 = por %p103, %p104
    %p106 = scmp.ne.s32.totalorder %s92, %s93
    %p107 = scmp.eq.s32.totalorder %s17, 1
    %p108 = por %p106, %p107
    %p110 = scmp.ne.s32.totalorder %s93, %s109
    %p111 = scmp.eq.s32.totalorder %s17, 0
    %p112 = por %p110, %p111
    %s113 = ssub.s32 %s11, %s18
    %p114 = scmp.eq.s32.totalorder %s113, 0
    %s116 = sadd.s32 %s115, 1
    %s117 = scalar_select %p114, %s115, %s116
    %p120 = pneg %p114
    %p121 = scmp.eq.s32.totalorder %s11, 1
    %p122 = por %p120, %p121
    %p123 = scmp.ne.s32.totalorder %s115, %s118
    %p124 = scmp.eq.s32.totalorder %s11, 0
    %p125 = por %p123, %p124
    %p126 = scmp.ne.s32.totalorder %s115, %s118
    %p127 = scmp.eq.s32.totalorder %s16, 1
    %p128 = por %p126, %p127
    %p129 = scmp.ne.s32.totalorder %s118, %s119
    %p130 = scmp.eq.s32.totalorder %s16, 0
    %p131 = por %p129, %p130
    %p132 = scmp.ne.s32.totalorder %s118, %s119
    %p133 = scmp.eq.s32.totalorder %s17, 1
    %p134 = por %p132, %p133
    %p136 = scmp.ne.s32.totalorder %s119, %s135
    %p137 = scmp.eq.s32.totalorder %s17, 0
    %p138 = por %p136, %p137
    %p139 = scmp.le.s32.totalorder 1, %s11
    %p140 = scmp.lt.s32.totalorder %s11, 3
    %p141 = pnand %p139, %p140
    %p142 = pneg %p141
    // Predicated region
    $region9: #{edge_layer_forward.4} parent=5 // pred_check
      _
    $region10: #{edge_layer_forward.4} parent=5 // pred_check_branch
      %144 = sbr.rel (%p141) target = $region12
    $region11: #{edge_layer_forward.4} parent=5 // pred_region
      %s145 = ssub.s32 %s11, 1
      // Predicated region
      $region13: #{edge_layer_forward.4} parent=11 // pred_check
        %p146 = pneg %p58
      $region14: #{edge_layer_forward.4} parent=11 // pred_check_branch
        %148 = sbr.rel (%p146) target = $region16
      $region15: #{edge_layer_forward.4} parent=11 // pred_region
        _
      $region16: #{edge_layer_forward.4} parent=11 // pred_fallthru
        _
      // Predicated region
      $region17: #{edge_layer_forward.4} parent=11 // pred_check
        %p149 = pneg %p79
      $region18: #{edge_layer_forward.4} parent=11 // pred_check_branch
        %151 = sbr.rel (%p149) target = $region20
      $region19: #{edge_layer_forward.4} parent=11 // pred_region
        _
      $region20: #{edge_layer_forward.4} parent=11 // pred_fallthru
        _
    $region12: #{edge_layer_forward.4} parent=5 // pred_fallthru
      _
    %p152 = scmp.lt.s32.totalorder %s11, 2
    // Predicated region
    $region21: #{edge_layer_forward.4} parent=5 // pred_check
      %p153 = pneg %p152
    $region22: #{edge_layer_forward.4} parent=5 // pred_check_branch
      %155 = sbr.rel (%p153) target = $region24
    $region23: #{edge_layer_forward.4} parent=5 // pred_region
      // Predicated region
      $region25: #{edge_layer_forward.4} parent=23 // pred_check
        %p156 = pneg %p31
      $region26: #{edge_layer_forward.4} parent=23 // pred_check_branch
        %158 = sbr.rel (%p156) target = $region28
      $region27: #{edge_layer_forward.4} parent=23 // pred_region
        %s159 = smul.u32 31, %s11
        %p160 = scmp.lt.s32.totalorder %s159, 61
        %s161 = scalar_select %p160, %s159, 61
        %s162 = smul.addr %s161, 8
        %s163 = scalar_lea.vmem %s0, %s162
        %s164 = smul.u32 31, %s11
      $region28: #{edge_layer_forward.4} parent=23 // pred_fallthru
        _
    $region24: #{edge_layer_forward.4} parent=5 // pred_fallthru
      _
    %p165 = scmp.le.s32.totalorder 1, %s11
    %p166 = scmp.lt.s32.totalorder %s11, 3
    %p167 = pnand %p165, %p166
    %p168 = pneg %p167
    // Predicated region
    $region29: #{edge_layer_forward.4} parent=5 // pred_check
      _
    $region30: #{edge_layer_forward.4} parent=5 // pred_check_branch
      %170 = sbr.rel (%p167) target = $region32
    $region31: #{edge_layer_forward.4} parent=5 // pred_region
      %s171 = ssub.s32 %s11, 1
      %s172 = smul.u32 31, %s16
      %p173 = scmp.lt.s32.totalorder %s172, 61
      %s174 = scalar_select %p173, %s172, 61
      %s175 = smul.addr %s174, 8
      %s176 = scalar_lea.vmem %s0, %s175
      %p177 = pneg %p37
      %p178 = pneg %p34
      %p179 = pneg %p58
      %p180 = pneg %p55
      %p181 = pneg %p79
      %p182 = pneg %p76
      %p183 = pneg %p105
      %p184 = pneg %p102
      %s185 = smul.u32 31, %s16
      %p186 = scmp.lt.s32.totalorder %s185, 61
      %s187 = scalar_select %p186, %s185, 61
      %s188 = smul.addr %s187, 8
      %s189 = scalar_lea.vmem %s3, %s188
      %p190 = pneg %p131
      %p191 = pneg %p128
      %p192 = scmp.lt.s32.totalorder %s16, 1
      %s193 = scalar_select %p192, %s16, 1
      %s194 = smul.addr %s193, 2
      %s195 = scalar_lea.vmem %s4, %s194
      %s196 = smul.u32 31, %s16
      %p197 = scmp.lt.s32.totalorder %s196, 61
      %s198 = scalar_select %p197, %s196, 61
      %s199 = smul.addr %s198, 8
      %s200 = scalar_lea.vmem %s0, %s199
      %s201 = smul.u32 31, %s16
      %s202 = smul.u32 31, %s16
      %p203 = scmp.lt.s32.totalorder %s202, 61
      %s204 = scalar_select %p203, %s202, 61
      %s205 = smul.addr %s204, 8
      %s206 = scalar_lea.vmem %s3, %s205
      %s207 = smul.u32 31, %s16
      %p208 = scmp.lt.s32.totalorder %s16, 1
      %s209 = scalar_select %p208, %s16, 1
      %s210 = smul.addr %s209, 2
      %s211 = scalar_lea.vmem %s4, %s210
      %v212 = vld [vmem:[%s200] sm:$0xff]
      %v213 = vld [vmem:[%s200 + $0x8] sm:$0xff]
      %v214 = vld [vmem:[%s200 + $0x10] sm:$0xff]
      %v215 = vld [vmem:[%s200 + $0x18] sm:$0xff]
      %v216 = vld [vmem:[%s200 + $0x20] sm:$0xff]
      %v217 = vld [vmem:[%s200 + $0x28] sm:$0xff]
      %v218 = vld [vmem:[%s200 + $0x30] sm:$0xff]
      %v219 = vld [vmem:[%s200 + $0x38] sm:$0xff]
      %v220 = vld [vmem:[%s200 + $0x40] sm:$0xff]
      %v221 = vld [vmem:[%s200 + $0x48] sm:$0xff]
      %v222 = vld [vmem:[%s200 + $0x50] sm:$0xff]
      %v223 = vld [vmem:[%s200 + $0x58] sm:$0xff]
      %v224 = vld [vmem:[%s200 + $0x60] sm:$0xff]
      %v225 = vld [vmem:[%s200 + $0x68] sm:$0xff]
      %v226 = vld [vmem:[%s200 + $0x70] sm:$0xff]
      %v227 = vld [vmem:[%s200 + $0x78] sm:$0xff]
      %v228 = vld [vmem:[%s200 + $0x80] sm:$0xff]
      %v229 = vld [vmem:[%s200 + $0x88] sm:$0xff]
      %v230 = vld [vmem:[%s200 + $0x90] sm:$0xff]
      %v231 = vld [vmem:[%s200 + $0x98] sm:$0xff]
      %v232 = vld [vmem:[%s200 + $0xa0] sm:$0xff]
      %v233 = vld [vmem:[%s200 + $0xa8] sm:$0xff]
      %v234 = vld [vmem:[%s200 + $0xb0] sm:$0xff]
      %v235 = vld [vmem:[%s200 + $0xb8] sm:$0xff]
      %v236 = vld [vmem:[%s200 + $0xc0] sm:$0xff]
      %v237 = vld [vmem:[%s200 + $0xc8] sm:$0xff]
      %v238 = vld [vmem:[%s200 + $0xd0] sm:$0xff]
      %v239 = vld [vmem:[%s200 + $0xd8] sm:$0xff]
      %v240 = vld [vmem:[%s200 + $0xe0] sm:$0xff]
      %v241 = vld [vmem:[%s200 + $0xe8] sm:$0xff]
      %v242 = vld [vmem:[%s200 + $0xf0] sm:$0xff]
      %v243 = vld [vmem:[%s1] sm:$0xff]
      %v244 = vld [vmem:[%s1 + $0x8] sm:$0xff]
      %v245 = vld [vmem:[%s1 + $0x10] sm:$0xff]
      %v246 = vld [vmem:[%s1 + $0x18] sm:$0xff]
      %v247 = vld [vmem:[%s1 + $0x20] sm:$0xff]
      %v248 = vld [vmem:[%s1 + $0x28] sm:$0xff]
      %v249 = vld [vmem:[%s1 + $0x30] sm:$0xff]
      %v250 = vld [vmem:[%s1 + $0x38] sm:$0xff]
      %v251 = vld [vmem:[%s1 + $0x40] sm:$0xff]
      %v252 = vld [vmem:[%s1 + $0x48] sm:$0xff]
      %v253 = vld [vmem:[%s1 + $0x50] sm:$0xff]
      %v254 = vld [vmem:[%s1 + $0x58] sm:$0xff]
      %v255 = vld [vmem:[%s1 + $0x60] sm:$0xff]
      %v256 = vld [vmem:[%s1 + $0x68] sm:$0xff]
      %v257 = vld [vmem:[%s1 + $0x70] sm:$0xff]
      %v258 = vld [vmem:[%s1 + $0x78] sm:$0xff]
      %v259 = vld [vmem:[%s2] sm:$0x1]
      %v261 = vlaneseq
      %v262 = vshrl.u32 %v261, 7
      %v263 = vsub.s32 0, %v262
      %v264 = vrot.slane %v259, %v263
      %266 = vmatprep.subr.mxu0 0.0
      %267 = vmatpush1.msra.mxu0 %v258
      %268 = vmatprep.subr.mxu0 0.0
      %269 = vmatpush1.msra.mxu0 %v257
      %270 = vmatprep.subr.mxu0 0.0
      %271 = vmatpush1.msra.mxu0 %v256
      %272 = vmatprep.subr.mxu0 0.0
      %273 = vmatpush1.msra.mxu0 %v255
      %274 = vmatprep.subr.mxu0 0.0
      %275 = vmatpush1.msra.mxu0 %v254
      %276 = vmatprep.subr.mxu0 0.0
      %277 = vmatpush1.msra.mxu0 %v253
      %278 = vmatprep.subr.mxu0 0.0
      %279 = vmatpush1.msra.mxu0 %v252
      %280 = vmatprep.subr.mxu0 0.0
      %281 = vmatpush1.msra.mxu0 %v251
      %282 = vmatprep.subr.mxu0 0.0
      %283 = vmatpush1.msra.mxu0 %v250
      %284 = vmatprep.subr.mxu0 0.0
      %285 = vmatpush1.msra.mxu0 %v249
      %286 = vmatprep.subr.mxu0 0.0
      %287 = vmatpush1.msra.mxu0 %v248
      %288 = vmatprep.subr.mxu0 0.0
      %289 = vmatpush1.msra.mxu0 %v247
      %290 = vmatprep.subr.mxu0 0.0
      %291 = vmatpush1.msra.mxu0 %v246
      %292 = vmatprep.subr.mxu0 0.0
      %293 = vmatpush1.msra.mxu0 %v245
      %294 = vmatprep.subr.mxu0 0.0
      %295 = vmatpush1.msra.mxu0 %v244
      %296 = vmatprep.subr.mxu0 0.0
      %297 = vmatpush1.msra.mxu0 %v243
      %298 = vmatprep.subr.mxu0 0.0
      %299 = vmatpush2.msra.mxu0 0.0
      %300 = vmatprep.subr.mxu0 0.0
      %301 = vmatpush2.msra.mxu0 0.0
      %302 = vmatprep.subr.mxu0 0.0
      %303 = vmatpush2.msra.mxu0 0.0
      %304 = vmatprep.subr.mxu0 0.0
      %305 = vmatpush2.msra.mxu0 0.0
      %306 = vmatprep.subr.mxu0 0.0
      %307 = vmatpush2.msra.mxu0 0.0
      %308 = vmatprep.subr.mxu0 0.0
      %309 = vmatpush2.msra.mxu0 0.0
      %310 = vmatprep.subr.mxu0 0.0
      %311 = vmatpush2.msra.mxu0 0.0
      %312 = vmatprep.subr.mxu0 0.0
      %313 = vmatpush2.msra.mxu0 0.0
      %314 = vmatprep.subr.mxu0 0.0
      %315 = vmatpush2.msra.mxu0 0.0
      %316 = vmatprep.subr.mxu0 0.0
      %317 = vmatpush2.msra.mxu0 0.0
      %318 = vmatprep.subr.mxu0 0.0
      %319 = vmatpush2.msra.mxu0 0.0
      %320 = vmatprep.subr.mxu0 0.0
      %321 = vmatpush2.msra.mxu0 0.0
      %322 = vmatprep.subr.mxu0 0.0
      %323 = vmatpush2.msra.mxu0 0.0
      %324 = vmatprep.subr.mxu0 0.0
      %325 = vmatpush2.msra.mxu0 0.0
      %326 = vmatprep.subr.mxu0 0.0
      %327 = vmatpush2.msra.mxu0 0.0
      %328 = vmatprep.subr.mxu0 0.0
      %329 = vmatpush2.msra.mxu0 0.0
      %330 = vmatprep.mubr.f32.mxu0 0.0
      %331 = vmatmul.mubr.f32.gmra.mxu0 %v212
      %v332 = vpop.f32.mrf.mxu0
      %v333 = vadd.f32 %v264, %v332
      %v334 = vpop.f32.mrf.mxu0
      %335 = vmatprep.mubr.f32.mxu0 0.0
      %336 = vmatmul.mubr.f32.gmra.mxu0 %v213
      %v337 = vpop.f32.mrf.mxu0
      %v338 = vadd.f32 %v264, %v337
      %v339 = vpop.f32.mrf.mxu0
      %340 = vmatprep.mubr.f32.mxu0 0.0
      %341 = vmatmul.mubr.f32.gmra.mxu0 %v214
      %v342 = vpop.f32.mrf.mxu0
      %v343 = vadd.f32 %v264, %v342
      %v344 = vpop.f32.mrf.mxu0
      %345 = vmatprep.mubr.f32.mxu0 0.0
      %346 = vmatmul.mubr.f32.gmra.mxu0 %v215
      %v347 = vpop.f32.mrf.mxu0
      %v348 = vadd.f32 %v264, %v347
      %v349 = vpop.f32.mrf.mxu0
      %350 = vmatprep.mubr.f32.mxu0 0.0
      %351 = vmatmul.mubr.f32.gmra.mxu0 %v216
      %v352 = vpop.f32.mrf.mxu0
      %v353 = vadd.f32 %v264, %v352
      %v354 = vpop.f32.mrf.mxu0
      %355 = vmatprep.mubr.f32.mxu0 0.0
      %356 = vmatmul.mubr.f32.gmra.mxu0 %v217
      %v357 = vpop.f32.mrf.mxu0
      %v358 = vadd.f32 %v264, %v357
      %v359 = vpop.f32.mrf.mxu0
      %360 = vmatprep.mubr.f32.mxu0 0.0
      %361 = vmatmul.mubr.f32.gmra.mxu0 %v218
      %v362 = vpop.f32.mrf.mxu0
      %v363 = vadd.f32 %v264, %v362
      %v364 = vpop.f32.mrf.mxu0
      %365 = vmatprep.mubr.f32.mxu0 0.0
      %366 = vmatmul.mubr.f32.gmra.mxu0 %v219
      %v367 = vpop.f32.mrf.mxu0
      %v368 = vadd.f32 %v264, %v367
      %v369 = vpop.f32.mrf.mxu0
      %370 = vmatprep.mubr.f32.mxu0 0.0
      %371 = vmatmul.mubr.f32.gmra.mxu0 %v220
      %v372 = vpop.f32.mrf.mxu0
      %v373 = vadd.f32 %v264, %v372
      %v374 = vpop.f32.mrf.mxu0
      %375 = vmatprep.mubr.f32.mxu0 0.0
      %376 = vmatmul.mubr.f32.gmra.mxu0 %v221
      %v377 = vpop.f32.mrf.mxu0
      %v378 = vadd.f32 %v264, %v377
      %v379 = vpop.f32.mrf.mxu0
      %380 = vmatprep.mubr.f32.mxu0 0.0
      %381 = vmatmul.mubr.f32.gmra.mxu0 %v222
      %v382 = vpop.f32.mrf.mxu0
      %v383 = vadd.f32 %v264, %v382
      %v384 = vpop.f32.mrf.mxu0
      %385 = vmatprep.mubr.f32.mxu0 0.0
      %386 = vmatmul.mubr.f32.gmra.mxu0 %v223
      %v387 = vpop.f32.mrf.mxu0
      %v388 = vadd.f32 %v264, %v387
      %v389 = vpop.f32.mrf.mxu0
      %390 = vmatprep.mubr.f32.mxu0 0.0
      %391 = vmatmul.mubr.f32.gmra.mxu0 %v224
      %v392 = vpop.f32.mrf.mxu0
      %v393 = vadd.f32 %v264, %v392
      %v394 = vpop.f32.mrf.mxu0
      %395 = vmatprep.mubr.f32.mxu0 0.0
      %396 = vmatmul.mubr.f32.gmra.mxu0 %v225
      %v397 = vpop.f32.mrf.mxu0
      %v398 = vadd.f32 %v264, %v397
      %v399 = vpop.f32.mrf.mxu0
      %400 = vmatprep.mubr.f32.mxu0 0.0
      %401 = vmatmul.mubr.f32.gmra.mxu0 %v226
      %v402 = vpop.f32.mrf.mxu0
      %v403 = vadd.f32 %v264, %v402
      %v404 = vpop.f32.mrf.mxu0
      %405 = vmatprep.mubr.f32.mxu0 0.0
      %406 = vmatmul.mubr.f32.gmra.mxu0 %v227
      %v407 = vpop.f32.mrf.mxu0
      %v408 = vadd.f32 %v264, %v407
      %v409 = vpop.f32.mrf.mxu0
      %410 = vmatprep.mubr.f32.mxu0 0.0
      %411 = vmatmul.mubr.f32.gmra.mxu0 %v228
      %v412 = vpop.f32.mrf.mxu0
      %v413 = vadd.f32 %v264, %v412
      %v414 = vpop.f32.mrf.mxu0
      %415 = vmatprep.mubr.f32.mxu0 0.0
      %416 = vmatmul.mubr.f32.gmra.mxu0 %v229
      %v417 = vpop.f32.mrf.mxu0
      %v418 = vadd.f32 %v264, %v417
      %v419 = vpop.f32.mrf.mxu0
      %420 = vmatprep.mubr.f32.mxu0 0.0
      %421 = vmatmul.mubr.f32.gmra.mxu0 %v230
      %v422 = vpop.f32.mrf.mxu0
      %v423 = vadd.f32 %v264, %v422
      %v424 = vpop.f32.mrf.mxu0
      %425 = vmatprep.mubr.f32.mxu0 0.0
      %426 = vmatmul.mubr.f32.gmra.mxu0 %v231
      %v427 = vpop.f32.mrf.mxu0
      %v428 = vadd.f32 %v264, %v427
      %v429 = vpop.f32.mrf.mxu0
      %430 = vmatprep.mubr.f32.mxu0 0.0
      %431 = vmatmul.mubr.f32.gmra.mxu0 %v232
      %v432 = vpop.f32.mrf.mxu0
      %v433 = vadd.f32 %v264, %v432
      %v434 = vpop.f32.mrf.mxu0
      %435 = vmatprep.mubr.f32.mxu0 0.0
      %436 = vmatmul.mubr.f32.gmra.mxu0 %v233
      %v437 = vpop.f32.mrf.mxu0
      %v438 = vadd.f32 %v264, %v437
      %v439 = vpop.f32.mrf.mxu0
      %440 = vmatprep.mubr.f32.mxu0 0.0
      %441 = vmatmul.mubr.f32.gmra.mxu0 %v234
      %v442 = vpop.f32.mrf.mxu0
      %v443 = vadd.f32 %v264, %v442
      %v444 = vpop.f32.mrf.mxu0
      %445 = vmatprep.mubr.f32.mxu0 0.0
      %446 = vmatmul.mubr.f32.gmra.mxu0 %v235
      %v447 = vpop.f32.mrf.mxu0
      %v448 = vadd.f32 %v264, %v447
      %v449 = vpop.f32.mrf.mxu0
      %450 = vmatprep.mubr.f32.mxu0 0.0
      %451 = vmatmul.mubr.f32.gmra.mxu0 %v236
      %v452 = vpop.f32.mrf.mxu0
      %v453 = vadd.f32 %v264, %v452
      %v454 = vpop.f32.mrf.mxu0
      %455 = vmatprep.mubr.f32.mxu0 0.0
      %456 = vmatmul.mubr.f32.gmra.mxu0 %v237
      %v457 = vpop.f32.mrf.mxu0
      %v458 = vadd.f32 %v264, %v457
      %v459 = vpop.f32.mrf.mxu0
      %460 = vmatprep.mubr.f32.mxu0 0.0
      %461 = vmatmul.mubr.f32.gmra.mxu0 %v238
      %v462 = vpop.f32.mrf.mxu0
      %v463 = vadd.f32 %v264, %v462
      %v464 = vpop.f32.mrf.mxu0
      %465 = vmatprep.mubr.f32.mxu0 0.0
      %466 = vmatmul.mubr.f32.gmra.mxu0 %v239
      %v467 = vpop.f32.mrf.mxu0
      %v468 = vadd.f32 %v264, %v467
      %v469 = vpop.f32.mrf.mxu0
      %470 = vmatprep.mubr.f32.mxu0 0.0
      %471 = vmatmul.mubr.f32.gmra.mxu0 %v240
      %v472 = vpop.f32.mrf.mxu0
      %v473 = vadd.f32 %v264, %v472
      %v474 = vpop.f32.mrf.mxu0
      %475 = vmatprep.mubr.f32.mxu0 0.0
      %476 = vmatmul.mubr.f32.gmra.mxu0 %v241
      %v477 = vpop.f32.mrf.mxu0
      %v478 = vadd.f32 %v264, %v477
      %v479 = vpop.f32.mrf.mxu0
      %480 = vmatprep.mubr.f32.mxu0 0.0
      %481 = vmatmul.mubr.f32.gmra.mxu0 %v242
      %v482 = vpop.f32.mrf.mxu0
      %v483 = vadd.f32 %v264, %v482
      %v484 = vpop.f32.mrf.mxu0
      %485 = vdwg.mxu0
      %vm486 = vcmp.ge.f32.partialorder %v333, 0.0
      %vm487 = vcmp.ge.f32.partialorder %v338, 0.0
      %vm488 = vcmp.ge.f32.partialorder %v343, 0.0
      %vm489 = vcmp.ge.f32.partialorder %v348, 0.0
      %vm490 = vcmp.ge.f32.partialorder %v353, 0.0
      %vm491 = vcmp.ge.f32.partialorder %v358, 0.0
      %vm492 = vcmp.ge.f32.partialorder %v363, 0.0
      %vm493 = vcmp.ge.f32.partialorder %v368, 0.0
      %vm494 = vcmp.ge.f32.partialorder %v373, 0.0
      %vm495 = vcmp.ge.f32.partialorder %v378, 0.0
      %vm496 = vcmp.ge.f32.partialorder %v383, 0.0
      %vm497 = vcmp.ge.f32.partialorder %v388, 0.0
      %vm498 = vcmp.ge.f32.partialorder %v393, 0.0
      %vm499 = vcmp.ge.f32.partialorder %v398, 0.0
      %vm500 = vcmp.ge.f32.partialorder %v403, 0.0
      %vm501 = vcmp.ge.f32.partialorder %v408, 0.0
      %vm502 = vcmp.ge.f32.partialorder %v413, 0.0
      %vm503 = vcmp.ge.f32.partialorder %v418, 0.0
      %vm504 = vcmp.ge.f32.partialorder %v423, 0.0
      %vm505 = vcmp.ge.f32.partialorder %v428, 0.0
      %vm506 = vcmp.ge.f32.partialorder %v433, 0.0
      %vm507 = vcmp.ge.f32.partialorder %v438, 0.0
      %vm508 = vcmp.ge.f32.partialorder %v443, 0.0
      %vm509 = vcmp.ge.f32.partialorder %v448, 0.0
      %vm510 = vcmp.ge.f32.partialorder %v453, 0.0
      %vm511 = vcmp.ge.f32.partialorder %v458, 0.0
      %vm512 = vcmp.ge.f32.partialorder %v463, 0.0
      %vm513 = vcmp.ge.f32.partialorder %v468, 0.0
      %vm514 = vcmp.ge.f32.partialorder %v473, 0.0
      %vm515 = vcmp.ge.f32.partialorder %v478, 0.0
      %vm516 = vcmp.ge.f32.partialorder %v483, 0.0
      %v517 = vmul.f32 %v333, 0.1
      %v518 = vmul.f32 %v338, 0.1
      %v519 = vmul.f32 %v343, 0.1
      %v520 = vmul.f32 %v348, 0.1
      %v521 = vmul.f32 %v353, 0.1
      %v522 = vmul.f32 %v358, 0.1
      %v523 = vmul.f32 %v363, 0.1
      %v524 = vmul.f32 %v368, 0.1
      %v525 = vmul.f32 %v373, 0.1
      %v526 = vmul.f32 %v378, 0.1
      %v527 = vmul.f32 %v383, 0.1
      %v528 = vmul.f32 %v388, 0.1
      %v529 = vmul.f32 %v393, 0.1
      %v530 = vmul.f32 %v398, 0.1
      %v531 = vmul.f32 %v403, 0.1
      %v532 = vmul.f32 %v408, 0.1
      %v533 = vmul.f32 %v413, 0.1
      %v534 = vmul.f32 %v418, 0.1
      %v535 = vmul.f32 %v423, 0.1
      %v536 = vmul.f32 %v428, 0.1
      %v537 = vmul.f32 %v433, 0.1
      %v538 = vmul.f32 %v438, 0.1
      %v539 = vmul.f32 %v443, 0.1
      %v540 = vmul.f32 %v448, 0.1
      %v541 = vmul.f32 %v453, 0.1
      %v542 = vmul.f32 %v458, 0.1
      %v543 = vmul.f32 %v463, 0.1
      %v544 = vmul.f32 %v468, 0.1
      %v545 = vmul.f32 %v473, 0.1
      %v546 = vmul.f32 %v478, 0.1
      %v547 = vmul.f32 %v483, 0.1
      %v548 = vsel %vm486, %v333, %v517
      %v549 = vsel %vm487, %v338, %v518
      %v550 = vsel %vm488, %v343, %v519
      %v551 = vsel %vm489, %v348, %v520
      %v552 = vsel %vm490, %v353, %v521
      %v553 = vsel %vm491, %v358, %v522
      %v554 = vsel %vm492, %v363, %v523
      %v555 = vsel %vm493, %v368, %v524
      %v556 = vsel %vm494, %v373, %v525
      %v557 = vsel %vm495, %v378, %v526
      %v558 = vsel %vm496, %v383, %v527
      %v559 = vsel %vm497, %v388, %v528
      %v560 = vsel %vm498, %v393, %v529
      %v561 = vsel %vm499, %v398, %v530
      %v562 = vsel %vm500, %v403, %v531
      %v563 = vsel %vm501, %v408, %v532
      %v564 = vsel %vm502, %v413, %v533
      %v565 = vsel %vm503, %v418, %v534
      %v566 = vsel %vm504, %v423, %v535
      %v567 = vsel %vm505, %v428, %v536
      %v568 = vsel %vm506, %v433, %v537
      %v569 = vsel %vm507, %v438, %v538
      %v570 = vsel %vm508, %v443, %v539
      %v571 = vsel %vm509, %v448, %v540
      %v572 = vsel %vm510, %v453, %v541
      %v573 = vsel %vm511, %v458, %v542
      %v574 = vsel %vm512, %v463, %v543
      %v575 = vsel %vm513, %v468, %v544
      %v576 = vsel %vm514, %v473, %v545
      %v577 = vsel %vm515, %v478, %v546
      %v578 = vsel %vm516, %v483, %v547
      %579 = vst [vmem:[%s206] sm:$0xff] %v548
      %580 = vst [vmem:[%s206 + $0x8] sm:$0xff] %v549
      %581 = vst [vmem:[%s206 + $0x10] sm:$0xff] %v550
      %582 = vst [vmem:[%s206 + $0x18] sm:$0xff] %v551
      %583 = vst [vmem:[%s206 + $0x20] sm:$0xff] %v552
      %584 = vst [vmem:[%s206 + $0x28] sm:$0xff] %v553
      %585 = vst [vmem:[%s206 + $0x30] sm:$0xff] %v554
      %586 = vst [vmem:[%s206 + $0x38] sm:$0xff] %v555
      %587 = vst [vmem:[%s206 + $0x40] sm:$0xff] %v556
      %588 = vst [vmem:[%s206 + $0x48] sm:$0xff] %v557
      %589 = vst [vmem:[%s206 + $0x50] sm:$0xff] %v558
      %590 = vst [vmem:[%s206 + $0x58] sm:$0xff] %v559
      %591 = vst [vmem:[%s206 + $0x60] sm:$0xff] %v560
      %592 = vst [vmem:[%s206 + $0x68] sm:$0xff] %v561
      %593 = vst [vmem:[%s206 + $0x70] sm:$0xff] %v562
      %594 = vst [vmem:[%s206 + $0x78] sm:$0xff] %v563
      %595 = vst [vmem:[%s206 + $0x80] sm:$0xff] %v564
      %596 = vst [vmem:[%s206 + $0x88] sm:$0xff] %v565
      %597 = vst [vmem:[%s206 + $0x90] sm:$0xff] %v566
      %598 = vst [vmem:[%s206 + $0x98] sm:$0xff] %v567
      %599 = vst [vmem:[%s206 + $0xa0] sm:$0xff] %v568
      %600 = vst [vmem:[%s206 + $0xa8] sm:$0xff] %v569
      %601 = vst [vmem:[%s206 + $0xb0] sm:$0xff] %v570
      %602 = vst [vmem:[%s206 + $0xb8] sm:$0xff] %v571
      %603 = vst [vmem:[%s206 + $0xc0] sm:$0xff] %v572
      %604 = vst [vmem:[%s206 + $0xc8] sm:$0xff] %v573
      %605 = vst [vmem:[%s206 + $0xd0] sm:$0xff] %v574
      %606 = vst [vmem:[%s206 + $0xd8] sm:$0xff] %v575
      %607 = vst [vmem:[%s206 + $0xe0] sm:$0xff] %v576
      %608 = vst [vmem:[%s206 + $0xe8] sm:$0xff] %v577
      %609 = vst [vmem:[%s206 + $0xf0] sm:$0xff] %v578
      %v610 = vadd.f32 %v548, %v549
      %v611 = vadd.f32 %v610, %v550
      %v612 = vadd.f32 %v611, %v551
      %v613 = vadd.f32 %v612, %v552
      %v614 = vadd.f32 %v613, %v553
      %v615 = vadd.f32 %v614, %v554
      %v616 = vadd.f32 %v615, %v555
      %v617 = vadd.f32 %v616, %v556
      %v618 = vadd.f32 %v617, %v557
      %v619 = vadd.f32 %v618, %v558
      %v620 = vadd.f32 %v619, %v559
      %v621 = vadd.f32 %v620, %v560
      %v622 = vadd.f32 %v621, %v561
      %v623 = vadd.f32 %v622, %v562
      %v624 = vadd.f32 %v623, %v563
      %v625 = vadd.f32 %v624, %v564
      %v626 = vadd.f32 %v625, %v565
      %v627 = vadd.f32 %v626, %v566
      %v628 = vadd.f32 %v627, %v567
      %v629 = vadd.f32 %v628, %v568
      %v630 = vadd.f32 %v629, %v569
      %v631 = vadd.f32 %v630, %v570
      %v632 = vadd.f32 %v631, %v571
      %v633 = vadd.f32 %v632, %v572
      %v634 = vadd.f32 %v633, %v573
      %v635 = vadd.f32 %v634, %v574
      %v636 = vadd.f32 %v635, %v575
      %v637 = vadd.f32 %v636, %v576
      %v638 = vadd.f32 %v637, %v577
      %v639 = vadd.f32 %v638, %v578
      %v640 = vrot.slane %v639, 4
      %v641 = vadd.f32 %v639, %v640
      %v642 = vrot.slane %v641, 2
      %v643 = vadd.f32 %v641, %v642
      %v644 = vrot.slane %v643, 1
      %v645 = vadd.f32 %v643, %v644
      %646 = vst [vmem:[%s211] sm:$0x1] %v645
      %v647 = vmul.f32 %v548, %v548
      %v648 = vmul.f32 %v549, %v549
      %v649 = vmul.f32 %v550, %v550
      %v650 = vmul.f32 %v551, %v551
      %v651 = vmul.f32 %v552, %v552
      %v652 = vmul.f32 %v553, %v553
      %v653 = vmul.f32 %v554, %v554
      %v654 = vmul.f32 %v555, %v555
      %v655 = vmul.f32 %v556, %v556
      %v656 = vmul.f32 %v557, %v557
      %v657 = vmul.f32 %v558, %v558
      %v658 = vmul.f32 %v559, %v559
      %v659 = vmul.f32 %v560, %v560
      %v660 = vmul.f32 %v561, %v561
      %v661 = vmul.f32 %v562, %v562
      %v662 = vmul.f32 %v563, %v563
      %v663 = vmul.f32 %v564, %v564
      %v664 = vmul.f32 %v565, %v565
      %v665 = vmul.f32 %v566, %v566
      %v666 = vmul.f32 %v567, %v567
      %v667 = vmul.f32 %v568, %v568
      %v668 = vmul.f32 %v569, %v569
      %v669 = vmul.f32 %v570, %v570
      %v670 = vmul.f32 %v571, %v571
      %v671 = vmul.f32 %v572, %v572
      %v672 = vmul.f32 %v573, %v573
      %v673 = vmul.f32 %v574, %v574
      %v674 = vmul.f32 %v575, %v575
      %v675 = vmul.f32 %v576, %v576
      %v676 = vmul.f32 %v577, %v577
      %v677 = vmul.f32 %v578, %v578
      %v678 = vadd.f32 %v647, %v648
      %v679 = vadd.f32 %v678, %v649
      %v680 = vadd.f32 %v679, %v650
      %v681 = vadd.f32 %v680, %v651
      %v682 = vadd.f32 %v681, %v652
      %v683 = vadd.f32 %v682, %v653
      %v684 = vadd.f32 %v683, %v654
      %v685 = vadd.f32 %v684, %v655
      %v686 = vadd.f32 %v685, %v656
      %v687 = vadd.f32 %v686, %v657
      %v688 = vadd.f32 %v687, %v658
      %v689 = vadd.f32 %v688, %v659
      %v690 = vadd.f32 %v689, %v660
      %v691 = vadd.f32 %v690, %v661
      %v692 = vadd.f32 %v691, %v662
      %v693 = vadd.f32 %v692, %v663
      %v694 = vadd.f32 %v693, %v664
      %v695 = vadd.f32 %v694, %v665
      %v696 = vadd.f32 %v695, %v666
      %v697 = vadd.f32 %v696, %v667
      %v698 = vadd.f32 %v697, %v668
      %v699 = vadd.f32 %v698, %v669
      %v700 = vadd.f32 %v699, %v670
      %v701 = vadd.f32 %v700, %v671
      %v702 = vadd.f32 %v701, %v672
      %v703 = vadd.f32 %v702, %v673
      %v704 = vadd.f32 %v703, %v674
      %v705 = vadd.f32 %v704, %v675
      %v706 = vadd.f32 %v705, %v676
      %v707 = vadd.f32 %v706, %v677
      %v708 = vrot.slane %v707, 4
      %v709 = vadd.f32 %v707, %v708
      %v710 = vrot.slane %v709, 2
      %v711 = vadd.f32 %v709, %v710
      %v712 = vrot.slane %v711, 1
      %v713 = vadd.f32 %v711, %v712
      %714 = vst [vmem:[%s211 + $0x1] sm:$0x1] %v713
      %s715 = smul.u32 31, %s16
      %p716 = scmp.lt.s32.totalorder %s715, 61
      %s717 = scalar_select %p716, %s715, 61
      %s718 = smul.addr %s717, 8
      %s719 = scalar_lea.vmem %s3, %s718
      %p720 = scmp.lt.s32.totalorder %s16, 1
      %s721 = scalar_select %p720, %s16, 1
      %s722 = smul.addr %s721, 2
      %s723 = scalar_lea.vmem %s4, %s722
      // Predicated region
      $region33: #{edge_layer_forward.4} parent=31 // pred_check
        %p724 = pneg %p102
      $region34: #{edge_layer_forward.4} parent=31 // pred_check_branch
        %726 = sbr.rel (%p724) target = $region36
      $region35: #{edge_layer_forward.4} parent=31 // pred_region
        %s727 = smul.u32 31, %s16
      $region36: #{edge_layer_forward.4} parent=31 // pred_fallthru
        _
      // Predicated region
      $region37: #{edge_layer_forward.4} parent=31 // pred_check
        %p728 = pneg %p128
      $region38: #{edge_layer_forward.4} parent=31 // pred_check_branch
        %730 = sbr.rel (%p728) target = $region40
      $region39: #{edge_layer_forward.4} parent=31 // pred_region
        _
      $region40: #{edge_layer_forward.4} parent=31 // pred_fallthru
        _
    $region32: #{edge_layer_forward.4} parent=5 // pred_fallthru
      _
    %p731 = scmp.le.s32.totalorder 2, %s11
    // Predicated region
    $region41: #{edge_layer_forward.4} parent=5 // pred_check
      %p732 = pneg %p731
    $region42: #{edge_layer_forward.4} parent=5 // pred_check_branch
      %734 = sbr.rel (%p732) target = $region44
    $region43: #{edge_layer_forward.4} parent=5 // pred_region
      %s735 = ssub.s32 %s11, 2
      // Predicated region
      $region45: #{edge_layer_forward.4} parent=43 // pred_check
        %p736 = pneg %p108
      $region46: #{edge_layer_forward.4} parent=43 // pred_check_branch
        %738 = sbr.rel (%p736) target = $region48
      $region47: #{edge_layer_forward.4} parent=43 // pred_region
        %s739 = smul.u32 31, %s17
        %p740 = scmp.lt.s32.totalorder %s739, 61
        %s741 = scalar_select %p740, %s739, 61
        %s742 = smul.addr %s741, 8
        %s743 = scalar_lea.vmem %s3, %s742
      $region48: #{edge_layer_forward.4} parent=43 // pred_fallthru
        _
      // Predicated region
      $region49: #{edge_layer_forward.4} parent=43 // pred_check
        %p744 = pneg %p134
      $region50: #{edge_layer_forward.4} parent=43 // pred_check_branch
        %746 = sbr.rel (%p744) target = $region52
      $region51: #{edge_layer_forward.4} parent=43 // pred_region
        %p747 = scmp.lt.s32.totalorder %s17, 1
        %s748 = scalar_select %p747, %s17, 1
        %s749 = smul.addr %s748, 2
        %s750 = scalar_lea.vmem %s4, %s749
      $region52: #{edge_layer_forward.4} parent=43 // pred_fallthru
        _
    $region44: #{edge_layer_forward.4} parent=5 // pred_fallthru
      _
  $region6: #{edge_layer_forward.4} parent=0 // loop_footer
    %s15 = sadd.s32 1, %s11
  $region7: #{edge_layer_forward.4} parent=0 // loop_footer_branch
    %10 = sbr.rel target = $region3
  $region8: #{edge_layer_forward.4} parent=0 // loop_exit
    _

// kernel: edge_layer_forward.5
$region0: #{edge_layer_forward.5}
  #allocation0 [shape = 'u32[]', space=smem, size = 0x4, offset = 0x4, fixed_abs, tag = 'smem constant byte address 0x4 - core index']
  #allocation1 [shape = 'u32[144,128]{1,0:T(1,128)}', space=vmem, size = 0x12000, scoped, tag = 'internal scratch']
  %s0 = inlined_call_operand.vmem [shape: f32[496,128], index: 0, kind: input, shape index: {}]
  %s1 = inlined_call_operand.vmem [shape: f32[128,128], index: 1, kind: input, shape index: {}]
  %s2 = inlined_call_operand.vmem [shape: f32[1,128], index: 2, kind: input, shape index: {}]
  %s3 = inlined_call_operand.vmem [shape: f32[250,128], index: 3, kind: output, shape index: {}]
  %s4 = sld [smem:[#allocation0]]
  $region93: #{edge_layer_forward.5} parent=0
    _
  %s6 = ssub.s32 1, %s4
  %s7 = scalar_select 0, %s6, %s4
  $region1: #{edge_layer_forward.5} parent=0
    #allocation2 [shape = 'u8[253952]{0}', space=vmem, size = 0x3e000, scoped, tag = 'output window, operand 0']
    loop: start=0, step=1, limit=4
    $region2: #{edge_layer_forward.5} parent=1 // loop_pre_header
      _
    $region3: #{edge_layer_forward.5} parent=1 // loop_header
      %s9 = sphi 0, %s13
      %p10 = scmp.ge.s32.totalorder %s9, 4
      %s19 = sphi 0, %s21
      %s22 = sphi 0, %s19
      %s23 = sphi 0, %s22
      %s39 = sphi 0, %s23
      %s43 = sphi 0, %s43
      %s45 = sphi 0, %s43
      %s46 = sphi 0, %s45
      %s60 = sphi 0, %s46
      %s64 = sphi 0, %s64
      %s66 = sphi 0, %s64
      %s67 = sphi 0, %s66
      %s81 = sphi 0, %s67
      %s87 = sphi 0, %s89
      %s90 = sphi 0, %s87
      %s91 = sphi 0, %s90
      %s107 = sphi 0, %s91
    $region4: #{edge_layer_forward.5} parent=1 // loop_header_branch
      %12 = sbr.rel (%p10) target = $region8
    $region5: #{edge_layer_forward.5} parent=1 // loop_body
      %s14 = ssub.s32 %s9, 1
      %s15 = ssub.s32 %s9, 2
      %s16 = sadd.s32 %s9, 1
      %s17 = ssub.s32 %s9, %s16
      %p18 = scmp.eq.s32.totalorder %s17, 0
      %s20 = sadd.s32 %s19, 1
      %s21 = scalar_select %p18, %s19, %s20
      %p24 = pneg %p18
      %p25 = scmp.eq.s32.totalorder %s9, 1
      %p26 = por %p24, %p25
      %p27 = scmp.ne.s32.totalorder %s19, %s22
      %p28 = scmp.eq.s32.totalorder %s9, 0
      %p29 = por %p27, %p28
      %p30 = scmp.ne.s32.totalorder %s19, %s22
      %p31 = scmp.eq.s32.totalorder %s14, 1
      %p32 = por %p30, %p31
      %p33 = scmp.ne.s32.totalorder %s22, %s23
      %p34 = scmp.eq.s32.totalorder %s14, 0
      %p35 = por %p33, %p34
      %p36 = scmp.ne.s32.totalorder %s22, %s23
      %p37 = scmp.eq.s32.totalorder %s15, 1
      %p38 = por %p36, %p37
      %p40 = scmp.ne.s32.totalorder %s23, %s39
      %p41 = scmp.eq.s32.totalorder %s15, 0
      %p42 = por %p40, %p41
      %s44 = sadd.s32 %s43, 1
      %p47 = scmp.eq.s32.totalorder %s9, 1
      %p48 = scmp.ne.s32.totalorder %s43, %s45
      %p49 = scmp.eq.s32.totalorder %s9, 0
      %p50 = por %p48, %p49
      %p51 = scmp.ne.s32.totalorder %s43, %s45
      %p52 = scmp.eq.s32.totalorder %s14, 1
      %p53 = por %p51, %p52
      %p54 = scmp.ne.s32.totalorder %s45, %s46
      %p55 = scmp.eq.s32.totalorder %s14, 0
      %p56 = por %p54, %p55
      %p57 = scmp.ne.s32.totalorder %s45, %s46
      %p58 = scmp.eq.s32.totalorder %s15, 1
      %p59 = por %p57, %p58
      %p61 = scmp.ne.s32.totalorder %s46, %s60
      %p62 = scmp.eq.s32.totalorder %s15, 0
      %p63 = por %p61, %p62
      %s65 = sadd.s32 %s64, 1
      %p68 = scmp.eq.s32.totalorder %s9, 1
      %p69 = scmp.ne.s32.totalorder %s64, %s66
      %p70 = scmp.eq.s32.totalorder %s9, 0
      %p71 = por %p69, %p70
      %p72 = scmp.ne.s32.totalorder %s64, %s66
      %p73 = scmp.eq.s32.totalorder %s14, 1
      %p74 = por %p72, %p73
      %p75 = scmp.ne.s32.totalorder %s66, %s67
      %p76 = scmp.eq.s32.totalorder %s14, 0
      %p77 = por %p75, %p76
      %p78 = scmp.ne.s32.totalorder %s66, %s67
      %p79 = scmp.eq.s32.totalorder %s15, 1
      %p80 = por %p78, %p79
      %p82 = scmp.ne.s32.totalorder %s67, %s81
      %p83 = scmp.eq.s32.totalorder %s15, 0
      %p84 = por %p82, %p83
      %s85 = ssub.s32 %s9, %s16
      %p86 = scmp.eq.s32.totalorder %s85, 0
      %s88 = sadd.s32 %s87, 1
      %s89 = scalar_select %p86, %s87, %s88
      %p92 = pneg %p86
      %p93 = scmp.eq.s32.totalorder %s9, 1
      %p94 = por %p92, %p93
      %p95 = scmp.ne.s32.totalorder %s87, %s90
      %p96 = scmp.eq.s32.totalorder %s9, 0
      %p97 = por %p95, %p96
      %p98 = scmp.ne.s32.totalorder %s87, %s90
      %p99 = scmp.eq.s32.totalorder %s14, 1
      %p100 = por %p98, %p99
      %p101 = scmp.ne.s32.totalorder %s90, %s91
      %p102 = scmp.eq.s32.totalorder %s14, 0
      %p103 = por %p101, %p102
      %p104 = scmp.ne.s32.totalorder %s90, %s91
      %p105 = scmp.eq.s32.totalorder %s15, 1
      %p106 = por %p104, %p105
      %p108 = scmp.ne.s32.totalorder %s91, %s107
      %p109 = scmp.eq.s32.totalorder %s15, 0
      %p110 = por %p108, %p109
      %p111 = scmp.le.s32.totalorder 1, %s9
      %p112 = scmp.lt.s32.totalorder %s9, 3
      %p113 = pnand %p111, %p112
      %p114 = pneg %p113
      // Predicated region
      $region9: #{edge_layer_forward.5} parent=5 // pred_check
        _
      $region10: #{edge_layer_forward.5} parent=5 // pred_check_branch
        %116 = sbr.rel (%p113) target = $region12
      $region11: #{edge_layer_forward.5} parent=5 // pred_region
        %s117 = ssub.s32 %s9, 1
        // Predicated region
        $region13: #{edge_layer_forward.5} parent=11 // pred_check
          %p118 = pneg %p56
        $region14: #{edge_layer_forward.5} parent=11 // pred_check_branch
          %120 = sbr.rel (%p118) target = $region16
        $region15: #{edge_layer_forward.5} parent=11 // pred_region
          _
        $region16: #{edge_layer_forward.5} parent=11 // pred_fallthru
          _
        // Predicated region
        $region17: #{edge_layer_forward.5} parent=11 // pred_check
          %p121 = pneg %p77
        $region18: #{edge_layer_forward.5} parent=11 // pred_check_branch
          %123 = sbr.rel (%p121) target = $region20
        $region19: #{edge_layer_forward.5} parent=11 // pred_region
          _
        $region20: #{edge_layer_forward.5} parent=11 // pred_fallthru
          _
      $region12: #{edge_layer_forward.5} parent=5 // pred_fallthru
        _
      %p124 = scmp.lt.s32.totalorder %s9, 2
      // Predicated region
      $region21: #{edge_layer_forward.5} parent=5 // pred_check
        %p125 = pneg %p124
      $region22: #{edge_layer_forward.5} parent=5 // pred_check_branch
        %127 = sbr.rel (%p125) target = $region24
      $region23: #{edge_layer_forward.5} parent=5 // pred_region
        // Predicated region
        $region25: #{edge_layer_forward.5} parent=23 // pred_check
          %p128 = pneg %p29
        $region26: #{edge_layer_forward.5} parent=23 // pred_check_branch
          %130 = sbr.rel (%p128) target = $region28
        $region27: #{edge_layer_forward.5} parent=23 // pred_region
          %s131 = smul.u32 31, %s9
          %p132 = scmp.lt.s32.totalorder %s131, 61
          %s133 = scalar_select %p132, %s131, 61
          %s134 = smul.addr %s133, 8
          %s135 = scalar_lea.vmem %s0, %s134
          %s136 = smul.u32 31, %s9
        $region28: #{edge_layer_forward.5} parent=23 // pred_fallthru
          _
      $region24: #{edge_layer_forward.5} parent=5 // pred_fallthru
        _
      %p137 = scmp.le.s32.totalorder 1, %s9
      %p138 = scmp.lt.s32.totalorder %s9, 3
      %p139 = pnand %p137, %p138
      %p140 = pneg %p139
      // Predicated region
      $region29: #{edge_layer_forward.5} parent=5 // pred_check
        _
      $region30: #{edge_layer_forward.5} parent=5 // pred_check_branch
        %142 = sbr.rel (%p139) target = $region32
      $region31: #{edge_layer_forward.5} parent=5 // pred_region
        %s143 = ssub.s32 %s9, 1
        %s144 = smul.u32 31, %s14
        %p145 = scmp.lt.s32.totalorder %s144, 61
        %s146 = scalar_select %p145, %s144, 61
        %s147 = smul.addr %s146, 8
        %s148 = scalar_lea.vmem %s0, %s147
        %p149 = pneg %p35
        %p150 = pneg %p32
        %p151 = pneg %p56
        %p152 = pneg %p53
        %p153 = pneg %p77
        %p154 = pneg %p74
        %p155 = pneg %p103
        %p156 = pneg %p100
        %s157 = sand.u32 %s90, 1
        %s158 = sand.u32 %s90, 1
        %s159 = smul.addr %s158, 248
        %s160 = scalar_lea.vmem [#allocation2], %s159
        %s161 = smul.u32 31, %s14
        %p162 = scmp.lt.s32.totalorder %s161, 61
        %s163 = scalar_select %p162, %s161, 61
        %s164 = smul.addr %s163, 8
        %s165 = scalar_lea.vmem %s0, %s164
        %s166 = smul.u32 31, %s14
        %s167 = smul.u32 31, %s14
        %s168 = ssub.s32 32, %s167
        %p169 = scmp.lt.s32.totalorder %s168, 31
        %s170 = scalar_select %p169, %s168, 31
        %s171 = smul.u32 128, %s170
        %v172 = vld [vmem:[%s165] sm:$0xff]
        %v173 = vld [vmem:[%s165 + $0x8] sm:$0xff]
        %v174 = vld [vmem:[%s165 + $0x10] sm:$0xff]
        %v175 = vld [vmem:[%s165 + $0x18] sm:$0xff]
        %v176 = vld [vmem:[%s165 + $0x20] sm:$0xff]
        %v177 = vld [vmem:[%s165 + $0x28] sm:$0xff]
        %v178 = vld [vmem:[%s165 + $0x30] sm:$0xff]
        %v179 = vld [vmem:[%s165 + $0x38] sm:$0xff]
        %v180 = vld [vmem:[%s165 + $0x40] sm:$0xff]
        %v181 = vld [vmem:[%s165 + $0x48] sm:$0xff]
        %v182 = vld [vmem:[%s165 + $0x50] sm:$0xff]
        %v183 = vld [vmem:[%s165 + $0x58] sm:$0xff]
        %v184 = vld [vmem:[%s165 + $0x60] sm:$0xff]
        %v185 = vld [vmem:[%s165 + $0x68] sm:$0xff]
        %v186 = vld [vmem:[%s165 + $0x70] sm:$0xff]
        %v187 = vld [vmem:[%s165 + $0x78] sm:$0xff]
        %v188 = vld [vmem:[%s165 + $0x80] sm:$0xff]
        %v189 = vld [vmem:[%s165 + $0x88] sm:$0xff]
        %v190 = vld [vmem:[%s165 + $0x90] sm:$0xff]
        %v191 = vld [vmem:[%s165 + $0x98] sm:$0xff]
        %v192 = vld [vmem:[%s165 + $0xa0] sm:$0xff]
        %v193 = vld [vmem:[%s165 + $0xa8] sm:$0xff]
        %v194 = vld [vmem:[%s165 + $0xb0] sm:$0xff]
        %v195 = vld [vmem:[%s165 + $0xb8] sm:$0xff]
        %v196 = vld [vmem:[%s165 + $0xc0] sm:$0xff]
        %v197 = vld [vmem:[%s165 + $0xc8] sm:$0xff]
        %v198 = vld [vmem:[%s165 + $0xd0] sm:$0xff]
        %v199 = vld [vmem:[%s165 + $0xd8] sm:$0xff]
        %v200 = vld [vmem:[%s165 + $0xe0] sm:$0xff]
        %v201 = vld [vmem:[%s165 + $0xe8] sm:$0xff]
        %v202 = vld [vmem:[%s165 + $0xf0] sm:$0xff]
        %v203 = vld [vmem:[%s1] sm:$0xff]
        %v204 = vld [vmem:[%s1 + $0x8] sm:$0xff]
        %v205 = vld [vmem:[%s1 + $0x10] sm:$0xff]
        %v206 = vld [vmem:[%s1 + $0x18] sm:$0xff]
        %v207 = vld [vmem:[%s1 + $0x20] sm:$0xff]
        %v208 = vld [vmem:[%s1 + $0x28] sm:$0xff]
        %v209 = vld [vmem:[%s1 + $0x30] sm:$0xff]
        %v210 = vld [vmem:[%s1 + $0x38] sm:$0xff]
        %v211 = vld [vmem:[%s1 + $0x40] sm:$0xff]
        %v212 = vld [vmem:[%s1 + $0x48] sm:$0xff]
        %v213 = vld [vmem:[%s1 + $0x50] sm:$0xff]
        %v214 = vld [vmem:[%s1 + $0x58] sm:$0xff]
        %v215 = vld [vmem:[%s1 + $0x60] sm:$0xff]
        %v216 = vld [vmem:[%s1 + $0x68] sm:$0xff]
        %v217 = vld [vmem:[%s1 + $0x70] sm:$0xff]
        %v218 = vld [vmem:[%s1 + $0x78] sm:$0xff]
        %v219 = vld [vmem:[%s2] sm:$0x1]
        %v221 = vlaneseq
        %v222 = vshrl.u32 %v221, 7
        %v223 = vsub.s32 0, %v222
        %v224 = vrot.slane %v219, %v223
        %226 = vmatprep.subr.mxu0 0.0
        %227 = vmatpush1.msra.mxu0 %v218
        %228 = vmatprep.subr.mxu0 0.0
        %229 = vmatpush1.msra.mxu0 %v217
        %230 = vmatprep.subr.mxu0 0.0
        %231 = vmatpush1.msra.mxu0 %v216
        %232 = vmatprep.subr.mxu0 0.0
        %233 = vmatpush1.msra.mxu0 %v215
        %234 = vmatprep.subr.mxu0 0.0
        %235 = vmatpush1.msra.mxu0 %v214
        %236 = vmatprep.subr.mxu0 0.0
        %237 = vmatpush1.msra.mxu0 %v213
        %238 = vmatprep.subr.mxu0 0.0
        %239 = vmatpush1.msra.mxu0 %v212
        %240 = vmatprep.subr.mxu0 0.0
        %241 = vmatpush1.msra.mxu0 %v211
        %242 = vmatprep.subr.mxu0 0.0
        %243 = vmatpush1.msra.mxu0 %v210
        %244 = vmatprep.subr.mxu0 0.0
        %245 = vmatpush1.msra.mxu0 %v209
        %246 = vmatprep.subr.mxu0 0.0
        %247 = vmatpush1.msra.mxu0 %v208
        %248 = vmatprep.subr.mxu0 0.0
        %249 = vmatpush1.msra.mxu0 %v207
        %250 = vmatprep.subr.mxu0 0.0
        %251 = vmatpush1.msra.mxu0 %v206
        %252 = vmatprep.subr.mxu0 0.0
        %253 = vmatpush1.msra.mxu0 %v205
        %254 = vmatprep.subr.mxu0 0.0
        %255 = vmatpush1.msra.mxu0 %v204
        %256 = vmatprep.subr.mxu0 0.0
        %257 = vmatpush1.msra.mxu0 %v203
        %258 = vmatprep.subr.mxu0 0.0
        %259 = vmatpush2.msra.mxu0 0.0
        %260 = vmatprep.subr.mxu0 0.0
        %261 = vmatpush2.msra.mxu0 0.0
        %262 = vmatprep.subr.mxu0 0.0
        %263 = vmatpush2.msra.mxu0 0.0
        %264 = vmatprep.subr.mxu0 0.0
        %265 = vmatpush2.msra.mxu0 0.0
        %266 = vmatprep.subr.mxu0 0.0
        %267 = vmatpush2.msra.mxu0 0.0
        %268 = vmatprep.subr.mxu0 0.0
        %269 = vmatpush2.msra.mxu0 0.0
        %270 = vmatprep.subr.mxu0 0.0
        %271 = vmatpush2.msra.mxu0 0.0
        %272 = vmatprep.subr.mxu0 0.0
        %273 = vmatpush2.msra.mxu0 0.0
        %274 = vmatprep.subr.mxu0 0.0
        %275 = vmatpush2.msra.mxu0 0.0
        %276 = vmatprep.subr.mxu0 0.0
        %277 = vmatpush2.msra.mxu0 0.0
        %278 = vmatprep.subr.mxu0 0.0
        %279 = vmatpush2.msra.mxu0 0.0
        %280 = vmatprep.subr.mxu0 0.0
        %281 = vmatpush2.msra.mxu0 0.0
        %282 = vmatprep.subr.mxu0 0.0
        %283 = vmatpush2.msra.mxu0 0.0
        %284 = vmatprep.subr.mxu0 0.0
        %285 = vmatpush2.msra.mxu0 0.0
        %286 = vmatprep.subr.mxu0 0.0
        %287 = vmatpush2.msra.mxu0 0.0
        %288 = vmatprep.subr.mxu0 0.0
        %289 = vmatpush2.msra.mxu0 0.0
        %290 = vmatprep.mubr.f32.mxu0 0.0
        %291 = vmatmul.mubr.f32.gmra.mxu0 %v172
        %v292 = vpop.f32.mrf.mxu0
        %v293 = vadd.f32 %v224, %v292
        %v294 = vpop.f32.mrf.mxu0
        %295 = vmatprep.mubr.f32.mxu0 0.0
        %296 = vmatmul.mubr.f32.gmra.mxu0 %v173
        %v297 = vpop.f32.mrf.mxu0
        %v298 = vadd.f32 %v224, %v297
        %v299 = vpop.f32.mrf.mxu0
        %300 = vmatprep.mubr.f32.mxu0 0.0
        %301 = vmatmul.mubr.f32.gmra.mxu0 %v174
        %v302 = vpop.f32.mrf.mxu0
        %v303 = vadd.f32 %v224, %v302
        %v304 = vpop.f32.mrf.mxu0
        %305 = vmatprep.mubr.f32.mxu0 0.0
        %306 = vmatmul.mubr.f32.gmra.mxu0 %v175
        %v307 = vpop.f32.mrf.mxu0
        %v308 = vadd.f32 %v224, %v307
        %v309 = vpop.f32.mrf.mxu0
        %310 = vmatprep.mubr.f32.mxu0 0.0
        %311 = vmatmul.mubr.f32.gmra.mxu0 %v176
        %v312 = vpop.f32.mrf.mxu0
        %v313 = vadd.f32 %v224, %v312
        %v314 = vpop.f32.mrf.mxu0
        %315 = vmatprep.mubr.f32.mxu0 0.0
        %316 = vmatmul.mubr.f32.gmra.mxu0 %v177
        %v317 = vpop.f32.mrf.mxu0
        %v318 = vadd.f32 %v224, %v317
        %v319 = vpop.f32.mrf.mxu0
        %320 = vmatprep.mubr.f32.mxu0 0.0
        %321 = vmatmul.mubr.f32.gmra.mxu0 %v178
        %v322 = vpop.f32.mrf.mxu0
        %v323 = vadd.f32 %v224, %v322
        %v324 = vpop.f32.mrf.mxu0
        %325 = vmatprep.mubr.f32.mxu0 0.0
        %326 = vmatmul.mubr.f32.gmra.mxu0 %v179
        %v327 = vpop.f32.mrf.mxu0
        %v328 = vadd.f32 %v224, %v327
        %v329 = vpop.f32.mrf.mxu0
        %330 = vmatprep.mubr.f32.mxu0 0.0
        %331 = vmatmul.mubr.f32.gmra.mxu0 %v180
        %v332 = vpop.f32.mrf.mxu0
        %v333 = vadd.f32 %v224, %v332
        %v334 = vpop.f32.mrf.mxu0
        %335 = vmatprep.mubr.f32.mxu0 0.0
        %336 = vmatmul.mubr.f32.gmra.mxu0 %v181
        %v337 = vpop.f32.mrf.mxu0
        %v338 = vadd.f32 %v224, %v337
        %v339 = vpop.f32.mrf.mxu0
        %340 = vmatprep.mubr.f32.mxu0 0.0
        %341 = vmatmul.mubr.f32.gmra.mxu0 %v182
        %v342 = vpop.f32.mrf.mxu0
        %v343 = vadd.f32 %v224, %v342
        %v344 = vpop.f32.mrf.mxu0
        %345 = vmatprep.mubr.f32.mxu0 0.0
        %346 = vmatmul.mubr.f32.gmra.mxu0 %v183
        %v347 = vpop.f32.mrf.mxu0
        %v348 = vadd.f32 %v224, %v347
        %v349 = vpop.f32.mrf.mxu0
        %350 = vmatprep.mubr.f32.mxu0 0.0
        %351 = vmatmul.mubr.f32.gmra.mxu0 %v184
        %v352 = vpop.f32.mrf.mxu0
        %v353 = vadd.f32 %v224, %v352
        %v354 = vpop.f32.mrf.mxu0
        %355 = vmatprep.mubr.f32.mxu0 0.0
        %356 = vmatmul.mubr.f32.gmra.mxu0 %v185
        %v357 = vpop.f32.mrf.mxu0
        %v358 = vadd.f32 %v224, %v357
        %v359 = vpop.f32.mrf.mxu0
        %360 = vmatprep.mubr.f32.mxu0 0.0
        %361 = vmatmul.mubr.f32.gmra.mxu0 %v186
        %v362 = vpop.f32.mrf.mxu0
        %v363 = vadd.f32 %v224, %v362
        %v364 = vpop.f32.mrf.mxu0
        %365 = vmatprep.mubr.f32.mxu0 0.0
        %366 = vmatmul.mubr.f32.gmra.mxu0 %v187
        %v367 = vpop.f32.mrf.mxu0
        %v368 = vadd.f32 %v224, %v367
        %v369 = vpop.f32.mrf.mxu0
        %370 = vmatprep.mubr.f32.mxu0 0.0
        %371 = vmatmul.mubr.f32.gmra.mxu0 %v188
        %v372 = vpop.f32.mrf.mxu0
        %v373 = vadd.f32 %v224, %v372
        %v374 = vpop.f32.mrf.mxu0
        %375 = vmatprep.mubr.f32.mxu0 0.0
        %376 = vmatmul.mubr.f32.gmra.mxu0 %v189
        %v377 = vpop.f32.mrf.mxu0
        %v378 = vadd.f32 %v224, %v377
        %v379 = vpop.f32.mrf.mxu0
        %380 = vmatprep.mubr.f32.mxu0 0.0
        %381 = vmatmul.mubr.f32.gmra.mxu0 %v190
        %v382 = vpop.f32.mrf.mxu0
        %v383 = vadd.f32 %v224, %v382
        %v384 = vpop.f32.mrf.mxu0
        %385 = vmatprep.mubr.f32.mxu0 0.0
        %386 = vmatmul.mubr.f32.gmra.mxu0 %v191
        %v387 = vpop.f32.mrf.mxu0
        %v388 = vadd.f32 %v224, %v387
        %v389 = vpop.f32.mrf.mxu0
        %390 = vmatprep.mubr.f32.mxu0 0.0
        %391 = vmatmul.mubr.f32.gmra.mxu0 %v192
        %v392 = vpop.f32.mrf.mxu0
        %v393 = vadd.f32 %v224, %v392
        %v394 = vpop.f32.mrf.mxu0
        %395 = vmatprep.mubr.f32.mxu0 0.0
        %396 = vmatmul.mubr.f32.gmra.mxu0 %v193
        %v397 = vpop.f32.mrf.mxu0
        %v398 = vadd.f32 %v224, %v397
        %v399 = vpop.f32.mrf.mxu0
        %400 = vmatprep.mubr.f32.mxu0 0.0
        %401 = vmatmul.mubr.f32.gmra.mxu0 %v194
        %v402 = vpop.f32.mrf.mxu0
        %v403 = vadd.f32 %v224, %v402
        %v404 = vpop.f32.mrf.mxu0
        %405 = vmatprep.mubr.f32.mxu0 0.0
        %406 = vmatmul.mubr.f32.gmra.mxu0 %v195
        %v407 = vpop.f32.mrf.mxu0
        %v408 = vadd.f32 %v224, %v407
        %v409 = vpop.f32.mrf.mxu0
        %410 = vmatprep.mubr.f32.mxu0 0.0
        %411 = vmatmul.mubr.f32.gmra.mxu0 %v196
        %v412 = vpop.f32.mrf.mxu0
        %v413 = vadd.f32 %v224, %v412
        %v414 = vpop.f32.mrf.mxu0
        %415 = vmatprep.mubr.f32.mxu0 0.0
        %416 = vmatmul.mubr.f32.gmra.mxu0 %v197
        %v417 = vpop.f32.mrf.mxu0
        %v418 = vadd.f32 %v224, %v417
        %v419 = vpop.f32.mrf.mxu0
        %420 = vmatprep.mubr.f32.mxu0 0.0
        %421 = vmatmul.mubr.f32.gmra.mxu0 %v198
        %v422 = vpop.f32.mrf.mxu0
        %v423 = vadd.f32 %v224, %v422
        %v424 = vpop.f32.mrf.mxu0
        %425 = vmatprep.mubr.f32.mxu0 0.0
        %426 = vmatmul.mubr.f32.gmra.mxu0 %v199
        %v427 = vpop.f32.mrf.mxu0
        %v428 = vadd.f32 %v224, %v427
        %v429 = vpop.f32.mrf.mxu0
        %430 = vmatprep.mubr.f32.mxu0 0.0
        %431 = vmatmul.mubr.f32.gmra.mxu0 %v200
        %v432 = vpop.f32.mrf.mxu0
        %v433 = vadd.f32 %v224, %v432
        %v434 = vpop.f32.mrf.mxu0
        %435 = vmatprep.mubr.f32.mxu0 0.0
        %436 = vmatmul.mubr.f32.gmra.mxu0 %v201
        %v437 = vpop.f32.mrf.mxu0
        %v438 = vadd.f32 %v224, %v437
        %v439 = vpop.f32.mrf.mxu0
        %440 = vmatprep.mubr.f32.mxu0 0.0
        %441 = vmatmul.mubr.f32.gmra.mxu0 %v202
        %v442 = vpop.f32.mrf.mxu0
        %v443 = vadd.f32 %v224, %v442
        %v444 = vpop.f32.mrf.mxu0
        %445 = vdwg.mxu0
        %446 = vst [vmem:[%s160] sm:$0xff] %v293
        %447 = vst [vmem:[%s160 + $0x8] sm:$0xff] %v298
        %448 = vst [vmem:[%s160 + $0x10] sm:$0xff] %v303
        %449 = vst [vmem:[%s160 + $0x18] sm:$0xff] %v308
        %450 = vst [vmem:[%s160 + $0x20] sm:$0xff] %v313
        %451 = vst [vmem:[%s160 + $0x28] sm:$0xff] %v318
        %452 = vst [vmem:[%s160 + $0x30] sm:$0xff] %v323
        %453 = vst [vmem:[%s160 + $0x38] sm:$0xff] %v328
        %454 = vst [vmem:[%s160 + $0x40] sm:$0xff] %v333
        %455 = vst [vmem:[%s160 + $0x48] sm:$0xff] %v338
        %456 = vst [vmem:[%s160 + $0x50] sm:$0xff] %v343
        %457 = vst [vmem:[%s160 + $0x58] sm:$0xff] %v348
        %458 = vst [vmem:[%s160 + $0x60] sm:$0xff] %v353
        %459 = vst [vmem:[%s160 + $0x68] sm:$0xff] %v358
        %460 = vst [vmem:[%s160 + $0x70] sm:$0xff] %v363
        %461 = vst [vmem:[%s160 + $0x78] sm:$0xff] %v368
        %462 = vst [vmem:[%s160 + $0x80] sm:$0xff] %v373
        %463 = vst [vmem:[%s160 + $0x88] sm:$0xff] %v378
        %464 = vst [vmem:[%s160 + $0x90] sm:$0xff] %v383
        %465 = vst [vmem:[%s160 + $0x98] sm:$0xff] %v388
        %466 = vst [vmem:[%s160 + $0xa0] sm:$0xff] %v393
        %467 = vst [vmem:[%s160 + $0xa8] sm:$0xff] %v398
        %468 = vst [vmem:[%s160 + $0xb0] sm:$0xff] %v403
        %469 = vst [vmem:[%s160 + $0xb8] sm:$0xff] %v408
        %470 = vst [vmem:[%s160 + $0xc0] sm:$0xff] %v413
        %471 = vst [vmem:[%s160 + $0xc8] sm:$0xff] %v418
        %472 = vst [vmem:[%s160 + $0xd0] sm:$0xff] %v423
        %473 = vst [vmem:[%s160 + $0xd8] sm:$0xff] %v428
        %474 = vst [vmem:[%s160 + $0xe0] sm:$0xff] %v433
        %475 = vst [vmem:[%s160 + $0xe8] sm:$0xff] %v438
        %476 = vst [vmem:[%s160 + $0xf0] sm:$0xff] %v443
        %s477 = sand.u32 %s90, 1
        %s478 = sand.u32 %s90, 1
        %s479 = smul.addr %s478, 248
        %s480 = scalar_lea.vmem [#allocation2], %s479
        // Predicated region
        $region33: #{edge_layer_forward.5} parent=31 // pred_check
          %p481 = pneg %p100
        $region34: #{edge_layer_forward.5} parent=31 // pred_check_branch
          %483 = sbr.rel (%p481) target = $region36
        $region35: #{edge_layer_forward.5} parent=31 // pred_region
          %s484 = smul.u32 31, %s14
          %s485 = ssub.s32 32, %s484
          %p486 = scmp.lt.s32.totalorder %s485, 31
          %s487 = scalar_select %p486, %s485, 31
          %s488 = smul.u32 128, %s487
          %p489 = scmp.ne.s32.totalorder 0, %s488
          %s490 = smul.addr %s484, 8
          %s491 = scalar_lea.vmem %s3, %s490
          // Predicated region
          $region37: #{edge_layer_forward.5} parent=35 // pred_check
            %p492 = pneg %p489
          $region38: #{edge_layer_forward.5} parent=35 // pred_check_branch
            %494 = sbr.rel (%p492) target = $region40
          $region39: #{edge_layer_forward.5} parent=35 // pred_region
            // Predicated region
            $region41: #{edge_layer_forward.5} parent=39 // pred_check
              _
            $region42: #{edge_layer_forward.5} parent=39 // pred_check_branch
              %496 = sbr.rel (0) target = $region44
            $region43: #{edge_layer_forward.5} parent=39 // pred_region
              // Predicated region
              $region63: #{edge_layer_forward.5} parent=43 // pred_check
                _
              $region64: #{edge_layer_forward.5} parent=43 // pred_check_branch
                %607 = sbr.rel (0) target = $region66
              $region65: #{edge_layer_forward.5} parent=43 // pred_region
                %s608 = sdiv.u32.pop %s487, 31
                %s609 = srem.u32.pop %s487, 31
                // While loop
                $region67: #{edge_layer_forward.5} parent=65 // loop_pre_header
                  _
                $region68: #{edge_layer_forward.5} parent=65 // loop_header
                  %s611 = sphi 0, %s613
                  %p612 = scmp.ge.s32.totalorder %s611, %s608
                  %s616 = sphi 0, %s683
                  %s617 = sphi %s480, %s686
                  %s618 = sphi %s491, %s687
                $region69: #{edge_layer_forward.5} parent=65 // loop_header_branch
                  %615 = sbr.rel (%p612) target = $region73
                $region70: #{edge_layer_forward.5} parent=65 // loop_body
                  %v619 = vld [vmem:[%s617] sm:$0xff]
                  %620 = vst [vmem:[%s618] sm:$0xff] %v619
                  %v621 = vld [vmem:[%s617 + $0x8] sm:$0xff]
                  %622 = vst [vmem:[%s618 + $0x8] sm:$0xff] %v621
                  %v623 = vld [vmem:[%s617 + $0x10] sm:$0xff]
                  %624 = vst [vmem:[%s618 + $0x10] sm:$0xff] %v623
                  %v625 = vld [vmem:[%s617 + $0x18] sm:$0xff]
                  %626 = vst [vmem:[%s618 + $0x18] sm:$0xff] %v625
                  %v627 = vld [vmem:[%s617 + $0x20] sm:$0xff]
                  %628 = vst [vmem:[%s618 + $0x20] sm:$0xff] %v627
                  %v629 = vld [vmem:[%s617 + $0x28] sm:$0xff]
                  %630 = vst [vmem:[%s618 + $0x28] sm:$0xff] %v629
                  %v631 = vld [vmem:[%s617 + $0x30] sm:$0xff]
                  %632 = vst [vmem:[%s618 + $0x30] sm:$0xff] %v631
                  %v633 = vld [vmem:[%s617 + $0x38] sm:$0xff]
                  %634 = vst [vmem:[%s618 + $0x38] sm:$0xff] %v633
                  %v635 = vld [vmem:[%s617 + $0x40] sm:$0xff]
                  %636 = vst [vmem:[%s618 + $0x40] sm:$0xff] %v635
                  %v637 = vld [vmem:[%s617 + $0x48] sm:$0xff]
                  %638 = vst [vmem:[%s618 + $0x48] sm:$0xff] %v637
                  %v639 = vld [vmem:[%s617 + $0x50] sm:$0xff]
                  %640 = vst [vmem:[%s618 + $0x50] sm:$0xff] %v639
                  %v641 = vld [vmem:[%s617 + $0x58] sm:$0xff]
                  %642 = vst [vmem:[%s618 + $0x58] sm:$0xff] %v641
                  %v643 = vld [vmem:[%s617 + $0x60] sm:$0xff]
                  %644 = vst [vmem:[%s618 + $0x60] sm:$0xff] %v643
                  %v645 = vld [vmem:[%s617 + $0x68] sm:$0xff]
                  %646 = vst [vmem:[%s618 + $0x68] sm:$0xff] %v645
                  %v647 = vld [vmem:[%s617 + $0x70] sm:$0xff]
                  %648 = vst [vmem:[%s618 + $0x70] sm:$0xff] %v647
                  %v649 = vld [vmem:[%s617 + $0x78] sm:$0xff]
                  %650 = vst [vmem:[%s618 + $0x78] sm:$0xff] %v649
                  %v651 = vld [vmem:[%s617 + $0x80] sm:$0xff]
                  %652 = vst [vmem:[%s618 + $0x80] sm:$0xff] %v651
                  %v653 = vld [vmem:[%s617 + $0x88] sm:$0xff]
                  %654 = vst [vmem:[%s618 + $0x88] sm:$0xff] %v653
                  %v655 = vld [vmem:[%s617 + $0x90] sm:$0xff]
                  %656 = vst [vmem:[%s618 + $0x90] sm:$0xff] %v655
                  %v657 = vld [vmem:[%s617 + $0x98] sm:$0xff]
                  %658 = vst [vmem:[%s618 + $0x98] sm:$0xff] %v657
                  %v659 = vld [vmem:[%s617 + $0xa0] sm:$0xff]
                  %660 = vst [vmem:[%s618 + $0xa0] sm:$0xff] %v659
                  %v661 = vld [vmem:[%s617 + $0xa8] sm:$0xff]
                  %662 = vst [vmem:[%s618 + $0xa8] sm:$0xff] %v661
                  %v663 = vld [vmem:[%s617 + $0xb0] sm:$0xff]
                  %664 = vst [vmem:[%s618 + $0xb0] sm:$0xff] %v663
                  %v665 = vld [vmem:[%s617 + $0xb8] sm:$0xff]
                  %666 = vst [vmem:[%s618 + $0xb8] sm:$0xff] %v665
                  %v667 = vld [vmem:[%s617 + $0xc0] sm:$0xff]
                  %668 = vst [vmem:[%s618 + $0xc0] sm:$0xff] %v667
                  %v669 = vld [vmem:[%s617 + $0xc8] sm:$0xff]
                  %670 = vst [vmem:[%s618 + $0xc8] sm:$0xff] %v669
                  %v671 = vld [vmem:[%s617 + $0xd0] sm:$0xff]
                  %672 = vst [vmem:[%s618 + $0xd0] sm:$0xff] %v671
                  %v673 = vld [vmem:[%s617 + $0xd8] sm:$0xff]
                  %674 = vst [vmem:[%s618 + $0xd8] sm:$0xff] %v673
                  %v675 = vld [vmem:[%s617 + $0xe0] sm:$0xff]
                  %676 = vst [vmem:[%s618 + $0xe0] sm:$0xff] %v675
                  %v677 = vld [vmem:[%s617 + $0xe8] sm:$0xff]
                  %678 = vst [vmem:[%s618 + $0xe8] sm:$0xff] %v677
                  %v679 = vld [vmem:[%s617 + $0xf0] sm:$0xff]
                  %680 = vst [vmem:[%s618 + $0xf0] sm:$0xff] %v679
                  %s681 = sadd.s32 1, %s616
                  %p682 = scmp.ge.s32.totalorder %s681, %s608
                  %s683 = scalar_select %p682, 0, %s681
                  %s684 = smul.u32 %s683, 248
                  %s685 = smul.u32 %s683, 248
                  %s686 = scalar_lea.vmem %s480, %s684 [#allocation2]
                  %s687 = scalar_lea.vmem %s491, %s685
                $region71: #{edge_layer_forward.5} parent=65 // loop_footer
                  %s613 = sadd.s32 %s611, 1
                $region72: #{edge_layer_forward.5} parent=65 // loop_footer_branch
                  %610 = sbr.rel target = $region68
                $region73: #{edge_layer_forward.5} parent=65 // loop_exit
                  _
                %s688 = sdiv.u32.pop %s487, 31
                %s689 = srem.u32.pop %s487, 31
                %s690 = smul.u32 %s688, 31
                %s691 = smul.u32 8, %s690
                %s692 = scalar_lea.vmem %s480, %s691 [#allocation2]
                %s693 = smul.u32 8, %s690
                %s694 = scalar_lea.vmem %s491, %s693
                // While loop
                $region74: #{edge_layer_forward.5} parent=65 // loop_pre_header
                  _
                $region75: #{edge_layer_forward.5} parent=65 // loop_header
                  %s696 = sphi 0, %s698
                  %p697 = scmp.ge.s32.totalorder %s696, %s689
                  %s701 = sphi 0, %s708
                  %s702 = sphi %s692, %s711
                  %s703 = sphi %s694, %s712
                $region76: #{edge_layer_forward.5} parent=65 // loop_header_branch
                  %700 = sbr.rel (%p697) target = $region80
                $region77: #{edge_layer_forward.5} parent=65 // loop_body
                  %v704 = vld [vmem:[%s702] sm:$0xff]
                  %705 = vst [vmem:[%s703] sm:$0xff] %v704
                  %s706 = sadd.s32 1, %s701
                  %p707 = scmp.ge.s32.totalorder %s706, %s689
                  %s708 = scalar_select %p707, 0, %s706
                  %s709 = smul.u32 %s708, 8
                  %s710 = smul.u32 %s708, 8
                  %s711 = scalar_lea.vmem %s692, %s709 [#allocation2]
                  %s712 = scalar_lea.vmem %s694, %s710
                $region78: #{edge_layer_forward.5} parent=65 // loop_footer
                  %s698 = sadd.s32 %s696, 1
                $region79: #{edge_layer_forward.5} parent=65 // loop_footer_branch
                  %695 = sbr.rel target = $region75
                $region80: #{edge_layer_forward.5} parent=65 // loop_exit
                  _
              $region66: #{edge_layer_forward.5} parent=43 // pred_fallthru
                _
              // Predicated region
              $region81: #{edge_layer_forward.5} parent=43 // pred_check
                _
              $region82: #{edge_layer_forward.5} parent=43 // pred_check_branch
                %714 = sbr.rel target = $region84
              $region83: #{edge_layer_forward.5} parent=43 // pred_region
                _
              $region84: #{edge_layer_forward.5} parent=43 // pred_fallthru
                _
            $region44: #{edge_layer_forward.5} parent=39 // pred_fallthru
              _
            // Predicated region
            $region45: #{edge_layer_forward.5} parent=39 // pred_check
              _
            $region46: #{edge_layer_forward.5} parent=39 // pred_check_branch
              %498 = sbr.rel target = $region48
            $region47: #{edge_layer_forward.5} parent=39 // pred_region
              %s500 = ssub.s32 256, 1
              %s501 = sdiv.u32.pop %s487, 31
              %s502 = srem.u32.pop %s487, 31
              // While loop
              $region49: #{edge_layer_forward.5} parent=47 // loop_pre_header
                _
              $region50: #{edge_layer_forward.5} parent=47 // loop_header
                %s504 = sphi 0, %s506
                %p505 = scmp.ge.s32.totalorder %s504, %s501
                %s509 = sphi 0, %s576
                %s510 = sphi %s480, %s579
                %s511 = sphi %s491, %s580
              $region51: #{edge_layer_forward.5} parent=47 // loop_header_branch
                %508 = sbr.rel (%p505) target = $region55
              $region52: #{edge_layer_forward.5} parent=47 // loop_body
                %v512 = vld [vmem:[%s510] sm:%s500]
                %513 = vst [vmem:[%s511] sm:%s500] %v512
                %v514 = vld [vmem:[%s510 + $0x8] sm:%s500]
                %515 = vst [vmem:[%s511 + $0x8] sm:%s500] %v514
                %v516 = vld [vmem:[%s510 + $0x10] sm:%s500]
                %517 = vst [vmem:[%s511 + $0x10] sm:%s500] %v516
                %v518 = vld [vmem:[%s510 + $0x18] sm:%s500]
                %519 = vst [vmem:[%s511 + $0x18] sm:%s500] %v518
                %v520 = vld [vmem:[%s510 + $0x20] sm:%s500]
                %521 = vst [vmem:[%s511 + $0x20] sm:%s500] %v520
                %v522 = vld [vmem:[%s510 + $0x28] sm:%s500]
                %523 = vst [vmem:[%s511 + $0x28] sm:%s500] %v522
                %v524 = vld [vmem:[%s510 + $0x30] sm:%s500]
                %525 = vst [vmem:[%s511 + $0x30] sm:%s500] %v524
                %v526 = vld [vmem:[%s510 + $0x38] sm:%s500]
                %527 = vst [vmem:[%s511 + $0x38] sm:%s500] %v526
                %v528 = vld [vmem:[%s510 + $0x40] sm:%s500]
                %529 = vst [vmem:[%s511 + $0x40] sm:%s500] %v528
                %v530 = vld [vmem:[%s510 + $0x48] sm:%s500]
                %531 = vst [vmem:[%s511 + $0x48] sm:%s500] %v530
                %v532 = vld [vmem:[%s510 + $0x50] sm:%s500]
                %533 = vst [vmem:[%s511 + $0x50] sm:%s500] %v532
                %v534 = vld [vmem:[%s510 + $0x58] sm:%s500]
                %535 = vst [vmem:[%s511 + $0x58] sm:%s500] %v534
                %v536 = vld [vmem:[%s510 + $0x60] sm:%s500]
                %537 = vst [vmem:[%s511 + $0x60] sm:%s500] %v536
                %v538 = vld [vmem:[%s510 + $0x68] sm:%s500]
                %539 = vst [vmem:[%s511 + $0x68] sm:%s500] %v538
                %v540 = vld [vmem:[%s510 + $0x70] sm:%s500]
                %541 = vst [vmem:[%s511 + $0x70] sm:%s500] %v540
                %v542 = vld [vmem:[%s510 + $0x78] sm:%s500]
                %543 = vst [vmem:[%s511 + $0x78] sm:%s500] %v542
                %v544 = vld [vmem:[%s510 + $0x80] sm:%s500]
                %545 = vst [vmem:[%s511 + $0x80] sm:%s500] %v544
                %v546 = vld [vmem:[%s510 + $0x88] sm:%s500]
                %547 = vst [vmem:[%s511 + $0x88] sm:%s500] %v546
                %v548 = vld [vmem:[%s510 + $0x90] sm:%s500]
                %549 = vst [vmem:[%s511 + $0x90] sm:%s500] %v548
                %v550 = vld [vmem:[%s510 + $0x98] sm:%s500]
                %551 = vst [vmem:[%s511 + $0x98] sm:%s500] %v550
                %v552 = vld [vmem:[%s510 + $0xa0] sm:%s500]
                %553 = vst [vmem:[%s511 + $0xa0] sm:%s500] %v552
                %v554 = vld [vmem:[%s510 + $0xa8] sm:%s500]
                %555 = vst [vmem:[%s511 + $0xa8] sm:%s500] %v554
                %v556 = vld [vmem:[%s510 + $0xb0] sm:%s500]
                %557 = vst [vmem:[%s511 + $0xb0] sm:%s500] %v556
                %v558 = vld [vmem:[%s510 + $0xb8] sm:%s500]
                %559 = vst [vmem:[%s511 + $0xb8] sm:%s500] %v558
                %v560 = vld [vmem:[%s510 + $0xc0] sm:%s500]
                %561 = vst [vmem:[%s511 + $0xc0] sm:%s500] %v560
                %v562 = vld [vmem:[%s510 + $0xc8] sm:%s500]
                %563 = vst [vmem:[%s511 + $0xc8] sm:%s500] %v562
                %v564 = vld [vmem:[%s510 + $0xd0] sm:%s500]
                %565 = vst [vmem:[%s511 + $0xd0] sm:%s500] %v564
                %v566 = vld [vmem:[%s510 + $0xd8] sm:%s500]
                %567 = vst [vmem:[%s511 + $0xd8] sm:%s500] %v566
                %v568 = vld [vmem:[%s510 + $0xe0] sm:%s500]
                %569 = vst [vmem:[%s511 + $0xe0] sm:%s500] %v568
                %v570 = vld [vmem:[%s510 + $0xe8] sm:%s500]
                %571 = vst [vmem:[%s511 + $0xe8] sm:%s500] %v570
                %v572 = vld [vmem:[%s510 + $0xf0] sm:%s500]
                %573 = vst [vmem:[%s511 + $0xf0] sm:%s500] %v572
                %s574 = sadd.s32 1, %s509
                %p575 = scmp.ge.s32.totalorder %s574, %s501
                %s576 = scalar_select %p575, 0, %s574
                %s577 = smul.u32 %s576, 248
                %s578 = smul.u32 %s576, 248
                %s579 = scalar_lea.vmem %s480, %s577 [#allocation2]
                %s580 = scalar_lea.vmem %s491, %s578
              $region53: #{edge_layer_forward.5} parent=47 // loop_footer
                %s506 = sadd.s32 %s504, 1
              $region54: #{edge_layer_forward.5} parent=47 // loop_footer_branch
                %503 = sbr.rel target = $region50
              $region55: #{edge_layer_forward.5} parent=47 // loop_exit
                _
              %s581 = sdiv.u32.pop %s487, 31
              %s582 = srem.u32.pop %s487, 31
              %s583 = smul.u32 %s581, 31
              %s584 = smul.u32 8, %s583
              %s585 = scalar_lea.vmem %s480, %s584 [#allocation2]
              %s586 = smul.u32 8, %s583
              %s587 = scalar_lea.vmem %s491, %s586
              // While loop
              $region56: #{edge_layer_forward.5} parent=47 // loop_pre_header
                _
              $region57: #{edge_layer_forward.5} parent=47 // loop_header
                %s589 = sphi 0, %s591
                %p590 = scmp.ge.s32.totalorder %s589, %s582
                %s594 = sphi 0, %s601
                %s595 = sphi %s585, %s604
                %s596 = sphi %s587, %s605
              $region58: #{edge_layer_forward.5} parent=47 // loop_header_branch
                %593 = sbr.rel (%p590) target = $region62
              $region59: #{edge_layer_forward.5} parent=47 // loop_body
                %v597 = vld [vmem:[%s595] sm:%s500]
                %598 = vst [vmem:[%s596] sm:%s500] %v597
                %s599 = sadd.s32 1, %s594
                %p600 = scmp.ge.s32.totalorder %s599, %s582
                %s601 = scalar_select %p600, 0, %s599
                %s602 = smul.u32 %s601, 8
                %s603 = smul.u32 %s601, 8
                %s604 = scalar_lea.vmem %s585, %s602 [#allocation2]
                %s605 = scalar_lea.vmem %s587, %s603
              $region60: #{edge_layer_forward.5} parent=47 // loop_footer
                %s591 = sadd.s32 %s589, 1
              $region61: #{edge_layer_forward.5} parent=47 // loop_footer_branch
                %588 = sbr.rel target = $region57
              $region62: #{edge_layer_forward.5} parent=47 // loop_exit
                _
            $region48: #{edge_layer_forward.5} parent=39 // pred_fallthru
              _
          $region40: #{edge_layer_forward.5} parent=35 // pred_fallthru
            _
          %715 = vnop
        $region36: #{edge_layer_forward.5} parent=31 // pred_fallthru
          _
      $region32: #{edge_layer_forward.5} parent=5 // pred_fallthru
        _
      %p716 = scmp.le.s32.totalorder 2, %s9
      // Predicated region
      $region85: #{edge_layer_forward.5} parent=5 // pred_check
        %p717 = pneg %p716
      $region86: #{edge_layer_forward.5} parent=5 // pred_check_branch
        %719 = sbr.rel (%p717) target = $region88
      $region87: #{edge_layer_forward.5} parent=5 // pred_region
        %s720 = ssub.s32 %s9, 2
        // Predicated region
        $region89: #{edge_layer_forward.5} parent=87 // pred_check
          %p721 = pneg %p106
        $region90: #{edge_layer_forward.5} parent=87 // pred_check_branch
          %723 = sbr.rel (%p721) target = $region92
        $region91: #{edge_layer_forward.5} parent=87 // pred_region
          %s724 = sand.u32 %s91, 1
          %s725 = sand.u32 %s91, 1
          %s726 = smul.addr %s725, 248
          %s727 = scalar_lea.vmem [#allocation2], %s726
        $region92: #{edge_layer_forward.5} parent=87 // pred_fallthru
          _
      $region88: #{edge_layer_forward.5} parent=5 // pred_fallthru
        _
    $region6: #{edge_layer_forward.5} parent=1 // loop_footer
      %s13 = sadd.s32 1, %s9
    $region7: #{edge_layer_forward.5} parent=1 // loop_footer_branch
      %8 = sbr.rel target = $region3
    $region8: #{edge_layer_forward.5} parent=1 // loop_exit
      _

// kernel: edge_layer_forward.3
$region0: #{edge_layer_forward.3}
  #allocation0 [shape = 'u32[]', space=smem, size = 0x4, offset = 0x4, fixed_abs, tag = 'smem constant byte address 0x4 - core index']
  #allocation1 [shape = 'u32[144,128]{1,0:T(1,128)}', space=vmem, size = 0x12000, scoped, tag = 'internal scratch']
  %s0 = inlined_call_operand.vmem [shape: f32[1000,16], index: 0, kind: input, shape index: {}]
  %s1 = inlined_call_operand.vmem [shape: f32[1000,16], index: 1, kind: input, shape index: {}]
  %s2 = inlined_call_operand.vmem [shape: f32[1000,16], index: 2, kind: input, shape index: {}]
  %s3 = inlined_call_operand.vmem [shape: f32[16,32], index: 3, kind: input, shape index: {}]
  %s4 = inlined_call_operand.vmem [shape: f32[16,32], index: 4, kind: input, shape index: {}]
  %s5 = inlined_call_operand.vmem [shape: f32[16,32], index: 5, kind: input, shape index: {}]
  %s6 = inlined_call_operand.vmem [shape: f32[1,32], index: 6, kind: input, shape index: {}]
  %s7 = inlined_call_operand.vmem [shape: f32[1984,32], index: 7, kind: output, shape index: {0}]
  %s8 = inlined_call_operand.vmem [shape: f32[2,2,32], index: 8, kind: output, shape index: {1}]
  %9 = xla_tuple %s7, %s8
  %s10 = sld [smem:[#allocation0]]
  $region77: #{edge_layer_forward.3} parent=0
    _
  %s12 = ssub.s32 1, %s10
  %s13 = scalar_select 0, %s12, %s10
  loop: start=0, step=1, limit=4
  $region2: #{edge_layer_forward.3} parent=0 // loop_pre_header
    _
  $region3: #{edge_layer_forward.3} parent=0 // loop_header
    %s15 = sphi 0, %s19
    %p16 = scmp.ge.s32.totalorder %s15, 4
    %s25 = sphi 0, %s27
    %s28 = sphi 0, %s25
    %s29 = sphi 0, %s28
    %s45 = sphi 0, %s29
    %s51 = sphi 0, %s53
    %s54 = sphi 0, %s51
    %s55 = sphi 0, %s54
    %s71 = sphi 0, %s55
    %s77 = sphi 0, %s79
    %s80 = sphi 0, %s77
    %s81 = sphi 0, %s80
    %s97 = sphi 0, %s81
    %s101 = sphi 0, %s101
    %s103 = sphi 0, %s101
    %s104 = sphi 0, %s103
    %s118 = sphi 0, %s104
    %s122 = sphi 0, %s122
    %s124 = sphi 0, %s122
    %s125 = sphi 0, %s124
    %s139 = sphi 0, %s125
    %s143 = sphi 0, %s143
    %s145 = sphi 0, %s143
    %s146 = sphi 0, %s145
    %s160 = sphi 0, %s146
    %s164 = sphi 0, %s164
    %s166 = sphi 0, %s164
    %s167 = sphi 0, %s166
    %s181 = sphi 0, %s167
    %s187 = sphi 0, %s189
    %s190 = sphi 0, %s187
    %s191 = sphi 0, %s190
    %s207 = sphi 0, %s191
    %s213 = sphi 0, %s215
    %s216 = sphi 0, %s213
    %s217 = sphi 0, %s216
    %s233 = sphi 0, %s217
  $region4: #{edge_layer_forward.3} parent=0 // loop_header_branch
    %18 = sbr.rel (%p16) target = $region8
  $region5: #{edge_layer_forward.3} parent=0 // loop_body
    %s20 = ssub.s32 %s15, 1
    %s21 = ssub.s32 %s15, 2
    %s22 = sadd.s32 %s15, 1
    %s23 = ssub.s32 %s15, %s22
    %p24 = scmp.eq.s32.totalorder %s23, 0
    %s26 = sadd.s32 %s25, 1
    %s27 = scalar_select %p24, %s25, %s26
    %p30 = pneg %p24
    %p31 = scmp.eq.s32.totalorder %s15, 1
    %p32 = por %p30, %p31
    %p33 = scmp.ne.s32.totalorder %s25, %s28
    %p34 = scmp.eq.s32.totalorder %s15, 0
    %p35 = por %p33, %p34
    %p36 = scmp.ne.s32.totalorder %s25, %s28
    %p37 = scmp.eq.s32.totalorder %s20, 1
    %p38 = por %p36, %p37
    %p39 = scmp.ne.s32.totalorder %s28, %s29
    %p40 = scmp.eq.s32.totalorder %s20, 0
    %p41 = por %p39, %p40
    %p42 = scmp.ne.s32.totalorder %s28, %s29
    %p43 = scmp.eq.s32.totalorder %s21, 1
    %p44 = por %p42, %p43
    %p46 = scmp.ne.s32.totalorder %s29, %s45
    %p47 = scmp.eq.s32.totalorder %s21, 0
    %p48 = por %p46, %p47
    %s49 = ssub.s32 %s15, %s22
    %p50 = scmp.eq.s32.totalorder %s49, 0
    %s52 = sadd.s32 %s51, 1
    %s53 = scalar_select %p50, %s51, %s52
    %p56 = pneg %p50
    %p57 = scmp.eq.s32.totalorder %s15, 1
    %p58 = por %p56, %p57
    %p59 = scmp.ne.s32.totalorder %s51, %s54
    %p60 = scmp.eq.s32.totalorder %s15, 0
    %p61 = por %p59, %p60
    %p62 = scmp.ne.s32.totalorder %s51, %s54
    %p63 = scmp.eq.s32.totalorder %s20, 1
    %p64 = por %p62, %p63
    %p65 = scmp.ne.s32.totalorder %s54, %s55
    %p66 = scmp.eq.s32.totalorder %s20, 0
    %p67 = por %p65, %p66
    %p68 = scmp.ne.s32.totalorder %s54, %s55
    %p69 = scmp.eq.s32.totalorder %s21, 1
    %p70 = por %p68, %p69
    %p72 = scmp.ne.s32.totalorder %s55, %s71
    %p73 = scmp.eq.s32.totalorder %s21, 0
    %p74 = por %p72, %p73
    %s75 = ssub.s32 %s15, %s22
    %p76 = scmp.eq.s32.totalorder %s75, 0
    %s78 = sadd.s32 %s77, 1
    %s79 = scalar_select %p76, %s77, %s78
    %p82 = pneg %p76
    %p83 = scmp.eq.s32.totalorder %s15, 1
    %p84 = por %p82, %p83
    %p85 = scmp.ne.s32.totalorder %s77, %s80
    %p86 = scmp.eq.s32.totalorder %s15, 0
    %p87 = por %p85, %p86
    %p88 = scmp.ne.s32.totalorder %s77, %s80
    %p89 = scmp.eq.s32.totalorder %s20, 1
    %p90 = por %p88, %p89
    %p91 = scmp.ne.s32.totalorder %s80, %s81
    %p92 = scmp.eq.s32.totalorder %s20, 0
    %p93 = por %p91, %p92
    %p94 = scmp.ne.s32.totalorder %s80, %s81
    %p95 = scmp.eq.s32.totalorder %s21, 1
    %p96 = por %p94, %p95
    %p98 = scmp.ne.s32.totalorder %s81, %s97
    %p99 = scmp.eq.s32.totalorder %s21, 0
    %p100 = por %p98, %p99
    %s102 = sadd.s32 %s101, 1
    %p105 = scmp.eq.s32.totalorder %s15, 1
    %p106 = scmp.ne.s32.totalorder %s101, %s103
    %p107 = scmp.eq.s32.totalorder %s15, 0
    %p108 = por %p106, %p107
    %p109 = scmp.ne.s32.totalorder %s101, %s103
    %p110 = scmp.eq.s32.totalorder %s20, 1
    %p111 = por %p109, %p110
    %p112 = scmp.ne.s32.totalorder %s103, %s104
    %p113 = scmp.eq.s32.totalorder %s20, 0
    %p114 = por %p112, %p113
    %p115 = scmp.ne.s32.totalorder %s103, %s104
    %p116 = scmp.eq.s32.totalorder %s21, 1
    %p117 = por %p115, %p116
    %p119 = scmp.ne.s32.totalorder %s104, %s118
    %p120 = scmp.eq.s32.totalorder %s21, 0
    %p121 = por %p119, %p120
    %s123 = sadd.s32 %s122, 1
    %p126 = scmp.eq.s32.totalorder %s15, 1
    %p127 = scmp.ne.s32.totalorder %s122, %s124
    %p128 = scmp.eq.s32.totalorder %s15, 0
    %p129 = por %p127, %p128
    %p130 = scmp.ne.s32.totalorder %s122, %s124
    %p131 = scmp.eq.s32.totalorder %s20, 1
    %p132 = por %p130, %p131
    %p133 = scmp.ne.s32.totalorder %s124, %s125
    %p134 = scmp.eq.s32.totalorder %s20, 0
    %p135 = por %p133, %p134
    %p136 = scmp.ne.s32.totalorder %s124, %s125
    %p137 = scmp.eq.s32.totalorder %s21, 1
    %p138 = por %p136, %p137
    %p140 = scmp.ne.s32.totalorder %s125, %s139
    %p141 = scmp.eq.s32.totalorder %s21, 0
    %p142 = por %p140, %p141
    %s144 = sadd.s32 %s143, 1
    %p147 = scmp.eq.s32.totalorder %s15, 1
    %p148 = scmp.ne.s32.totalorder %s143, %s145
    %p149 = scmp.eq.s32.totalorder %s15, 0
    %p150 = por %p148, %p149
    %p151 = scmp.ne.s32.totalorder %s143, %s145
    %p152 = scmp.eq.s32.totalorder %s20, 1
    %p153 = por %p151, %p152
    %p154 = scmp.ne.s32.totalorder %s145, %s146
    %p155 = scmp.eq.s32.totalorder %s20, 0
    %p156 = por %p154, %p155
    %p157 = scmp.ne.s32.totalorder %s145, %s146
    %p158 = scmp.eq.s32.totalorder %s21, 1
    %p159 = por %p157, %p158
    %p161 = scmp.ne.s32.totalorder %s146, %s160
    %p162 = scmp.eq.s32.totalorder %s21, 0
    %p163 = por %p161, %p162
    %s165 = sadd.s32 %s164, 1
    %p168 = scmp.eq.s32.totalorder %s15, 1
    %p169 = scmp.ne.s32.totalorder %s164, %s166
    %p170 = scmp.eq.s32.totalorder %s15, 0
    %p171 = por %p169, %p170
    %p172 = scmp.ne.s32.totalorder %s164, %s166
    %p173 = scmp.eq.s32.totalorder %s20, 1
    %p174 = por %p172, %p173
    %p175 = scmp.ne.s32.totalorder %s166, %s167
    %p176 = scmp.eq.s32.totalorder %s20, 0
    %p177 = por %p175, %p176
    %p178 = scmp.ne.s32.totalorder %s166, %s167
    %p179 = scmp.eq.s32.totalorder %s21, 1
    %p180 = por %p178, %p179
    %p182 = scmp.ne.s32.totalorder %s167, %s181
    %p183 = scmp.eq.s32.totalorder %s21, 0
    %p184 = por %p182, %p183
    %s185 = ssub.s32 %s15, %s22
    %p186 = scmp.eq.s32.totalorder %s185, 0
    %s188 = sadd.s32 %s187, 1
    %s189 = scalar_select %p186, %s187, %s188
    %p192 = pneg %p186
    %p193 = scmp.eq.s32.totalorder %s15, 1
    %p194 = por %p192, %p193
    %p195 = scmp.ne.s32.totalorder %s187, %s190
    %p196 = scmp.eq.s32.totalorder %s15, 0
    %p197 = por %p195, %p196
    %p198 = scmp.ne.s32.totalorder %s187, %s190
    %p199 = scmp.eq.s32.totalorder %s20, 1
    %p200 = por %p198, %p199
    %p201 = scmp.ne.s32.totalorder %s190, %s191
    %p202 = scmp.eq.s32.totalorder %s20, 0
    %p203 = por %p201, %p202
    %p204 = scmp.ne.s32.totalorder %s190, %s191
    %p205 = scmp.eq.s32.totalorder %s21, 1
    %p206 = por %p204, %p205
    %p208 = scmp.ne.s32.totalorder %s191, %s207
    %p209 = scmp.eq.s32.totalorder %s21, 0
    %p210 = por %p208, %p209
    %s211 = ssub.s32 %s15, %s22
    %p212 = scmp.eq.s32.totalorder %s211, 0
    %s214 = sadd.s32 %s213, 1
    %s215 = scalar_select %p212, %s213, %s214
    %p218 = pneg %p212
    %p219 = scmp.eq.s32.totalorder %s15, 1
    %p220 = por %p218, %p219
    %p221 = scmp.ne.s32.totalorder %s213, %s216
    %p222 = scmp.eq.s32.totalorder %s15, 0
    %p223 = por %p221, %p222
    %p224 = scmp.ne.s32.totalorder %s213, %s216
    %p225 = scmp.eq.s32.totalorder %s20, 1
    %p226 = por %p224, %p225
    %p227 = scmp.ne.s32.totalorder %s216, %s217
    %p228 = scmp.eq.s32.totalorder %s20, 0
    %p229 = por %p227, %p228
    %p230 = scmp.ne.s32.totalorder %s216, %s217
    %p231 = scmp.eq.s32.totalorder %s21, 1
    %p232 = por %p230, %p231
    %p234 = scmp.ne.s32.totalorder %s217, %s233
    %p235 = scmp.eq.s32.totalorder %s21, 0
    %p236 = por %p234, %p235
    %p237 = scmp.le.s32.totalorder 1, %s15
    %p238 = scmp.lt.s32.totalorder %s15, 3
    %p239 = pnand %p237, %p238
    %p240 = pneg %p239
    // Predicated region
    $region9: #{edge_layer_forward.3} parent=5 // pred_check
      _
    $region10: #{edge_layer_forward.3} parent=5 // pred_check_branch
      %242 = sbr.rel (%p239) target = $region12
    $region11: #{edge_layer_forward.3} parent=5 // pred_region
      %s243 = ssub.s32 %s15, 1
      // Predicated region
      $region13: #{edge_layer_forward.3} parent=11 // pred_check
        %p244 = pneg %p114
      $region14: #{edge_layer_forward.3} parent=11 // pred_check_branch
        %246 = sbr.rel (%p244) target = $region16
      $region15: #{edge_layer_forward.3} parent=11 // pred_region
        _
      $region16: #{edge_layer_forward.3} parent=11 // pred_fallthru
        _
      // Predicated region
      $region17: #{edge_layer_forward.3} parent=11 // pred_check
        %p247 = pneg %p135
      $region18: #{edge_layer_forward.3} parent=11 // pred_check_branch
        %249 = sbr.rel (%p247) target = $region20
      $region19: #{edge_layer_forward.3} parent=11 // pred_region
        _
      $region20: #{edge_layer_forward.3} parent=11 // pred_fallthru
        _
      // Predicated region
      $region21: #{edge_layer_forward.3} parent=11 // pred_check
        %p250 = pneg %p156
      $region22: #{edge_layer_forward.3} parent=11 // pred_check_branch
        %252 = sbr.rel (%p250) target = $region24
      $region23: #{edge_layer_forward.3} parent=11 // pred_region
        _
      $region24: #{edge_layer_forward.3} parent=11 // pred_fallthru
        _
      // Predicated region
      $region25: #{edge_layer_forward.3} parent=11 // pred_check
        %p253 = pneg %p177
      $region26: #{edge_layer_forward.3} parent=11 // pred_check_branch
        %255 = sbr.rel (%p253) target = $region28
      $region27: #{edge_layer_forward.3} parent=11 // pred_region
        _
      $region28: #{edge_layer_forward.3} parent=11 // pred_fallthru
        _
    $region12: #{edge_layer_forward.3} parent=5 // pred_fallthru
      _
    %p256 = scmp.lt.s32.totalorder %s15, 2
    // Predicated region
    $region29: #{edge_layer_forward.3} parent=5 // pred_check
      %p257 = pneg %p256
    $region30: #{edge_layer_forward.3} parent=5 // pred_check_branch
      %259 = sbr.rel (%p257) target = $region32
    $region31: #{edge_layer_forward.3} parent=5 // pred_region
      // Predicated region
      $region33: #{edge_layer_forward.3} parent=31 // pred_check
        %p260 = pneg %p35
      $region34: #{edge_layer_forward.3} parent=31 // pred_check_branch
        %262 = sbr.rel (%p260) target = $region36
      $region35: #{edge_layer_forward.3} parent=31 // pred_region
        %s263 = smul.u32 124, %s15
        %s264 = ssub.s32 125, %s263
        %p265 = scmp.lt.s32.totalorder %s264, 124
        %s266 = scalar_select %p265, %s264, 124
        %s267 = smul.u32 128, %s266
        %p268 = scmp.lt.s32.totalorder %s263, 124
        %s269 = scalar_select %p268, %s263, 124
        %s270 = smul.addr %s269, 8
        %s271 = scalar_lea.vmem %s0, %s270
        %s272 = smul.u32 124, %s15
        %s273 = ssub.s32 125, %s272
        %p274 = scmp.lt.s32.totalorder %s273, 124
        %s275 = scalar_select %p274, %s273, 124
        %s276 = smul.u32 128, %s275
      $region36: #{edge_layer_forward.3} parent=31 // pred_fallthru
        _
      // Predicated region
      $region37: #{edge_layer_forward.3} parent=31 // pred_check
        %p277 = pneg %p61
      $region38: #{edge_layer_forward.3} parent=31 // pred_check_branch
        %279 = sbr.rel (%p277) target = $region40
      $region39: #{edge_layer_forward.3} parent=31 // pred_region
        %s280 = smul.u32 124, %s15
        %s281 = ssub.s32 125, %s280
        %p282 = scmp.lt.s32.totalorder %s281, 124
        %s283 = scalar_select %p282, %s281, 124
        %s284 = smul.u32 128, %s283
        %p285 = scmp.lt.s32.totalorder %s280, 124
        %s286 = scalar_select %p285, %s280, 124
        %s287 = smul.addr %s286, 8
        %s288 = scalar_lea.vmem %s1, %s287
        %s289 = smul.u32 124, %s15
        %s290 = ssub.s32 125, %s289
        %p291 = scmp.lt.s32.totalorder %s290, 124
        %s292 = scalar_select %p291, %s290, 124
        %s293 = smul.u32 128, %s292
      $region40: #{edge_layer_forward.3} parent=31 // pred_fallthru
        _
      // Predicated region
      $region41: #{edge_layer_forward.3} parent=31 // pred_check
        %p294 = pneg %p87
      $region42: #{edge_layer_forward.3} parent=31 // pred_check_branch
        %296 = sbr.rel (%p294) target = $region44
      $region43: #{edge_layer_forward.3} parent=31 // pred_region
        %s297 = smul.u32 124, %s15
        %s298 = ssub.s32 125, %s297
        %p299 = scmp.lt.s32.totalorder %s298, 124
        %s300 = scalar_select %p299, %s298, 124
        %s301 = smul.u32 128, %s300
        %p302 = scmp.lt.s32.totalorder %s297, 124
        %s303 = scalar_select %p302, %s297, 124
        %s304 = smul.addr %s303, 8
        %s305 = scalar_lea.vmem %s2, %s304
        %s306 = smul.u32 124, %s15
        %s307 = ssub.s32 125, %s306
        %p308 = scmp.lt.s32.totalorder %s307, 124
        %s309 = scalar_select %p308, %s307, 124
        %s310 = smul.u32 128, %s309
      $region44: #{edge_layer_forward.3} parent=31 // pred_fallthru
        _
    $region32: #{edge_layer_forward.3} parent=5 // pred_fallthru
      _
    %p311 = scmp.le.s32.totalorder 1, %s15
    %p312 = scmp.lt.s32.totalorder %s15, 3
    %p313 = pnand %p311, %p312
    %p314 = pneg %p313
    // Predicated region
    $region45: #{edge_layer_forward.3} parent=5 // pred_check
      _
    $region46: #{edge_layer_forward.3} parent=5 // pred_check_branch
      %316 = sbr.rel (%p313) target = $region48
    $region47: #{edge_layer_forward.3} parent=5 // pred_region
      %s317 = ssub.s32 %s15, 1
      %s318 = smul.u32 124, %s20
      %s319 = ssub.s32 125, %s318
      %p320 = scmp.lt.s32.totalorder %s319, 124
      %s321 = scalar_select %p320, %s319, 124
      %s322 = smul.u32 128, %s321
      %p323 = scmp.lt.s32.totalorder %s318, 124
      %s324 = scalar_select %p323, %s318, 124
      %s325 = smul.addr %s324, 8
      %s326 = scalar_lea.vmem %s0, %s325
      %p327 = pneg %p41
      %p328 = pneg %p38
      %s329 = smul.u32 124, %s20
      %s330 = ssub.s32 125, %s329
      %p331 = scmp.lt.s32.totalorder %s330, 124
      %s332 = scalar_select %p331, %s330, 124
      %s333 = smul.u32 128, %s332
      %p334 = scmp.lt.s32.totalorder %s329, 124
      %s335 = scalar_select %p334, %s329, 124
      %s336 = smul.addr %s335, 8
      %s337 = scalar_lea.vmem %s1, %s336
      %p338 = pneg %p67
      %p339 = pneg %p64
      %s340 = smul.u32 124, %s20
      %s341 = ssub.s32 125, %s340
      %p342 = scmp.lt.s32.totalorder %s341, 124
      %s343 = scalar_select %p342, %s341, 124
      %s344 = smul.u32 128, %s343
      %p345 = scmp.lt.s32.totalorder %s340, 124
      %s346 = scalar_select %p345, %s340, 124
      %s347 = smul.addr %s346, 8
      %s348 = scalar_lea.vmem %s2, %s347
      %p349 = pneg %p93
      %p350 = pneg %p90
      %p351 = pneg %p114
      %p352 = pneg %p111
      %p353 = pneg %p135
      %p354 = pneg %p132
      %p355 = pneg %p156
      %p356 = pneg %p153
      %p357 = pneg %p177
      %p358 = pneg %p174
      %p359 = pneg %p203
      %p360 = pneg %p200
      %s361 = smul.u32 124, %s20
      %p362 = scmp.lt.s32.totalorder %s361, 247
      %s363 = scalar_select %p362, %s361, 247
      %s364 = smul.addr %s363, 8
      %s365 = scalar_lea.vmem %s7, %s364
      %p366 = pneg %p229
      %p367 = pneg %p226
      %p368 = scmp.lt.s32.totalorder %s20, 1
      %s369 = scalar_select %p368, %s20, 1
      %s370 = smul.addr %s369, 2
      %s371 = scalar_lea.vmem %s8, %s370
      %s372 = smul.u32 124, %s20
      %s373 = ssub.s32 125, %s372
      %p374 = scmp.lt.s32.totalorder %s373, 124
      %s375 = scalar_select %p374, %s373, 124
      %s376 = smul.u32 128, %s375
      %p377 = scmp.lt.s32.totalorder %s372, 124
      %s378 = scalar_select %p377, %s372, 124
      %s379 = smul.addr %s378, 8
      %s380 = scalar_lea.vmem %s0, %s379
      %s381 = smul.u32 124, %s20
      %s382 = ssub.s32 125, %s381
      %p383 = scmp.lt.s32.totalorder %s382, 124
      %s384 = scalar_select %p383, %s382, 124
      %s385 = smul.u32 128, %s384
      %s386 = smul.u32 124, %s20
      %s387 = ssub.s32 125, %s386
      %p388 = scmp.lt.s32.totalorder %s387, 124
      %s389 = scalar_select %p388, %s387, 124
      %s390 = smul.u32 128, %s389
      %p391 = scmp.lt.s32.totalorder %s386, 124
      %s392 = scalar_select %p391, %s386, 124
      %s393 = smul.addr %s392, 8
      %s394 = scalar_lea.vmem %s1, %s393
      %s395 = smul.u32 124, %s20
      %s396 = ssub.s32 125, %s395
      %p397 = scmp.lt.s32.totalorder %s396, 124
      %s398 = scalar_select %p397, %s396, 124
      %s399 = smul.u32 128, %s398
      %s400 = smul.u32 124, %s20
      %s401 = ssub.s32 125, %s400
      %p402 = scmp.lt.s32.totalorder %s401, 124
      %s403 = scalar_select %p402, %s401, 124
      %s404 = smul.u32 128, %s403
      %p405 = scmp.lt.s32.totalorder %s400, 124
      %s406 = scalar_select %p405, %s400, 124
      %s407 = smul.addr %s406, 8
      %s408 = scalar_lea.vmem %s2, %s407
      %s409 = smul.u32 124, %s20
      %s410 = ssub.s32 125, %s409
      %p411 = scmp.lt.s32.totalorder %s410, 124
      %s412 = scalar_select %p411, %s410, 124
      %s413 = smul.u32 128, %s412
      %s414 = smul.u32 124, %s20
      %p415 = scmp.lt.s32.totalorder %s414, 247
      %s416 = scalar_select %p415, %s414, 247
      %s417 = smul.addr %s416, 8
      %s418 = scalar_lea.vmem %s7, %s417
      %s419 = smul.u32 124, %s20
      %p420 = scmp.lt.s32.totalorder %s20, 1
      %s421 = scalar_select %p420, %s20, 1
      %s422 = smul.addr %s421, 2
      %s423 = scalar_lea.vmem %s8, %s422
      %v424 = vld [vmem:[%s380] sm:$0xff]
      %v425 = vld [vmem:[%s380 + $0x8] sm:$0xff]
      %v426 = vld [vmem:[%s380 + $0x10] sm:$0xff]
      %v427 = vld [vmem:[%s380 + $0x18] sm:$0xff]
      %v428 = vld [vmem:[%s380 + $0x20] sm:$0xff]
      %v429 = vld [vmem:[%s380 + $0x28] sm:$0xff]
      %v430 = vld [vmem:[%s380 + $0x30] sm:$0xff]
      %v431 = vld [vmem:[%s380 + $0x38] sm:$0xff]
      %v432 = vld [vmem:[%s380 + $0x40] sm:$0xff]
      %v433 = vld [vmem:[%s380 + $0x48] sm:$0xff]
      %v434 = vld [vmem:[%s380 + $0x50] sm:$0xff]
      %v435 = vld [vmem:[%s380 + $0x58] sm:$0xff]
      %v436 = vld [vmem:[%s380 + $0x60] sm:$0xff]
      %v437 = vld [vmem:[%s380 + $0x68] sm:$0xff]
      %v438 = vld [vmem:[%s380 + $0x70] sm:$0xff]
      %v439 = vld [vmem:[%s380 + $0x78] sm:$0xff]
      %v440 = vld [vmem:[%s380 + $0x80] sm:$0xff]
      %v441 = vld [vmem:[%s380 + $0x88] sm:$0xff]
      %v442 = vld [vmem:[%s380 + $0x90] sm:$0xff]
      %v443 = vld [vmem:[%s380 + $0x98] sm:$0xff]
      %v444 = vld [vmem:[%s380 + $0xa0] sm:$0xff]
      %v445 = vld [vmem:[%s380 + $0xa8] sm:$0xff]
      %v446 = vld [vmem:[%s380 + $0xb0] sm:$0xff]
      %v447 = vld [vmem:[%s380 + $0xb8] sm:$0xff]
      %v448 = vld [vmem:[%s380 + $0xc0] sm:$0xff]
      %v449 = vld [vmem:[%s380 + $0xc8] sm:$0xff]
      %v450 = vld [vmem:[%s380 + $0xd0] sm:$0xff]
      %v451 = vld [vmem:[%s380 + $0xd8] sm:$0xff]
      %v452 = vld [vmem:[%s380 + $0xe0] sm:$0xff]
      %v453 = vld [vmem:[%s380 + $0xe8] sm:$0xff]
      %v454 = vld [vmem:[%s380 + $0xf0] sm:$0xff]
      %v455 = vld [vmem:[%s380 + $0xf8] sm:$0xff]
      %v456 = vld [vmem:[%s380 + $0x100] sm:$0xff]
      %v457 = vld [vmem:[%s380 + $0x108] sm:$0xff]
      %v458 = vld [vmem:[%s380 + $0x110] sm:$0xff]
      %v459 = vld [vmem:[%s380 + $0x118] sm:$0xff]
      %v460 = vld [vmem:[%s380 + $0x120] sm:$0xff]
      %v461 = vld [vmem:[%s380 + $0x128] sm:$0xff]
      %v462 = vld [vmem:[%s380 + $0x130] sm:$0xff]
      %v463 = vld [vmem:[%s380 + $0x138] sm:$0xff]
      %v464 = vld [vmem:[%s380 + $0x140] sm:$0xff]
      %v465 = vld [vmem:[%s380 + $0x148] sm:$0xff]
      %v466 = vld [vmem:[%s380 + $0x150] sm:$0xff]
      %v467 = vld [vmem:[%s380 + $0x158] sm:$0xff]
      %v468 = vld [vmem:[%s380 + $0x160] sm:$0xff]
      %v469 = vld [vmem:[%s380 + $0x168] sm:$0xff]
      %v470 = vld [vmem:[%s380 + $0x170] sm:$0xff]
      %v471 = vld [vmem:[%s380 + $0x178] sm:$0xff]
      %v472 = vld [vmem:[%s380 + $0x180] sm:$0xff]
      %v473 = vld [vmem:[%s380 + $0x188] sm:$0xff]
      %v474 = vld [vmem:[%s380 + $0x190] sm:$0xff]
      %v475 = vld [vmem:[%s380 + $0x198] sm:$0xff]
      %v476 = vld [vmem:[%s380 + $0x1a0] sm:$0xff]
      %v477 = vld [vmem:[%s380 + $0x1a8] sm:$0xff]
      %v478 = vld [vmem:[%s380 + $0x1b0] sm:$0xff]
      %v479 = vld [vmem:[%s380 + $0x1b8] sm:$0xff]
      %v480 = vld [vmem:[%s380 + $0x1c0] sm:$0xff]
      %v481 = vld [vmem:[%s380 + $0x1c8] sm:$0xff]
      %v482 = vld [vmem:[%s380 + $0x1d0] sm:$0xff]
      %v483 = vld [vmem:[%s380 + $0x1d8] sm:$0xff]
      %v484 = vld [vmem:[%s380 + $0x1e0] sm:$0xff]
      %v485 = vld [vmem:[%s380 + $0x1e8] sm:$0xff]
      %v486 = vld [vmem:[%s380 + $0x1f0] sm:$0xff]
      %v487 = vld [vmem:[%s380 + $0x1f8] sm:$0xff]
      %v488 = vld [vmem:[%s380 + $0x200] sm:$0xff]
      %v489 = vld [vmem:[%s380 + $0x208] sm:$0xff]
      %v490 = vld [vmem:[%s380 + $0x210] sm:$0xff]
      %v491 = vld [vmem:[%s380 + $0x218] sm:$0xff]
      %v492 = vld [vmem:[%s380 + $0x220] sm:$0xff]
      %v493 = vld [vmem:[%s380 + $0x228] sm:$0xff]
      %v494 = vld [vmem:[%s380 + $0x230] sm:$0xff]
      %v495 = vld [vmem:[%s380 + $0x238] sm:$0xff]
      %v496 = vld [vmem:[%s380 + $0x240] sm:$0xff]
      %v497 = vld [vmem:[%s380 + $0x248] sm:$0xff]
      %v498 = vld [vmem:[%s380 + $0x250] sm:$0xff]
      %v499 = vld [vmem:[%s380 + $0x258] sm:$0xff]
      %v500 = vld [vmem:[%s380 + $0x260] sm:$0xff]
      %v501 = vld [vmem:[%s380 + $0x268] sm:$0xff]
      %v502 = vld [vmem:[%s380 + $0x270] sm:$0xff]
      %v503 = vld [vmem:[%s380 + $0x278] sm:$0xff]
      %v504 = vld [vmem:[%s380 + $0x280] sm:$0xff]
      %v505 = vld [vmem:[%s380 + $0x288] sm:$0xff]
      %v506 = vld [vmem:[%s380 + $0x290] sm:$0xff]
      %v507 = vld [vmem:[%s380 + $0x298] sm:$0xff]
      %v508 = vld [vmem:[%s380 + $0x2a0] sm:$0xff]
      %v509 = vld [vmem:[%s380 + $0x2a8] sm:$0xff]
      %v510 = vld [vmem:[%s380 + $0x2b0] sm:$0xff]
      %v511 = vld [vmem:[%s380 + $0x2b8] sm:$0xff]
      %v512 = vld [vmem:[%s380 + $0x2c0] sm:$0xff]
      %v513 = vld [vmem:[%s380 + $0x2c8] sm:$0xff]
      %v514 = vld [vmem:[%s380 + $0x2d0] sm:$0xff]
      %v515 = vld [vmem:[%s380 + $0x2d8] sm:$0xff]
      %v516 = vld [vmem:[%s380 + $0x2e0] sm:$0xff]
      %v517 = vld [vmem:[%s380 + $0x2e8] sm:$0xff]
      %v518 = vld [vmem:[%s380 + $0x2f0] sm:$0xff]
      %v519 = vld [vmem:[%s380 + $0x2f8] sm:$0xff]
      %v520 = vld [vmem:[%s380 + $0x300] sm:$0xff]
      %v521 = vld [vmem:[%s380 + $0x308] sm:$0xff]
      %v522 = vld [vmem:[%s380 + $0x310] sm:$0xff]
      %v523 = vld [vmem:[%s380 + $0x318] sm:$0xff]
      %v524 = vld [vmem:[%s380 + $0x320] sm:$0xff]
      %v525 = vld [vmem:[%s380 + $0x328] sm:$0xff]
      %v526 = vld [vmem:[%s380 + $0x330] sm:$0xff]
      %v527 = vld [vmem:[%s380 + $0x338] sm:$0xff]
      %v528 = vld [vmem:[%s380 + $0x340] sm:$0xff]
      %v529 = vld [vmem:[%s380 + $0x348] sm:$0xff]
      %v530 = vld [vmem:[%s380 + $0x350] sm:$0xff]
      %v531 = vld [vmem:[%s380 + $0x358] sm:$0xff]
      %v532 = vld [vmem:[%s380 + $0x360] sm:$0xff]
      %v533 = vld [vmem:[%s380 + $0x368] sm:$0xff]
      %v534 = vld [vmem:[%s380 + $0x370] sm:$0xff]
      %v535 = vld [vmem:[%s380 + $0x378] sm:$0xff]
      %v536 = vld [vmem:[%s380 + $0x380] sm:$0xff]
      %v537 = vld [vmem:[%s380 + $0x388] sm:$0xff]
      %v538 = vld [vmem:[%s380 + $0x390] sm:$0xff]
      %v539 = vld [vmem:[%s380 + $0x398] sm:$0xff]
      %v540 = vld [vmem:[%s380 + $0x3a0] sm:$0xff]
      %v541 = vld [vmem:[%s380 + $0x3a8] sm:$0xff]
      %v542 = vld [vmem:[%s380 + $0x3b0] sm:$0xff]
      %v543 = vld [vmem:[%s380 + $0x3b8] sm:$0xff]
      %v544 = vld [vmem:[%s380 + $0x3c0] sm:$0xff]
      %v545 = vld [vmem:[%s380 + $0x3c8] sm:$0xff]
      %v546 = vld [vmem:[%s380 + $0x3d0] sm:$0xff]
      %v547 = vld [vmem:[%s380 + $0x3d8] sm:$0xff]
      %v548 = vld [vmem:[%s3] sm:$0xff]
      %v549 = vld [vmem:[%s3 + $0x8] sm:$0xff]
      %v550 = vld [vmem:[%s394] sm:$0xff]
      %v551 = vld [vmem:[%s394 + $0x8] sm:$0xff]
      %v552 = vld [vmem:[%s394 + $0x10] sm:$0xff]
      %v553 = vld [vmem:[%s394 + $0x18] sm:$0xff]
      %v554 = vld [vmem:[%s394 + $0x20] sm:$0xff]
      %v555 = vld [vmem:[%s394 + $0x28] sm:$0xff]
      %v556 = vld [vmem:[%s394 + $0x30] sm:$0xff]
      %v557 = vld [vmem:[%s394 + $0x38] sm:$0xff]
      %v558 = vld [vmem:[%s394 + $0x40] sm:$0xff]
      %v559 = vld [vmem:[%s394 + $0x48] sm:$0xff]
      %v560 = vld [vmem:[%s394 + $0x50] sm:$0xff]
      %v561 = vld [vmem:[%s394 + $0x58] sm:$0xff]
      %v562 = vld [vmem:[%s394 + $0x60] sm:$0xff]
      %v563 = vld [vmem:[%s394 + $0x68] sm:$0xff]
      %v564 = vld [vmem:[%s394 + $0x70] sm:$0xff]
      %v565 = vld [vmem:[%s394 + $0x78] sm:$0xff]
      %v566 = vld [vmem:[%s394 + $0x80] sm:$0xff]
      %v567 = vld [vmem:[%s394 + $0x88] sm:$0xff]
      %v568 = vld [vmem:[%s394 + $0x90] sm:$0xff]
      %v569 = vld [vmem:[%s394 + $0x98] sm:$0xff]
      %v570 = vld [vmem:[%s394 + $0xa0] sm:$0xff]
      %v571 = vld [vmem:[%s394 + $0xa8] sm:$0xff]
      %v572 = vld [vmem:[%s394 + $0xb0] sm:$0xff]
      %v573 = vld [vmem:[%s394 + $0xb8] sm:$0xff]
      %v574 = vld [vmem:[%s394 + $0xc0] sm:$0xff]
      %v575 = vld [vmem:[%s394 + $0xc8] sm:$0xff]
      %v576 = vld [vmem:[%s394 + $0xd0] sm:$0xff]
      %v577 = vld [vmem:[%s394 + $0xd8] sm:$0xff]
      %v578 = vld [vmem:[%s394 + $0xe0] sm:$0xff]
      %v579 = vld [vmem:[%s394 + $0xe8] sm:$0xff]
      %v580 = vld [vmem:[%s394 + $0xf0] sm:$0xff]
      %v581 = vld [vmem:[%s394 + $0xf8] sm:$0xff]
      %v582 = vld [vmem:[%s394 + $0x100] sm:$0xff]
      %v583 = vld [vmem:[%s394 + $0x108] sm:$0xff]
      %v584 = vld [vmem:[%s394 + $0x110] sm:$0xff]
      %v585 = vld [vmem:[%s394 + $0x118] sm:$0xff]
      %v586 = vld [vmem:[%s394 + $0x120] sm:$0xff]
      %v587 = vld [vmem:[%s394 + $0x128] sm:$0xff]
      %v588 = vld [vmem:[%s394 + $0x130] sm:$0xff]
      %v589 = vld [vmem:[%s394 + $0x138] sm:$0xff]
      %v590 = vld [vmem:[%s394 + $0x140] sm:$0xff]
      %v591 = vld [vmem:[%s394 + $0x148] sm:$0xff]
      %v592 = vld [vmem:[%s394 + $0x150] sm:$0xff]
      %v593 = vld [vmem:[%s394 + $0x158] sm:$0xff]
      %v594 = vld [vmem:[%s394 + $0x160] sm:$0xff]
      %v595 = vld [vmem:[%s394 + $0x168] sm:$0xff]
      %v596 = vld [vmem:[%s394 + $0x170] sm:$0xff]
      %v597 = vld [vmem:[%s394 + $0x178] sm:$0xff]
      %v598 = vld [vmem:[%s394 + $0x180] sm:$0xff]
      %v599 = vld [vmem:[%s394 + $0x188] sm:$0xff]
      %v600 = vld [vmem:[%s394 + $0x190] sm:$0xff]
      %v601 = vld [vmem:[%s394 + $0x198] sm:$0xff]
      %v602 = vld [vmem:[%s394 + $0x1a0] sm:$0xff]
      %v603 = vld [vmem:[%s394 + $0x1a8] sm:$0xff]
      %v604 = vld [vmem:[%s394 + $0x1b0] sm:$0xff]
      %v605 = vld [vmem:[%s394 + $0x1b8] sm:$0xff]
      %v606 = vld [vmem:[%s394 + $0x1c0] sm:$0xff]
      %v607 = vld [vmem:[%s394 + $0x1c8] sm:$0xff]
      %v608 = vld [vmem:[%s394 + $0x1d0] sm:$0xff]
      %v609 = vld [vmem:[%s394 + $0x1d8] sm:$0xff]
      %v610 = vld [vmem:[%s394 + $0x1e0] sm:$0xff]
      %v611 = vld [vmem:[%s394 + $0x1e8] sm:$0xff]
      %v612 = vld [vmem:[%s394 + $0x1f0] sm:$0xff]
      %v613 = vld [vmem:[%s394 + $0x1f8] sm:$0xff]
      %v614 = vld [vmem:[%s394 + $0x200] sm:$0xff]
      %v615 = vld [vmem:[%s394 + $0x208] sm:$0xff]
      %v616 = vld [vmem:[%s394 + $0x210] sm:$0xff]
      %v617 = vld [vmem:[%s394 + $0x218] sm:$0xff]
      %v618 = vld [vmem:[%s394 + $0x220] sm:$0xff]
      %v619 = vld [vmem:[%s394 + $0x228] sm:$0xff]
      %v620 = vld [vmem:[%s394 + $0x230] sm:$0xff]
      %v621 = vld [vmem:[%s394 + $0x238] sm:$0xff]
      %v622 = vld [vmem:[%s394 + $0x240] sm:$0xff]
      %v623 = vld [vmem:[%s394 + $0x248] sm:$0xff]
      %v624 = vld [vmem:[%s394 + $0x250] sm:$0xff]
      %v625 = vld [vmem:[%s394 + $0x258] sm:$0xff]
      %v626 = vld [vmem:[%s394 + $0x260] sm:$0xff]
      %v627 = vld [vmem:[%s394 + $0x268] sm:$0xff]
      %v628 = vld [vmem:[%s394 + $0x270] sm:$0xff]
      %v629 = vld [vmem:[%s394 + $0x278] sm:$0xff]
      %v630 = vld [vmem:[%s394 + $0x280] sm:$0xff]
      %v631 = vld [vmem:[%s394 + $0x288] sm:$0xff]
      %v632 = vld [vmem:[%s394 + $0x290] sm:$0xff]
      %v633 = vld [vmem:[%s394 + $0x298] sm:$0xff]
      %v634 = vld [vmem:[%s394 + $0x2a0] sm:$0xff]
      %v635 = vld [vmem:[%s394 + $0x2a8] sm:$0xff]
      %v636 = vld [vmem:[%s394 + $0x2b0] sm:$0xff]
      %v637 = vld [vmem:[%s394 + $0x2b8] sm:$0xff]
      %v638 = vld [vmem:[%s394 + $0x2c0] sm:$0xff]
      %v639 = vld [vmem:[%s394 + $0x2c8] sm:$0xff]
      %v640 = vld [vmem:[%s394 + $0x2d0] sm:$0xff]
      %v641 = vld [vmem:[%s394 + $0x2d8] sm:$0xff]
      %v642 = vld [vmem:[%s394 + $0x2e0] sm:$0xff]
      %v643 = vld [vmem:[%s394 + $0x2e8] sm:$0xff]
      %v644 = vld [vmem:[%s394 + $0x2f0] sm:$0xff]
      %v645 = vld [vmem:[%s394 + $0x2f8] sm:$0xff]
      %v646 = vld [vmem:[%s394 + $0x300] sm:$0xff]
      %v647 = vld [vmem:[%s394 + $0x308] sm:$0xff]
      %v648 = vld [vmem:[%s394 + $0x310] sm:$0xff]
      %v649 = vld [vmem:[%s394 + $0x318] sm:$0xff]
      %v650 = vld [vmem:[%s394 + $0x320] sm:$0xff]
      %v651 = vld [vmem:[%s394 + $0x328] sm:$0xff]
      %v652 = vld [vmem:[%s394 + $0x330] sm:$0xff]
      %v653 = vld [vmem:[%s394 + $0x338] sm:$0xff]
      %v654 = vld [vmem:[%s394 + $0x340] sm:$0xff]
      %v655 = vld [vmem:[%s394 + $0x348] sm:$0xff]
      %v656 = vld [vmem:[%s394 + $0x350] sm:$0xff]
      %v657 = vld [vmem:[%s394 + $0x358] sm:$0xff]
      %v658 = vld [vmem:[%s394 + $0x360] sm:$0xff]
      %v659 = vld [vmem:[%s394 + $0x368] sm:$0xff]
      %v660 = vld [vmem:[%s394 + $0x370] sm:$0xff]
      %v661 = vld [vmem:[%s394 + $0x378] sm:$0xff]
      %v662 = vld [vmem:[%s394 + $0x380] sm:$0xff]
      %v663 = vld [vmem:[%s394 + $0x388] sm:$0xff]
      %v664 = vld [vmem:[%s394 + $0x390] sm:$0xff]
      %v665 = vld [vmem:[%s394 + $0x398] sm:$0xff]
      %v666 = vld [vmem:[%s394 + $0x3a0] sm:$0xff]
      %v667 = vld [vmem:[%s394 + $0x3a8] sm:$0xff]
      %v668 = vld [vmem:[%s394 + $0x3b0] sm:$0xff]
      %v669 = vld [vmem:[%s394 + $0x3b8] sm:$0xff]
      %v670 = vld [vmem:[%s394 + $0x3c0] sm:$0xff]
      %v671 = vld [vmem:[%s394 + $0x3c8] sm:$0xff]
      %v672 = vld [vmem:[%s394 + $0x3d0] sm:$0xff]
      %v673 = vld [vmem:[%s394 + $0x3d8] sm:$0xff]
      %v674 = vld [vmem:[%s4] sm:$0xff]
      %v675 = vld [vmem:[%s4 + $0x8] sm:$0xff]
      %vm676 = vcmask 130048
      %v678 = vsel %vm676, %v550, 0
      %v681 = vsel %vm676, %v551, 0
      %v684 = vsel %vm676, %v552, 0
      %v687 = vsel %vm676, %v553, 0
      %v690 = vsel %vm676, %v554, 0
      %v693 = vsel %vm676, %v555, 0
      %v696 = vsel %vm676, %v556, 0
      %v699 = vsel %vm676, %v557, 0
      %v702 = vsel %vm676, %v558, 0
      %v705 = vsel %vm676, %v559, 0
      %v708 = vsel %vm676, %v560, 0
      %v711 = vsel %vm676, %v561, 0
      %v714 = vsel %vm676, %v562, 0
      %v717 = vsel %vm676, %v563, 0
      %v720 = vsel %vm676, %v564, 0
      %v723 = vsel %vm676, %v565, 0
      %v726 = vsel %vm676, %v566, 0
      %v729 = vsel %vm676, %v567, 0
      %v732 = vsel %vm676, %v568, 0
      %v735 = vsel %vm676, %v569, 0
      %v738 = vsel %vm676, %v570, 0
      %v741 = vsel %vm676, %v571, 0
      %v744 = vsel %vm676, %v572, 0
      %v747 = vsel %vm676, %v573, 0
      %v750 = vsel %vm676, %v574, 0
      %v753 = vsel %vm676, %v575, 0
      %v756 = vsel %vm676, %v576, 0
      %v759 = vsel %vm676, %v577, 0
      %v762 = vsel %vm676, %v578, 0
      %v765 = vsel %vm676, %v579, 0
      %v768 = vsel %vm676, %v580, 0
      %v771 = vsel %vm676, %v581, 0
      %v774 = vsel %vm676, %v582, 0
      %v777 = vsel %vm676, %v583, 0
      %v780 = vsel %vm676, %v584, 0
      %v783 = vsel %vm676, %v585, 0
      %v786 = vsel %vm676, %v586, 0
      %v789 = vsel %vm676, %v587, 0
      %v792 = vsel %vm676, %v588, 0
      %v795 = vsel %vm676, %v589, 0
      %v798 = vsel %vm676, %v590, 0
      %v801 = vsel %vm676, %v591, 0
      %v804 = vsel %vm676, %v592, 0
      %v807 = vsel %vm676, %v593, 0
      %v810 = vsel %vm676, %v594, 0
      %v813 = vsel %vm676, %v595, 0
      %v816 = vsel %vm676, %v596, 0
      %v819 = vsel %vm676, %v597, 0
      %v822 = vsel %vm676, %v598, 0
      %v825 = vsel %vm676, %v599, 0
      %v828 = vsel %vm676, %v600, 0
      %v831 = vsel %vm676, %v601, 0
      %v834 = vsel %vm676, %v602, 0
      %v837 = vsel %vm676, %v603, 0
      %v840 = vsel %vm676, %v604, 0
      %v843 = vsel %vm676, %v605, 0
      %v846 = vsel %vm676, %v606, 0
      %v849 = vsel %vm676, %v607, 0
      %v852 = vsel %vm676, %v608, 0
      %v855 = vsel %vm676, %v609, 0
      %v858 = vsel %vm676, %v610, 0
      %v861 = vsel %vm676, %v611, 0
      %v864 = vsel %vm676, %v612, 0
      %v867 = vsel %vm676, %v613, 0
      %v870 = vsel %vm676, %v614, 0
      %v873 = vsel %vm676, %v615, 0
      %v876 = vsel %vm676, %v616, 0
      %v879 = vsel %vm676, %v617, 0
      %v882 = vsel %vm676, %v618, 0
      %v885 = vsel %vm676, %v619, 0
      %v888 = vsel %vm676, %v620, 0
      %v891 = vsel %vm676, %v621, 0
      %v894 = vsel %vm676, %v622, 0
      %v897 = vsel %vm676, %v623, 0
      %v900 = vsel %vm676, %v624, 0
      %v903 = vsel %vm676, %v625, 0
      %v906 = vsel %vm676, %v626, 0
      %v909 = vsel %vm676, %v627, 0
      %v912 = vsel %vm676, %v628, 0
      %v915 = vsel %vm676, %v629, 0
      %v918 = vsel %vm676, %v630, 0
      %v921 = vsel %vm676, %v631, 0
      %v924 = vsel %vm676, %v632, 0
      %v927 = vsel %vm676, %v633, 0
      %v930 = vsel %vm676, %v634, 0
      %v933 = vsel %vm676, %v635, 0
      %v936 = vsel %vm676, %v636, 0
      %v939 = vsel %vm676, %v637, 0
      %v942 = vsel %vm676, %v638, 0
      %v945 = vsel %vm676, %v639, 0
      %v948 = vsel %vm676, %v640, 0
      %v951 = vsel %vm676, %v641, 0
      %v954 = vsel %vm676, %v642, 0
      %v957 = vsel %vm676, %v643, 0
      %v960 = vsel %vm676, %v644, 0
      %v963 = vsel %vm676, %v645, 0
      %v966 = vsel %vm676, %v646, 0
      %v969 = vsel %vm676, %v647, 0
      %v972 = vsel %vm676, %v648, 0
      %v975 = vsel %vm676, %v649, 0
      %v978 = vsel %vm676, %v650, 0
      %v981 = vsel %vm676, %v651, 0
      %v984 = vsel %vm676, %v652, 0
      %v987 = vsel %vm676, %v653, 0
      %v990 = vsel %vm676, %v654, 0
      %v993 = vsel %vm676, %v655, 0
      %v996 = vsel %vm676, %v656, 0
      %v999 = vsel %vm676, %v657, 0
      %v1002 = vsel %vm676, %v658, 0
      %v1005 = vsel %vm676, %v659, 0
      %v1008 = vsel %vm676, %v660, 0
      %v1011 = vsel %vm676, %v661, 0
      %v1014 = vsel %vm676, %v662, 0
      %v1017 = vsel %vm676, %v663, 0
      %v1020 = vsel %vm676, %v664, 0
      %v1023 = vsel %vm676, %v665, 0
      %v1026 = vsel %vm676, %v666, 0
      %v1029 = vsel %vm676, %v667, 0
      %v1032 = vsel %vm676, %v668, 0
      %v1035 = vsel %vm676, %v669, 0
      %v1038 = vsel %vm676, %v670, 0
      %v1041 = vsel %vm676, %v671, 0
      %v1044 = vsel %vm676, %v672, 0
      %v1047 = vsel %vm676, %v673, 0
      %1049 = vmatprep.subr.mxu0 0.0
      %1050 = vmatpush1.msra.mxu0 0.0
      %1051 = vmatprep.subr.mxu0 0.0
      %1052 = vmatpush1.msra.mxu0 0.0
      %1053 = vmatprep.subr.mxu0 0.0
      %1054 = vmatpush1.msra.mxu0 0.0
      %1055 = vmatprep.subr.mxu0 0.0
      %1056 = vmatpush1.msra.mxu0 0.0
      %1057 = vmatprep.subr.mxu0 0.0
      %1058 = vmatpush1.msra.mxu0 0.0
      %1059 = vmatprep.subr.mxu0 0.0
      %1060 = vmatpush1.msra.mxu0 0.0
      %1061 = vmatprep.subr.mxu0 0.0
      %1062 = vmatpush1.msra.mxu0 0.0
      %1063 = vmatprep.subr.mxu0 0.0
      %1064 = vmatpush1.msra.mxu0 0.0
      %1065 = vmatprep.subr.mxu0 0.0
      %1066 = vmatpush1.msra.mxu0 0.0
      %1067 = vmatprep.subr.mxu0 0.0
      %1068 = vmatpush1.msra.mxu0 0.0
      %1069 = vmatprep.subr.mxu0 0.0
      %1070 = vmatpush1.msra.mxu0 0.0
      %1071 = vmatprep.subr.mxu0 0.0
      %1072 = vmatpush1.msra.mxu0 0.0
      %1073 = vmatprep.subr.mxu0 0.0
      %1074 = vmatpush1.msra.mxu0 0.0
      %1075 = vmatprep.subr.mxu0 0.0
      %1076 = vmatpush1.msra.mxu0 0.0
      %1077 = vmatprep.subr.mxu0 0.0
      %1078 = vmatpush1.msra.mxu0 %v675
      %1079 = vmatprep.subr.mxu0 0.0
      %1080 = vmatpush1.msra.mxu0 %v674
      %1081 = vmatprep.subr.mxu0 0.0
      %1082 = vmatpush2.msra.mxu0 0.0
      %1083 = vmatprep.subr.mxu0 0.0
      %1084 = vmatpush2.msra.mxu0 0.0
      %1085 = vmatprep.subr.mxu0 0.0
      %1086 = vmatpush2.msra.mxu0 0.0
      %1087 = vmatprep.subr.mxu0 0.0
      %1088 = vmatpush2.msra.mxu0 0.0
      %1089 = vmatprep.subr.mxu0 0.0
      %1090 = vmatpush2.msra.mxu0 0.0
      %1091 = vmatprep.subr.mxu0 0.0
      %1092 = vmatpush2.msra.mxu0 0.0
      %1093 = vmatprep.subr.mxu0 0.0
      %1094 = vmatpush2.msra.mxu0 0.0
      %1095 = vmatprep.subr.mxu0 0.0
      %1096 = vmatpush2.msra.mxu0 0.0
      %1097 = vmatprep.subr.mxu0 0.0
      %1098 = vmatpush2.msra.mxu0 0.0
      %1099 = vmatprep.subr.mxu0 0.0
      %1100 = vmatpush2.msra.mxu0 0.0
      %1101 = vmatprep.subr.mxu0 0.0
      %1102 = vmatpush2.msra.mxu0 0.0
      %1103 = vmatprep.subr.mxu0 0.0
      %1104 = vmatpush2.msra.mxu0 0.0
      %1105 = vmatprep.subr.mxu0 0.0
      %1106 = vmatpush2.msra.mxu0 0.0
      %1107 = vmatprep.subr.mxu0 0.0
      %1108 = vmatpush2.msra.mxu0 0.0
      %1109 = vmatprep.subr.mxu0 0.0
      %1110 = vmatpush2.msra.mxu0 0.0
      %1111 = vmatprep.subr.mxu0 0.0
      %1112 = vmatpush2.msra.mxu0 0.0
      %1113 = vmatprep.mubr.f32.mxu0 0.0
      %1114 = vmatmul.mubr.f32.gmra.mxu0 %v678
      %v1115 = vpop.f32.mrf.mxu0
      %v1116 = vadd.f32 0.0, %v1115
      %v1117 = vpop.f32.mrf.mxu0
      %1118 = vmatprep.mubr.f32.mxu0 0.0
      %1119 = vmatmul.mubr.f32.gmra.mxu0 %v681
      %v1120 = vpop.f32.mrf.mxu0
      %v1121 = vadd.f32 0.0, %v1120
      %v1122 = vpop.f32.mrf.mxu0
      %1123 = vmatprep.mubr.f32.mxu0 0.0
      %1124 = vmatmul.mubr.f32.gmra.mxu0 %v684
      %v1125 = vpop.f32.mrf.mxu0
      %v1126 = vadd.f32 0.0, %v1125
      %v1127 = vpop.f32.mrf.mxu0
      %1128 = vmatprep.mubr.f32.mxu0 0.0
      %1129 = vmatmul.mubr.f32.gmra.mxu0 %v687
      %v1130 = vpop.f32.mrf.mxu0
      %v1131 = vadd.f32 0.0, %v1130
      %v1132 = vpop.f32.mrf.mxu0
      %1133 = vmatprep.mubr.f32.mxu0 0.0
      %1134 = vmatmul.mubr.f32.gmra.mxu0 %v690
      %v1135 = vpop.f32.mrf.mxu0
      %v1136 = vadd.f32 0.0, %v1135
      %v1137 = vpop.f32.mrf.mxu0
      %1138 = vmatprep.mubr.f32.mxu0 0.0
      %1139 = vmatmul.mubr.f32.gmra.mxu0 %v693
      %v1140 = vpop.f32.mrf.mxu0
      %v1141 = vadd.f32 0.0, %v1140
      %v1142 = vpop.f32.mrf.mxu0
      %1143 = vmatprep.mubr.f32.mxu0 0.0
      %1144 = vmatmul.mubr.f32.gmra.mxu0 %v696
      %v1145 = vpop.f32.mrf.mxu0
      %v1146 = vadd.f32 0.0, %v1145
      %v1147 = vpop.f32.mrf.mxu0
      %1148 = vmatprep.mubr.f32.mxu0 0.0
      %1149 = vmatmul.mubr.f32.gmra.mxu0 %v699
      %v1150 = vpop.f32.mrf.mxu0
      %v1151 = vadd.f32 0.0, %v1150
      %v1152 = vpop.f32.mrf.mxu0
      %1153 = vmatprep.mubr.f32.mxu0 0.0
      %1154 = vmatmul.mubr.f32.gmra.mxu0 %v702
      %v1155 = vpop.f32.mrf.mxu0
      %v1156 = vadd.f32 0.0, %v1155
      %v1157 = vpop.f32.mrf.mxu0
      %1158 = vmatprep.mubr.f32.mxu0 0.0
      %1159 = vmatmul.mubr.f32.gmra.mxu0 %v705
      %v1160 = vpop.f32.mrf.mxu0
      %v1161 = vadd.f32 0.0, %v1160
      %v1162 = vpop.f32.mrf.mxu0
      %1163 = vmatprep.mubr.f32.mxu0 0.0
      %1164 = vmatmul.mubr.f32.gmra.mxu0 %v708
      %v1165 = vpop.f32.mrf.mxu0
      %v1166 = vadd.f32 0.0, %v1165
      %v1167 = vpop.f32.mrf.mxu0
      %1168 = vmatprep.mubr.f32.mxu0 0.0
      %1169 = vmatmul.mubr.f32.gmra.mxu0 %v711
      %v1170 = vpop.f32.mrf.mxu0
      %v1171 = vadd.f32 0.0, %v1170
      %v1172 = vpop.f32.mrf.mxu0
      %1173 = vmatprep.mubr.f32.mxu0 0.0
      %1174 = vmatmul.mubr.f32.gmra.mxu0 %v714
      %v1175 = vpop.f32.mrf.mxu0
      %v1176 = vadd.f32 0.0, %v1175
      %v1177 = vpop.f32.mrf.mxu0
      %1178 = vmatprep.mubr.f32.mxu0 0.0
      %1179 = vmatmul.mubr.f32.gmra.mxu0 %v717
      %v1180 = vpop.f32.mrf.mxu0
      %v1181 = vadd.f32 0.0, %v1180
      %v1182 = vpop.f32.mrf.mxu0
      %1183 = vmatprep.mubr.f32.mxu0 0.0
      %1184 = vmatmul.mubr.f32.gmra.mxu0 %v720
      %v1185 = vpop.f32.mrf.mxu0
      %v1186 = vadd.f32 0.0, %v1185
      %v1187 = vpop.f32.mrf.mxu0
      %1188 = vmatprep.mubr.f32.mxu0 0.0
      %1189 = vmatmul.mubr.f32.gmra.mxu0 %v723
      %v1190 = vpop.f32.mrf.mxu0
      %v1191 = vadd.f32 0.0, %v1190
      %v1192 = vpop.f32.mrf.mxu0
      %1193 = vmatprep.mubr.f32.mxu0 0.0
      %1194 = vmatmul.mubr.f32.gmra.mxu0 %v726
      %v1195 = vpop.f32.mrf.mxu0
      %v1196 = vadd.f32 0.0, %v1195
      %v1197 = vpop.f32.mrf.mxu0
      %1198 = vmatprep.mubr.f32.mxu0 0.0
      %1199 = vmatmul.mubr.f32.gmra.mxu0 %v729
      %v1200 = vpop.f32.mrf.mxu0
      %v1201 = vadd.f32 0.0, %v1200
      %v1202 = vpop.f32.mrf.mxu0
      %1203 = vmatprep.mubr.f32.mxu0 0.0
      %1204 = vmatmul.mubr.f32.gmra.mxu0 %v732
      %v1205 = vpop.f32.mrf.mxu0
      %v1206 = vadd.f32 0.0, %v1205
      %v1207 = vpop.f32.mrf.mxu0
      %1208 = vmatprep.mubr.f32.mxu0 0.0
      %1209 = vmatmul.mubr.f32.gmra.mxu0 %v735
      %v1210 = vpop.f32.mrf.mxu0
      %v1211 = vadd.f32 0.0, %v1210
      %v1212 = vpop.f32.mrf.mxu0
      %1213 = vmatprep.mubr.f32.mxu0 0.0
      %1214 = vmatmul.mubr.f32.gmra.mxu0 %v738
      %v1215 = vpop.f32.mrf.mxu0
      %v1216 = vadd.f32 0.0, %v1215
      %v1217 = vpop.f32.mrf.mxu0
      %1218 = vmatprep.mubr.f32.mxu0 0.0
      %1219 = vmatmul.mubr.f32.gmra.mxu0 %v741
      %v1220 = vpop.f32.mrf.mxu0
      %v1221 = vadd.f32 0.0, %v1220
      %v1222 = vpop.f32.mrf.mxu0
      %1223 = vmatprep.mubr.f32.mxu0 0.0
      %1224 = vmatmul.mubr.f32.gmra.mxu0 %v744
      %v1225 = vpop.f32.mrf.mxu0
      %v1226 = vadd.f32 0.0, %v1225
      %v1227 = vpop.f32.mrf.mxu0
      %1228 = vmatprep.mubr.f32.mxu0 0.0
      %1229 = vmatmul.mubr.f32.gmra.mxu0 %v747
      %v1230 = vpop.f32.mrf.mxu0
      %v1231 = vadd.f32 0.0, %v1230
      %v1232 = vpop.f32.mrf.mxu0
      %1233 = vmatprep.mubr.f32.mxu0 0.0
      %1234 = vmatmul.mubr.f32.gmra.mxu0 %v750
      %v1235 = vpop.f32.mrf.mxu0
      %v1236 = vadd.f32 0.0, %v1235
      %v1237 = vpop.f32.mrf.mxu0
      %1238 = vmatprep.mubr.f32.mxu0 0.0
      %1239 = vmatmul.mubr.f32.gmra.mxu0 %v753
      %v1240 = vpop.f32.mrf.mxu0
      %v1241 = vadd.f32 0.0, %v1240
      %v1242 = vpop.f32.mrf.mxu0
      %1243 = vmatprep.mubr.f32.mxu0 0.0
      %1244 = vmatmul.mubr.f32.gmra.mxu0 %v756
      %v1245 = vpop.f32.mrf.mxu0
      %v1246 = vadd.f32 0.0, %v1245
      %v1247 = vpop.f32.mrf.mxu0
      %1248 = vmatprep.mubr.f32.mxu0 0.0
      %1249 = vmatmul.mubr.f32.gmra.mxu0 %v759
      %v1250 = vpop.f32.mrf.mxu0
      %v1251 = vadd.f32 0.0, %v1250
      %v1252 = vpop.f32.mrf.mxu0
      %1253 = vmatprep.mubr.f32.mxu0 0.0
      %1254 = vmatmul.mubr.f32.gmra.mxu0 %v762
      %v1255 = vpop.f32.mrf.mxu0
      %v1256 = vadd.f32 0.0, %v1255
      %v1257 = vpop.f32.mrf.mxu0
      %1258 = vmatprep.mubr.f32.mxu0 0.0
      %1259 = vmatmul.mubr.f32.gmra.mxu0 %v765
      %v1260 = vpop.f32.mrf.mxu0
      %v1261 = vadd.f32 0.0, %v1260
      %v1262 = vpop.f32.mrf.mxu0
      %1263 = vmatprep.mubr.f32.mxu0 0.0
      %1264 = vmatmul.mubr.f32.gmra.mxu0 %v768
      %v1265 = vpop.f32.mrf.mxu0
      %v1266 = vadd.f32 0.0, %v1265
      %v1267 = vpop.f32.mrf.mxu0
      %1268 = vmatprep.mubr.f32.mxu0 0.0
      %1269 = vmatmul.mubr.f32.gmra.mxu0 %v771
      %v1270 = vpop.f32.mrf.mxu0
      %v1271 = vadd.f32 0.0, %v1270
      %v1272 = vpop.f32.mrf.mxu0
      %1273 = vmatprep.mubr.f32.mxu0 0.0
      %1274 = vmatmul.mubr.f32.gmra.mxu0 %v774
      %v1275 = vpop.f32.mrf.mxu0
      %v1276 = vadd.f32 0.0, %v1275
      %v1277 = vpop.f32.mrf.mxu0
      %1278 = vmatprep.mubr.f32.mxu0 0.0
      %1279 = vmatmul.mubr.f32.gmra.mxu0 %v777
      %v1280 = vpop.f32.mrf.mxu0
      %v1281 = vadd.f32 0.0, %v1280
      %v1282 = vpop.f32.mrf.mxu0
      %1283 = vmatprep.mubr.f32.mxu0 0.0
      %1284 = vmatmul.mubr.f32.gmra.mxu0 %v780
      %v1285 = vpop.f32.mrf.mxu0
      %v1286 = vadd.f32 0.0, %v1285
      %v1287 = vpop.f32.mrf.mxu0
      %1288 = vmatprep.mubr.f32.mxu0 0.0
      %1289 = vmatmul.mubr.f32.gmra.mxu0 %v783
      %v1290 = vpop.f32.mrf.mxu0
      %v1291 = vadd.f32 0.0, %v1290
      %v1292 = vpop.f32.mrf.mxu0
      %1293 = vmatprep.mubr.f32.mxu0 0.0
      %1294 = vmatmul.mubr.f32.gmra.mxu0 %v786
      %v1295 = vpop.f32.mrf.mxu0
      %v1296 = vadd.f32 0.0, %v1295
      %v1297 = vpop.f32.mrf.mxu0
      %1298 = vmatprep.mubr.f32.mxu0 0.0
      %1299 = vmatmul.mubr.f32.gmra.mxu0 %v789
      %v1300 = vpop.f32.mrf.mxu0
      %v1301 = vadd.f32 0.0, %v1300
      %v1302 = vpop.f32.mrf.mxu0
      %1303 = vmatprep.mubr.f32.mxu0 0.0
      %1304 = vmatmul.mubr.f32.gmra.mxu0 %v792
      %v1305 = vpop.f32.mrf.mxu0
      %v1306 = vadd.f32 0.0, %v1305
      %v1307 = vpop.f32.mrf.mxu0
      %1308 = vmatprep.mubr.f32.mxu0 0.0
      %1309 = vmatmul.mubr.f32.gmra.mxu0 %v795
      %v1310 = vpop.f32.mrf.mxu0
      %v1311 = vadd.f32 0.0, %v1310
      %v1312 = vpop.f32.mrf.mxu0
      %1313 = vmatprep.mubr.f32.mxu0 0.0
      %1314 = vmatmul.mubr.f32.gmra.mxu0 %v798
      %v1315 = vpop.f32.mrf.mxu0
      %v1316 = vadd.f32 0.0, %v1315
      %v1317 = vpop.f32.mrf.mxu0
      %1318 = vmatprep.mubr.f32.mxu0 0.0
      %1319 = vmatmul.mubr.f32.gmra.mxu0 %v801
      %v1320 = vpop.f32.mrf.mxu0
      %v1321 = vadd.f32 0.0, %v1320
      %v1322 = vpop.f32.mrf.mxu0
      %1323 = vmatprep.mubr.f32.mxu0 0.0
      %1324 = vmatmul.mubr.f32.gmra.mxu0 %v804
      %v1325 = vpop.f32.mrf.mxu0
      %v1326 = vadd.f32 0.0, %v1325
      %v1327 = vpop.f32.mrf.mxu0
      %1328 = vmatprep.mubr.f32.mxu0 0.0
      %1329 = vmatmul.mubr.f32.gmra.mxu0 %v807
      %v1330 = vpop.f32.mrf.mxu0
      %v1331 = vadd.f32 0.0, %v1330
      %v1332 = vpop.f32.mrf.mxu0
      %1333 = vmatprep.mubr.f32.mxu0 0.0
      %1334 = vmatmul.mubr.f32.gmra.mxu0 %v810
      %v1335 = vpop.f32.mrf.mxu0
      %v1336 = vadd.f32 0.0, %v1335
      %v1337 = vpop.f32.mrf.mxu0
      %1338 = vmatprep.mubr.f32.mxu0 0.0
      %1339 = vmatmul.mubr.f32.gmra.mxu0 %v813
      %v1340 = vpop.f32.mrf.mxu0
      %v1341 = vadd.f32 0.0, %v1340
      %v1342 = vpop.f32.mrf.mxu0
      %1343 = vmatprep.mubr.f32.mxu0 0.0
      %1344 = vmatmul.mubr.f32.gmra.mxu0 %v816
      %v1345 = vpop.f32.mrf.mxu0
      %v1346 = vadd.f32 0.0, %v1345
      %v1347 = vpop.f32.mrf.mxu0
      %1348 = vmatprep.mubr.f32.mxu0 0.0
      %1349 = vmatmul.mubr.f32.gmra.mxu0 %v819
      %v1350 = vpop.f32.mrf.mxu0
      %v1351 = vadd.f32 0.0, %v1350
      %v1352 = vpop.f32.mrf.mxu0
      %1353 = vmatprep.mubr.f32.mxu0 0.0
      %1354 = vmatmul.mubr.f32.gmra.mxu0 %v822
      %v1355 = vpop.f32.mrf.mxu0
      %v1356 = vadd.f32 0.0, %v1355
      %v1357 = vpop.f32.mrf.mxu0
      %1358 = vmatprep.mubr.f32.mxu0 0.0
      %1359 = vmatmul.mubr.f32.gmra.mxu0 %v825
      %v1360 = vpop.f32.mrf.mxu0
      %v1361 = vadd.f32 0.0, %v1360
      %v1362 = vpop.f32.mrf.mxu0
      %1363 = vmatprep.mubr.f32.mxu0 0.0
      %1364 = vmatmul.mubr.f32.gmra.mxu0 %v828
      %v1365 = vpop.f32.mrf.mxu0
      %v1366 = vadd.f32 0.0, %v1365
      %v1367 = vpop.f32.mrf.mxu0
      %1368 = vmatprep.mubr.f32.mxu0 0.0
      %1369 = vmatmul.mubr.f32.gmra.mxu0 %v831
      %v1370 = vpop.f32.mrf.mxu0
      %v1371 = vadd.f32 0.0, %v1370
      %v1372 = vpop.f32.mrf.mxu0
      %1373 = vmatprep.mubr.f32.mxu0 0.0
      %1374 = vmatmul.mubr.f32.gmra.mxu0 %v834
      %v1375 = vpop.f32.mrf.mxu0
      %v1376 = vadd.f32 0.0, %v1375
      %v1377 = vpop.f32.mrf.mxu0
      %1378 = vmatprep.mubr.f32.mxu0 0.0
      %1379 = vmatmul.mubr.f32.gmra.mxu0 %v837
      %v1380 = vpop.f32.mrf.mxu0
      %v1381 = vadd.f32 0.0, %v1380
      %v1382 = vpop.f32.mrf.mxu0
      %1383 = vmatprep.mubr.f32.mxu0 0.0
      %1384 = vmatmul.mubr.f32.gmra.mxu0 %v840
      %v1385 = vpop.f32.mrf.mxu0
      %v1386 = vadd.f32 0.0, %v1385
      %v1387 = vpop.f32.mrf.mxu0
      %1388 = vmatprep.mubr.f32.mxu0 0.0
      %1389 = vmatmul.mubr.f32.gmra.mxu0 %v843
      %v1390 = vpop.f32.mrf.mxu0
      %v1391 = vadd.f32 0.0, %v1390
      %v1392 = vpop.f32.mrf.mxu0
      %1393 = vmatprep.mubr.f32.mxu0 0.0
      %1394 = vmatmul.mubr.f32.gmra.mxu0 %v846
      %v1395 = vpop.f32.mrf.mxu0
      %v1396 = vadd.f32 0.0, %v1395
      %v1397 = vpop.f32.mrf.mxu0
      %1398 = vmatprep.mubr.f32.mxu0 0.0
      %1399 = vmatmul.mubr.f32.gmra.mxu0 %v849
      %v1400 = vpop.f32.mrf.mxu0
      %v1401 = vadd.f32 0.0, %v1400
      %v1402 = vpop.f32.mrf.mxu0
      %1403 = vmatprep.mubr.f32.mxu0 0.0
      %1404 = vmatmul.mubr.f32.gmra.mxu0 %v852
      %v1405 = vpop.f32.mrf.mxu0
      %v1406 = vadd.f32 0.0, %v1405
      %v1407 = vpop.f32.mrf.mxu0
      %1408 = vmatprep.mubr.f32.mxu0 0.0
      %1409 = vmatmul.mubr.f32.gmra.mxu0 %v855
      %v1410 = vpop.f32.mrf.mxu0
      %v1411 = vadd.f32 0.0, %v1410
      %v1412 = vpop.f32.mrf.mxu0
      %1413 = vmatprep.mubr.f32.mxu0 0.0
      %1414 = vmatmul.mubr.f32.gmra.mxu0 %v858
      %v1415 = vpop.f32.mrf.mxu0
      %v1416 = vadd.f32 0.0, %v1415
      %v1417 = vpop.f32.mrf.mxu0
      %1418 = vmatprep.mubr.f32.mxu0 0.0
      %1419 = vmatmul.mubr.f32.gmra.mxu0 %v861
      %v1420 = vpop.f32.mrf.mxu0
      %v1421 = vadd.f32 0.0, %v1420
      %v1422 = vpop.f32.mrf.mxu0
      %1423 = vmatprep.mubr.f32.mxu0 0.0
      %1424 = vmatmul.mubr.f32.gmra.mxu0 %v864
      %v1425 = vpop.f32.mrf.mxu0
      %v1426 = vadd.f32 0.0, %v1425
      %v1427 = vpop.f32.mrf.mxu0
      %1428 = vmatprep.mubr.f32.mxu0 0.0
      %1429 = vmatmul.mubr.f32.gmra.mxu0 %v867
      %v1430 = vpop.f32.mrf.mxu0
      %v1431 = vadd.f32 0.0, %v1430
      %v1432 = vpop.f32.mrf.mxu0
      %1433 = vmatprep.mubr.f32.mxu0 0.0
      %1434 = vmatmul.mubr.f32.gmra.mxu0 %v870
      %v1435 = vpop.f32.mrf.mxu0
      %v1436 = vadd.f32 0.0, %v1435
      %v1437 = vpop.f32.mrf.mxu0
      %1438 = vmatprep.mubr.f32.mxu0 0.0
      %1439 = vmatmul.mubr.f32.gmra.mxu0 %v873
      %v1440 = vpop.f32.mrf.mxu0
      %v1441 = vadd.f32 0.0, %v1440
      %v1442 = vpop.f32.mrf.mxu0
      %1443 = vmatprep.mubr.f32.mxu0 0.0
      %1444 = vmatmul.mubr.f32.gmra.mxu0 %v876
      %v1445 = vpop.f32.mrf.mxu0
      %v1446 = vadd.f32 0.0, %v1445
      %v1447 = vpop.f32.mrf.mxu0
      %1448 = vmatprep.mubr.f32.mxu0 0.0
      %1449 = vmatmul.mubr.f32.gmra.mxu0 %v879
      %v1450 = vpop.f32.mrf.mxu0
      %v1451 = vadd.f32 0.0, %v1450
      %v1452 = vpop.f32.mrf.mxu0
      %1453 = vmatprep.mubr.f32.mxu0 0.0
      %1454 = vmatmul.mubr.f32.gmra.mxu0 %v882
      %v1455 = vpop.f32.mrf.mxu0
      %v1456 = vadd.f32 0.0, %v1455
      %v1457 = vpop.f32.mrf.mxu0
      %1458 = vmatprep.mubr.f32.mxu0 0.0
      %1459 = vmatmul.mubr.f32.gmra.mxu0 %v885
      %v1460 = vpop.f32.mrf.mxu0
      %v1461 = vadd.f32 0.0, %v1460
      %v1462 = vpop.f32.mrf.mxu0
      %1463 = vmatprep.mubr.f32.mxu0 0.0
      %1464 = vmatmul.mubr.f32.gmra.mxu0 %v888
      %v1465 = vpop.f32.mrf.mxu0
      %v1466 = vadd.f32 0.0, %v1465
      %v1467 = vpop.f32.mrf.mxu0
      %1468 = vmatprep.mubr.f32.mxu0 0.0
      %1469 = vmatmul.mubr.f32.gmra.mxu0 %v891
      %v1470 = vpop.f32.mrf.mxu0
      %v1471 = vadd.f32 0.0, %v1470
      %v1472 = vpop.f32.mrf.mxu0
      %1473 = vmatprep.mubr.f32.mxu0 0.0
      %1474 = vmatmul.mubr.f32.gmra.mxu0 %v894
      %v1475 = vpop.f32.mrf.mxu0
      %v1476 = vadd.f32 0.0, %v1475
      %v1477 = vpop.f32.mrf.mxu0
      %1478 = vmatprep.mubr.f32.mxu0 0.0
      %1479 = vmatmul.mubr.f32.gmra.mxu0 %v897
      %v1480 = vpop.f32.mrf.mxu0
      %v1481 = vadd.f32 0.0, %v1480
      %v1482 = vpop.f32.mrf.mxu0
      %1483 = vmatprep.mubr.f32.mxu0 0.0
      %1484 = vmatmul.mubr.f32.gmra.mxu0 %v900
      %v1485 = vpop.f32.mrf.mxu0
      %v1486 = vadd.f32 0.0, %v1485
      %v1487 = vpop.f32.mrf.mxu0
      %1488 = vmatprep.mubr.f32.mxu0 0.0
      %1489 = vmatmul.mubr.f32.gmra.mxu0 %v903
      %v1490 = vpop.f32.mrf.mxu0
      %v1491 = vadd.f32 0.0, %v1490
      %v1492 = vpop.f32.mrf.mxu0
      %1493 = vmatprep.mubr.f32.mxu0 0.0
      %1494 = vmatmul.mubr.f32.gmra.mxu0 %v906
      %v1495 = vpop.f32.mrf.mxu0
      %v1496 = vadd.f32 0.0, %v1495
      %v1497 = vpop.f32.mrf.mxu0
      %1498 = vmatprep.mubr.f32.mxu0 0.0
      %1499 = vmatmul.mubr.f32.gmra.mxu0 %v909
      %v1500 = vpop.f32.mrf.mxu0
      %v1501 = vadd.f32 0.0, %v1500
      %v1502 = vpop.f32.mrf.mxu0
      %1503 = vmatprep.mubr.f32.mxu0 0.0
      %1504 = vmatmul.mubr.f32.gmra.mxu0 %v912
      %v1505 = vpop.f32.mrf.mxu0
      %v1506 = vadd.f32 0.0, %v1505
      %v1507 = vpop.f32.mrf.mxu0
      %1508 = vmatprep.mubr.f32.mxu0 0.0
      %1509 = vmatmul.mubr.f32.gmra.mxu0 %v915
      %v1510 = vpop.f32.mrf.mxu0
      %v1511 = vadd.f32 0.0, %v1510
      %v1512 = vpop.f32.mrf.mxu0
      %1513 = vmatprep.mubr.f32.mxu0 0.0
      %1514 = vmatmul.mubr.f32.gmra.mxu0 %v918
      %v1515 = vpop.f32.mrf.mxu0
      %v1516 = vadd.f32 0.0, %v1515
      %v1517 = vpop.f32.mrf.mxu0
      %1518 = vmatprep.mubr.f32.mxu0 0.0
      %1519 = vmatmul.mubr.f32.gmra.mxu0 %v921
      %v1520 = vpop.f32.mrf.mxu0
      %v1521 = vadd.f32 0.0, %v1520
      %v1522 = vpop.f32.mrf.mxu0
      %1523 = vmatprep.mubr.f32.mxu0 0.0
      %1524 = vmatmul.mubr.f32.gmra.mxu0 %v924
      %v1525 = vpop.f32.mrf.mxu0
      %v1526 = vadd.f32 0.0, %v1525
      %v1527 = vpop.f32.mrf.mxu0
      %1528 = vmatprep.mubr.f32.mxu0 0.0
      %1529 = vmatmul.mubr.f32.gmra.mxu0 %v927
      %v1530 = vpop.f32.mrf.mxu0
      %v1531 = vadd.f32 0.0, %v1530
      %v1532 = vpop.f32.mrf.mxu0
      %1533 = vmatprep.mubr.f32.mxu0 0.0
      %1534 = vmatmul.mubr.f32.gmra.mxu0 %v930
      %v1535 = vpop.f32.mrf.mxu0
      %v1536 = vadd.f32 0.0, %v1535
      %v1537 = vpop.f32.mrf.mxu0
      %1538 = vmatprep.mubr.f32.mxu0 0.0
      %1539 = vmatmul.mubr.f32.gmra.mxu0 %v933
      %v1540 = vpop.f32.mrf.mxu0
      %v1541 = vadd.f32 0.0, %v1540
      %v1542 = vpop.f32.mrf.mxu0
      %1543 = vmatprep.mubr.f32.mxu0 0.0
      %1544 = vmatmul.mubr.f32.gmra.mxu0 %v936
      %v1545 = vpop.f32.mrf.mxu0
      %v1546 = vadd.f32 0.0, %v1545
      %v1547 = vpop.f32.mrf.mxu0
      %1548 = vmatprep.mubr.f32.mxu0 0.0
      %1549 = vmatmul.mubr.f32.gmra.mxu0 %v939
      %v1550 = vpop.f32.mrf.mxu0
      %v1551 = vadd.f32 0.0, %v1550
      %v1552 = vpop.f32.mrf.mxu0
      %1553 = vmatprep.mubr.f32.mxu0 0.0
      %1554 = vmatmul.mubr.f32.gmra.mxu0 %v942
      %v1555 = vpop.f32.mrf.mxu0
      %v1556 = vadd.f32 0.0, %v1555
      %v1557 = vpop.f32.mrf.mxu0
      %1558 = vmatprep.mubr.f32.mxu0 0.0
      %1559 = vmatmul.mubr.f32.gmra.mxu0 %v945
      %v1560 = vpop.f32.mrf.mxu0
      %v1561 = vadd.f32 0.0, %v1560
      %v1562 = vpop.f32.mrf.mxu0
      %1563 = vmatprep.mubr.f32.mxu0 0.0
      %1564 = vmatmul.mubr.f32.gmra.mxu0 %v948
      %v1565 = vpop.f32.mrf.mxu0
      %v1566 = vadd.f32 0.0, %v1565
      %v1567 = vpop.f32.mrf.mxu0
      %1568 = vmatprep.mubr.f32.mxu0 0.0
      %1569 = vmatmul.mubr.f32.gmra.mxu0 %v951
      %v1570 = vpop.f32.mrf.mxu0
      %v1571 = vadd.f32 0.0, %v1570
      %v1572 = vpop.f32.mrf.mxu0
      %1573 = vmatprep.mubr.f32.mxu0 0.0
      %1574 = vmatmul.mubr.f32.gmra.mxu0 %v954
      %v1575 = vpop.f32.mrf.mxu0
      %v1576 = vadd.f32 0.0, %v1575
      %v1577 = vpop.f32.mrf.mxu0
      %1578 = vmatprep.mubr.f32.mxu0 0.0
      %1579 = vmatmul.mubr.f32.gmra.mxu0 %v957
      %v1580 = vpop.f32.mrf.mxu0
      %v1581 = vadd.f32 0.0, %v1580
      %v1582 = vpop.f32.mrf.mxu0
      %1583 = vmatprep.mubr.f32.mxu0 0.0
      %1584 = vmatmul.mubr.f32.gmra.mxu0 %v960
      %v1585 = vpop.f32.mrf.mxu0
      %v1586 = vadd.f32 0.0, %v1585
      %v1587 = vpop.f32.mrf.mxu0
      %1588 = vmatprep.mubr.f32.mxu0 0.0
      %1589 = vmatmul.mubr.f32.gmra.mxu0 %v963
      %v1590 = vpop.f32.mrf.mxu0
      %v1591 = vadd.f32 0.0, %v1590
      %v1592 = vpop.f32.mrf.mxu0
      %1593 = vmatprep.mubr.f32.mxu0 0.0
      %1594 = vmatmul.mubr.f32.gmra.mxu0 %v966
      %v1595 = vpop.f32.mrf.mxu0
      %v1596 = vadd.f32 0.0, %v1595
      %v1597 = vpop.f32.mrf.mxu0
      %1598 = vmatprep.mubr.f32.mxu0 0.0
      %1599 = vmatmul.mubr.f32.gmra.mxu0 %v969
      %v1600 = vpop.f32.mrf.mxu0
      %v1601 = vadd.f32 0.0, %v1600
      %v1602 = vpop.f32.mrf.mxu0
      %1603 = vmatprep.mubr.f32.mxu0 0.0
      %1604 = vmatmul.mubr.f32.gmra.mxu0 %v972
      %v1605 = vpop.f32.mrf.mxu0
      %v1606 = vadd.f32 0.0, %v1605
      %v1607 = vpop.f32.mrf.mxu0
      %1608 = vmatprep.mubr.f32.mxu0 0.0
      %1609 = vmatmul.mubr.f32.gmra.mxu0 %v975
      %v1610 = vpop.f32.mrf.mxu0
      %v1611 = vadd.f32 0.0, %v1610
      %v1612 = vpop.f32.mrf.mxu0
      %1613 = vmatprep.mubr.f32.mxu0 0.0
      %1614 = vmatmul.mubr.f32.gmra.mxu0 %v978
      %v1615 = vpop.f32.mrf.mxu0
      %v1616 = vadd.f32 0.0, %v1615
      %v1617 = vpop.f32.mrf.mxu0
      %1618 = vmatprep.mubr.f32.mxu0 0.0
      %1619 = vmatmul.mubr.f32.gmra.mxu0 %v981
      %v1620 = vpop.f32.mrf.mxu0
      %v1621 = vadd.f32 0.0, %v1620
      %v1622 = vpop.f32.mrf.mxu0
      %1623 = vmatprep.mubr.f32.mxu0 0.0
      %1624 = vmatmul.mubr.f32.gmra.mxu0 %v984
      %v1625 = vpop.f32.mrf.mxu0
      %v1626 = vadd.f32 0.0, %v1625
      %v1627 = vpop.f32.mrf.mxu0
      %1628 = vmatprep.mubr.f32.mxu0 0.0
      %1629 = vmatmul.mubr.f32.gmra.mxu0 %v987
      %v1630 = vpop.f32.mrf.mxu0
      %v1631 = vadd.f32 0.0, %v1630
      %v1632 = vpop.f32.mrf.mxu0
      %1633 = vmatprep.mubr.f32.mxu0 0.0
      %1634 = vmatmul.mubr.f32.gmra.mxu0 %v990
      %v1635 = vpop.f32.mrf.mxu0
      %v1636 = vadd.f32 0.0, %v1635
      %v1637 = vpop.f32.mrf.mxu0
      %1638 = vmatprep.mubr.f32.mxu0 0.0
      %1639 = vmatmul.mubr.f32.gmra.mxu0 %v993
      %v1640 = vpop.f32.mrf.mxu0
      %v1641 = vadd.f32 0.0, %v1640
      %v1642 = vpop.f32.mrf.mxu0
      %1643 = vmatprep.mubr.f32.mxu0 0.0
      %1644 = vmatmul.mubr.f32.gmra.mxu0 %v996
      %v1645 = vpop.f32.mrf.mxu0
      %v1646 = vadd.f32 0.0, %v1645
      %v1647 = vpop.f32.mrf.mxu0
      %1648 = vmatprep.mubr.f32.mxu0 0.0
      %1649 = vmatmul.mubr.f32.gmra.mxu0 %v999
      %v1650 = vpop.f32.mrf.mxu0
      %v1651 = vadd.f32 0.0, %v1650
      %v1652 = vpop.f32.mrf.mxu0
      %1653 = vmatprep.mubr.f32.mxu0 0.0
      %1654 = vmatmul.mubr.f32.gmra.mxu0 %v1002
      %v1655 = vpop.f32.mrf.mxu0
      %v1656 = vadd.f32 0.0, %v1655
      %v1657 = vpop.f32.mrf.mxu0
      %1658 = vmatprep.mubr.f32.mxu0 0.0
      %1659 = vmatmul.mubr.f32.gmra.mxu0 %v1005
      %v1660 = vpop.f32.mrf.mxu0
      %v1661 = vadd.f32 0.0, %v1660
      %v1662 = vpop.f32.mrf.mxu0
      %1663 = vmatprep.mubr.f32.mxu0 0.0
      %1664 = vmatmul.mubr.f32.gmra.mxu0 %v1008
      %v1665 = vpop.f32.mrf.mxu0
      %v1666 = vadd.f32 0.0, %v1665
      %v1667 = vpop.f32.mrf.mxu0
      %1668 = vmatprep.mubr.f32.mxu0 0.0
      %1669 = vmatmul.mubr.f32.gmra.mxu0 %v1011
      %v1670 = vpop.f32.mrf.mxu0
      %v1671 = vadd.f32 0.0, %v1670
      %v1672 = vpop.f32.mrf.mxu0
      %1673 = vmatprep.mubr.f32.mxu0 0.0
      %1674 = vmatmul.mubr.f32.gmra.mxu0 %v1014
      %v1675 = vpop.f32.mrf.mxu0
      %v1676 = vadd.f32 0.0, %v1675
      %v1677 = vpop.f32.mrf.mxu0
      %1678 = vmatprep.mubr.f32.mxu0 0.0
      %1679 = vmatmul.mubr.f32.gmra.mxu0 %v1017
      %v1680 = vpop.f32.mrf.mxu0
      %v1681 = vadd.f32 0.0, %v1680
      %v1682 = vpop.f32.mrf.mxu0
      %1683 = vmatprep.mubr.f32.mxu0 0.0
      %1684 = vmatmul.mubr.f32.gmra.mxu0 %v1020
      %v1685 = vpop.f32.mrf.mxu0
      %v1686 = vadd.f32 0.0, %v1685
      %v1687 = vpop.f32.mrf.mxu0
      %1688 = vmatprep.mubr.f32.mxu0 0.0
      %1689 = vmatmul.mubr.f32.gmra.mxu0 %v1023
      %v1690 = vpop.f32.mrf.mxu0
      %v1691 = vadd.f32 0.0, %v1690
      %v1692 = vpop.f32.mrf.mxu0
      %1693 = vmatprep.mubr.f32.mxu0 0.0
      %1694 = vmatmul.mubr.f32.gmra.mxu0 %v1026
      %v1695 = vpop.f32.mrf.mxu0
      %v1696 = vadd.f32 0.0, %v1695
      %v1697 = vpop.f32.mrf.mxu0
      %1698 = vmatprep.mubr.f32.mxu0 0.0
      %1699 = vmatmul.mubr.f32.gmra.mxu0 %v1029
      %v1700 = vpop.f32.mrf.mxu0
      %v1701 = vadd.f32 0.0, %v1700
      %v1702 = vpop.f32.mrf.mxu0
      %1703 = vmatprep.mubr.f32.mxu0 0.0
      %1704 = vmatmul.mubr.f32.gmra.mxu0 %v1032
      %v1705 = vpop.f32.mrf.mxu0
      %v1706 = vadd.f32 0.0, %v1705
      %v1707 = vpop.f32.mrf.mxu0
      %1708 = vmatprep.mubr.f32.mxu0 0.0
      %1709 = vmatmul.mubr.f32.gmra.mxu0 %v1035
      %v1710 = vpop.f32.mrf.mxu0
      %v1711 = vadd.f32 0.0, %v1710
      %v1712 = vpop.f32.mrf.mxu0
      %1713 = vmatprep.mubr.f32.mxu0 0.0
      %1714 = vmatmul.mubr.f32.gmra.mxu0 %v1038
      %v1715 = vpop.f32.mrf.mxu0
      %v1716 = vadd.f32 0.0, %v1715
      %v1717 = vpop.f32.mrf.mxu0
      %1718 = vmatprep.mubr.f32.mxu0 0.0
      %1719 = vmatmul.mubr.f32.gmra.mxu0 %v1041
      %v1720 = vpop.f32.mrf.mxu0
      %v1721 = vadd.f32 0.0, %v1720
      %v1722 = vpop.f32.mrf.mxu0
      %1723 = vmatprep.mubr.f32.mxu0 0.0
      %1724 = vmatmul.mubr.f32.gmra.mxu0 %v1044
      %v1725 = vpop.f32.mrf.mxu0
      %v1726 = vadd.f32 0.0, %v1725
      %v1727 = vpop.f32.mrf.mxu0
      %1728 = vmatprep.mubr.f32.mxu0 0.0
      %1729 = vmatmul.mubr.f32.gmra.mxu0 %v1047
      %v1730 = vpop.f32.mrf.mxu0
      %v1731 = vadd.f32 0.0, %v1730
      %v1732 = vpop.f32.mrf.mxu0
      %1733 = vdwg.mxu0
      %v1735 = vsel %vm676, %v424, 0
      %v1738 = vsel %vm676, %v425, 0
      %v1741 = vsel %vm676, %v426, 0
      %v1744 = vsel %vm676, %v427, 0
      %v1747 = vsel %vm676, %v428, 0
      %v1750 = vsel %vm676, %v429, 0
      %v1753 = vsel %vm676, %v430, 0
      %v1756 = vsel %vm676, %v431, 0
      %v1759 = vsel %vm676, %v432, 0
      %v1762 = vsel %vm676, %v433, 0
      %v1765 = vsel %vm676, %v434, 0
      %v1768 = vsel %vm676, %v435, 0
      %v1771 = vsel %vm676, %v436, 0
      %v1774 = vsel %vm676, %v437, 0
      %v1777 = vsel %vm676, %v438, 0
      %v1780 = vsel %vm676, %v439, 0
      %v1783 = vsel %vm676, %v440, 0
      %v1786 = vsel %vm676, %v441, 0
      %v1789 = vsel %vm676, %v442, 0
      %v1792 = vsel %vm676, %v443, 0
      %v1795 = vsel %vm676, %v444, 0
      %v1798 = vsel %vm676, %v445, 0
      %v1801 = vsel %vm676, %v446, 0
      %v1804 = vsel %vm676, %v447, 0
      %v1807 = vsel %vm676, %v448, 0
      %v1810 = vsel %vm676, %v449, 0
      %v1813 = vsel %vm676, %v450, 0
      %v1816 = vsel %vm676, %v451, 0
      %v1819 = vsel %vm676, %v452, 0
      %v1822 = vsel %vm676, %v453, 0
      %v1825 = vsel %vm676, %v454, 0
      %v1828 = vsel %vm676, %v455, 0
      %v1831 = vsel %vm676, %v456, 0
      %v1834 = vsel %vm676, %v457, 0
      %v1837 = vsel %vm676, %v458, 0
      %v1840 = vsel %vm676, %v459, 0
      %v1843 = vsel %vm676, %v460, 0
      %v1846 = vsel %vm676, %v461, 0
      %v1849 = vsel %vm676, %v462, 0
      %v1852 = vsel %vm676, %v463, 0
      %v1855 = vsel %vm676, %v464, 0
      %v1858 = vsel %vm676, %v465, 0
      %v1861 = vsel %vm676, %v466, 0
      %v1864 = vsel %vm676, %v467, 0
      %v1867 = vsel %vm676, %v468, 0
      %v1870 = vsel %vm676, %v469, 0
      %v1873 = vsel %vm676, %v470, 0
      %v1876 = vsel %vm676, %v471, 0
      %v1879 = vsel %vm676, %v472, 0
      %v1882 = vsel %vm676, %v473, 0
      %v1885 = vsel %vm676, %v474, 0
      %v1888 = vsel %vm676, %v475, 0
      %v1891 = vsel %vm676, %v476, 0
      %v1894 = vsel %vm676, %v477, 0
      %v1897 = vsel %vm676, %v478, 0
      %v1900 = vsel %vm676, %v479, 0
      %v1903 = vsel %vm676, %v480, 0
      %v1906 = vsel %vm676, %v481, 0
      %v1909 = vsel %vm676, %v482, 0
      %v1912 = vsel %vm676, %v483, 0
      %v1915 = vsel %vm676, %v484, 0
      %v1918 = vsel %vm676, %v485, 0
      %v1921 = vsel %vm676, %v486, 0
      %v1924 = vsel %vm676, %v487, 0
      %v1927 = vsel %vm676, %v488, 0
      %v1930 = vsel %vm676, %v489, 0
      %v1933 = vsel %vm676, %v490, 0
      %v1936 = vsel %vm676, %v491, 0
      %v1939 = vsel %vm676, %v492, 0
      %v1942 = vsel %vm676, %v493, 0
      %v1945 = vsel %vm676, %v494, 0
      %v1948 = vsel %vm676, %v495, 0
      %v1951 = vsel %vm676, %v496, 0
      %v1954 = vsel %vm676, %v497, 0
      %v1957 = vsel %vm676, %v498, 0
      %v1960 = vsel %vm676, %v499, 0
      %v1963 = vsel %vm676, %v500, 0
      %v1966 = vsel %vm676, %v501, 0
      %v1969 = vsel %vm676, %v502, 0
      %v1972 = vsel %vm676, %v503, 0
      %v1975 = vsel %vm676, %v504, 0
      %v1978 = vsel %vm676, %v505, 0
      %v1981 = vsel %vm676, %v506, 0
      %v1984 = vsel %vm676, %v507, 0
      %v1987 = vsel %vm676, %v508, 0
      %v1990 = vsel %vm676, %v509, 0
      %v1993 = vsel %vm676, %v510, 0
      %v1996 = vsel %vm676, %v511, 0
      %v1999 = vsel %vm676, %v512, 0
      %v2002 = vsel %vm676, %v513, 0
      %v2005 = vsel %vm676, %v514, 0
      %v2008 = vsel %vm676, %v515, 0
      %v2011 = vsel %vm676, %v516, 0
      %v2014 = vsel %vm676, %v517, 0
      %v2017 = vsel %vm676, %v518, 0
      %v2020 = vsel %vm676, %v519, 0
      %v2023 = vsel %vm676, %v520, 0
      %v2026 = vsel %vm676, %v521, 0
      %v2029 = vsel %vm676, %v522, 0
      %v2032 = vsel %vm676, %v523, 0
      %v2035 = vsel %vm676, %v524, 0
      %v2038 = vsel %vm676, %v525, 0
      %v2041 = vsel %vm676, %v526, 0
      %v2044 = vsel %vm676, %v527, 0
      %v2047 = vsel %vm676, %v528, 0
      %v2050 = vsel %vm676, %v529, 0
      %v2053 = vsel %vm676, %v530, 0
      %v2056 = vsel %vm676, %v531, 0
      %v2059 = vsel %vm676, %v532, 0
      %v2062 = vsel %vm676, %v533, 0
      %v2065 = vsel %vm676, %v534, 0
      %v2068 = vsel %vm676, %v535, 0
      %v2071 = vsel %vm676, %v536, 0
      %v2074 = vsel %vm676, %v537, 0
      %v2077 = vsel %vm676, %v538, 0
      %v2080 = vsel %vm676, %v539, 0
      %v2083 = vsel %vm676, %v540, 0
      %v2086 = vsel %vm676, %v541, 0
      %v2089 = vsel %vm676, %v542, 0
      %v2092 = vsel %vm676, %v543, 0
      %v2095 = vsel %vm676, %v544, 0
      %v2098 = vsel %vm676, %v545, 0
      %v2101 = vsel %vm676, %v546, 0
      %v2104 = vsel %vm676, %v547, 0
      %2106 = vmatprep.subr.mxu0 0.0
      %2107 = vmatpush1.msra.mxu0 0.0
      %2108 = vmatprep.subr.mxu0 0.0
      %2109 = vmatpush1.msra.mxu0 0.0
      %2110 = vmatprep.subr.mxu0 0.0
      %2111 = vmatpush1.msra.mxu0 0.0
      %2112 = vmatprep.subr.mxu0 0.0
      %2113 = vmatpush1.msra.mxu0 0.0
      %2114 = vmatprep.subr.mxu0 0.0
      %2115 = vmatpush1.msra.mxu0 0.0
      %2116 = vmatprep.subr.mxu0 0.0
      %2117 = vmatpush1.msra.mxu0 0.0
      %2118 = vmatprep.subr.mxu0 0.0
      %2119 = vmatpush1.msra.mxu0 0.0
      %2120 = vmatprep.subr.mxu0 0.0
      %2121 = vmatpush1.msra.mxu0 0.0
      %2122 = vmatprep.subr.mxu0 0.0
      %2123 = vmatpush1.msra.mxu0 0.0
      %2124 = vmatprep.subr.mxu0 0.0
      %2125 = vmatpush1.msra.mxu0 0.0
      %2126 = vmatprep.subr.mxu0 0.0
      %2127 = vmatpush1.msra.mxu0 0.0
      %2128 = vmatprep.subr.mxu0 0.0
      %2129 = vmatpush1.msra.mxu0 0.0
      %2130 = vmatprep.subr.mxu0 0.0
      %2131 = vmatpush1.msra.mxu0 0.0
      %2132 = vmatprep.subr.mxu0 0.0
      %2133 = vmatpush1.msra.mxu0 0.0
      %2134 = vmatprep.subr.mxu0 0.0
      %2135 = vmatpush1.msra.mxu0 %v549
      %2136 = vmatprep.subr.mxu0 0.0
      %2137 = vmatpush1.msra.mxu0 %v548
      %2138 = vmatprep.subr.mxu0 0.0
      %2139 = vmatpush2.msra.mxu0 0.0
      %2140 = vmatprep.subr.mxu0 0.0
      %2141 = vmatpush2.msra.mxu0 0.0
      %2142 = vmatprep.subr.mxu0 0.0
      %2143 = vmatpush2.msra.mxu0 0.0
      %2144 = vmatprep.subr.mxu0 0.0
      %2145 = vmatpush2.msra.mxu0 0.0
      %2146 = vmatprep.subr.mxu0 0.0
      %2147 = vmatpush2.msra.mxu0 0.0
      %2148 = vmatprep.subr.mxu0 0.0
      %2149 = vmatpush2.msra.mxu0 0.0
      %2150 = vmatprep.subr.mxu0 0.0
      %2151 = vmatpush2.msra.mxu0 0.0
      %2152 = vmatprep.subr.mxu0 0.0
      %2153 = vmatpush2.msra.mxu0 0.0
      %2154 = vmatprep.subr.mxu0 0.0
      %2155 = vmatpush2.msra.mxu0 0.0
      %2156 = vmatprep.subr.mxu0 0.0
      %2157 = vmatpush2.msra.mxu0 0.0
      %2158 = vmatprep.subr.mxu0 0.0
      %2159 = vmatpush2.msra.mxu0 0.0
      %2160 = vmatprep.subr.mxu0 0.0
      %2161 = vmatpush2.msra.mxu0 0.0
      %2162 = vmatprep.subr.mxu0 0.0
      %2163 = vmatpush2.msra.mxu0 0.0
      %2164 = vmatprep.subr.mxu0 0.0
      %2165 = vmatpush2.msra.mxu0 0.0
      %2166 = vmatprep.subr.mxu0 0.0
      %2167 = vmatpush2.msra.mxu0 0.0
      %2168 = vmatprep.subr.mxu0 0.0
      %2169 = vmatpush2.msra.mxu0 0.0
      %2170 = vmatprep.mubr.f32.mxu0 0.0
      %2171 = vmatmul.mubr.f32.gmra.mxu0 %v1735
      %v2172 = vpop.f32.mrf.mxu0
      %v2173 = vadd.f32 %v1116, %v2172
      %v2174 = vpop.f32.mrf.mxu0
      %2175 = vmatprep.mubr.f32.mxu0 0.0
      %2176 = vmatmul.mubr.f32.gmra.mxu0 %v1738
      %v2177 = vpop.f32.mrf.mxu0
      %v2178 = vadd.f32 %v1121, %v2177
      %v2179 = vpop.f32.mrf.mxu0
      %2180 = vmatprep.mubr.f32.mxu0 0.0
      %2181 = vmatmul.mubr.f32.gmra.mxu0 %v1741
      %v2182 = vpop.f32.mrf.mxu0
      %v2183 = vadd.f32 %v1126, %v2182
      %v2184 = vpop.f32.mrf.mxu0
      %2185 = vmatprep.mubr.f32.mxu0 0.0
      %2186 = vmatmul.mubr.f32.gmra.mxu0 %v1744
      %v2187 = vpop.f32.mrf.mxu0
      %v2188 = vadd.f32 %v1131, %v2187
      %v2189 = vpop.f32.mrf.mxu0
      %2190 = vmatprep.mubr.f32.mxu0 0.0
      %2191 = vmatmul.mubr.f32.gmra.mxu0 %v1747
      %v2192 = vpop.f32.mrf.mxu0
      %v2193 = vadd.f32 %v1136, %v2192
      %v2194 = vpop.f32.mrf.mxu0
      %2195 = vmatprep.mubr.f32.mxu0 0.0
      %2196 = vmatmul.mubr.f32.gmra.mxu0 %v1750
      %v2197 = vpop.f32.mrf.mxu0
      %v2198 = vadd.f32 %v1141, %v2197
      %v2199 = vpop.f32.mrf.mxu0
      %2200 = vmatprep.mubr.f32.mxu0 0.0
      %2201 = vmatmul.mubr.f32.gmra.mxu0 %v1753
      %v2202 = vpop.f32.mrf.mxu0
      %v2203 = vadd.f32 %v1146, %v2202
      %v2204 = vpop.f32.mrf.mxu0
      %2205 = vmatprep.mubr.f32.mxu0 0.0
      %2206 = vmatmul.mubr.f32.gmra.mxu0 %v1756
      %v2207 = vpop.f32.mrf.mxu0
      %v2208 = vadd.f32 %v1151, %v2207
      %v2209 = vpop.f32.mrf.mxu0
      %2210 = vmatprep.mubr.f32.mxu0 0.0
      %2211 = vmatmul.mubr.f32.gmra.mxu0 %v1759
      %v2212 = vpop.f32.mrf.mxu0
      %v2213 = vadd.f32 %v1156, %v2212
      %v2214 = vpop.f32.mrf.mxu0
      %2215 = vmatprep.mubr.f32.mxu0 0.0
      %2216 = vmatmul.mubr.f32.gmra.mxu0 %v1762
      %v2217 = vpop.f32.mrf.mxu0
      %v2218 = vadd.f32 %v1161, %v2217
      %v2219 = vpop.f32.mrf.mxu0
      %2220 = vmatprep.mubr.f32.mxu0 0.0
      %2221 = vmatmul.mubr.f32.gmra.mxu0 %v1765
      %v2222 = vpop.f32.mrf.mxu0
      %v2223 = vadd.f32 %v1166, %v2222
      %v2224 = vpop.f32.mrf.mxu0
      %2225 = vmatprep.mubr.f32.mxu0 0.0
      %2226 = vmatmul.mubr.f32.gmra.mxu0 %v1768
      %v2227 = vpop.f32.mrf.mxu0
      %v2228 = vadd.f32 %v1171, %v2227
      %v2229 = vpop.f32.mrf.mxu0
      %2230 = vmatprep.mubr.f32.mxu0 0.0
      %2231 = vmatmul.mubr.f32.gmra.mxu0 %v1771
      %v2232 = vpop.f32.mrf.mxu0
      %v2233 = vadd.f32 %v1176, %v2232
      %v2234 = vpop.f32.mrf.mxu0
      %2235 = vmatprep.mubr.f32.mxu0 0.0
      %2236 = vmatmul.mubr.f32.gmra.mxu0 %v1774
      %v2237 = vpop.f32.mrf.mxu0
      %v2238 = vadd.f32 %v1181, %v2237
      %v2239 = vpop.f32.mrf.mxu0
      %2240 = vmatprep.mubr.f32.mxu0 0.0
      %2241 = vmatmul.mubr.f32.gmra.mxu0 %v1777
      %v2242 = vpop.f32.mrf.mxu0
      %v2243 = vadd.f32 %v1186, %v2242
      %v2244 = vpop.f32.mrf.mxu0
      %2245 = vmatprep.mubr.f32.mxu0 0.0
      %2246 = vmatmul.mubr.f32.gmra.mxu0 %v1780
      %v2247 = vpop.f32.mrf.mxu0
      %v2248 = vadd.f32 %v1191, %v2247
      %v2249 = vpop.f32.mrf.mxu0
      %2250 = vmatprep.mubr.f32.mxu0 0.0
      %2251 = vmatmul.mubr.f32.gmra.mxu0 %v1783
      %v2252 = vpop.f32.mrf.mxu0
      %v2253 = vadd.f32 %v1196, %v2252
      %v2254 = vpop.f32.mrf.mxu0
      %2255 = vmatprep.mubr.f32.mxu0 0.0
      %2256 = vmatmul.mubr.f32.gmra.mxu0 %v1786
      %v2257 = vpop.f32.mrf.mxu0
      %v2258 = vadd.f32 %v1201, %v2257
      %v2259 = vpop.f32.mrf.mxu0
      %2260 = vmatprep.mubr.f32.mxu0 0.0
      %2261 = vmatmul.mubr.f32.gmra.mxu0 %v1789
      %v2262 = vpop.f32.mrf.mxu0
      %v2263 = vadd.f32 %v1206, %v2262
      %v2264 = vpop.f32.mrf.mxu0
      %2265 = vmatprep.mubr.f32.mxu0 0.0
      %2266 = vmatmul.mubr.f32.gmra.mxu0 %v1792
      %v2267 = vpop.f32.mrf.mxu0
      %v2268 = vadd.f32 %v1211, %v2267
      %v2269 = vpop.f32.mrf.mxu0
      %2270 = vmatprep.mubr.f32.mxu0 0.0
      %2271 = vmatmul.mubr.f32.gmra.mxu0 %v1795
      %v2272 = vpop.f32.mrf.mxu0
      %v2273 = vadd.f32 %v1216, %v2272
      %v2274 = vpop.f32.mrf.mxu0
      %2275 = vmatprep.mubr.f32.mxu0 0.0
      %2276 = vmatmul.mubr.f32.gmra.mxu0 %v1798
      %v2277 = vpop.f32.mrf.mxu0
      %v2278 = vadd.f32 %v1221, %v2277
      %v2279 = vpop.f32.mrf.mxu0
      %2280 = vmatprep.mubr.f32.mxu0 0.0
      %2281 = vmatmul.mubr.f32.gmra.mxu0 %v1801
      %v2282 = vpop.f32.mrf.mxu0
      %v2283 = vadd.f32 %v1226, %v2282
      %v2284 = vpop.f32.mrf.mxu0
      %2285 = vmatprep.mubr.f32.mxu0 0.0
      %2286 = vmatmul.mubr.f32.gmra.mxu0 %v1804
      %v2287 = vpop.f32.mrf.mxu0
      %v2288 = vadd.f32 %v1231, %v2287
      %v2289 = vpop.f32.mrf.mxu0
      %2290 = vmatprep.mubr.f32.mxu0 0.0
      %2291 = vmatmul.mubr.f32.gmra.mxu0 %v1807
      %v2292 = vpop.f32.mrf.mxu0
      %v2293 = vadd.f32 %v1236, %v2292
      %v2294 = vpop.f32.mrf.mxu0
      %2295 = vmatprep.mubr.f32.mxu0 0.0
      %2296 = vmatmul.mubr.f32.gmra.mxu0 %v1810
      %v2297 = vpop.f32.mrf.mxu0
      %v2298 = vadd.f32 %v1241, %v2297
      %v2299 = vpop.f32.mrf.mxu0
      %2300 = vmatprep.mubr.f32.mxu0 0.0
      %2301 = vmatmul.mubr.f32.gmra.mxu0 %v1813
      %v2302 = vpop.f32.mrf.mxu0
      %v2303 = vadd.f32 %v1246, %v2302
      %v2304 = vpop.f32.mrf.mxu0
      %2305 = vmatprep.mubr.f32.mxu0 0.0
      %2306 = vmatmul.mubr.f32.gmra.mxu0 %v1816
      %v2307 = vpop.f32.mrf.mxu0
      %v2308 = vadd.f32 %v1251, %v2307
      %v2309 = vpop.f32.mrf.mxu0
      %2310 = vmatprep.mubr.f32.mxu0 0.0
      %2311 = vmatmul.mubr.f32.gmra.mxu0 %v1819
      %v2312 = vpop.f32.mrf.mxu0
      %v2313 = vadd.f32 %v1256, %v2312
      %v2314 = vpop.f32.mrf.mxu0
      %2315 = vmatprep.mubr.f32.mxu0 0.0
      %2316 = vmatmul.mubr.f32.gmra.mxu0 %v1822
      %v2317 = vpop.f32.mrf.mxu0
      %v2318 = vadd.f32 %v1261, %v2317
      %v2319 = vpop.f32.mrf.mxu0
      %2320 = vmatprep.mubr.f32.mxu0 0.0
      %2321 = vmatmul.mubr.f32.gmra.mxu0 %v1825
      %v2322 = vpop.f32.mrf.mxu0
      %v2323 = vadd.f32 %v1266, %v2322
      %v2324 = vpop.f32.mrf.mxu0
      %2325 = vmatprep.mubr.f32.mxu0 0.0
      %2326 = vmatmul.mubr.f32.gmra.mxu0 %v1828
      %v2327 = vpop.f32.mrf.mxu0
      %v2328 = vadd.f32 %v1271, %v2327
      %v2329 = vpop.f32.mrf.mxu0
      %2330 = vmatprep.mubr.f32.mxu0 0.0
      %2331 = vmatmul.mubr.f32.gmra.mxu0 %v1831
      %v2332 = vpop.f32.mrf.mxu0
      %v2333 = vadd.f32 %v1276, %v2332
      %v2334 = vpop.f32.mrf.mxu0
      %2335 = vmatprep.mubr.f32.mxu0 0.0
      %2336 = vmatmul.mubr.f32.gmra.mxu0 %v1834
      %v2337 = vpop.f32.mrf.mxu0
      %v2338 = vadd.f32 %v1281, %v2337
      %v2339 = vpop.f32.mrf.mxu0
      %2340 = vmatprep.mubr.f32.mxu0 0.0
      %2341 = vmatmul.mubr.f32.gmra.mxu0 %v1837
      %v2342 = vpop.f32.mrf.mxu0
      %v2343 = vadd.f32 %v1286, %v2342
      %v2344 = vpop.f32.mrf.mxu0
      %2345 = vmatprep.mubr.f32.mxu0 0.0
      %2346 = vmatmul.mubr.f32.gmra.mxu0 %v1840
      %v2347 = vpop.f32.mrf.mxu0
      %v2348 = vadd.f32 %v1291, %v2347
      %v2349 = vpop.f32.mrf.mxu0
      %2350 = vmatprep.mubr.f32.mxu0 0.0
      %2351 = vmatmul.mubr.f32.gmra.mxu0 %v1843
      %v2352 = vpop.f32.mrf.mxu0
      %v2353 = vadd.f32 %v1296, %v2352
      %v2354 = vpop.f32.mrf.mxu0
      %2355 = vmatprep.mubr.f32.mxu0 0.0
      %2356 = vmatmul.mubr.f32.gmra.mxu0 %v1846
      %v2357 = vpop.f32.mrf.mxu0
      %v2358 = vadd.f32 %v1301, %v2357
      %v2359 = vpop.f32.mrf.mxu0
      %2360 = vmatprep.mubr.f32.mxu0 0.0
      %2361 = vmatmul.mubr.f32.gmra.mxu0 %v1849
      %v2362 = vpop.f32.mrf.mxu0
      %v2363 = vadd.f32 %v1306, %v2362
      %v2364 = vpop.f32.mrf.mxu0
      %2365 = vmatprep.mubr.f32.mxu0 0.0
      %2366 = vmatmul.mubr.f32.gmra.mxu0 %v1852
      %v2367 = vpop.f32.mrf.mxu0
      %v2368 = vadd.f32 %v1311, %v2367
      %v2369 = vpop.f32.mrf.mxu0
      %2370 = vmatprep.mubr.f32.mxu0 0.0
      %2371 = vmatmul.mubr.f32.gmra.mxu0 %v1855
      %v2372 = vpop.f32.mrf.mxu0
      %v2373 = vadd.f32 %v1316, %v2372
      %v2374 = vpop.f32.mrf.mxu0
      %2375 = vmatprep.mubr.f32.mxu0 0.0
      %2376 = vmatmul.mubr.f32.gmra.mxu0 %v1858
      %v2377 = vpop.f32.mrf.mxu0
      %v2378 = vadd.f32 %v1321, %v2377
      %v2379 = vpop.f32.mrf.mxu0
      %2380 = vmatprep.mubr.f32.mxu0 0.0
      %2381 = vmatmul.mubr.f32.gmra.mxu0 %v1861
      %v2382 = vpop.f32.mrf.mxu0
      %v2383 = vadd.f32 %v1326, %v2382
      %v2384 = vpop.f32.mrf.mxu0
      %2385 = vmatprep.mubr.f32.mxu0 0.0
      %2386 = vmatmul.mubr.f32.gmra.mxu0 %v1864
      %v2387 = vpop.f32.mrf.mxu0
      %v2388 = vadd.f32 %v1331, %v2387
      %v2389 = vpop.f32.mrf.mxu0
      %2390 = vmatprep.mubr.f32.mxu0 0.0
      %2391 = vmatmul.mubr.f32.gmra.mxu0 %v1867
      %v2392 = vpop.f32.mrf.mxu0
      %v2393 = vadd.f32 %v1336, %v2392
      %v2394 = vpop.f32.mrf.mxu0
      %2395 = vmatprep.mubr.f32.mxu0 0.0
      %2396 = vmatmul.mubr.f32.gmra.mxu0 %v1870
      %v2397 = vpop.f32.mrf.mxu0
      %v2398 = vadd.f32 %v1341, %v2397
      %v2399 = vpop.f32.mrf.mxu0
      %2400 = vmatprep.mubr.f32.mxu0 0.0
      %2401 = vmatmul.mubr.f32.gmra.mxu0 %v1873
      %v2402 = vpop.f32.mrf.mxu0
      %v2403 = vadd.f32 %v1346, %v2402
      %v2404 = vpop.f32.mrf.mxu0
      %2405 = vmatprep.mubr.f32.mxu0 0.0
      %2406 = vmatmul.mubr.f32.gmra.mxu0 %v1876
      %v2407 = vpop.f32.mrf.mxu0
      %v2408 = vadd.f32 %v1351, %v2407
      %v2409 = vpop.f32.mrf.mxu0
      %2410 = vmatprep.mubr.f32.mxu0 0.0
      %2411 = vmatmul.mubr.f32.gmra.mxu0 %v1879
      %v2412 = vpop.f32.mrf.mxu0
      %v2413 = vadd.f32 %v1356, %v2412
      %v2414 = vpop.f32.mrf.mxu0
      %2415 = vmatprep.mubr.f32.mxu0 0.0
      %2416 = vmatmul.mubr.f32.gmra.mxu0 %v1882
      %v2417 = vpop.f32.mrf.mxu0
      %v2418 = vadd.f32 %v1361, %v2417
      %v2419 = vpop.f32.mrf.mxu0
      %2420 = vmatprep.mubr.f32.mxu0 0.0
      %2421 = vmatmul.mubr.f32.gmra.mxu0 %v1885
      %v2422 = vpop.f32.mrf.mxu0
      %v2423 = vadd.f32 %v1366, %v2422
      %v2424 = vpop.f32.mrf.mxu0
      %2425 = vmatprep.mubr.f32.mxu0 0.0
      %2426 = vmatmul.mubr.f32.gmra.mxu0 %v1888
      %v2427 = vpop.f32.mrf.mxu0
      %v2428 = vadd.f32 %v1371, %v2427
      %v2429 = vpop.f32.mrf.mxu0
      %2430 = vmatprep.mubr.f32.mxu0 0.0
      %2431 = vmatmul.mubr.f32.gmra.mxu0 %v1891
      %v2432 = vpop.f32.mrf.mxu0
      %v2433 = vadd.f32 %v1376, %v2432
      %v2434 = vpop.f32.mrf.mxu0
      %2435 = vmatprep.mubr.f32.mxu0 0.0
      %2436 = vmatmul.mubr.f32.gmra.mxu0 %v1894
      %v2437 = vpop.f32.mrf.mxu0
      %v2438 = vadd.f32 %v1381, %v2437
      %v2439 = vpop.f32.mrf.mxu0
      %2440 = vmatprep.mubr.f32.mxu0 0.0
      %2441 = vmatmul.mubr.f32.gmra.mxu0 %v1897
      %v2442 = vpop.f32.mrf.mxu0
      %v2443 = vadd.f32 %v1386, %v2442
      %v2444 = vpop.f32.mrf.mxu0
      %2445 = vmatprep.mubr.f32.mxu0 0.0
      %2446 = vmatmul.mubr.f32.gmra.mxu0 %v1900
      %v2447 = vpop.f32.mrf.mxu0
      %v2448 = vadd.f32 %v1391, %v2447
      %v2449 = vpop.f32.mrf.mxu0
      %2450 = vmatprep.mubr.f32.mxu0 0.0
      %2451 = vmatmul.mubr.f32.gmra.mxu0 %v1903
      %v2452 = vpop.f32.mrf.mxu0
      %v2453 = vadd.f32 %v1396, %v2452
      %v2454 = vpop.f32.mrf.mxu0
      %2455 = vmatprep.mubr.f32.mxu0 0.0
      %2456 = vmatmul.mubr.f32.gmra.mxu0 %v1906
      %v2457 = vpop.f32.mrf.mxu0
      %v2458 = vadd.f32 %v1401, %v2457
      %v2459 = vpop.f32.mrf.mxu0
      %2460 = vmatprep.mubr.f32.mxu0 0.0
      %2461 = vmatmul.mubr.f32.gmra.mxu0 %v1909
      %v2462 = vpop.f32.mrf.mxu0
      %v2463 = vadd.f32 %v1406, %v2462
      %v2464 = vpop.f32.mrf.mxu0
      %2465 = vmatprep.mubr.f32.mxu0 0.0
      %2466 = vmatmul.mubr.f32.gmra.mxu0 %v1912
      %v2467 = vpop.f32.mrf.mxu0
      %v2468 = vadd.f32 %v1411, %v2467
      %v2469 = vpop.f32.mrf.mxu0
      %2470 = vmatprep.mubr.f32.mxu0 0.0
      %2471 = vmatmul.mubr.f32.gmra.mxu0 %v1915
      %v2472 = vpop.f32.mrf.mxu0
      %v2473 = vadd.f32 %v1416, %v2472
      %v2474 = vpop.f32.mrf.mxu0
      %2475 = vmatprep.mubr.f32.mxu0 0.0
      %2476 = vmatmul.mubr.f32.gmra.mxu0 %v1918
      %v2477 = vpop.f32.mrf.mxu0
      %v2478 = vadd.f32 %v1421, %v2477
      %v2479 = vpop.f32.mrf.mxu0
      %2480 = vmatprep.mubr.f32.mxu0 0.0
      %2481 = vmatmul.mubr.f32.gmra.mxu0 %v1921
      %v2482 = vpop.f32.mrf.mxu0
      %v2483 = vadd.f32 %v1426, %v2482
      %v2484 = vpop.f32.mrf.mxu0
      %2485 = vmatprep.mubr.f32.mxu0 0.0
      %2486 = vmatmul.mubr.f32.gmra.mxu0 %v1924
      %v2487 = vpop.f32.mrf.mxu0
      %v2488 = vadd.f32 %v1431, %v2487
      %v2489 = vpop.f32.mrf.mxu0
      %2490 = vmatprep.mubr.f32.mxu0 0.0
      %2491 = vmatmul.mubr.f32.gmra.mxu0 %v1927
      %v2492 = vpop.f32.mrf.mxu0
      %v2493 = vadd.f32 %v1436, %v2492
      %v2494 = vpop.f32.mrf.mxu0
      %2495 = vmatprep.mubr.f32.mxu0 0.0
      %2496 = vmatmul.mubr.f32.gmra.mxu0 %v1930
      %v2497 = vpop.f32.mrf.mxu0
      %v2498 = vadd.f32 %v1441, %v2497
      %v2499 = vpop.f32.mrf.mxu0
      %2500 = vmatprep.mubr.f32.mxu0 0.0
      %2501 = vmatmul.mubr.f32.gmra.mxu0 %v1933
      %v2502 = vpop.f32.mrf.mxu0
      %v2503 = vadd.f32 %v1446, %v2502
      %v2504 = vpop.f32.mrf.mxu0
      %2505 = vmatprep.mubr.f32.mxu0 0.0
      %2506 = vmatmul.mubr.f32.gmra.mxu0 %v1936
      %v2507 = vpop.f32.mrf.mxu0
      %v2508 = vadd.f32 %v1451, %v2507
      %v2509 = vpop.f32.mrf.mxu0
      %2510 = vmatprep.mubr.f32.mxu0 0.0
      %2511 = vmatmul.mubr.f32.gmra.mxu0 %v1939
      %v2512 = vpop.f32.mrf.mxu0
      %v2513 = vadd.f32 %v1456, %v2512
      %v2514 = vpop.f32.mrf.mxu0
      %2515 = vmatprep.mubr.f32.mxu0 0.0
      %2516 = vmatmul.mubr.f32.gmra.mxu0 %v1942
      %v2517 = vpop.f32.mrf.mxu0
      %v2518 = vadd.f32 %v1461, %v2517
      %v2519 = vpop.f32.mrf.mxu0
      %2520 = vmatprep.mubr.f32.mxu0 0.0
      %2521 = vmatmul.mubr.f32.gmra.mxu0 %v1945
      %v2522 = vpop.f32.mrf.mxu0
      %v2523 = vadd.f32 %v1466, %v2522
      %v2524 = vpop.f32.mrf.mxu0
      %2525 = vmatprep.mubr.f32.mxu0 0.0
      %2526 = vmatmul.mubr.f32.gmra.mxu0 %v1948
      %v2527 = vpop.f32.mrf.mxu0
      %v2528 = vadd.f32 %v1471, %v2527
      %v2529 = vpop.f32.mrf.mxu0
      %2530 = vmatprep.mubr.f32.mxu0 0.0
      %2531 = vmatmul.mubr.f32.gmra.mxu0 %v1951
      %v2532 = vpop.f32.mrf.mxu0
      %v2533 = vadd.f32 %v1476, %v2532
      %v2534 = vpop.f32.mrf.mxu0
      %2535 = vmatprep.mubr.f32.mxu0 0.0
      %2536 = vmatmul.mubr.f32.gmra.mxu0 %v1954
      %v2537 = vpop.f32.mrf.mxu0
      %v2538 = vadd.f32 %v1481, %v2537
      %v2539 = vpop.f32.mrf.mxu0
      %2540 = vmatprep.mubr.f32.mxu0 0.0
      %2541 = vmatmul.mubr.f32.gmra.mxu0 %v1957
      %v2542 = vpop.f32.mrf.mxu0
      %v2543 = vadd.f32 %v1486, %v2542
      %v2544 = vpop.f32.mrf.mxu0
      %2545 = vmatprep.mubr.f32.mxu0 0.0
      %2546 = vmatmul.mubr.f32.gmra.mxu0 %v1960
      %v2547 = vpop.f32.mrf.mxu0
      %v2548 = vadd.f32 %v1491, %v2547
      %v2549 = vpop.f32.mrf.mxu0
      %2550 = vmatprep.mubr.f32.mxu0 0.0
      %2551 = vmatmul.mubr.f32.gmra.mxu0 %v1963
      %v2552 = vpop.f32.mrf.mxu0
      %v2553 = vadd.f32 %v1496, %v2552
      %v2554 = vpop.f32.mrf.mxu0
      %2555 = vmatprep.mubr.f32.mxu0 0.0
      %2556 = vmatmul.mubr.f32.gmra.mxu0 %v1966
      %v2557 = vpop.f32.mrf.mxu0
      %v2558 = vadd.f32 %v1501, %v2557
      %v2559 = vpop.f32.mrf.mxu0
      %2560 = vmatprep.mubr.f32.mxu0 0.0
      %2561 = vmatmul.mubr.f32.gmra.mxu0 %v1969
      %v2562 = vpop.f32.mrf.mxu0
      %v2563 = vadd.f32 %v1506, %v2562
      %v2564 = vpop.f32.mrf.mxu0
      %2565 = vmatprep.mubr.f32.mxu0 0.0
      %2566 = vmatmul.mubr.f32.gmra.mxu0 %v1972
      %v2567 = vpop.f32.mrf.mxu0
      %v2568 = vadd.f32 %v1511, %v2567
      %v2569 = vpop.f32.mrf.mxu0
      %2570 = vmatprep.mubr.f32.mxu0 0.0
      %2571 = vmatmul.mubr.f32.gmra.mxu0 %v1975
      %v2572 = vpop.f32.mrf.mxu0
      %v2573 = vadd.f32 %v1516, %v2572
      %v2574 = vpop.f32.mrf.mxu0
      %2575 = vmatprep.mubr.f32.mxu0 0.0
      %2576 = vmatmul.mubr.f32.gmra.mxu0 %v1978
      %v2577 = vpop.f32.mrf.mxu0
      %v2578 = vadd.f32 %v1521, %v2577
      %v2579 = vpop.f32.mrf.mxu0
      %2580 = vmatprep.mubr.f32.mxu0 0.0
      %2581 = vmatmul.mubr.f32.gmra.mxu0 %v1981
      %v2582 = vpop.f32.mrf.mxu0
      %v2583 = vadd.f32 %v1526, %v2582
      %v2584 = vpop.f32.mrf.mxu0
      %2585 = vmatprep.mubr.f32.mxu0 0.0
      %2586 = vmatmul.mubr.f32.gmra.mxu0 %v1984
      %v2587 = vpop.f32.mrf.mxu0
      %v2588 = vadd.f32 %v1531, %v2587
      %v2589 = vpop.f32.mrf.mxu0
      %2590 = vmatprep.mubr.f32.mxu0 0.0
      %2591 = vmatmul.mubr.f32.gmra.mxu0 %v1987
      %v2592 = vpop.f32.mrf.mxu0
      %v2593 = vadd.f32 %v1536, %v2592
      %v2594 = vpop.f32.mrf.mxu0
      %2595 = vmatprep.mubr.f32.mxu0 0.0
      %2596 = vmatmul.mubr.f32.gmra.mxu0 %v1990
      %v2597 = vpop.f32.mrf.mxu0
      %v2598 = vadd.f32 %v1541, %v2597
      %v2599 = vpop.f32.mrf.mxu0
      %2600 = vmatprep.mubr.f32.mxu0 0.0
      %2601 = vmatmul.mubr.f32.gmra.mxu0 %v1993
      %v2602 = vpop.f32.mrf.mxu0
      %v2603 = vadd.f32 %v1546, %v2602
      %v2604 = vpop.f32.mrf.mxu0
      %2605 = vmatprep.mubr.f32.mxu0 0.0
      %2606 = vmatmul.mubr.f32.gmra.mxu0 %v1996
      %v2607 = vpop.f32.mrf.mxu0
      %v2608 = vadd.f32 %v1551, %v2607
      %v2609 = vpop.f32.mrf.mxu0
      %2610 = vmatprep.mubr.f32.mxu0 0.0
      %2611 = vmatmul.mubr.f32.gmra.mxu0 %v1999
      %v2612 = vpop.f32.mrf.mxu0
      %v2613 = vadd.f32 %v1556, %v2612
      %v2614 = vpop.f32.mrf.mxu0
      %2615 = vmatprep.mubr.f32.mxu0 0.0
      %2616 = vmatmul.mubr.f32.gmra.mxu0 %v2002
      %v2617 = vpop.f32.mrf.mxu0
      %v2618 = vadd.f32 %v1561, %v2617
      %v2619 = vpop.f32.mrf.mxu0
      %2620 = vmatprep.mubr.f32.mxu0 0.0
      %2621 = vmatmul.mubr.f32.gmra.mxu0 %v2005
      %v2622 = vpop.f32.mrf.mxu0
      %v2623 = vadd.f32 %v1566, %v2622
      %v2624 = vpop.f32.mrf.mxu0
      %2625 = vmatprep.mubr.f32.mxu0 0.0
      %2626 = vmatmul.mubr.f32.gmra.mxu0 %v2008
      %v2627 = vpop.f32.mrf.mxu0
      %v2628 = vadd.f32 %v1571, %v2627
      %v2629 = vpop.f32.mrf.mxu0
      %2630 = vmatprep.mubr.f32.mxu0 0.0
      %2631 = vmatmul.mubr.f32.gmra.mxu0 %v2011
      %v2632 = vpop.f32.mrf.mxu0
      %v2633 = vadd.f32 %v1576, %v2632
      %v2634 = vpop.f32.mrf.mxu0
      %2635 = vmatprep.mubr.f32.mxu0 0.0
      %2636 = vmatmul.mubr.f32.gmra.mxu0 %v2014
      %v2637 = vpop.f32.mrf.mxu0
      %v2638 = vadd.f32 %v1581, %v2637
      %v2639 = vpop.f32.mrf.mxu0
      %2640 = vmatprep.mubr.f32.mxu0 0.0
      %2641 = vmatmul.mubr.f32.gmra.mxu0 %v2017
      %v2642 = vpop.f32.mrf.mxu0
      %v2643 = vadd.f32 %v1586, %v2642
      %v2644 = vpop.f32.mrf.mxu0
      %2645 = vmatprep.mubr.f32.mxu0 0.0
      %2646 = vmatmul.mubr.f32.gmra.mxu0 %v2020
      %v2647 = vpop.f32.mrf.mxu0
      %v2648 = vadd.f32 %v1591, %v2647
      %v2649 = vpop.f32.mrf.mxu0
      %2650 = vmatprep.mubr.f32.mxu0 0.0
      %2651 = vmatmul.mubr.f32.gmra.mxu0 %v2023
      %v2652 = vpop.f32.mrf.mxu0
      %v2653 = vadd.f32 %v1596, %v2652
      %v2654 = vpop.f32.mrf.mxu0
      %2655 = vmatprep.mubr.f32.mxu0 0.0
      %2656 = vmatmul.mubr.f32.gmra.mxu0 %v2026
      %v2657 = vpop.f32.mrf.mxu0
      %v2658 = vadd.f32 %v1601, %v2657
      %v2659 = vpop.f32.mrf.mxu0
      %2660 = vmatprep.mubr.f32.mxu0 0.0
      %2661 = vmatmul.mubr.f32.gmra.mxu0 %v2029
      %v2662 = vpop.f32.mrf.mxu0
      %v2663 = vadd.f32 %v1606, %v2662
      %v2664 = vpop.f32.mrf.mxu0
      %2665 = vmatprep.mubr.f32.mxu0 0.0
      %2666 = vmatmul.mubr.f32.gmra.mxu0 %v2032
      %v2667 = vpop.f32.mrf.mxu0
      %v2668 = vadd.f32 %v1611, %v2667
      %v2669 = vpop.f32.mrf.mxu0
      %2670 = vmatprep.mubr.f32.mxu0 0.0
      %2671 = vmatmul.mubr.f32.gmra.mxu0 %v2035
      %v2672 = vpop.f32.mrf.mxu0
      %v2673 = vadd.f32 %v1616, %v2672
      %v2674 = vpop.f32.mrf.mxu0
      %2675 = vmatprep.mubr.f32.mxu0 0.0
      %2676 = vmatmul.mubr.f32.gmra.mxu0 %v2038
      %v2677 = vpop.f32.mrf.mxu0
      %v2678 = vadd.f32 %v1621, %v2677
      %v2679 = vpop.f32.mrf.mxu0
      %2680 = vmatprep.mubr.f32.mxu0 0.0
      %2681 = vmatmul.mubr.f32.gmra.mxu0 %v2041
      %v2682 = vpop.f32.mrf.mxu0
      %v2683 = vadd.f32 %v1626, %v2682
      %v2684 = vpop.f32.mrf.mxu0
      %2685 = vmatprep.mubr.f32.mxu0 0.0
      %2686 = vmatmul.mubr.f32.gmra.mxu0 %v2044
      %v2687 = vpop.f32.mrf.mxu0
      %v2688 = vadd.f32 %v1631, %v2687
      %v2689 = vpop.f32.mrf.mxu0
      %2690 = vmatprep.mubr.f32.mxu0 0.0
      %2691 = vmatmul.mubr.f32.gmra.mxu0 %v2047
      %v2692 = vpop.f32.mrf.mxu0
      %v2693 = vadd.f32 %v1636, %v2692
      %v2694 = vpop.f32.mrf.mxu0
      %2695 = vmatprep.mubr.f32.mxu0 0.0
      %2696 = vmatmul.mubr.f32.gmra.mxu0 %v2050
      %v2697 = vpop.f32.mrf.mxu0
      %v2698 = vadd.f32 %v1641, %v2697
      %v2699 = vpop.f32.mrf.mxu0
      %2700 = vmatprep.mubr.f32.mxu0 0.0
      %2701 = vmatmul.mubr.f32.gmra.mxu0 %v2053
      %v2702 = vpop.f32.mrf.mxu0
      %v2703 = vadd.f32 %v1646, %v2702
      %v2704 = vpop.f32.mrf.mxu0
      %2705 = vmatprep.mubr.f32.mxu0 0.0
      %2706 = vmatmul.mubr.f32.gmra.mxu0 %v2056
      %v2707 = vpop.f32.mrf.mxu0
      %v2708 = vadd.f32 %v1651, %v2707
      %v2709 = vpop.f32.mrf.mxu0
      %2710 = vmatprep.mubr.f32.mxu0 0.0
      %2711 = vmatmul.mubr.f32.gmra.mxu0 %v2059
      %v2712 = vpop.f32.mrf.mxu0
      %v2713 = vadd.f32 %v1656, %v2712
      %v2714 = vpop.f32.mrf.mxu0
      %2715 = vmatprep.mubr.f32.mxu0 0.0
      %2716 = vmatmul.mubr.f32.gmra.mxu0 %v2062
      %v2717 = vpop.f32.mrf.mxu0
      %v2718 = vadd.f32 %v1661, %v2717
      %v2719 = vpop.f32.mrf.mxu0
      %2720 = vmatprep.mubr.f32.mxu0 0.0
      %2721 = vmatmul.mubr.f32.gmra.mxu0 %v2065
      %v2722 = vpop.f32.mrf.mxu0
      %v2723 = vadd.f32 %v1666, %v2722
      %v2724 = vpop.f32.mrf.mxu0
      %2725 = vmatprep.mubr.f32.mxu0 0.0
      %2726 = vmatmul.mubr.f32.gmra.mxu0 %v2068
      %v2727 = vpop.f32.mrf.mxu0
      %v2728 = vadd.f32 %v1671, %v2727
      %v2729 = vpop.f32.mrf.mxu0
      %2730 = vmatprep.mubr.f32.mxu0 0.0
      %2731 = vmatmul.mubr.f32.gmra.mxu0 %v2071
      %v2732 = vpop.f32.mrf.mxu0
      %v2733 = vadd.f32 %v1676, %v2732
      %v2734 = vpop.f32.mrf.mxu0
      %2735 = vmatprep.mubr.f32.mxu0 0.0
      %2736 = vmatmul.mubr.f32.gmra.mxu0 %v2074
      %v2737 = vpop.f32.mrf.mxu0
      %v2738 = vadd.f32 %v1681, %v2737
      %v2739 = vpop.f32.mrf.mxu0
      %2740 = vmatprep.mubr.f32.mxu0 0.0
      %2741 = vmatmul.mubr.f32.gmra.mxu0 %v2077
      %v2742 = vpop.f32.mrf.mxu0
      %v2743 = vadd.f32 %v1686, %v2742
      %v2744 = vpop.f32.mrf.mxu0
      %2745 = vmatprep.mubr.f32.mxu0 0.0
      %2746 = vmatmul.mubr.f32.gmra.mxu0 %v2080
      %v2747 = vpop.f32.mrf.mxu0
      %v2748 = vadd.f32 %v1691, %v2747
      %v2749 = vpop.f32.mrf.mxu0
      %2750 = vmatprep.mubr.f32.mxu0 0.0
      %2751 = vmatmul.mubr.f32.gmra.mxu0 %v2083
      %v2752 = vpop.f32.mrf.mxu0
      %v2753 = vadd.f32 %v1696, %v2752
      %v2754 = vpop.f32.mrf.mxu0
      %2755 = vmatprep.mubr.f32.mxu0 0.0
      %2756 = vmatmul.mubr.f32.gmra.mxu0 %v2086
      %v2757 = vpop.f32.mrf.mxu0
      %v2758 = vadd.f32 %v1701, %v2757
      %v2759 = vpop.f32.mrf.mxu0
      %2760 = vmatprep.mubr.f32.mxu0 0.0
      %2761 = vmatmul.mubr.f32.gmra.mxu0 %v2089
      %v2762 = vpop.f32.mrf.mxu0
      %v2763 = vadd.f32 %v1706, %v2762
      %v2764 = vpop.f32.mrf.mxu0
      %2765 = vmatprep.mubr.f32.mxu0 0.0
      %2766 = vmatmul.mubr.f32.gmra.mxu0 %v2092
      %v2767 = vpop.f32.mrf.mxu0
      %v2768 = vadd.f32 %v1711, %v2767
      %v2769 = vpop.f32.mrf.mxu0
      %2770 = vmatprep.mubr.f32.mxu0 0.0
      %2771 = vmatmul.mubr.f32.gmra.mxu0 %v2095
      %v2772 = vpop.f32.mrf.mxu0
      %v2773 = vadd.f32 %v1716, %v2772
      %v2774 = vpop.f32.mrf.mxu0
      %2775 = vmatprep.mubr.f32.mxu0 0.0
      %2776 = vmatmul.mubr.f32.gmra.mxu0 %v2098
      %v2777 = vpop.f32.mrf.mxu0
      %v2778 = vadd.f32 %v1721, %v2777
      %v2779 = vpop.f32.mrf.mxu0
      %2780 = vmatprep.mubr.f32.mxu0 0.0
      %2781 = vmatmul.mubr.f32.gmra.mxu0 %v2101
      %v2782 = vpop.f32.mrf.mxu0
      %v2783 = vadd.f32 %v1726, %v2782
      %v2784 = vpop.f32.mrf.mxu0
      %2785 = vmatprep.mubr.f32.mxu0 0.0
      %2786 = vmatmul.mubr.f32.gmra.mxu0 %v2104
      %v2787 = vpop.f32.mrf.mxu0
      %v2788 = vadd.f32 %v1731, %v2787
      %v2789 = vpop.f32.mrf.mxu0
      %2790 = vdwg.mxu0
      %v2791 = vld [vmem:[%s408] sm:$0xff]
      %v2792 = vld [vmem:[%s408 + $0x8] sm:$0xff]
      %v2793 = vld [vmem:[%s408 + $0x10] sm:$0xff]
      %v2794 = vld [vmem:[%s408 + $0x18] sm:$0xff]
      %v2795 = vld [vmem:[%s408 + $0x20] sm:$0xff]
      %v2796 = vld [vmem:[%s408 + $0x28] sm:$0xff]
      %v2797 = vld [vmem:[%s408 + $0x30] sm:$0xff]
      %v2798 = vld [vmem:[%s408 + $0x38] sm:$0xff]
      %v2799 = vld [vmem:[%s408 + $0x40] sm:$0xff]
      %v2800 = vld [vmem:[%s408 + $0x48] sm:$0xff]
      %v2801 = vld [vmem:[%s408 + $0x50] sm:$0xff]
      %v2802 = vld [vmem:[%s408 + $0x58] sm:$0xff]
      %v2803 = vld [vmem:[%s408 + $0x60] sm:$0xff]
      %v2804 = vld [vmem:[%s408 + $0x68] sm:$0xff]
      %v2805 = vld [vmem:[%s408 + $0x70] sm:$0xff]
      %v2806 = vld [vmem:[%s408 + $0x78] sm:$0xff]
      %v2807 = vld [vmem:[%s408 + $0x80] sm:$0xff]
      %v2808 = vld [vmem:[%s408 + $0x88] sm:$0xff]
      %v2809 = vld [vmem:[%s408 + $0x90] sm:$0xff]
      %v2810 = vld [vmem:[%s408 + $0x98] sm:$0xff]
      %v2811 = vld [vmem:[%s408 + $0xa0] sm:$0xff]
      %v2812 = vld [vmem:[%s408 + $0xa8] sm:$0xff]
      %v2813 = vld [vmem:[%s408 + $0xb0] sm:$0xff]
      %v2814 = vld [vmem:[%s408 + $0xb8] sm:$0xff]
      %v2815 = vld [vmem:[%s408 + $0xc0] sm:$0xff]
      %v2816 = vld [vmem:[%s408 + $0xc8] sm:$0xff]
      %v2817 = vld [vmem:[%s408 + $0xd0] sm:$0xff]
      %v2818 = vld [vmem:[%s408 + $0xd8] sm:$0xff]
      %v2819 = vld [vmem:[%s408 + $0xe0] sm:$0xff]
      %v2820 = vld [vmem:[%s408 + $0xe8] sm:$0xff]
      %v2821 = vld [vmem:[%s408 + $0xf0] sm:$0xff]
      %v2822 = vld [vmem:[%s408 + $0xf8] sm:$0xff]
      %v2823 = vld [vmem:[%s408 + $0x100] sm:$0xff]
      %v2824 = vld [vmem:[%s408 + $0x108] sm:$0xff]
      %v2825 = vld [vmem:[%s408 + $0x110] sm:$0xff]
      %v2826 = vld [vmem:[%s408 + $0x118] sm:$0xff]
      %v2827 = vld [vmem:[%s408 + $0x120] sm:$0xff]
      %v2828 = vld [vmem:[%s408 + $0x128] sm:$0xff]
      %v2829 = vld [vmem:[%s408 + $0x130] sm:$0xff]
      %v2830 = vld [vmem:[%s408 + $0x138] sm:$0xff]
      %v2831 = vld [vmem:[%s408 + $0x140] sm:$0xff]
      %v2832 = vld [vmem:[%s408 + $0x148] sm:$0xff]
      %v2833 = vld [vmem:[%s408 + $0x150] sm:$0xff]
      %v2834 = vld [vmem:[%s408 + $0x158] sm:$0xff]
      %v2835 = vld [vmem:[%s408 + $0x160] sm:$0xff]
      %v2836 = vld [vmem:[%s408 + $0x168] sm:$0xff]
      %v2837 = vld [vmem:[%s408 + $0x170] sm:$0xff]
      %v2838 = vld [vmem:[%s408 + $0x178] sm:$0xff]
      %v2839 = vld [vmem:[%s408 + $0x180] sm:$0xff]
      %v2840 = vld [vmem:[%s408 + $0x188] sm:$0xff]
      %v2841 = vld [vmem:[%s408 + $0x190] sm:$0xff]
      %v2842 = vld [vmem:[%s408 + $0x198] sm:$0xff]
      %v2843 = vld [vmem:[%s408 + $0x1a0] sm:$0xff]
      %v2844 = vld [vmem:[%s408 + $0x1a8] sm:$0xff]
      %v2845 = vld [vmem:[%s408 + $0x1b0] sm:$0xff]
      %v2846 = vld [vmem:[%s408 + $0x1b8] sm:$0xff]
      %v2847 = vld [vmem:[%s408 + $0x1c0] sm:$0xff]
      %v2848 = vld [vmem:[%s408 + $0x1c8] sm:$0xff]
      %v2849 = vld [vmem:[%s408 + $0x1d0] sm:$0xff]
      %v2850 = vld [vmem:[%s408 + $0x1d8] sm:$0xff]
      %v2851 = vld [vmem:[%s408 + $0x1e0] sm:$0xff]
      %v2852 = vld [vmem:[%s408 + $0x1e8] sm:$0xff]
      %v2853 = vld [vmem:[%s408 + $0x1f0] sm:$0xff]
      %v2854 = vld [vmem:[%s408 + $0x1f8] sm:$0xff]
      %v2855 = vld [vmem:[%s408 + $0x200] sm:$0xff]
      %v2856 = vld [vmem:[%s408 + $0x208] sm:$0xff]
      %v2857 = vld [vmem:[%s408 + $0x210] sm:$0xff]
      %v2858 = vld [vmem:[%s408 + $0x218] sm:$0xff]
      %v2859 = vld [vmem:[%s408 + $0x220] sm:$0xff]
      %v2860 = vld [vmem:[%s408 + $0x228] sm:$0xff]
      %v2861 = vld [vmem:[%s408 + $0x230] sm:$0xff]
      %v2862 = vld [vmem:[%s408 + $0x238] sm:$0xff]
      %v2863 = vld [vmem:[%s408 + $0x240] sm:$0xff]
      %v2864 = vld [vmem:[%s408 + $0x248] sm:$0xff]
      %v2865 = vld [vmem:[%s408 + $0x250] sm:$0xff]
      %v2866 = vld [vmem:[%s408 + $0x258] sm:$0xff]
      %v2867 = vld [vmem:[%s408 + $0x260] sm:$0xff]
      %v2868 = vld [vmem:[%s408 + $0x268] sm:$0xff]
      %v2869 = vld [vmem:[%s408 + $0x270] sm:$0xff]
      %v2870 = vld [vmem:[%s408 + $0x278] sm:$0xff]
      %v2871 = vld [vmem:[%s408 + $0x280] sm:$0xff]
      %v2872 = vld [vmem:[%s408 + $0x288] sm:$0xff]
      %v2873 = vld [vmem:[%s408 + $0x290] sm:$0xff]
      %v2874 = vld [vmem:[%s408 + $0x298] sm:$0xff]
      %v2875 = vld [vmem:[%s408 + $0x2a0] sm:$0xff]
      %v2876 = vld [vmem:[%s408 + $0x2a8] sm:$0xff]
      %v2877 = vld [vmem:[%s408 + $0x2b0] sm:$0xff]
      %v2878 = vld [vmem:[%s408 + $0x2b8] sm:$0xff]
      %v2879 = vld [vmem:[%s408 + $0x2c0] sm:$0xff]
      %v2880 = vld [vmem:[%s408 + $0x2c8] sm:$0xff]
      %v2881 = vld [vmem:[%s408 + $0x2d0] sm:$0xff]
      %v2882 = vld [vmem:[%s408 + $0x2d8] sm:$0xff]
      %v2883 = vld [vmem:[%s408 + $0x2e0] sm:$0xff]
      %v2884 = vld [vmem:[%s408 + $0x2e8] sm:$0xff]
      %v2885 = vld [vmem:[%s408 + $0x2f0] sm:$0xff]
      %v2886 = vld [vmem:[%s408 + $0x2f8] sm:$0xff]
      %v2887 = vld [vmem:[%s408 + $0x300] sm:$0xff]
      %v2888 = vld [vmem:[%s408 + $0x308] sm:$0xff]
      %v2889 = vld [vmem:[%s408 + $0x310] sm:$0xff]
      %v2890 = vld [vmem:[%s408 + $0x318] sm:$0xff]
      %v2891 = vld [vmem:[%s408 + $0x320] sm:$0xff]
      %v2892 = vld [vmem:[%s408 + $0x328] sm:$0xff]
      %v2893 = vld [vmem:[%s408 + $0x330] sm:$0xff]
      %v2894 = vld [vmem:[%s408 + $0x338] sm:$0xff]
      %v2895 = vld [vmem:[%s408 + $0x340] sm:$0xff]
      %v2896 = vld [vmem:[%s408 + $0x348] sm:$0xff]
      %v2897 = vld [vmem:[%s408 + $0x350] sm:$0xff]
      %v2898 = vld [vmem:[%s408 + $0x358] sm:$0xff]
      %v2899 = vld [vmem:[%s408 + $0x360] sm:$0xff]
      %v2900 = vld [vmem:[%s408 + $0x368] sm:$0xff]
      %v2901 = vld [vmem:[%s408 + $0x370] sm:$0xff]
      %v2902 = vld [vmem:[%s408 + $0x378] sm:$0xff]
      %v2903 = vld [vmem:[%s408 + $0x380] sm:$0xff]
      %v2904 = vld [vmem:[%s408 + $0x388] sm:$0xff]
      %v2905 = vld [vmem:[%s408 + $0x390] sm:$0xff]
      %v2906 = vld [vmem:[%s408 + $0x398] sm:$0xff]
      %v2907 = vld [vmem:[%s408 + $0x3a0] sm:$0xff]
      %v2908 = vld [vmem:[%s408 + $0x3a8] sm:$0xff]
      %v2909 = vld [vmem:[%s408 + $0x3b0] sm:$0xff]
      %v2910 = vld [vmem:[%s408 + $0x3b8] sm:$0xff]
      %v2911 = vld [vmem:[%s408 + $0x3c0] sm:$0xff]
      %v2912 = vld [vmem:[%s408 + $0x3c8] sm:$0xff]
      %v2913 = vld [vmem:[%s408 + $0x3d0] sm:$0xff]
      %v2914 = vld [vmem:[%s408 + $0x3d8] sm:$0xff]
      %v2915 = vld [vmem:[%s5] sm:$0xff]
      %v2916 = vld [vmem:[%s5 + $0x8] sm:$0xff]
      %v2918 = vsel %vm676, %v2791, 0
      %v2921 = vsel %vm676, %v2792, 0
      %v2924 = vsel %vm676, %v2793, 0
      %v2927 = vsel %vm676, %v2794, 0
      %v2930 = vsel %vm676, %v2795, 0
      %v2933 = vsel %vm676, %v2796, 0
      %v2936 = vsel %vm676, %v2797, 0
      %v2939 = vsel %vm676, %v2798, 0
      %v2942 = vsel %vm676, %v2799, 0
      %v2945 = vsel %vm676, %v2800, 0
      %v2948 = vsel %vm676, %v2801, 0
      %v2951 = vsel %vm676, %v2802, 0
      %v2954 = vsel %vm676, %v2803, 0
      %v2957 = vsel %vm676, %v2804, 0
      %v2960 = vsel %vm676, %v2805, 0
      %v2963 = vsel %vm676, %v2806, 0
      %v2966 = vsel %vm676, %v2807, 0
      %v2969 = vsel %vm676, %v2808, 0
      %v2972 = vsel %vm676, %v2809, 0
      %v2975 = vsel %vm676, %v2810, 0
      %v2978 = vsel %vm676, %v2811, 0
      %v2981 = vsel %vm676, %v2812, 0
      %v2984 = vsel %vm676, %v2813, 0
      %v2987 = vsel %vm676, %v2814, 0
      %v2990 = vsel %vm676, %v2815, 0
      %v2993 = vsel %vm676, %v2816, 0
      %v2996 = vsel %vm676, %v2817, 0
      %v2999 = vsel %vm676, %v2818, 0
      %v3002 = vsel %vm676, %v2819, 0
      %v3005 = vsel %vm676, %v2820, 0
      %v3008 = vsel %vm676, %v2821, 0
      %v3011 = vsel %vm676, %v2822, 0
      %v3014 = vsel %vm676, %v2823, 0
      %v3017 = vsel %vm676, %v2824, 0
      %v3020 = vsel %vm676, %v2825, 0
      %v3023 = vsel %vm676, %v2826, 0
      %v3026 = vsel %vm676, %v2827, 0
      %v3029 = vsel %vm676, %v2828, 0
      %v3032 = vsel %vm676, %v2829, 0
      %v3035 = vsel %vm676, %v2830, 0
      %v3038 = vsel %vm676, %v2831, 0
      %v3041 = vsel %vm676, %v2832, 0
      %v3044 = vsel %vm676, %v2833, 0
      %v3047 = vsel %vm676, %v2834, 0
      %v3050 = vsel %vm676, %v2835, 0
      %v3053 = vsel %vm676, %v2836, 0
      %v3056 = vsel %vm676, %v2837, 0
      %v3059 = vsel %vm676, %v2838, 0
      %v3062 = vsel %vm676, %v2839, 0
      %v3065 = vsel %vm676, %v2840, 0
      %v3068 = vsel %vm676, %v2841, 0
      %v3071 = vsel %vm676, %v2842, 0
      %v3074 = vsel %vm676, %v2843, 0
      %v3077 = vsel %vm676, %v2844, 0
      %v3080 = vsel %vm676, %v2845, 0
      %v3083 = vsel %vm676, %v2846, 0
      %v3086 = vsel %vm676, %v2847, 0
      %v3089 = vsel %vm676, %v2848, 0
      %v3092 = vsel %vm676, %v2849, 0
      %v3095 = vsel %vm676, %v2850, 0
      %v3098 = vsel %vm676, %v2851, 0
      %v3101 = vsel %vm676, %v2852, 0
      %v3104 = vsel %vm676, %v2853, 0
      %v3107 = vsel %vm676, %v2854, 0
      %v3110 = vsel %vm676, %v2855, 0
      %v3113 = vsel %vm676, %v2856, 0
      %v3116 = vsel %vm676, %v2857, 0
      %v3119 = vsel %vm676, %v2858, 0
      %v3122 = vsel %vm676, %v2859, 0
      %v3125 = vsel %vm676, %v2860, 0
      %v3128 = vsel %vm676, %v2861, 0
      %v3131 = vsel %vm676, %v2862, 0
      %v3134 = vsel %vm676, %v2863, 0
      %v3137 = vsel %vm676, %v2864, 0
      %v3140 = vsel %vm676, %v2865, 0
      %v3143 = vsel %vm676, %v2866, 0
      %v3146 = vsel %vm676, %v2867, 0
      %v3149 = vsel %vm676, %v2868, 0
      %v3152 = vsel %vm676, %v2869, 0
      %v3155 = vsel %vm676, %v2870, 0
      %v3158 = vsel %vm676, %v2871, 0
      %v3161 = vsel %vm676, %v2872, 0
      %v3164 = vsel %vm676, %v2873, 0
      %v3167 = vsel %vm676, %v2874, 0
      %v3170 = vsel %vm676, %v2875, 0
      %v3173 = vsel %vm676, %v2876, 0
      %v3176 = vsel %vm676, %v2877, 0
      %v3179 = vsel %vm676, %v2878, 0
      %v3182 = vsel %vm676, %v2879, 0
      %v3185 = vsel %vm676, %v2880, 0
      %v3188 = vsel %vm676, %v2881, 0
      %v3191 = vsel %vm676, %v2882, 0
      %v3194 = vsel %vm676, %v2883, 0
      %v3197 = vsel %vm676, %v2884, 0
      %v3200 = vsel %vm676, %v2885, 0
      %v3203 = vsel %vm676, %v2886, 0
      %v3206 = vsel %vm676, %v2887, 0
      %v3209 = vsel %vm676, %v2888, 0
      %v3212 = vsel %vm676, %v2889, 0
      %v3215 = vsel %vm676, %v2890, 0
      %v3218 = vsel %vm676, %v2891, 0
      %v3221 = vsel %vm676, %v2892, 0
      %v3224 = vsel %vm676, %v2893, 0
      %v3227 = vsel %vm676, %v2894, 0
      %v3230 = vsel %vm676, %v2895, 0
      %v3233 = vsel %vm676, %v2896, 0
      %v3236 = vsel %vm676, %v2897, 0
      %v3239 = vsel %vm676, %v2898, 0
      %v3242 = vsel %vm676, %v2899, 0
      %v3245 = vsel %vm676, %v2900, 0
      %v3248 = vsel %vm676, %v2901, 0
      %v3251 = vsel %vm676, %v2902, 0
      %v3254 = vsel %vm676, %v2903, 0
      %v3257 = vsel %vm676, %v2904, 0
      %v3260 = vsel %vm676, %v2905, 0
      %v3263 = vsel %vm676, %v2906, 0
      %v3266 = vsel %vm676, %v2907, 0
      %v3269 = vsel %vm676, %v2908, 0
      %v3272 = vsel %vm676, %v2909, 0
      %v3275 = vsel %vm676, %v2910, 0
      %v3278 = vsel %vm676, %v2911, 0
      %v3281 = vsel %vm676, %v2912, 0
      %v3284 = vsel %vm676, %v2913, 0
      %v3287 = vsel %vm676, %v2914, 0
      %3289 = vmatprep.subr.mxu0 0.0
      %3290 = vmatpush1.msra.mxu0 0.0
      %3291 = vmatprep.subr.mxu0 0.0
      %3292 = vmatpush1.msra.mxu0 0.0
      %3293 = vmatprep.subr.mxu0 0.0
      %3294 = vmatpush1.msra.mxu0 0.0
      %3295 = vmatprep.subr.mxu0 0.0
      %3296 = vmatpush1.msra.mxu0 0.0
      %3297 = vmatprep.subr.mxu0 0.0
      %3298 = vmatpush1.msra.mxu0 0.0
      %3299 = vmatprep.subr.mxu0 0.0
      %3300 = vmatpush1.msra.mxu0 0.0
      %3301 = vmatprep.subr.mxu0 0.0
      %3302 = vmatpush1.msra.mxu0 0.0
      %3303 = vmatprep.subr.mxu0 0.0
      %3304 = vmatpush1.msra.mxu0 0.0
      %3305 = vmatprep.subr.mxu0 0.0
      %3306 = vmatpush1.msra.mxu0 0.0
      %3307 = vmatprep.subr.mxu0 0.0
      %3308 = vmatpush1.msra.mxu0 0.0
      %3309 = vmatprep.subr.mxu0 0.0
      %3310 = vmatpush1.msra.mxu0 0.0
      %3311 = vmatprep.subr.mxu0 0.0
      %3312 = vmatpush1.msra.mxu0 0.0
      %3313 = vmatprep.subr.mxu0 0.0
      %3314 = vmatpush1.msra.mxu0 0.0
      %3315 = vmatprep.subr.mxu0 0.0
      %3316 = vmatpush1.msra.mxu0 0.0
      %3317 = vmatprep.subr.mxu0 0.0
      %3318 = vmatpush1.msra.mxu0 %v2916
      %3319 = vmatprep.subr.mxu0 0.0
      %3320 = vmatpush1.msra.mxu0 %v2915
      %3321 = vmatprep.subr.mxu0 0.0
      %3322 = vmatpush2.msra.mxu0 0.0
      %3323 = vmatprep.subr.mxu0 0.0
      %3324 = vmatpush2.msra.mxu0 0.0
      %3325 = vmatprep.subr.mxu0 0.0
      %3326 = vmatpush2.msra.mxu0 0.0
      %3327 = vmatprep.subr.mxu0 0.0
      %3328 = vmatpush2.msra.mxu0 0.0
      %3329 = vmatprep.subr.mxu0 0.0
      %3330 = vmatpush2.msra.mxu0 0.0
      %3331 = vmatprep.subr.mxu0 0.0
      %3332 = vmatpush2.msra.mxu0 0.0
      %3333 = vmatprep.subr.mxu0 0.0
      %3334 = vmatpush2.msra.mxu0 0.0
      %3335 = vmatprep.subr.mxu0 0.0
      %3336 = vmatpush2.msra.mxu0 0.0
      %3337 = vmatprep.subr.mxu0 0.0
      %3338 = vmatpush2.msra.mxu0 0.0
      %3339 = vmatprep.subr.mxu0 0.0
      %3340 = vmatpush2.msra.mxu0 0.0
      %3341 = vmatprep.subr.mxu0 0.0
      %3342 = vmatpush2.msra.mxu0 0.0
      %3343 = vmatprep.subr.mxu0 0.0
      %3344 = vmatpush2.msra.mxu0 0.0
      %3345 = vmatprep.subr.mxu0 0.0
      %3346 = vmatpush2.msra.mxu0 0.0
      %3347 = vmatprep.subr.mxu0 0.0
      %3348 = vmatpush2.msra.mxu0 0.0
      %3349 = vmatprep.subr.mxu0 0.0
      %3350 = vmatpush2.msra.mxu0 0.0
      %3351 = vmatprep.subr.mxu0 0.0
      %3352 = vmatpush2.msra.mxu0 0.0
      %3353 = vmatprep.mubr.f32.mxu0 0.0
      %3354 = vmatmul.mubr.f32.gmra.mxu0 %v2918
      %v3355 = vpop.f32.mrf.mxu0
      %v3356 = vadd.f32 0.0, %v3355
      %v3357 = vpop.f32.mrf.mxu0
      %3358 = vmatprep.mubr.f32.mxu0 0.0
      %3359 = vmatmul.mubr.f32.gmra.mxu0 %v2921
      %v3360 = vpop.f32.mrf.mxu0
      %v3361 = vadd.f32 0.0, %v3360
      %v3362 = vpop.f32.mrf.mxu0
      %3363 = vmatprep.mubr.f32.mxu0 0.0
      %3364 = vmatmul.mubr.f32.gmra.mxu0 %v2924
      %v3365 = vpop.f32.mrf.mxu0
      %v3366 = vadd.f32 0.0, %v3365
      %v3367 = vpop.f32.mrf.mxu0
      %3368 = vmatprep.mubr.f32.mxu0 0.0
      %3369 = vmatmul.mubr.f32.gmra.mxu0 %v2927
      %v3370 = vpop.f32.mrf.mxu0
      %v3371 = vadd.f32 0.0, %v3370
      %v3372 = vpop.f32.mrf.mxu0
      %3373 = vmatprep.mubr.f32.mxu0 0.0
      %3374 = vmatmul.mubr.f32.gmra.mxu0 %v2930
      %v3375 = vpop.f32.mrf.mxu0
      %v3376 = vadd.f32 0.0, %v3375
      %v3377 = vpop.f32.mrf.mxu0
      %3378 = vmatprep.mubr.f32.mxu0 0.0
      %3379 = vmatmul.mubr.f32.gmra.mxu0 %v2933
      %v3380 = vpop.f32.mrf.mxu0
      %v3381 = vadd.f32 0.0, %v3380
      %v3382 = vpop.f32.mrf.mxu0
      %3383 = vmatprep.mubr.f32.mxu0 0.0
      %3384 = vmatmul.mubr.f32.gmra.mxu0 %v2936
      %v3385 = vpop.f32.mrf.mxu0
      %v3386 = vadd.f32 0.0, %v3385
      %v3387 = vpop.f32.mrf.mxu0
      %3388 = vmatprep.mubr.f32.mxu0 0.0
      %3389 = vmatmul.mubr.f32.gmra.mxu0 %v2939
      %v3390 = vpop.f32.mrf.mxu0
      %v3391 = vadd.f32 0.0, %v3390
      %v3392 = vpop.f32.mrf.mxu0
      %3393 = vmatprep.mubr.f32.mxu0 0.0
      %3394 = vmatmul.mubr.f32.gmra.mxu0 %v2942
      %v3395 = vpop.f32.mrf.mxu0
      %v3396 = vadd.f32 0.0, %v3395
      %v3397 = vpop.f32.mrf.mxu0
      %3398 = vmatprep.mubr.f32.mxu0 0.0
      %3399 = vmatmul.mubr.f32.gmra.mxu0 %v2945
      %v3400 = vpop.f32.mrf.mxu0
      %v3401 = vadd.f32 0.0, %v3400
      %v3402 = vpop.f32.mrf.mxu0
      %3403 = vmatprep.mubr.f32.mxu0 0.0
      %3404 = vmatmul.mubr.f32.gmra.mxu0 %v2948
      %v3405 = vpop.f32.mrf.mxu0
      %v3406 = vadd.f32 0.0, %v3405
      %v3407 = vpop.f32.mrf.mxu0
      %3408 = vmatprep.mubr.f32.mxu0 0.0
      %3409 = vmatmul.mubr.f32.gmra.mxu0 %v2951
      %v3410 = vpop.f32.mrf.mxu0
      %v3411 = vadd.f32 0.0, %v3410
      %v3412 = vpop.f32.mrf.mxu0
      %3413 = vmatprep.mubr.f32.mxu0 0.0
      %3414 = vmatmul.mubr.f32.gmra.mxu0 %v2954
      %v3415 = vpop.f32.mrf.mxu0
      %v3416 = vadd.f32 0.0, %v3415
      %v3417 = vpop.f32.mrf.mxu0
      %3418 = vmatprep.mubr.f32.mxu0 0.0
      %3419 = vmatmul.mubr.f32.gmra.mxu0 %v2957
      %v3420 = vpop.f32.mrf.mxu0
      %v3421 = vadd.f32 0.0, %v3420
      %v3422 = vpop.f32.mrf.mxu0
      %3423 = vmatprep.mubr.f32.mxu0 0.0
      %3424 = vmatmul.mubr.f32.gmra.mxu0 %v2960
      %v3425 = vpop.f32.mrf.mxu0
      %v3426 = vadd.f32 0.0, %v3425
      %v3427 = vpop.f32.mrf.mxu0
      %3428 = vmatprep.mubr.f32.mxu0 0.0
      %3429 = vmatmul.mubr.f32.gmra.mxu0 %v2963
      %v3430 = vpop.f32.mrf.mxu0
      %v3431 = vadd.f32 0.0, %v3430
      %v3432 = vpop.f32.mrf.mxu0
      %3433 = vmatprep.mubr.f32.mxu0 0.0
      %3434 = vmatmul.mubr.f32.gmra.mxu0 %v2966
      %v3435 = vpop.f32.mrf.mxu0
      %v3436 = vadd.f32 0.0, %v3435
      %v3437 = vpop.f32.mrf.mxu0
      %3438 = vmatprep.mubr.f32.mxu0 0.0
      %3439 = vmatmul.mubr.f32.gmra.mxu0 %v2969
      %v3440 = vpop.f32.mrf.mxu0
      %v3441 = vadd.f32 0.0, %v3440
      %v3442 = vpop.f32.mrf.mxu0
      %3443 = vmatprep.mubr.f32.mxu0 0.0
      %3444 = vmatmul.mubr.f32.gmra.mxu0 %v2972
      %v3445 = vpop.f32.mrf.mxu0
      %v3446 = vadd.f32 0.0, %v3445
      %v3447 = vpop.f32.mrf.mxu0
      %3448 = vmatprep.mubr.f32.mxu0 0.0
      %3449 = vmatmul.mubr.f32.gmra.mxu0 %v2975
      %v3450 = vpop.f32.mrf.mxu0
      %v3451 = vadd.f32 0.0, %v3450
      %v3452 = vpop.f32.mrf.mxu0
      %3453 = vmatprep.mubr.f32.mxu0 0.0
      %3454 = vmatmul.mubr.f32.gmra.mxu0 %v2978
      %v3455 = vpop.f32.mrf.mxu0
      %v3456 = vadd.f32 0.0, %v3455
      %v3457 = vpop.f32.mrf.mxu0
      %3458 = vmatprep.mubr.f32.mxu0 0.0
      %3459 = vmatmul.mubr.f32.gmra.mxu0 %v2981
      %v3460 = vpop.f32.mrf.mxu0
      %v3461 = vadd.f32 0.0, %v3460
      %v3462 = vpop.f32.mrf.mxu0
      %3463 = vmatprep.mubr.f32.mxu0 0.0
      %3464 = vmatmul.mubr.f32.gmra.mxu0 %v2984
      %v3465 = vpop.f32.mrf.mxu0
      %v3466 = vadd.f32 0.0, %v3465
      %v3467 = vpop.f32.mrf.mxu0
      %3468 = vmatprep.mubr.f32.mxu0 0.0
      %3469 = vmatmul.mubr.f32.gmra.mxu0 %v2987
      %v3470 = vpop.f32.mrf.mxu0
      %v3471 = vadd.f32 0.0, %v3470
      %v3472 = vpop.f32.mrf.mxu0
      %3473 = vmatprep.mubr.f32.mxu0 0.0
      %3474 = vmatmul.mubr.f32.gmra.mxu0 %v2990
      %v3475 = vpop.f32.mrf.mxu0
      %v3476 = vadd.f32 0.0, %v3475
      %v3477 = vpop.f32.mrf.mxu0
      %3478 = vmatprep.mubr.f32.mxu0 0.0
      %3479 = vmatmul.mubr.f32.gmra.mxu0 %v2993
      %v3480 = vpop.f32.mrf.mxu0
      %v3481 = vadd.f32 0.0, %v3480
      %v3482 = vpop.f32.mrf.mxu0
      %3483 = vmatprep.mubr.f32.mxu0 0.0
      %3484 = vmatmul.mubr.f32.gmra.mxu0 %v2996
      %v3485 = vpop.f32.mrf.mxu0
      %v3486 = vadd.f32 0.0, %v3485
      %v3487 = vpop.f32.mrf.mxu0
      %3488 = vmatprep.mubr.f32.mxu0 0.0
      %3489 = vmatmul.mubr.f32.gmra.mxu0 %v2999
      %v3490 = vpop.f32.mrf.mxu0
      %v3491 = vadd.f32 0.0, %v3490
      %v3492 = vpop.f32.mrf.mxu0
      %3493 = vmatprep.mubr.f32.mxu0 0.0
      %3494 = vmatmul.mubr.f32.gmra.mxu0 %v3002
      %v3495 = vpop.f32.mrf.mxu0
      %v3496 = vadd.f32 0.0, %v3495
      %v3497 = vpop.f32.mrf.mxu0
      %3498 = vmatprep.mubr.f32.mxu0 0.0
      %3499 = vmatmul.mubr.f32.gmra.mxu0 %v3005
      %v3500 = vpop.f32.mrf.mxu0
      %v3501 = vadd.f32 0.0, %v3500
      %v3502 = vpop.f32.mrf.mxu0
      %3503 = vmatprep.mubr.f32.mxu0 0.0
      %3504 = vmatmul.mubr.f32.gmra.mxu0 %v3008
      %v3505 = vpop.f32.mrf.mxu0
      %v3506 = vadd.f32 0.0, %v3505
      %v3507 = vpop.f32.mrf.mxu0
      %3508 = vmatprep.mubr.f32.mxu0 0.0
      %3509 = vmatmul.mubr.f32.gmra.mxu0 %v3011
      %v3510 = vpop.f32.mrf.mxu0
      %v3511 = vadd.f32 0.0, %v3510
      %v3512 = vpop.f32.mrf.mxu0
      %3513 = vmatprep.mubr.f32.mxu0 0.0
      %3514 = vmatmul.mubr.f32.gmra.mxu0 %v3014
      %v3515 = vpop.f32.mrf.mxu0
      %v3516 = vadd.f32 0.0, %v3515
      %v3517 = vpop.f32.mrf.mxu0
      %3518 = vmatprep.mubr.f32.mxu0 0.0
      %3519 = vmatmul.mubr.f32.gmra.mxu0 %v3017
      %v3520 = vpop.f32.mrf.mxu0
      %v3521 = vadd.f32 0.0, %v3520
      %v3522 = vpop.f32.mrf.mxu0
      %3523 = vmatprep.mubr.f32.mxu0 0.0
      %3524 = vmatmul.mubr.f32.gmra.mxu0 %v3020
      %v3525 = vpop.f32.mrf.mxu0
      %v3526 = vadd.f32 0.0, %v3525
      %v3527 = vpop.f32.mrf.mxu0
      %3528 = vmatprep.mubr.f32.mxu0 0.0
      %3529 = vmatmul.mubr.f32.gmra.mxu0 %v3023
      %v3530 = vpop.f32.mrf.mxu0
      %v3531 = vadd.f32 0.0, %v3530
      %v3532 = vpop.f32.mrf.mxu0
      %3533 = vmatprep.mubr.f32.mxu0 0.0
      %3534 = vmatmul.mubr.f32.gmra.mxu0 %v3026
      %v3535 = vpop.f32.mrf.mxu0
      %v3536 = vadd.f32 0.0, %v3535
      %v3537 = vpop.f32.mrf.mxu0
      %3538 = vmatprep.mubr.f32.mxu0 0.0
      %3539 = vmatmul.mubr.f32.gmra.mxu0 %v3029
      %v3540 = vpop.f32.mrf.mxu0
      %v3541 = vadd.f32 0.0, %v3540
      %v3542 = vpop.f32.mrf.mxu0
      %3543 = vmatprep.mubr.f32.mxu0 0.0
      %3544 = vmatmul.mubr.f32.gmra.mxu0 %v3032
      %v3545 = vpop.f32.mrf.mxu0
      %v3546 = vadd.f32 0.0, %v3545
      %v3547 = vpop.f32.mrf.mxu0
      %3548 = vmatprep.mubr.f32.mxu0 0.0
      %3549 = vmatmul.mubr.f32.gmra.mxu0 %v3035
      %v3550 = vpop.f32.mrf.mxu0
      %v3551 = vadd.f32 0.0, %v3550
      %v3552 = vpop.f32.mrf.mxu0
      %3553 = vmatprep.mubr.f32.mxu0 0.0
      %3554 = vmatmul.mubr.f32.gmra.mxu0 %v3038
      %v3555 = vpop.f32.mrf.mxu0
      %v3556 = vadd.f32 0.0, %v3555
      %v3557 = vpop.f32.mrf.mxu0
      %3558 = vmatprep.mubr.f32.mxu0 0.0
      %3559 = vmatmul.mubr.f32.gmra.mxu0 %v3041
      %v3560 = vpop.f32.mrf.mxu0
      %v3561 = vadd.f32 0.0, %v3560
      %v3562 = vpop.f32.mrf.mxu0
      %3563 = vmatprep.mubr.f32.mxu0 0.0
      %3564 = vmatmul.mubr.f32.gmra.mxu0 %v3044
      %v3565 = vpop.f32.mrf.mxu0
      %v3566 = vadd.f32 0.0, %v3565
      %v3567 = vpop.f32.mrf.mxu0
      %3568 = vmatprep.mubr.f32.mxu0 0.0
      %3569 = vmatmul.mubr.f32.gmra.mxu0 %v3047
      %v3570 = vpop.f32.mrf.mxu0
      %v3571 = vadd.f32 0.0, %v3570
      %v3572 = vpop.f32.mrf.mxu0
      %3573 = vmatprep.mubr.f32.mxu0 0.0
      %3574 = vmatmul.mubr.f32.gmra.mxu0 %v3050
      %v3575 = vpop.f32.mrf.mxu0
      %v3576 = vadd.f32 0.0, %v3575
      %v3577 = vpop.f32.mrf.mxu0
      %3578 = vmatprep.mubr.f32.mxu0 0.0
      %3579 = vmatmul.mubr.f32.gmra.mxu0 %v3053
      %v3580 = vpop.f32.mrf.mxu0
      %v3581 = vadd.f32 0.0, %v3580
      %v3582 = vpop.f32.mrf.mxu0
      %3583 = vmatprep.mubr.f32.mxu0 0.0
      %3584 = vmatmul.mubr.f32.gmra.mxu0 %v3056
      %v3585 = vpop.f32.mrf.mxu0
      %v3586 = vadd.f32 0.0, %v3585
      %v3587 = vpop.f32.mrf.mxu0
      %3588 = vmatprep.mubr.f32.mxu0 0.0
      %3589 = vmatmul.mubr.f32.gmra.mxu0 %v3059
      %v3590 = vpop.f32.mrf.mxu0
      %v3591 = vadd.f32 0.0, %v3590
      %v3592 = vpop.f32.mrf.mxu0
      %3593 = vmatprep.mubr.f32.mxu0 0.0
      %3594 = vmatmul.mubr.f32.gmra.mxu0 %v3062
      %v3595 = vpop.f32.mrf.mxu0
      %v3596 = vadd.f32 0.0, %v3595
      %v3597 = vpop.f32.mrf.mxu0
      %3598 = vmatprep.mubr.f32.mxu0 0.0
      %3599 = vmatmul.mubr.f32.gmra.mxu0 %v3065
      %v3600 = vpop.f32.mrf.mxu0
      %v3601 = vadd.f32 0.0, %v3600
      %v3602 = vpop.f32.mrf.mxu0
      %3603 = vmatprep.mubr.f32.mxu0 0.0
      %3604 = vmatmul.mubr.f32.gmra.mxu0 %v3068
      %v3605 = vpop.f32.mrf.mxu0
      %v3606 = vadd.f32 0.0, %v3605
      %v3607 = vpop.f32.mrf.mxu0
      %3608 = vmatprep.mubr.f32.mxu0 0.0
      %3609 = vmatmul.mubr.f32.gmra.mxu0 %v3071
      %v3610 = vpop.f32.mrf.mxu0
      %v3611 = vadd.f32 0.0, %v3610
      %v3612 = vpop.f32.mrf.mxu0
      %3613 = vmatprep.mubr.f32.mxu0 0.0
      %3614 = vmatmul.mubr.f32.gmra.mxu0 %v3074
      %v3615 = vpop.f32.mrf.mxu0
      %v3616 = vadd.f32 0.0, %v3615
      %v3617 = vpop.f32.mrf.mxu0
      %3618 = vmatprep.mubr.f32.mxu0 0.0
      %3619 = vmatmul.mubr.f32.gmra.mxu0 %v3077
      %v3620 = vpop.f32.mrf.mxu0
      %v3621 = vadd.f32 0.0, %v3620
      %v3622 = vpop.f32.mrf.mxu0
      %3623 = vmatprep.mubr.f32.mxu0 0.0
      %3624 = vmatmul.mubr.f32.gmra.mxu0 %v3080
      %v3625 = vpop.f32.mrf.mxu0
      %v3626 = vadd.f32 0.0, %v3625
      %v3627 = vpop.f32.mrf.mxu0
      %3628 = vmatprep.mubr.f32.mxu0 0.0
      %3629 = vmatmul.mubr.f32.gmra.mxu0 %v3083
      %v3630 = vpop.f32.mrf.mxu0
      %v3631 = vadd.f32 0.0, %v3630
      %v3632 = vpop.f32.mrf.mxu0
      %3633 = vmatprep.mubr.f32.mxu0 0.0
      %3634 = vmatmul.mubr.f32.gmra.mxu0 %v3086
      %v3635 = vpop.f32.mrf.mxu0
      %v3636 = vadd.f32 0.0, %v3635
      %v3637 = vpop.f32.mrf.mxu0
      %3638 = vmatprep.mubr.f32.mxu0 0.0
      %3639 = vmatmul.mubr.f32.gmra.mxu0 %v3089
      %v3640 = vpop.f32.mrf.mxu0
      %v3641 = vadd.f32 0.0, %v3640
      %v3642 = vpop.f32.mrf.mxu0
      %3643 = vmatprep.mubr.f32.mxu0 0.0
      %3644 = vmatmul.mubr.f32.gmra.mxu0 %v3092
      %v3645 = vpop.f32.mrf.mxu0
      %v3646 = vadd.f32 0.0, %v3645
      %v3647 = vpop.f32.mrf.mxu0
      %3648 = vmatprep.mubr.f32.mxu0 0.0
      %3649 = vmatmul.mubr.f32.gmra.mxu0 %v3095
      %v3650 = vpop.f32.mrf.mxu0
      %v3651 = vadd.f32 0.0, %v3650
      %v3652 = vpop.f32.mrf.mxu0
      %3653 = vmatprep.mubr.f32.mxu0 0.0
      %3654 = vmatmul.mubr.f32.gmra.mxu0 %v3098
      %v3655 = vpop.f32.mrf.mxu0
      %v3656 = vadd.f32 0.0, %v3655
      %v3657 = vpop.f32.mrf.mxu0
      %3658 = vmatprep.mubr.f32.mxu0 0.0
      %3659 = vmatmul.mubr.f32.gmra.mxu0 %v3101
      %v3660 = vpop.f32.mrf.mxu0
      %v3661 = vadd.f32 0.0, %v3660
      %v3662 = vpop.f32.mrf.mxu0
      %3663 = vmatprep.mubr.f32.mxu0 0.0
      %3664 = vmatmul.mubr.f32.gmra.mxu0 %v3104
      %v3665 = vpop.f32.mrf.mxu0
      %v3666 = vadd.f32 0.0, %v3665
      %v3667 = vpop.f32.mrf.mxu0
      %3668 = vmatprep.mubr.f32.mxu0 0.0
      %3669 = vmatmul.mubr.f32.gmra.mxu0 %v3107
      %v3670 = vpop.f32.mrf.mxu0
      %v3671 = vadd.f32 0.0, %v3670
      %v3672 = vpop.f32.mrf.mxu0
      %3673 = vmatprep.mubr.f32.mxu0 0.0
      %3674 = vmatmul.mubr.f32.gmra.mxu0 %v3110
      %v3675 = vpop.f32.mrf.mxu0
      %v3676 = vadd.f32 0.0, %v3675
      %v3677 = vpop.f32.mrf.mxu0
      %3678 = vmatprep.mubr.f32.mxu0 0.0
      %3679 = vmatmul.mubr.f32.gmra.mxu0 %v3113
      %v3680 = vpop.f32.mrf.mxu0
      %v3681 = vadd.f32 0.0, %v3680
      %v3682 = vpop.f32.mrf.mxu0
      %3683 = vmatprep.mubr.f32.mxu0 0.0
      %3684 = vmatmul.mubr.f32.gmra.mxu0 %v3116
      %v3685 = vpop.f32.mrf.mxu0
      %v3686 = vadd.f32 0.0, %v3685
      %v3687 = vpop.f32.mrf.mxu0
      %3688 = vmatprep.mubr.f32.mxu0 0.0
      %3689 = vmatmul.mubr.f32.gmra.mxu0 %v3119
      %v3690 = vpop.f32.mrf.mxu0
      %v3691 = vadd.f32 0.0, %v3690
      %v3692 = vpop.f32.mrf.mxu0
      %3693 = vmatprep.mubr.f32.mxu0 0.0
      %3694 = vmatmul.mubr.f32.gmra.mxu0 %v3122
      %v3695 = vpop.f32.mrf.mxu0
      %v3696 = vadd.f32 0.0, %v3695
      %v3697 = vpop.f32.mrf.mxu0
      %3698 = vmatprep.mubr.f32.mxu0 0.0
      %3699 = vmatmul.mubr.f32.gmra.mxu0 %v3125
      %v3700 = vpop.f32.mrf.mxu0
      %v3701 = vadd.f32 0.0, %v3700
      %v3702 = vpop.f32.mrf.mxu0
      %3703 = vmatprep.mubr.f32.mxu0 0.0
      %3704 = vmatmul.mubr.f32.gmra.mxu0 %v3128
      %v3705 = vpop.f32.mrf.mxu0
      %v3706 = vadd.f32 0.0, %v3705
      %v3707 = vpop.f32.mrf.mxu0
      %3708 = vmatprep.mubr.f32.mxu0 0.0
      %3709 = vmatmul.mubr.f32.gmra.mxu0 %v3131
      %v3710 = vpop.f32.mrf.mxu0
      %v3711 = vadd.f32 0.0, %v3710
      %v3712 = vpop.f32.mrf.mxu0
      %3713 = vmatprep.mubr.f32.mxu0 0.0
      %3714 = vmatmul.mubr.f32.gmra.mxu0 %v3134
      %v3715 = vpop.f32.mrf.mxu0
      %v3716 = vadd.f32 0.0, %v3715
      %v3717 = vpop.f32.mrf.mxu0
      %3718 = vmatprep.mubr.f32.mxu0 0.0
      %3719 = vmatmul.mubr.f32.gmra.mxu0 %v3137
      %v3720 = vpop.f32.mrf.mxu0
      %v3721 = vadd.f32 0.0, %v3720
      %v3722 = vpop.f32.mrf.mxu0
      %3723 = vmatprep.mubr.f32.mxu0 0.0
      %3724 = vmatmul.mubr.f32.gmra.mxu0 %v3140
      %v3725 = vpop.f32.mrf.mxu0
      %v3726 = vadd.f32 0.0, %v3725
      %v3727 = vpop.f32.mrf.mxu0
      %3728 = vmatprep.mubr.f32.mxu0 0.0
      %3729 = vmatmul.mubr.f32.gmra.mxu0 %v3143
      %v3730 = vpop.f32.mrf.mxu0
      %v3731 = vadd.f32 0.0, %v3730
      %v3732 = vpop.f32.mrf.mxu0
      %3733 = vmatprep.mubr.f32.mxu0 0.0
      %3734 = vmatmul.mubr.f32.gmra.mxu0 %v3146
      %v3735 = vpop.f32.mrf.mxu0
      %v3736 = vadd.f32 0.0, %v3735
      %v3737 = vpop.f32.mrf.mxu0
      %3738 = vmatprep.mubr.f32.mxu0 0.0
      %3739 = vmatmul.mubr.f32.gmra.mxu0 %v3149
      %v3740 = vpop.f32.mrf.mxu0
      %v3741 = vadd.f32 0.0, %v3740
      %v3742 = vpop.f32.mrf.mxu0
      %3743 = vmatprep.mubr.f32.mxu0 0.0
      %3744 = vmatmul.mubr.f32.gmra.mxu0 %v3152
      %v3745 = vpop.f32.mrf.mxu0
      %v3746 = vadd.f32 0.0, %v3745
      %v3747 = vpop.f32.mrf.mxu0
      %3748 = vmatprep.mubr.f32.mxu0 0.0
      %3749 = vmatmul.mubr.f32.gmra.mxu0 %v3155
      %v3750 = vpop.f32.mrf.mxu0
      %v3751 = vadd.f32 0.0, %v3750
      %v3752 = vpop.f32.mrf.mxu0
      %3753 = vmatprep.mubr.f32.mxu0 0.0
      %3754 = vmatmul.mubr.f32.gmra.mxu0 %v3158
      %v3755 = vpop.f32.mrf.mxu0
      %v3756 = vadd.f32 0.0, %v3755
      %v3757 = vpop.f32.mrf.mxu0
      %3758 = vmatprep.mubr.f32.mxu0 0.0
      %3759 = vmatmul.mubr.f32.gmra.mxu0 %v3161
      %v3760 = vpop.f32.mrf.mxu0
      %v3761 = vadd.f32 0.0, %v3760
      %v3762 = vpop.f32.mrf.mxu0
      %3763 = vmatprep.mubr.f32.mxu0 0.0
      %3764 = vmatmul.mubr.f32.gmra.mxu0 %v3164
      %v3765 = vpop.f32.mrf.mxu0
      %v3766 = vadd.f32 0.0, %v3765
      %v3767 = vpop.f32.mrf.mxu0
      %3768 = vmatprep.mubr.f32.mxu0 0.0
      %3769 = vmatmul.mubr.f32.gmra.mxu0 %v3167
      %v3770 = vpop.f32.mrf.mxu0
      %v3771 = vadd.f32 0.0, %v3770
      %v3772 = vpop.f32.mrf.mxu0
      %3773 = vmatprep.mubr.f32.mxu0 0.0
      %3774 = vmatmul.mubr.f32.gmra.mxu0 %v3170
      %v3775 = vpop.f32.mrf.mxu0
      %v3776 = vadd.f32 0.0, %v3775
      %v3777 = vpop.f32.mrf.mxu0
      %3778 = vmatprep.mubr.f32.mxu0 0.0
      %3779 = vmatmul.mubr.f32.gmra.mxu0 %v3173
      %v3780 = vpop.f32.mrf.mxu0
      %v3781 = vadd.f32 0.0, %v3780
      %v3782 = vpop.f32.mrf.mxu0
      %3783 = vmatprep.mubr.f32.mxu0 0.0
      %3784 = vmatmul.mubr.f32.gmra.mxu0 %v3176
      %v3785 = vpop.f32.mrf.mxu0
      %v3786 = vadd.f32 0.0, %v3785
      %v3787 = vpop.f32.mrf.mxu0
      %3788 = vmatprep.mubr.f32.mxu0 0.0
      %3789 = vmatmul.mubr.f32.gmra.mxu0 %v3179
      %v3790 = vpop.f32.mrf.mxu0
      %v3791 = vadd.f32 0.0, %v3790
      %v3792 = vpop.f32.mrf.mxu0
      %3793 = vmatprep.mubr.f32.mxu0 0.0
      %3794 = vmatmul.mubr.f32.gmra.mxu0 %v3182
      %v3795 = vpop.f32.mrf.mxu0
      %v3796 = vadd.f32 0.0, %v3795
      %v3797 = vpop.f32.mrf.mxu0
      %3798 = vmatprep.mubr.f32.mxu0 0.0
      %3799 = vmatmul.mubr.f32.gmra.mxu0 %v3185
      %v3800 = vpop.f32.mrf.mxu0
      %v3801 = vadd.f32 0.0, %v3800
      %v3802 = vpop.f32.mrf.mxu0
      %3803 = vmatprep.mubr.f32.mxu0 0.0
      %3804 = vmatmul.mubr.f32.gmra.mxu0 %v3188
      %v3805 = vpop.f32.mrf.mxu0
      %v3806 = vadd.f32 0.0, %v3805
      %v3807 = vpop.f32.mrf.mxu0
      %3808 = vmatprep.mubr.f32.mxu0 0.0
      %3809 = vmatmul.mubr.f32.gmra.mxu0 %v3191
      %v3810 = vpop.f32.mrf.mxu0
      %v3811 = vadd.f32 0.0, %v3810
      %v3812 = vpop.f32.mrf.mxu0
      %3813 = vmatprep.mubr.f32.mxu0 0.0
      %3814 = vmatmul.mubr.f32.gmra.mxu0 %v3194
      %v3815 = vpop.f32.mrf.mxu0
      %v3816 = vadd.f32 0.0, %v3815
      %v3817 = vpop.f32.mrf.mxu0
      %3818 = vmatprep.mubr.f32.mxu0 0.0
      %3819 = vmatmul.mubr.f32.gmra.mxu0 %v3197
      %v3820 = vpop.f32.mrf.mxu0
      %v3821 = vadd.f32 0.0, %v3820
      %v3822 = vpop.f32.mrf.mxu0
      %3823 = vmatprep.mubr.f32.mxu0 0.0
      %3824 = vmatmul.mubr.f32.gmra.mxu0 %v3200
      %v3825 = vpop.f32.mrf.mxu0
      %v3826 = vadd.f32 0.0, %v3825
      %v3827 = vpop.f32.mrf.mxu0
      %3828 = vmatprep.mubr.f32.mxu0 0.0
      %3829 = vmatmul.mubr.f32.gmra.mxu0 %v3203
      %v3830 = vpop.f32.mrf.mxu0
      %v3831 = vadd.f32 0.0, %v3830
      %v3832 = vpop.f32.mrf.mxu0
      %3833 = vmatprep.mubr.f32.mxu0 0.0
      %3834 = vmatmul.mubr.f32.gmra.mxu0 %v3206
      %v3835 = vpop.f32.mrf.mxu0
      %v3836 = vadd.f32 0.0, %v3835
      %v3837 = vpop.f32.mrf.mxu0
      %3838 = vmatprep.mubr.f32.mxu0 0.0
      %3839 = vmatmul.mubr.f32.gmra.mxu0 %v3209
      %v3840 = vpop.f32.mrf.mxu0
      %v3841 = vadd.f32 0.0, %v3840
      %v3842 = vpop.f32.mrf.mxu0
      %3843 = vmatprep.mubr.f32.mxu0 0.0
      %3844 = vmatmul.mubr.f32.gmra.mxu0 %v3212
      %v3845 = vpop.f32.mrf.mxu0
      %v3846 = vadd.f32 0.0, %v3845
      %v3847 = vpop.f32.mrf.mxu0
      %3848 = vmatprep.mubr.f32.mxu0 0.0
      %3849 = vmatmul.mubr.f32.gmra.mxu0 %v3215
      %v3850 = vpop.f32.mrf.mxu0
      %v3851 = vadd.f32 0.0, %v3850
      %v3852 = vpop.f32.mrf.mxu0
      %3853 = vmatprep.mubr.f32.mxu0 0.0
      %3854 = vmatmul.mubr.f32.gmra.mxu0 %v3218
      %v3855 = vpop.f32.mrf.mxu0
      %v3856 = vadd.f32 0.0, %v3855
      %v3857 = vpop.f32.mrf.mxu0
      %3858 = vmatprep.mubr.f32.mxu0 0.0
      %3859 = vmatmul.mubr.f32.gmra.mxu0 %v3221
      %v3860 = vpop.f32.mrf.mxu0
      %v3861 = vadd.f32 0.0, %v3860
      %v3862 = vpop.f32.mrf.mxu0
      %3863 = vmatprep.mubr.f32.mxu0 0.0
      %3864 = vmatmul.mubr.f32.gmra.mxu0 %v3224
      %v3865 = vpop.f32.mrf.mxu0
      %v3866 = vadd.f32 0.0, %v3865
      %v3867 = vpop.f32.mrf.mxu0
      %3868 = vmatprep.mubr.f32.mxu0 0.0
      %3869 = vmatmul.mubr.f32.gmra.mxu0 %v3227
      %v3870 = vpop.f32.mrf.mxu0
      %v3871 = vadd.f32 0.0, %v3870
      %v3872 = vpop.f32.mrf.mxu0
      %3873 = vmatprep.mubr.f32.mxu0 0.0
      %3874 = vmatmul.mubr.f32.gmra.mxu0 %v3230
      %v3875 = vpop.f32.mrf.mxu0
      %v3876 = vadd.f32 0.0, %v3875
      %v3877 = vpop.f32.mrf.mxu0
      %3878 = vmatprep.mubr.f32.mxu0 0.0
      %3879 = vmatmul.mubr.f32.gmra.mxu0 %v3233
      %v3880 = vpop.f32.mrf.mxu0
      %v3881 = vadd.f32 0.0, %v3880
      %v3882 = vpop.f32.mrf.mxu0
      %3883 = vmatprep.mubr.f32.mxu0 0.0
      %3884 = vmatmul.mubr.f32.gmra.mxu0 %v3236
      %v3885 = vpop.f32.mrf.mxu0
      %v3886 = vadd.f32 0.0, %v3885
      %v3887 = vpop.f32.mrf.mxu0
      %3888 = vmatprep.mubr.f32.mxu0 0.0
      %3889 = vmatmul.mubr.f32.gmra.mxu0 %v3239
      %v3890 = vpop.f32.mrf.mxu0
      %v3891 = vadd.f32 0.0, %v3890
      %v3892 = vpop.f32.mrf.mxu0
      %3893 = vmatprep.mubr.f32.mxu0 0.0
      %3894 = vmatmul.mubr.f32.gmra.mxu0 %v3242
      %v3895 = vpop.f32.mrf.mxu0
      %v3896 = vadd.f32 0.0, %v3895
      %v3897 = vpop.f32.mrf.mxu0
      %3898 = vmatprep.mubr.f32.mxu0 0.0
      %3899 = vmatmul.mubr.f32.gmra.mxu0 %v3245
      %v3900 = vpop.f32.mrf.mxu0
      %v3901 = vadd.f32 0.0, %v3900
      %v3902 = vpop.f32.mrf.mxu0
      %3903 = vmatprep.mubr.f32.mxu0 0.0
      %3904 = vmatmul.mubr.f32.gmra.mxu0 %v3248
      %v3905 = vpop.f32.mrf.mxu0
      %v3906 = vadd.f32 0.0, %v3905
      %v3907 = vpop.f32.mrf.mxu0
      %3908 = vmatprep.mubr.f32.mxu0 0.0
      %3909 = vmatmul.mubr.f32.gmra.mxu0 %v3251
      %v3910 = vpop.f32.mrf.mxu0
      %v3911 = vadd.f32 0.0, %v3910
      %v3912 = vpop.f32.mrf.mxu0
      %3913 = vmatprep.mubr.f32.mxu0 0.0
      %3914 = vmatmul.mubr.f32.gmra.mxu0 %v3254
      %v3915 = vpop.f32.mrf.mxu0
      %v3916 = vadd.f32 0.0, %v3915
      %v3917 = vpop.f32.mrf.mxu0
      %3918 = vmatprep.mubr.f32.mxu0 0.0
      %3919 = vmatmul.mubr.f32.gmra.mxu0 %v3257
      %v3920 = vpop.f32.mrf.mxu0
      %v3921 = vadd.f32 0.0, %v3920
      %v3922 = vpop.f32.mrf.mxu0
      %3923 = vmatprep.mubr.f32.mxu0 0.0
      %3924 = vmatmul.mubr.f32.gmra.mxu0 %v3260
      %v3925 = vpop.f32.mrf.mxu0
      %v3926 = vadd.f32 0.0, %v3925
      %v3927 = vpop.f32.mrf.mxu0
      %3928 = vmatprep.mubr.f32.mxu0 0.0
      %3929 = vmatmul.mubr.f32.gmra.mxu0 %v3263
      %v3930 = vpop.f32.mrf.mxu0
      %v3931 = vadd.f32 0.0, %v3930
      %v3932 = vpop.f32.mrf.mxu0
      %3933 = vmatprep.mubr.f32.mxu0 0.0
      %3934 = vmatmul.mubr.f32.gmra.mxu0 %v3266
      %v3935 = vpop.f32.mrf.mxu0
      %v3936 = vadd.f32 0.0, %v3935
      %v3937 = vpop.f32.mrf.mxu0
      %3938 = vmatprep.mubr.f32.mxu0 0.0
      %3939 = vmatmul.mubr.f32.gmra.mxu0 %v3269
      %v3940 = vpop.f32.mrf.mxu0
      %v3941 = vadd.f32 0.0, %v3940
      %v3942 = vpop.f32.mrf.mxu0
      %3943 = vmatprep.mubr.f32.mxu0 0.0
      %3944 = vmatmul.mubr.f32.gmra.mxu0 %v3272
      %v3945 = vpop.f32.mrf.mxu0
      %v3946 = vadd.f32 0.0, %v3945
      %v3947 = vpop.f32.mrf.mxu0
      %3948 = vmatprep.mubr.f32.mxu0 0.0
      %3949 = vmatmul.mubr.f32.gmra.mxu0 %v3275
      %v3950 = vpop.f32.mrf.mxu0
      %v3951 = vadd.f32 0.0, %v3950
      %v3952 = vpop.f32.mrf.mxu0
      %3953 = vmatprep.mubr.f32.mxu0 0.0
      %3954 = vmatmul.mubr.f32.gmra.mxu0 %v3278
      %v3955 = vpop.f32.mrf.mxu0
      %v3956 = vadd.f32 0.0, %v3955
      %v3957 = vpop.f32.mrf.mxu0
      %3958 = vmatprep.mubr.f32.mxu0 0.0
      %3959 = vmatmul.mubr.f32.gmra.mxu0 %v3281
      %v3960 = vpop.f32.mrf.mxu0
      %v3961 = vadd.f32 0.0, %v3960
      %v3962 = vpop.f32.mrf.mxu0
      %3963 = vmatprep.mubr.f32.mxu0 0.0
      %3964 = vmatmul.mubr.f32.gmra.mxu0 %v3284
      %v3965 = vpop.f32.mrf.mxu0
      %v3966 = vadd.f32 0.0, %v3965
      %v3967 = vpop.f32.mrf.mxu0
      %3968 = vmatprep.mubr.f32.mxu0 0.0
      %3969 = vmatmul.mubr.f32.gmra.mxu0 %v3287
      %v3970 = vpop.f32.mrf.mxu0
      %v3971 = vadd.f32 0.0, %v3970
      %v3972 = vpop.f32.mrf.mxu0
      %3973 = vdwg.mxu0
      %v3974 = vadd.f32 %v2173, %v3356
      %v3975 = vadd.f32 %v2178, %v3361
      %v3976 = vadd.f32 %v2183, %v3366
      %v3977 = vadd.f32 %v2188, %v3371
      %v3978 = vadd.f32 %v2193, %v3376
      %v3979 = vadd.f32 %v2198, %v3381
      %v3980 = vadd.f32 %v2203, %v3386
      %v3981 = vadd.f32 %v2208, %v3391
      %v3982 = vadd.f32 %v2213, %v3396
      %v3983 = vadd.f32 %v2218, %v3401
      %v3984 = vadd.f32 %v2223, %v3406
      %v3985 = vadd.f32 %v2228, %v3411
      %v3986 = vadd.f32 %v2233, %v3416
      %v3987 = vadd.f32 %v2238, %v3421
      %v3988 = vadd.f32 %v2243, %v3426
      %v3989 = vadd.f32 %v2248, %v3431
      %v3990 = vadd.f32 %v2253, %v3436
      %v3991 = vadd.f32 %v2258, %v3441
      %v3992 = vadd.f32 %v2263, %v3446
      %v3993 = vadd.f32 %v2268, %v3451
      %v3994 = vadd.f32 %v2273, %v3456
      %v3995 = vadd.f32 %v2278, %v3461
      %v3996 = vadd.f32 %v2283, %v3466
      %v3997 = vadd.f32 %v2288, %v3471
      %v3998 = vadd.f32 %v2293, %v3476
      %v3999 = vadd.f32 %v2298, %v3481
      %v4000 = vadd.f32 %v2303, %v3486
      %v4001 = vadd.f32 %v2308, %v3491
      %v4002 = vadd.f32 %v2313, %v3496
      %v4003 = vadd.f32 %v2318, %v3501
      %v4004 = vadd.f32 %v2323, %v3506
      %v4005 = vadd.f32 %v2328, %v3511
      %v4006 = vadd.f32 %v2333, %v3516
      %v4007 = vadd.f32 %v2338, %v3521
      %v4008 = vadd.f32 %v2343, %v3526
      %v4009 = vadd.f32 %v2348, %v3531
      %v4010 = vadd.f32 %v2353, %v3536
      %v4011 = vadd.f32 %v2358, %v3541
      %v4012 = vadd.f32 %v2363, %v3546
      %v4013 = vadd.f32 %v2368, %v3551
      %v4014 = vadd.f32 %v2373, %v3556
      %v4015 = vadd.f32 %v2378, %v3561
      %v4016 = vadd.f32 %v2383, %v3566
      %v4017 = vadd.f32 %v2388, %v3571
      %v4018 = vadd.f32 %v2393, %v3576
      %v4019 = vadd.f32 %v2398, %v3581
      %v4020 = vadd.f32 %v2403, %v3586
      %v4021 = vadd.f32 %v2408, %v3591
      %v4022 = vadd.f32 %v2413, %v3596
      %v4023 = vadd.f32 %v2418, %v3601
      %v4024 = vadd.f32 %v2423, %v3606
      %v4025 = vadd.f32 %v2428, %v3611
      %v4026 = vadd.f32 %v2433, %v3616
      %v4027 = vadd.f32 %v2438, %v3621
      %v4028 = vadd.f32 %v2443, %v3626
      %v4029 = vadd.f32 %v2448, %v3631
      %v4030 = vadd.f32 %v2453, %v3636
      %v4031 = vadd.f32 %v2458, %v3641
      %v4032 = vadd.f32 %v2463, %v3646
      %v4033 = vadd.f32 %v2468, %v3651
      %v4034 = vadd.f32 %v2473, %v3656
      %v4035 = vadd.f32 %v2478, %v3661
      %v4036 = vadd.f32 %v2483, %v3666
      %v4037 = vadd.f32 %v2488, %v3671
      %v4038 = vadd.f32 %v2493, %v3676
      %v4039 = vadd.f32 %v2498, %v3681
      %v4040 = vadd.f32 %v2503, %v3686
      %v4041 = vadd.f32 %v2508, %v3691
      %v4042 = vadd.f32 %v2513, %v3696
      %v4043 = vadd.f32 %v2518, %v3701
      %v4044 = vadd.f32 %v2523, %v3706
      %v4045 = vadd.f32 %v2528, %v3711
      %v4046 = vadd.f32 %v2533, %v3716
      %v4047 = vadd.f32 %v2538, %v3721
      %v4048 = vadd.f32 %v2543, %v3726
      %v4049 = vadd.f32 %v2548, %v3731
      %v4050 = vadd.f32 %v2553, %v3736
      %v4051 = vadd.f32 %v2558, %v3741
      %v4052 = vadd.f32 %v2563, %v3746
      %v4053 = vadd.f32 %v2568, %v3751
      %v4054 = vadd.f32 %v2573, %v3756
      %v4055 = vadd.f32 %v2578, %v3761
      %v4056 = vadd.f32 %v2583, %v3766
      %v4057 = vadd.f32 %v2588, %v3771
      %v4058 = vadd.f32 %v2593, %v3776
      %v4059 = vadd.f32 %v2598, %v3781
      %v4060 = vadd.f32 %v2603, %v3786
      %v4061 = vadd.f32 %v2608, %v3791
      %v4062 = vadd.f32 %v2613, %v3796
      %v4063 = vadd.f32 %v2618, %v3801
      %v4064 = vadd.f32 %v2623, %v3806
      %v4065 = vadd.f32 %v2628, %v3811
      %v4066 = vadd.f32 %v2633, %v3816
      %v4067 = vadd.f32 %v2638, %v3821
      %v4068 = vadd.f32 %v2643, %v3826
      %v4069 = vadd.f32 %v2648, %v3831
      %v4070 = vadd.f32 %v2653, %v3836
      %v4071 = vadd.f32 %v2658, %v3841
      %v4072 = vadd.f32 %v2663, %v3846
      %v4073 = vadd.f32 %v2668, %v3851
      %v4074 = vadd.f32 %v2673, %v3856
      %v4075 = vadd.f32 %v2678, %v3861
      %v4076 = vadd.f32 %v2683, %v3866
      %v4077 = vadd.f32 %v2688, %v3871
      %v4078 = vadd.f32 %v2693, %v3876
      %v4079 = vadd.f32 %v2698, %v3881
      %v4080 = vadd.f32 %v2703, %v3886
      %v4081 = vadd.f32 %v2708, %v3891
      %v4082 = vadd.f32 %v2713, %v3896
      %v4083 = vadd.f32 %v2718, %v3901
      %v4084 = vadd.f32 %v2723, %v3906
      %v4085 = vadd.f32 %v2728, %v3911
      %v4086 = vadd.f32 %v2733, %v3916
      %v4087 = vadd.f32 %v2738, %v3921
      %v4088 = vadd.f32 %v2743, %v3926
      %v4089 = vadd.f32 %v2748, %v3931
      %v4090 = vadd.f32 %v2753, %v3936
      %v4091 = vadd.f32 %v2758, %v3941
      %v4092 = vadd.f32 %v2763, %v3946
      %v4093 = vadd.f32 %v2768, %v3951
      %v4094 = vadd.f32 %v2773, %v3956
      %v4095 = vadd.f32 %v2778, %v3961
      %v4096 = vadd.f32 %v2783, %v3966
      %v4097 = vadd.f32 %v2788, %v3971
      %v4098 = vld [vmem:[%s6] sm:$0x1]
      %v4100 = vlaneseq
      %v4101 = vshrl.u32 %v4100, 7
      %v4102 = vsub.s32 0, %v4101
      %v4103 = vrot.slane %v4098, %v4102
      %v4105 = vadd.f32 %v3974, %v4103
      %v4106 = vadd.f32 %v3975, %v4103
      %v4107 = vadd.f32 %v3976, %v4103
      %v4108 = vadd.f32 %v3977, %v4103
      %v4109 = vadd.f32 %v3978, %v4103
      %v4110 = vadd.f32 %v3979, %v4103
      %v4111 = vadd.f32 %v3980, %v4103
      %v4112 = vadd.f32 %v3981, %v4103
      %v4113 = vadd.f32 %v3982, %v4103
      %v4114 = vadd.f32 %v3983, %v4103
      %v4115 = vadd.f32 %v3984, %v4103
      %v4116 = vadd.f32 %v3985, %v4103
      %v4117 = vadd.f32 %v3986, %v4103
      %v4118 = vadd.f32 %v3987, %v4103
      %v4119 = vadd.f32 %v3988, %v4103
      %v4120 = vadd.f32 %v3989, %v4103
      %v4121 = vadd.f32 %v3990, %v4103
      %v4122 = vadd.f32 %v3991, %v4103
      %v4123 = vadd.f32 %v3992, %v4103
      %v4124 = vadd.f32 %v3993, %v4103
      %v4125 = vadd.f32 %v3994, %v4103
      %v4126 = vadd.f32 %v3995, %v4103
      %v4127 = vadd.f32 %v3996, %v4103
      %v4128 = vadd.f32 %v3997, %v4103
      %v4129 = vadd.f32 %v3998, %v4103
      %v4130 = vadd.f32 %v3999, %v4103
      %v4131 = vadd.f32 %v4000, %v4103
      %v4132 = vadd.f32 %v4001, %v4103
      %v4133 = vadd.f32 %v4002, %v4103
      %v4134 = vadd.f32 %v4003, %v4103
      %v4135 = vadd.f32 %v4004, %v4103
      %v4136 = vadd.f32 %v4005, %v4103
      %v4137 = vadd.f32 %v4006, %v4103
      %v4138 = vadd.f32 %v4007, %v4103
      %v4139 = vadd.f32 %v4008, %v4103
      %v4140 = vadd.f32 %v4009, %v4103
      %v4141 = vadd.f32 %v4010, %v4103
      %v4142 = vadd.f32 %v4011, %v4103
      %v4143 = vadd.f32 %v4012, %v4103
      %v4144 = vadd.f32 %v4013, %v4103
      %v4145 = vadd.f32 %v4014, %v4103
      %v4146 = vadd.f32 %v4015, %v4103
      %v4147 = vadd.f32 %v4016, %v4103
      %v4148 = vadd.f32 %v4017, %v4103
      %v4149 = vadd.f32 %v4018, %v4103
      %v4150 = vadd.f32 %v4019, %v4103
      %v4151 = vadd.f32 %v4020, %v4103
      %v4152 = vadd.f32 %v4021, %v4103
      %v4153 = vadd.f32 %v4022, %v4103
      %v4154 = vadd.f32 %v4023, %v4103
      %v4155 = vadd.f32 %v4024, %v4103
      %v4156 = vadd.f32 %v4025, %v4103
      %v4157 = vadd.f32 %v4026, %v4103
      %v4158 = vadd.f32 %v4027, %v4103
      %v4159 = vadd.f32 %v4028, %v4103
      %v4160 = vadd.f32 %v4029, %v4103
      %v4161 = vadd.f32 %v4030, %v4103
      %v4162 = vadd.f32 %v4031, %v4103
      %v4163 = vadd.f32 %v4032, %v4103
      %v4164 = vadd.f32 %v4033, %v4103
      %v4165 = vadd.f32 %v4034, %v4103
      %v4166 = vadd.f32 %v4035, %v4103
      %v4167 = vadd.f32 %v4036, %v4103
      %v4168 = vadd.f32 %v4037, %v4103
      %v4169 = vadd.f32 %v4038, %v4103
      %v4170 = vadd.f32 %v4039, %v4103
      %v4171 = vadd.f32 %v4040, %v4103
      %v4172 = vadd.f32 %v4041, %v4103
      %v4173 = vadd.f32 %v4042, %v4103
      %v4174 = vadd.f32 %v4043, %v4103
      %v4175 = vadd.f32 %v4044, %v4103
      %v4176 = vadd.f32 %v4045, %v4103
      %v4177 = vadd.f32 %v4046, %v4103
      %v4178 = vadd.f32 %v4047, %v4103
      %v4179 = vadd.f32 %v4048, %v4103
      %v4180 = vadd.f32 %v4049, %v4103
      %v4181 = vadd.f32 %v4050, %v4103
      %v4182 = vadd.f32 %v4051, %v4103
      %v4183 = vadd.f32 %v4052, %v4103
      %v4184 = vadd.f32 %v4053, %v4103
      %v4185 = vadd.f32 %v4054, %v4103
      %v4186 = vadd.f32 %v4055, %v4103
      %v4187 = vadd.f32 %v4056, %v4103
      %v4188 = vadd.f32 %v4057, %v4103
      %v4189 = vadd.f32 %v4058, %v4103
      %v4190 = vadd.f32 %v4059, %v4103
      %v4191 = vadd.f32 %v4060, %v4103
      %v4192 = vadd.f32 %v4061, %v4103
      %v4193 = vadd.f32 %v4062, %v4103
      %v4194 = vadd.f32 %v4063, %v4103
      %v4195 = vadd.f32 %v4064, %v4103
      %v4196 = vadd.f32 %v4065, %v4103
      %v4197 = vadd.f32 %v4066, %v4103
      %v4198 = vadd.f32 %v4067, %v4103
      %v4199 = vadd.f32 %v4068, %v4103
      %v4200 = vadd.f32 %v4069, %v4103
      %v4201 = vadd.f32 %v4070, %v4103
      %v4202 = vadd.f32 %v4071, %v4103
      %v4203 = vadd.f32 %v4072, %v4103
      %v4204 = vadd.f32 %v4073, %v4103
      %v4205 = vadd.f32 %v4074, %v4103
      %v4206 = vadd.f32 %v4075, %v4103
      %v4207 = vadd.f32 %v4076, %v4103
      %v4208 = vadd.f32 %v4077, %v4103
      %v4209 = vadd.f32 %v4078, %v4103
      %v4210 = vadd.f32 %v4079, %v4103
      %v4211 = vadd.f32 %v4080, %v4103
      %v4212 = vadd.f32 %v4081, %v4103
      %v4213 = vadd.f32 %v4082, %v4103
      %v4214 = vadd.f32 %v4083, %v4103
      %v4215 = vadd.f32 %v4084, %v4103
      %v4216 = vadd.f32 %v4085, %v4103
      %v4217 = vadd.f32 %v4086, %v4103
      %v4218 = vadd.f32 %v4087, %v4103
      %v4219 = vadd.f32 %v4088, %v4103
      %v4220 = vadd.f32 %v4089, %v4103
      %v4221 = vadd.f32 %v4090, %v4103
      %v4222 = vadd.f32 %v4091, %v4103
      %v4223 = vadd.f32 %v4092, %v4103
      %v4224 = vadd.f32 %v4093, %v4103
      %v4225 = vadd.f32 %v4094, %v4103
      %v4226 = vadd.f32 %v4095, %v4103
      %v4227 = vadd.f32 %v4096, %v4103
      %v4228 = vadd.f32 %v4097, %v4103
      %vm4229 = vcmp.ge.f32.partialorder %v4105, 0.0
      %vm4230 = vcmp.ge.f32.partialorder %v4106, 0.0
      %vm4231 = vcmp.ge.f32.partialorder %v4107, 0.0
      %vm4232 = vcmp.ge.f32.partialorder %v4108, 0.0
      %vm4233 = vcmp.ge.f32.partialorder %v4109, 0.0
      %vm4234 = vcmp.ge.f32.partialorder %v4110, 0.0
      %vm4235 = vcmp.ge.f32.partialorder %v4111, 0.0
      %vm4236 = vcmp.ge.f32.partialorder %v4112, 0.0
      %vm4237 = vcmp.ge.f32.partialorder %v4113, 0.0
      %vm4238 = vcmp.ge.f32.partialorder %v4114, 0.0
      %vm4239 = vcmp.ge.f32.partialorder %v4115, 0.0
      %vm4240 = vcmp.ge.f32.partialorder %v4116, 0.0
      %vm4241 = vcmp.ge.f32.partialorder %v4117, 0.0
      %vm4242 = vcmp.ge.f32.partialorder %v4118, 0.0
      %vm4243 = vcmp.ge.f32.partialorder %v4119, 0.0
      %vm4244 = vcmp.ge.f32.partialorder %v4120, 0.0
      %vm4245 = vcmp.ge.f32.partialorder %v4121, 0.0
      %vm4246 = vcmp.ge.f32.partialorder %v4122, 0.0
      %vm4247 = vcmp.ge.f32.partialorder %v4123, 0.0
      %vm4248 = vcmp.ge.f32.partialorder %v4124, 0.0
      %vm4249 = vcmp.ge.f32.partialorder %v4125, 0.0
      %vm4250 = vcmp.ge.f32.partialorder %v4126, 0.0
      %vm4251 = vcmp.ge.f32.partialorder %v4127, 0.0
      %vm4252 = vcmp.ge.f32.partialorder %v4128, 0.0
      %vm4253 = vcmp.ge.f32.partialorder %v4129, 0.0
      %vm4254 = vcmp.ge.f32.partialorder %v4130, 0.0
      %vm4255 = vcmp.ge.f32.partialorder %v4131, 0.0
      %vm4256 = vcmp.ge.f32.partialorder %v4132, 0.0
      %vm4257 = vcmp.ge.f32.partialorder %v4133, 0.0
      %vm4258 = vcmp.ge.f32.partialorder %v4134, 0.0
      %vm4259 = vcmp.ge.f32.partialorder %v4135, 0.0
      %vm4260 = vcmp.ge.f32.partialorder %v4136, 0.0
      %vm4261 = vcmp.ge.f32.partialorder %v4137, 0.0
      %vm4262 = vcmp.ge.f32.partialorder %v4138, 0.0
      %vm4263 = vcmp.ge.f32.partialorder %v4139, 0.0
      %vm4264 = vcmp.ge.f32.partialorder %v4140, 0.0
      %vm4265 = vcmp.ge.f32.partialorder %v4141, 0.0
      %vm4266 = vcmp.ge.f32.partialorder %v4142, 0.0
      %vm4267 = vcmp.ge.f32.partialorder %v4143, 0.0
      %vm4268 = vcmp.ge.f32.partialorder %v4144, 0.0
      %vm4269 = vcmp.ge.f32.partialorder %v4145, 0.0
      %vm4270 = vcmp.ge.f32.partialorder %v4146, 0.0
      %vm4271 = vcmp.ge.f32.partialorder %v4147, 0.0
      %vm4272 = vcmp.ge.f32.partialorder %v4148, 0.0
      %vm4273 = vcmp.ge.f32.partialorder %v4149, 0.0
      %vm4274 = vcmp.ge.f32.partialorder %v4150, 0.0
      %vm4275 = vcmp.ge.f32.partialorder %v4151, 0.0
      %vm4276 = vcmp.ge.f32.partialorder %v4152, 0.0
      %vm4277 = vcmp.ge.f32.partialorder %v4153, 0.0
      %vm4278 = vcmp.ge.f32.partialorder %v4154, 0.0
      %vm4279 = vcmp.ge.f32.partialorder %v4155, 0.0
      %vm4280 = vcmp.ge.f32.partialorder %v4156, 0.0
      %vm4281 = vcmp.ge.f32.partialorder %v4157, 0.0
      %vm4282 = vcmp.ge.f32.partialorder %v4158, 0.0
      %vm4283 = vcmp.ge.f32.partialorder %v4159, 0.0
      %vm4284 = vcmp.ge.f32.partialorder %v4160, 0.0
      %vm4285 = vcmp.ge.f32.partialorder %v4161, 0.0
      %vm4286 = vcmp.ge.f32.partialorder %v4162, 0.0
      %vm4287 = vcmp.ge.f32.partialorder %v4163, 0.0
      %vm4288 = vcmp.ge.f32.partialorder %v4164, 0.0
      %vm4289 = vcmp.ge.f32.partialorder %v4165, 0.0
      %vm4290 = vcmp.ge.f32.partialorder %v4166, 0.0
      %vm4291 = vcmp.ge.f32.partialorder %v4167, 0.0
      %vm4292 = vcmp.ge.f32.partialorder %v4168, 0.0
      %vm4293 = vcmp.ge.f32.partialorder %v4169, 0.0
      %vm4294 = vcmp.ge.f32.partialorder %v4170, 0.0
      %vm4295 = vcmp.ge.f32.partialorder %v4171, 0.0
      %vm4296 = vcmp.ge.f32.partialorder %v4172, 0.0
      %vm4297 = vcmp.ge.f32.partialorder %v4173, 0.0
      %vm4298 = vcmp.ge.f32.partialorder %v4174, 0.0
      %vm4299 = vcmp.ge.f32.partialorder %v4175, 0.0
      %vm4300 = vcmp.ge.f32.partialorder %v4176, 0.0
      %vm4301 = vcmp.ge.f32.partialorder %v4177, 0.0
      %vm4302 = vcmp.ge.f32.partialorder %v4178, 0.0
      %vm4303 = vcmp.ge.f32.partialorder %v4179, 0.0
      %vm4304 = vcmp.ge.f32.partialorder %v4180, 0.0
      %vm4305 = vcmp.ge.f32.partialorder %v4181, 0.0
      %vm4306 = vcmp.ge.f32.partialorder %v4182, 0.0
      %vm4307 = vcmp.ge.f32.partialorder %v4183, 0.0
      %vm4308 = vcmp.ge.f32.partialorder %v4184, 0.0
      %vm4309 = vcmp.ge.f32.partialorder %v4185, 0.0
      %vm4310 = vcmp.ge.f32.partialorder %v4186, 0.0
      %vm4311 = vcmp.ge.f32.partialorder %v4187, 0.0
      %vm4312 = vcmp.ge.f32.partialorder %v4188, 0.0
      %vm4313 = vcmp.ge.f32.partialorder %v4189, 0.0
      %vm4314 = vcmp.ge.f32.partialorder %v4190, 0.0
      %vm4315 = vcmp.ge.f32.partialorder %v4191, 0.0
      %vm4316 = vcmp.ge.f32.partialorder %v4192, 0.0
      %vm4317 = vcmp.ge.f32.partialorder %v4193, 0.0
      %vm4318 = vcmp.ge.f32.partialorder %v4194, 0.0
      %vm4319 = vcmp.ge.f32.partialorder %v4195, 0.0
      %vm4320 = vcmp.ge.f32.partialorder %v4196, 0.0
      %vm4321 = vcmp.ge.f32.partialorder %v4197, 0.0
      %vm4322 = vcmp.ge.f32.partialorder %v4198, 0.0
      %vm4323 = vcmp.ge.f32.partialorder %v4199, 0.0
      %vm4324 = vcmp.ge.f32.partialorder %v4200, 0.0
      %vm4325 = vcmp.ge.f32.partialorder %v4201, 0.0
      %vm4326 = vcmp.ge.f32.partialorder %v4202, 0.0
      %vm4327 = vcmp.ge.f32.partialorder %v4203, 0.0
      %vm4328 = vcmp.ge.f32.partialorder %v4204, 0.0
      %vm4329 = vcmp.ge.f32.partialorder %v4205, 0.0
      %vm4330 = vcmp.ge.f32.partialorder %v4206, 0.0
      %vm4331 = vcmp.ge.f32.partialorder %v4207, 0.0
      %vm4332 = vcmp.ge.f32.partialorder %v4208, 0.0
      %vm4333 = vcmp.ge.f32.partialorder %v4209, 0.0
      %vm4334 = vcmp.ge.f32.partialorder %v4210, 0.0
      %vm4335 = vcmp.ge.f32.partialorder %v4211, 0.0
      %vm4336 = vcmp.ge.f32.partialorder %v4212, 0.0
      %vm4337 = vcmp.ge.f32.partialorder %v4213, 0.0
      %vm4338 = vcmp.ge.f32.partialorder %v4214, 0.0
      %vm4339 = vcmp.ge.f32.partialorder %v4215, 0.0
      %vm4340 = vcmp.ge.f32.partialorder %v4216, 0.0
      %vm4341 = vcmp.ge.f32.partialorder %v4217, 0.0
      %vm4342 = vcmp.ge.f32.partialorder %v4218, 0.0
      %vm4343 = vcmp.ge.f32.partialorder %v4219, 0.0
      %vm4344 = vcmp.ge.f32.partialorder %v4220, 0.0
      %vm4345 = vcmp.ge.f32.partialorder %v4221, 0.0
      %vm4346 = vcmp.ge.f32.partialorder %v4222, 0.0
      %vm4347 = vcmp.ge.f32.partialorder %v4223, 0.0
      %vm4348 = vcmp.ge.f32.partialorder %v4224, 0.0
      %vm4349 = vcmp.ge.f32.partialorder %v4225, 0.0
      %vm4350 = vcmp.ge.f32.partialorder %v4226, 0.0
      %vm4351 = vcmp.ge.f32.partialorder %v4227, 0.0
      %vm4352 = vcmp.ge.f32.partialorder %v4228, 0.0
      %v4353 = vmul.f32 %v4105, 0.1
      %v4354 = vmul.f32 %v4106, 0.1
      %v4355 = vmul.f32 %v4107, 0.1
      %v4356 = vmul.f32 %v4108, 0.1
      %v4357 = vmul.f32 %v4109, 0.1
      %v4358 = vmul.f32 %v4110, 0.1
      %v4359 = vmul.f32 %v4111, 0.1
      %v4360 = vmul.f32 %v4112, 0.1
      %v4361 = vmul.f32 %v4113, 0.1
      %v4362 = vmul.f32 %v4114, 0.1
      %v4363 = vmul.f32 %v4115, 0.1
      %v4364 = vmul.f32 %v4116, 0.1
      %v4365 = vmul.f32 %v4117, 0.1
      %v4366 = vmul.f32 %v4118, 0.1
      %v4367 = vmul.f32 %v4119, 0.1
      %v4368 = vmul.f32 %v4120, 0.1
      %v4369 = vmul.f32 %v4121, 0.1
      %v4370 = vmul.f32 %v4122, 0.1
      %v4371 = vmul.f32 %v4123, 0.1
      %v4372 = vmul.f32 %v4124, 0.1
      %v4373 = vmul.f32 %v4125, 0.1
      %v4374 = vmul.f32 %v4126, 0.1
      %v4375 = vmul.f32 %v4127, 0.1
      %v4376 = vmul.f32 %v4128, 0.1
      %v4377 = vmul.f32 %v4129, 0.1
      %v4378 = vmul.f32 %v4130, 0.1
      %v4379 = vmul.f32 %v4131, 0.1
      %v4380 = vmul.f32 %v4132, 0.1
      %v4381 = vmul.f32 %v4133, 0.1
      %v4382 = vmul.f32 %v4134, 0.1
      %v4383 = vmul.f32 %v4135, 0.1
      %v4384 = vmul.f32 %v4136, 0.1
      %v4385 = vmul.f32 %v4137, 0.1
      %v4386 = vmul.f32 %v4138, 0.1
      %v4387 = vmul.f32 %v4139, 0.1
      %v4388 = vmul.f32 %v4140, 0.1
      %v4389 = vmul.f32 %v4141, 0.1
      %v4390 = vmul.f32 %v4142, 0.1
      %v4391 = vmul.f32 %v4143, 0.1
      %v4392 = vmul.f32 %v4144, 0.1
      %v4393 = vmul.f32 %v4145, 0.1
      %v4394 = vmul.f32 %v4146, 0.1
      %v4395 = vmul.f32 %v4147, 0.1
      %v4396 = vmul.f32 %v4148, 0.1
      %v4397 = vmul.f32 %v4149, 0.1
      %v4398 = vmul.f32 %v4150, 0.1
      %v4399 = vmul.f32 %v4151, 0.1
      %v4400 = vmul.f32 %v4152, 0.1
      %v4401 = vmul.f32 %v4153, 0.1
      %v4402 = vmul.f32 %v4154, 0.1
      %v4403 = vmul.f32 %v4155, 0.1
      %v4404 = vmul.f32 %v4156, 0.1
      %v4405 = vmul.f32 %v4157, 0.1
      %v4406 = vmul.f32 %v4158, 0.1
      %v4407 = vmul.f32 %v4159, 0.1
      %v4408 = vmul.f32 %v4160, 0.1
      %v4409 = vmul.f32 %v4161, 0.1
      %v4410 = vmul.f32 %v4162, 0.1
      %v4411 = vmul.f32 %v4163, 0.1
      %v4412 = vmul.f32 %v4164, 0.1
      %v4413 = vmul.f32 %v4165, 0.1
      %v4414 = vmul.f32 %v4166, 0.1
      %v4415 = vmul.f32 %v4167, 0.1
      %v4416 = vmul.f32 %v4168, 0.1
      %v4417 = vmul.f32 %v4169, 0.1
      %v4418 = vmul.f32 %v4170, 0.1
      %v4419 = vmul.f32 %v4171, 0.1
      %v4420 = vmul.f32 %v4172, 0.1
      %v4421 = vmul.f32 %v4173, 0.1
      %v4422 = vmul.f32 %v4174, 0.1
      %v4423 = vmul.f32 %v4175, 0.1
      %v4424 = vmul.f32 %v4176, 0.1
      %v4425 = vmul.f32 %v4177, 0.1
      %v4426 = vmul.f32 %v4178, 0.1
      %v4427 = vmul.f32 %v4179, 0.1
      %v4428 = vmul.f32 %v4180, 0.1
      %v4429 = vmul.f32 %v4181, 0.1
      %v4430 = vmul.f32 %v4182, 0.1
      %v4431 = vmul.f32 %v4183, 0.1
      %v4432 = vmul.f32 %v4184, 0.1
      %v4433 = vmul.f32 %v4185, 0.1
      %v4434 = vmul.f32 %v4186, 0.1
      %v4435 = vmul.f32 %v4187, 0.1
      %v4436 = vmul.f32 %v4188, 0.1
      %v4437 = vmul.f32 %v4189, 0.1
      %v4438 = vmul.f32 %v4190, 0.1
      %v4439 = vmul.f32 %v4191, 0.1
      %v4440 = vmul.f32 %v4192, 0.1
      %v4441 = vmul.f32 %v4193, 0.1
      %v4442 = vmul.f32 %v4194, 0.1
      %v4443 = vmul.f32 %v4195, 0.1
      %v4444 = vmul.f32 %v4196, 0.1
      %v4445 = vmul.f32 %v4197, 0.1
      %v4446 = vmul.f32 %v4198, 0.1
      %v4447 = vmul.f32 %v4199, 0.1
      %v4448 = vmul.f32 %v4200, 0.1
      %v4449 = vmul.f32 %v4201, 0.1
      %v4450 = vmul.f32 %v4202, 0.1
      %v4451 = vmul.f32 %v4203, 0.1
      %v4452 = vmul.f32 %v4204, 0.1
      %v4453 = vmul.f32 %v4205, 0.1
      %v4454 = vmul.f32 %v4206, 0.1
      %v4455 = vmul.f32 %v4207, 0.1
      %v4456 = vmul.f32 %v4208, 0.1
      %v4457 = vmul.f32 %v4209, 0.1
      %v4458 = vmul.f32 %v4210, 0.1
      %v4459 = vmul.f32 %v4211, 0.1
      %v4460 = vmul.f32 %v4212, 0.1
      %v4461 = vmul.f32 %v4213, 0.1
      %v4462 = vmul.f32 %v4214, 0.1
      %v4463 = vmul.f32 %v4215, 0.1
      %v4464 = vmul.f32 %v4216, 0.1
      %v4465 = vmul.f32 %v4217, 0.1
      %v4466 = vmul.f32 %v4218, 0.1
      %v4467 = vmul.f32 %v4219, 0.1
      %v4468 = vmul.f32 %v4220, 0.1
      %v4469 = vmul.f32 %v4221, 0.1
      %v4470 = vmul.f32 %v4222, 0.1
      %v4471 = vmul.f32 %v4223, 0.1
      %v4472 = vmul.f32 %v4224, 0.1
      %v4473 = vmul.f32 %v4225, 0.1
      %v4474 = vmul.f32 %v4226, 0.1
      %v4475 = vmul.f32 %v4227, 0.1
      %v4476 = vmul.f32 %v4228, 0.1
      %v4477 = vsel %vm4229, %v4105, %v4353
      %v4478 = vsel %vm4230, %v4106, %v4354
      %v4479 = vsel %vm4231, %v4107, %v4355
      %v4480 = vsel %vm4232, %v4108, %v4356
      %v4481 = vsel %vm4233, %v4109, %v4357
      %v4482 = vsel %vm4234, %v4110, %v4358
      %v4483 = vsel %vm4235, %v4111, %v4359
      %v4484 = vsel %vm4236, %v4112, %v4360
      %v4485 = vsel %vm4237, %v4113, %v4361
      %v4486 = vsel %vm4238, %v4114, %v4362
      %v4487 = vsel %vm4239, %v4115, %v4363
      %v4488 = vsel %vm4240, %v4116, %v4364
      %v4489 = vsel %vm4241, %v4117, %v4365
      %v4490 = vsel %vm4242, %v4118, %v4366
      %v4491 = vsel %vm4243, %v4119, %v4367
      %v4492 = vsel %vm4244, %v4120, %v4368
      %v4493 = vsel %vm4245, %v4121, %v4369
      %v4494 = vsel %vm4246, %v4122, %v4370
      %v4495 = vsel %vm4247, %v4123, %v4371
      %v4496 = vsel %vm4248, %v4124, %v4372
      %v4497 = vsel %vm4249, %v4125, %v4373
      %v4498 = vsel %vm4250, %v4126, %v4374
      %v4499 = vsel %vm4251, %v4127, %v4375
      %v4500 = vsel %vm4252, %v4128, %v4376
      %v4501 = vsel %vm4253, %v4129, %v4377
      %v4502 = vsel %vm4254, %v4130, %v4378
      %v4503 = vsel %vm4255, %v4131, %v4379
      %v4504 = vsel %vm4256, %v4132, %v4380
      %v4505 = vsel %vm4257, %v4133, %v4381
      %v4506 = vsel %vm4258, %v4134, %v4382
      %v4507 = vsel %vm4259, %v4135, %v4383
      %v4508 = vsel %vm4260, %v4136, %v4384
      %v4509 = vsel %vm4261, %v4137, %v4385
      %v4510 = vsel %vm4262, %v4138, %v4386
      %v4511 = vsel %vm4263, %v4139, %v4387
      %v4512 = vsel %vm4264, %v4140, %v4388
      %v4513 = vsel %vm4265, %v4141, %v4389
      %v4514 = vsel %vm4266, %v4142, %v4390
      %v4515 = vsel %vm4267, %v4143, %v4391
      %v4516 = vsel %vm4268, %v4144, %v4392
      %v4517 = vsel %vm4269, %v4145, %v4393
      %v4518 = vsel %vm4270, %v4146, %v4394
      %v4519 = vsel %vm4271, %v4147, %v4395
      %v4520 = vsel %vm4272, %v4148, %v4396
      %v4521 = vsel %vm4273, %v4149, %v4397
      %v4522 = vsel %vm4274, %v4150, %v4398
      %v4523 = vsel %vm4275, %v4151, %v4399
      %v4524 = vsel %vm4276, %v4152, %v4400
      %v4525 = vsel %vm4277, %v4153, %v4401
      %v4526 = vsel %vm4278, %v4154, %v4402
      %v4527 = vsel %vm4279, %v4155, %v4403
      %v4528 = vsel %vm4280, %v4156, %v4404
      %v4529 = vsel %vm4281, %v4157, %v4405
      %v4530 = vsel %vm4282, %v4158, %v4406
      %v4531 = vsel %vm4283, %v4159, %v4407
      %v4532 = vsel %vm4284, %v4160, %v4408
      %v4533 = vsel %vm4285, %v4161, %v4409
      %v4534 = vsel %vm4286, %v4162, %v4410
      %v4535 = vsel %vm4287, %v4163, %v4411
      %v4536 = vsel %vm4288, %v4164, %v4412
      %v4537 = vsel %vm4289, %v4165, %v4413
      %v4538 = vsel %vm4290, %v4166, %v4414
      %v4539 = vsel %vm4291, %v4167, %v4415
      %v4540 = vsel %vm4292, %v4168, %v4416
      %v4541 = vsel %vm4293, %v4169, %v4417
      %v4542 = vsel %vm4294, %v4170, %v4418
      %v4543 = vsel %vm4295, %v4171, %v4419
      %v4544 = vsel %vm4296, %v4172, %v4420
      %v4545 = vsel %vm4297, %v4173, %v4421
      %v4546 = vsel %vm4298, %v4174, %v4422
      %v4547 = vsel %vm4299, %v4175, %v4423
      %v4548 = vsel %vm4300, %v4176, %v4424
      %v4549 = vsel %vm4301, %v4177, %v4425
      %v4550 = vsel %vm4302, %v4178, %v4426
      %v4551 = vsel %vm4303, %v4179, %v4427
      %v4552 = vsel %vm4304, %v4180, %v4428
      %v4553 = vsel %vm4305, %v4181, %v4429
      %v4554 = vsel %vm4306, %v4182, %v4430
      %v4555 = vsel %vm4307, %v4183, %v4431
      %v4556 = vsel %vm4308, %v4184, %v4432
      %v4557 = vsel %vm4309, %v4185, %v4433
      %v4558 = vsel %vm4310, %v4186, %v4434
      %v4559 = vsel %vm4311, %v4187, %v4435
      %v4560 = vsel %vm4312, %v4188, %v4436
      %v4561 = vsel %vm4313, %v4189, %v4437
      %v4562 = vsel %vm4314, %v4190, %v4438
      %v4563 = vsel %vm4315, %v4191, %v4439
      %v4564 = vsel %vm4316, %v4192, %v4440
      %v4565 = vsel %vm4317, %v4193, %v4441
      %v4566 = vsel %vm4318, %v4194, %v4442
      %v4567 = vsel %vm4319, %v4195, %v4443
      %v4568 = vsel %vm4320, %v4196, %v4444
      %v4569 = vsel %vm4321, %v4197, %v4445
      %v4570 = vsel %vm4322, %v4198, %v4446
      %v4571 = vsel %vm4323, %v4199, %v4447
      %v4572 = vsel %vm4324, %v4200, %v4448
      %v4573 = vsel %vm4325, %v4201, %v4449
      %v4574 = vsel %vm4326, %v4202, %v4450
      %v4575 = vsel %vm4327, %v4203, %v4451
      %v4576 = vsel %vm4328, %v4204, %v4452
      %v4577 = vsel %vm4329, %v4205, %v4453
      %v4578 = vsel %vm4330, %v4206, %v4454
      %v4579 = vsel %vm4331, %v4207, %v4455
      %v4580 = vsel %vm4332, %v4208, %v4456
      %v4581 = vsel %vm4333, %v4209, %v4457
      %v4582 = vsel %vm4334, %v4210, %v4458
      %v4583 = vsel %vm4335, %v4211, %v4459
      %v4584 = vsel %vm4336, %v4212, %v4460
      %v4585 = vsel %vm4337, %v4213, %v4461
      %v4586 = vsel %vm4338, %v4214, %v4462
      %v4587 = vsel %vm4339, %v4215, %v4463
      %v4588 = vsel %vm4340, %v4216, %v4464
      %v4589 = vsel %vm4341, %v4217, %v4465
      %v4590 = vsel %vm4342, %v4218, %v4466
      %v4591 = vsel %vm4343, %v4219, %v4467
      %v4592 = vsel %vm4344, %v4220, %v4468
      %v4593 = vsel %vm4345, %v4221, %v4469
      %v4594 = vsel %vm4346, %v4222, %v4470
      %v4595 = vsel %vm4347, %v4223, %v4471
      %v4596 = vsel %vm4348, %v4224, %v4472
      %v4597 = vsel %vm4349, %v4225, %v4473
      %v4598 = vsel %vm4350, %v4226, %v4474
      %v4599 = vsel %vm4351, %v4227, %v4475
      %v4600 = vsel %vm4352, %v4228, %v4476
      %p4601 = scmp.eq.s32.totalorder %s20, 1
      %p4602 = scmp.ne.s32.totalorder %s20, 1
      // Predicated region
      $region49: #{edge_layer_forward.3} parent=47 // pred_check
        %p4603 = pneg %p4602
      $region50: #{edge_layer_forward.3} parent=47 // pred_check_branch
        %4605 = sbr.rel (%p4603) target = $region52
      $region51: #{edge_layer_forward.3} parent=47 // pred_region
        %vm4606 = vcmask 261120
        %4607 = vst.msk [vmem:[%s418] sm:$0xff] %vm4606, %v4477
        %4608 = vst.msk [vmem:[%s418 + $0x8] sm:$0xff] %vm4606, %v4478
        %4609 = vst.msk [vmem:[%s418 + $0x10] sm:$0xff] %vm4606, %v4479
        %4610 = vst.msk [vmem:[%s418 + $0x18] sm:$0xff] %vm4606, %v4480
        %4611 = vst.msk [vmem:[%s418 + $0x20] sm:$0xff] %vm4606, %v4481
        %4612 = vst.msk [vmem:[%s418 + $0x28] sm:$0xff] %vm4606, %v4482
        %4613 = vst.msk [vmem:[%s418 + $0x30] sm:$0xff] %vm4606, %v4483
        %4614 = vst.msk [vmem:[%s418 + $0x38] sm:$0xff] %vm4606, %v4484
        %4615 = vst.msk [vmem:[%s418 + $0x40] sm:$0xff] %vm4606, %v4485
        %4616 = vst.msk [vmem:[%s418 + $0x48] sm:$0xff] %vm4606, %v4486
        %4617 = vst.msk [vmem:[%s418 + $0x50] sm:$0xff] %vm4606, %v4487
        %4618 = vst.msk [vmem:[%s418 + $0x58] sm:$0xff] %vm4606, %v4488
        %4619 = vst.msk [vmem:[%s418 + $0x60] sm:$0xff] %vm4606, %v4489
        %4620 = vst.msk [vmem:[%s418 + $0x68] sm:$0xff] %vm4606, %v4490
        %4621 = vst.msk [vmem:[%s418 + $0x70] sm:$0xff] %vm4606, %v4491
        %4622 = vst.msk [vmem:[%s418 + $0x78] sm:$0xff] %vm4606, %v4492
        %4623 = vst.msk [vmem:[%s418 + $0x80] sm:$0xff] %vm4606, %v4493
        %4624 = vst.msk [vmem:[%s418 + $0x88] sm:$0xff] %vm4606, %v4494
        %4625 = vst.msk [vmem:[%s418 + $0x90] sm:$0xff] %vm4606, %v4495
        %4626 = vst.msk [vmem:[%s418 + $0x98] sm:$0xff] %vm4606, %v4496
        %4627 = vst.msk [vmem:[%s418 + $0xa0] sm:$0xff] %vm4606, %v4497
        %4628 = vst.msk [vmem:[%s418 + $0xa8] sm:$0xff] %vm4606, %v4498
        %4629 = vst.msk [vmem:[%s418 + $0xb0] sm:$0xff] %vm4606, %v4499
        %4630 = vst.msk [vmem:[%s418 + $0xb8] sm:$0xff] %vm4606, %v4500
        %4631 = vst.msk [vmem:[%s418 + $0xc0] sm:$0xff] %vm4606, %v4501
        %4632 = vst.msk [vmem:[%s418 + $0xc8] sm:$0xff] %vm4606, %v4502
        %4633 = vst.msk [vmem:[%s418 + $0xd0] sm:$0xff] %vm4606, %v4503
        %4634 = vst.msk [vmem:[%s418 + $0xd8] sm:$0xff] %vm4606, %v4504
        %4635 = vst.msk [vmem:[%s418 + $0xe0] sm:$0xff] %vm4606, %v4505
        %4636 = vst.msk [vmem:[%s418 + $0xe8] sm:$0xff] %vm4606, %v4506
        %4637 = vst.msk [vmem:[%s418 + $0xf0] sm:$0xff] %vm4606, %v4507
        %4638 = vst.msk [vmem:[%s418 + $0xf8] sm:$0xff] %vm4606, %v4508
        %4639 = vst.msk [vmem:[%s418 + $0x100] sm:$0xff] %vm4606, %v4509
        %4640 = vst.msk [vmem:[%s418 + $0x108] sm:$0xff] %vm4606, %v4510
        %4641 = vst.msk [vmem:[%s418 + $0x110] sm:$0xff] %vm4606, %v4511
        %4642 = vst.msk [vmem:[%s418 + $0x118] sm:$0xff] %vm4606, %v4512
        %4643 = vst.msk [vmem:[%s418 + $0x120] sm:$0xff] %vm4606, %v4513
        %4644 = vst.msk [vmem:[%s418 + $0x128] sm:$0xff] %vm4606, %v4514
        %4645 = vst.msk [vmem:[%s418 + $0x130] sm:$0xff] %vm4606, %v4515
        %4646 = vst.msk [vmem:[%s418 + $0x138] sm:$0xff] %vm4606, %v4516
        %4647 = vst.msk [vmem:[%s418 + $0x140] sm:$0xff] %vm4606, %v4517
        %4648 = vst.msk [vmem:[%s418 + $0x148] sm:$0xff] %vm4606, %v4518
        %4649 = vst.msk [vmem:[%s418 + $0x150] sm:$0xff] %vm4606, %v4519
        %4650 = vst.msk [vmem:[%s418 + $0x158] sm:$0xff] %vm4606, %v4520
        %4651 = vst.msk [vmem:[%s418 + $0x160] sm:$0xff] %vm4606, %v4521
        %4652 = vst.msk [vmem:[%s418 + $0x168] sm:$0xff] %vm4606, %v4522
        %4653 = vst.msk [vmem:[%s418 + $0x170] sm:$0xff] %vm4606, %v4523
        %4654 = vst.msk [vmem:[%s418 + $0x178] sm:$0xff] %vm4606, %v4524
        %4655 = vst.msk [vmem:[%s418 + $0x180] sm:$0xff] %vm4606, %v4525
        %4656 = vst.msk [vmem:[%s418 + $0x188] sm:$0xff] %vm4606, %v4526
        %4657 = vst.msk [vmem:[%s418 + $0x190] sm:$0xff] %vm4606, %v4527
        %4658 = vst.msk [vmem:[%s418 + $0x198] sm:$0xff] %vm4606, %v4528
        %4659 = vst.msk [vmem:[%s418 + $0x1a0] sm:$0xff] %vm4606, %v4529
        %4660 = vst.msk [vmem:[%s418 + $0x1a8] sm:$0xff] %vm4606, %v4530
        %4661 = vst.msk [vmem:[%s418 + $0x1b0] sm:$0xff] %vm4606, %v4531
        %4662 = vst.msk [vmem:[%s418 + $0x1b8] sm:$0xff] %vm4606, %v4532
        %4663 = vst.msk [vmem:[%s418 + $0x1c0] sm:$0xff] %vm4606, %v4533
        %4664 = vst.msk [vmem:[%s418 + $0x1c8] sm:$0xff] %vm4606, %v4534
        %4665 = vst.msk [vmem:[%s418 + $0x1d0] sm:$0xff] %vm4606, %v4535
        %4666 = vst.msk [vmem:[%s418 + $0x1d8] sm:$0xff] %vm4606, %v4536
        %4667 = vst.msk [vmem:[%s418 + $0x1e0] sm:$0xff] %vm4606, %v4537
        %4668 = vst.msk [vmem:[%s418 + $0x1e8] sm:$0xff] %vm4606, %v4538
        %4669 = vst.msk [vmem:[%s418 + $0x1f0] sm:$0xff] %vm4606, %v4539
        %4670 = vst.msk [vmem:[%s418 + $0x1f8] sm:$0xff] %vm4606, %v4540
        %4671 = vst.msk [vmem:[%s418 + $0x200] sm:$0xff] %vm4606, %v4541
        %4672 = vst.msk [vmem:[%s418 + $0x208] sm:$0xff] %vm4606, %v4542
        %4673 = vst.msk [vmem:[%s418 + $0x210] sm:$0xff] %vm4606, %v4543
        %4674 = vst.msk [vmem:[%s418 + $0x218] sm:$0xff] %vm4606, %v4544
        %4675 = vst.msk [vmem:[%s418 + $0x220] sm:$0xff] %vm4606, %v4545
        %4676 = vst.msk [vmem:[%s418 + $0x228] sm:$0xff] %vm4606, %v4546
        %4677 = vst.msk [vmem:[%s418 + $0x230] sm:$0xff] %vm4606, %v4547
        %4678 = vst.msk [vmem:[%s418 + $0x238] sm:$0xff] %vm4606, %v4548
        %4679 = vst.msk [vmem:[%s418 + $0x240] sm:$0xff] %vm4606, %v4549
        %4680 = vst.msk [vmem:[%s418 + $0x248] sm:$0xff] %vm4606, %v4550
        %4681 = vst.msk [vmem:[%s418 + $0x250] sm:$0xff] %vm4606, %v4551
        %4682 = vst.msk [vmem:[%s418 + $0x258] sm:$0xff] %vm4606, %v4552
        %4683 = vst.msk [vmem:[%s418 + $0x260] sm:$0xff] %vm4606, %v4553
        %4684 = vst.msk [vmem:[%s418 + $0x268] sm:$0xff] %vm4606, %v4554
        %4685 = vst.msk [vmem:[%s418 + $0x270] sm:$0xff] %vm4606, %v4555
        %4686 = vst.msk [vmem:[%s418 + $0x278] sm:$0xff] %vm4606, %v4556
        %4687 = vst.msk [vmem:[%s418 + $0x280] sm:$0xff] %vm4606, %v4557
        %4688 = vst.msk [vmem:[%s418 + $0x288] sm:$0xff] %vm4606, %v4558
        %4689 = vst.msk [vmem:[%s418 + $0x290] sm:$0xff] %vm4606, %v4559
        %4690 = vst.msk [vmem:[%s418 + $0x298] sm:$0xff] %vm4606, %v4560
        %4691 = vst.msk [vmem:[%s418 + $0x2a0] sm:$0xff] %vm4606, %v4561
        %4692 = vst.msk [vmem:[%s418 + $0x2a8] sm:$0xff] %vm4606, %v4562
        %4693 = vst.msk [vmem:[%s418 + $0x2b0] sm:$0xff] %vm4606, %v4563
        %4694 = vst.msk [vmem:[%s418 + $0x2b8] sm:$0xff] %vm4606, %v4564
        %4695 = vst.msk [vmem:[%s418 + $0x2c0] sm:$0xff] %vm4606, %v4565
        %4696 = vst.msk [vmem:[%s418 + $0x2c8] sm:$0xff] %vm4606, %v4566
        %4697 = vst.msk [vmem:[%s418 + $0x2d0] sm:$0xff] %vm4606, %v4567
        %4698 = vst.msk [vmem:[%s418 + $0x2d8] sm:$0xff] %vm4606, %v4568
        %4699 = vst.msk [vmem:[%s418 + $0x2e0] sm:$0xff] %vm4606, %v4569
        %4700 = vst.msk [vmem:[%s418 + $0x2e8] sm:$0xff] %vm4606, %v4570
        %4701 = vst.msk [vmem:[%s418 + $0x2f0] sm:$0xff] %vm4606, %v4571
        %4702 = vst.msk [vmem:[%s418 + $0x2f8] sm:$0xff] %vm4606, %v4572
        %4703 = vst.msk [vmem:[%s418 + $0x300] sm:$0xff] %vm4606, %v4573
        %4704 = vst.msk [vmem:[%s418 + $0x308] sm:$0xff] %vm4606, %v4574
        %4705 = vst.msk [vmem:[%s418 + $0x310] sm:$0xff] %vm4606, %v4575
        %4706 = vst.msk [vmem:[%s418 + $0x318] sm:$0xff] %vm4606, %v4576
        %4707 = vst.msk [vmem:[%s418 + $0x320] sm:$0xff] %vm4606, %v4577
        %4708 = vst.msk [vmem:[%s418 + $0x328] sm:$0xff] %vm4606, %v4578
        %4709 = vst.msk [vmem:[%s418 + $0x330] sm:$0xff] %vm4606, %v4579
        %4710 = vst.msk [vmem:[%s418 + $0x338] sm:$0xff] %vm4606, %v4580
        %4711 = vst.msk [vmem:[%s418 + $0x340] sm:$0xff] %vm4606, %v4581
        %4712 = vst.msk [vmem:[%s418 + $0x348] sm:$0xff] %vm4606, %v4582
        %4713 = vst.msk [vmem:[%s418 + $0x350] sm:$0xff] %vm4606, %v4583
        %4714 = vst.msk [vmem:[%s418 + $0x358] sm:$0xff] %vm4606, %v4584
        %4715 = vst.msk [vmem:[%s418 + $0x360] sm:$0xff] %vm4606, %v4585
        %4716 = vst.msk [vmem:[%s418 + $0x368] sm:$0xff] %vm4606, %v4586
        %4717 = vst.msk [vmem:[%s418 + $0x370] sm:$0xff] %vm4606, %v4587
        %4718 = vst.msk [vmem:[%s418 + $0x378] sm:$0xff] %vm4606, %v4588
        %4719 = vst.msk [vmem:[%s418 + $0x380] sm:$0xff] %vm4606, %v4589
        %4720 = vst.msk [vmem:[%s418 + $0x388] sm:$0xff] %vm4606, %v4590
        %4721 = vst.msk [vmem:[%s418 + $0x390] sm:$0xff] %vm4606, %v4591
        %4722 = vst.msk [vmem:[%s418 + $0x398] sm:$0xff] %vm4606, %v4592
        %4723 = vst.msk [vmem:[%s418 + $0x3a0] sm:$0xff] %vm4606, %v4593
        %4724 = vst.msk [vmem:[%s418 + $0x3a8] sm:$0xff] %vm4606, %v4594
        %4725 = vst.msk [vmem:[%s418 + $0x3b0] sm:$0xff] %vm4606, %v4595
        %4726 = vst.msk [vmem:[%s418 + $0x3b8] sm:$0xff] %vm4606, %v4596
        %4727 = vst.msk [vmem:[%s418 + $0x3c0] sm:$0xff] %vm4606, %v4597
        %4728 = vst.msk [vmem:[%s418 + $0x3c8] sm:$0xff] %vm4606, %v4598
        %4729 = vst.msk [vmem:[%s418 + $0x3d0] sm:$0xff] %vm4606, %v4599
        %4730 = vst.msk [vmem:[%s418 + $0x3d8] sm:$0xff] %vm4606, %v4600
        %v4731 = vsel %vm4606, %v4477, 0.0
        %v4732 = vsel %vm4606, %v4478, 0.0
        %v4733 = vadd.f32 %v4731, %v4732
        %v4734 = vsel %vm4606, %v4479, 0.0
        %v4735 = vadd.f32 %v4733, %v4734
        %v4736 = vsel %vm4606, %v4480, 0.0
        %v4737 = vadd.f32 %v4735, %v4736
        %v4738 = vsel %vm4606, %v4481, 0.0
        %v4739 = vadd.f32 %v4737, %v4738
        %v4740 = vsel %vm4606, %v4482, 0.0
        %v4741 = vadd.f32 %v4739, %v4740
        %v4742 = vsel %vm4606, %v4483, 0.0
        %v4743 = vadd.f32 %v4741, %v4742
        %v4744 = vsel %vm4606, %v4484, 0.0
        %v4745 = vadd.f32 %v4743, %v4744
        %v4746 = vsel %vm4606, %v4485, 0.0
        %v4747 = vadd.f32 %v4745, %v4746
        %v4748 = vsel %vm4606, %v4486, 0.0
        %v4749 = vadd.f32 %v4747, %v4748
        %v4750 = vsel %vm4606, %v4487, 0.0
        %v4751 = vadd.f32 %v4749, %v4750
        %v4752 = vsel %vm4606, %v4488, 0.0
        %v4753 = vadd.f32 %v4751, %v4752
        %v4754 = vsel %vm4606, %v4489, 0.0
        %v4755 = vadd.f32 %v4753, %v4754
        %v4756 = vsel %vm4606, %v4490, 0.0
        %v4757 = vadd.f32 %v4755, %v4756
        %v4758 = vsel %vm4606, %v4491, 0.0
        %v4759 = vadd.f32 %v4757, %v4758
        %v4760 = vsel %vm4606, %v4492, 0.0
        %v4761 = vadd.f32 %v4759, %v4760
        %v4762 = vsel %vm4606, %v4493, 0.0
        %v4763 = vadd.f32 %v4761, %v4762
        %v4764 = vsel %vm4606, %v4494, 0.0
        %v4765 = vadd.f32 %v4763, %v4764
        %v4766 = vsel %vm4606, %v4495, 0.0
        %v4767 = vadd.f32 %v4765, %v4766
        %v4768 = vsel %vm4606, %v4496, 0.0
        %v4769 = vadd.f32 %v4767, %v4768
        %v4770 = vsel %vm4606, %v4497, 0.0
        %v4771 = vadd.f32 %v4769, %v4770
        %v4772 = vsel %vm4606, %v4498, 0.0
        %v4773 = vadd.f32 %v4771, %v4772
        %v4774 = vsel %vm4606, %v4499, 0.0
        %v4775 = vadd.f32 %v4773, %v4774
        %v4776 = vsel %vm4606, %v4500, 0.0
        %v4777 = vadd.f32 %v4775, %v4776
        %v4778 = vsel %vm4606, %v4501, 0.0
        %v4779 = vadd.f32 %v4777, %v4778
        %v4780 = vsel %vm4606, %v4502, 0.0
        %v4781 = vadd.f32 %v4779, %v4780
        %v4782 = vsel %vm4606, %v4503, 0.0
        %v4783 = vadd.f32 %v4781, %v4782
        %v4784 = vsel %vm4606, %v4504, 0.0
        %v4785 = vadd.f32 %v4783, %v4784
        %v4786 = vsel %vm4606, %v4505, 0.0
        %v4787 = vadd.f32 %v4785, %v4786
        %v4788 = vsel %vm4606, %v4506, 0.0
        %v4789 = vadd.f32 %v4787, %v4788
        %v4790 = vsel %vm4606, %v4507, 0.0
        %v4791 = vadd.f32 %v4789, %v4790
        %v4792 = vsel %vm4606, %v4508, 0.0
        %v4793 = vadd.f32 %v4791, %v4792
        %v4794 = vsel %vm4606, %v4509, 0.0
        %v4795 = vadd.f32 %v4793, %v4794
        %v4796 = vsel %vm4606, %v4510, 0.0
        %v4797 = vadd.f32 %v4795, %v4796
        %v4798 = vsel %vm4606, %v4511, 0.0
        %v4799 = vadd.f32 %v4797, %v4798
        %v4800 = vsel %vm4606, %v4512, 0.0
        %v4801 = vadd.f32 %v4799, %v4800
        %v4802 = vsel %vm4606, %v4513, 0.0
        %v4803 = vadd.f32 %v4801, %v4802
        %v4804 = vsel %vm4606, %v4514, 0.0
        %v4805 = vadd.f32 %v4803, %v4804
        %v4806 = vsel %vm4606, %v4515, 0.0
        %v4807 = vadd.f32 %v4805, %v4806
        %v4808 = vsel %vm4606, %v4516, 0.0
        %v4809 = vadd.f32 %v4807, %v4808
        %v4810 = vsel %vm4606, %v4517, 0.0
        %v4811 = vadd.f32 %v4809, %v4810
        %v4812 = vsel %vm4606, %v4518, 0.0
        %v4813 = vadd.f32 %v4811, %v4812
        %v4814 = vsel %vm4606, %v4519, 0.0
        %v4815 = vadd.f32 %v4813, %v4814
        %v4816 = vsel %vm4606, %v4520, 0.0
        %v4817 = vadd.f32 %v4815, %v4816
        %v4818 = vsel %vm4606, %v4521, 0.0
        %v4819 = vadd.f32 %v4817, %v4818
        %v4820 = vsel %vm4606, %v4522, 0.0
        %v4821 = vadd.f32 %v4819, %v4820
        %v4822 = vsel %vm4606, %v4523, 0.0
        %v4823 = vadd.f32 %v4821, %v4822
        %v4824 = vsel %vm4606, %v4524, 0.0
        %v4825 = vadd.f32 %v4823, %v4824
        %v4826 = vsel %vm4606, %v4525, 0.0
        %v4827 = vadd.f32 %v4825, %v4826
        %v4828 = vsel %vm4606, %v4526, 0.0
        %v4829 = vadd.f32 %v4827, %v4828
        %v4830 = vsel %vm4606, %v4527, 0.0
        %v4831 = vadd.f32 %v4829, %v4830
        %v4832 = vsel %vm4606, %v4528, 0.0
        %v4833 = vadd.f32 %v4831, %v4832
        %v4834 = vsel %vm4606, %v4529, 0.0
        %v4835 = vadd.f32 %v4833, %v4834
        %v4836 = vsel %vm4606, %v4530, 0.0
        %v4837 = vadd.f32 %v4835, %v4836
        %v4838 = vsel %vm4606, %v4531, 0.0
        %v4839 = vadd.f32 %v4837, %v4838
        %v4840 = vsel %vm4606, %v4532, 0.0
        %v4841 = vadd.f32 %v4839, %v4840
        %v4842 = vsel %vm4606, %v4533, 0.0
        %v4843 = vadd.f32 %v4841, %v4842
        %v4844 = vsel %vm4606, %v4534, 0.0
        %v4845 = vadd.f32 %v4843, %v4844
        %v4846 = vsel %vm4606, %v4535, 0.0
        %v4847 = vadd.f32 %v4845, %v4846
        %v4848 = vsel %vm4606, %v4536, 0.0
        %v4849 = vadd.f32 %v4847, %v4848
        %v4850 = vsel %vm4606, %v4537, 0.0
        %v4851 = vadd.f32 %v4849, %v4850
        %v4852 = vsel %vm4606, %v4538, 0.0
        %v4853 = vadd.f32 %v4851, %v4852
        %v4854 = vsel %vm4606, %v4539, 0.0
        %v4855 = vadd.f32 %v4853, %v4854
        %v4856 = vsel %vm4606, %v4540, 0.0
        %v4857 = vadd.f32 %v4855, %v4856
        %v4858 = vsel %vm4606, %v4541, 0.0
        %v4859 = vadd.f32 %v4857, %v4858
        %v4860 = vsel %vm4606, %v4542, 0.0
        %v4861 = vadd.f32 %v4859, %v4860
        %v4862 = vsel %vm4606, %v4543, 0.0
        %v4863 = vadd.f32 %v4861, %v4862
        %v4864 = vsel %vm4606, %v4544, 0.0
        %v4865 = vadd.f32 %v4863, %v4864
        %v4866 = vsel %vm4606, %v4545, 0.0
        %v4867 = vadd.f32 %v4865, %v4866
        %v4868 = vsel %vm4606, %v4546, 0.0
        %v4869 = vadd.f32 %v4867, %v4868
        %v4870 = vsel %vm4606, %v4547, 0.0
        %v4871 = vadd.f32 %v4869, %v4870
        %v4872 = vsel %vm4606, %v4548, 0.0
        %v4873 = vadd.f32 %v4871, %v4872
        %v4874 = vsel %vm4606, %v4549, 0.0
        %v4875 = vadd.f32 %v4873, %v4874
        %v4876 = vsel %vm4606, %v4550, 0.0
        %v4877 = vadd.f32 %v4875, %v4876
        %v4878 = vsel %vm4606, %v4551, 0.0
        %v4879 = vadd.f32 %v4877, %v4878
        %v4880 = vsel %vm4606, %v4552, 0.0
        %v4881 = vadd.f32 %v4879, %v4880
        %v4882 = vsel %vm4606, %v4553, 0.0
        %v4883 = vadd.f32 %v4881, %v4882
        %v4884 = vsel %vm4606, %v4554, 0.0
        %v4885 = vadd.f32 %v4883, %v4884
        %v4886 = vsel %vm4606, %v4555, 0.0
        %v4887 = vadd.f32 %v4885, %v4886
        %v4888 = vsel %vm4606, %v4556, 0.0
        %v4889 = vadd.f32 %v4887, %v4888
        %v4890 = vsel %vm4606, %v4557, 0.0
        %v4891 = vadd.f32 %v4889, %v4890
        %v4892 = vsel %vm4606, %v4558, 0.0
        %v4893 = vadd.f32 %v4891, %v4892
        %v4894 = vsel %vm4606, %v4559, 0.0
        %v4895 = vadd.f32 %v4893, %v4894
        %v4896 = vsel %vm4606, %v4560, 0.0
        %v4897 = vadd.f32 %v4895, %v4896
        %v4898 = vsel %vm4606, %v4561, 0.0
        %v4899 = vadd.f32 %v4897, %v4898
        %v4900 = vsel %vm4606, %v4562, 0.0
        %v4901 = vadd.f32 %v4899, %v4900
        %v4902 = vsel %vm4606, %v4563, 0.0
        %v4903 = vadd.f32 %v4901, %v4902
        %v4904 = vsel %vm4606, %v4564, 0.0
        %v4905 = vadd.f32 %v4903, %v4904
        %v4906 = vsel %vm4606, %v4565, 0.0
        %v4907 = vadd.f32 %v4905, %v4906
        %v4908 = vsel %vm4606, %v4566, 0.0
        %v4909 = vadd.f32 %v4907, %v4908
        %v4910 = vsel %vm4606, %v4567, 0.0
        %v4911 = vadd.f32 %v4909, %v4910
        %v4912 = vsel %vm4606, %v4568, 0.0
        %v4913 = vadd.f32 %v4911, %v4912
        %v4914 = vsel %vm4606, %v4569, 0.0
        %v4915 = vadd.f32 %v4913, %v4914
        %v4916 = vsel %vm4606, %v4570, 0.0
        %v4917 = vadd.f32 %v4915, %v4916
        %v4918 = vsel %vm4606, %v4571, 0.0
        %v4919 = vadd.f32 %v4917, %v4918
        %v4920 = vsel %vm4606, %v4572, 0.0
        %v4921 = vadd.f32 %v4919, %v4920
        %v4922 = vsel %vm4606, %v4573, 0.0
        %v4923 = vadd.f32 %v4921, %v4922
        %v4924 = vsel %vm4606, %v4574, 0.0
        %v4925 = vadd.f32 %v4923, %v4924
        %v4926 = vsel %vm4606, %v4575, 0.0
        %v4927 = vadd.f32 %v4925, %v4926
        %v4928 = vsel %vm4606, %v4576, 0.0
        %v4929 = vadd.f32 %v4927, %v4928
        %v4930 = vsel %vm4606, %v4577, 0.0
        %v4931 = vadd.f32 %v4929, %v4930
        %v4932 = vsel %vm4606, %v4578, 0.0
        %v4933 = vadd.f32 %v4931, %v4932
        %v4934 = vsel %vm4606, %v4579, 0.0
        %v4935 = vadd.f32 %v4933, %v4934
        %v4936 = vsel %vm4606, %v4580, 0.0
        %v4937 = vadd.f32 %v4935, %v4936
        %v4938 = vsel %vm4606, %v4581, 0.0
        %v4939 = vadd.f32 %v4937, %v4938
        %v4940 = vsel %vm4606, %v4582, 0.0
        %v4941 = vadd.f32 %v4939, %v4940
        %v4942 = vsel %vm4606, %v4583, 0.0
        %v4943 = vadd.f32 %v4941, %v4942
        %v4944 = vsel %vm4606, %v4584, 0.0
        %v4945 = vadd.f32 %v4943, %v4944
        %v4946 = vsel %vm4606, %v4585, 0.0
        %v4947 = vadd.f32 %v4945, %v4946
        %v4948 = vsel %vm4606, %v4586, 0.0
        %v4949 = vadd.f32 %v4947, %v4948
        %v4950 = vsel %vm4606, %v4587, 0.0
        %v4951 = vadd.f32 %v4949, %v4950
        %v4952 = vsel %vm4606, %v4588, 0.0
        %v4953 = vadd.f32 %v4951, %v4952
        %v4954 = vsel %vm4606, %v4589, 0.0
        %v4955 = vadd.f32 %v4953, %v4954
        %v4956 = vsel %vm4606, %v4590, 0.0
        %v4957 = vadd.f32 %v4955, %v4956
        %v4958 = vsel %vm4606, %v4591, 0.0
        %v4959 = vadd.f32 %v4957, %v4958
        %v4960 = vsel %vm4606, %v4592, 0.0
        %v4961 = vadd.f32 %v4959, %v4960
        %v4962 = vsel %vm4606, %v4593, 0.0
        %v4963 = vadd.f32 %v4961, %v4962
        %v4964 = vsel %vm4606, %v4594, 0.0
        %v4965 = vadd.f32 %v4963, %v4964
        %v4966 = vsel %vm4606, %v4595, 0.0
        %v4967 = vadd.f32 %v4965, %v4966
        %v4968 = vsel %vm4606, %v4596, 0.0
        %v4969 = vadd.f32 %v4967, %v4968
        %v4970 = vsel %vm4606, %v4597, 0.0
        %v4971 = vadd.f32 %v4969, %v4970
        %v4972 = vsel %vm4606, %v4598, 0.0
        %v4973 = vadd.f32 %v4971, %v4972
        %v4974 = vsel %vm4606, %v4599, 0.0
        %v4975 = vadd.f32 %v4973, %v4974
        %v4976 = vsel %vm4606, %v4600, 0.0
        %v4977 = vadd.f32 %v4975, %v4976
        %v4978 = vrot.slane %v4977, 4
        %v4979 = vadd.f32 %v4977, %v4978
        %v4980 = vrot.slane %v4979, 2
        %v4981 = vadd.f32 %v4979, %v4980
        %v4982 = vrot.slane %v4981, 1
        %v4983 = vadd.f32 %v4981, %v4982
        %vm4984 = vcmask 253952
        %4985 = vst.msk [vmem:[%s423] sm:$0x1] %vm4984, %v4983
        %v4986 = vmul.f32 %v4477, %v4477
        %v4987 = vmul.f32 %v4478, %v4478
        %v4988 = vmul.f32 %v4479, %v4479
        %v4989 = vmul.f32 %v4480, %v4480
        %v4990 = vmul.f32 %v4481, %v4481
        %v4991 = vmul.f32 %v4482, %v4482
        %v4992 = vmul.f32 %v4483, %v4483
        %v4993 = vmul.f32 %v4484, %v4484
        %v4994 = vmul.f32 %v4485, %v4485
        %v4995 = vmul.f32 %v4486, %v4486
        %v4996 = vmul.f32 %v4487, %v4487
        %v4997 = vmul.f32 %v4488, %v4488
        %v4998 = vmul.f32 %v4489, %v4489
        %v4999 = vmul.f32 %v4490, %v4490
        %v5000 = vmul.f32 %v4491, %v4491
        %v5001 = vmul.f32 %v4492, %v4492
        %v5002 = vmul.f32 %v4493, %v4493
        %v5003 = vmul.f32 %v4494, %v4494
        %v5004 = vmul.f32 %v4495, %v4495
        %v5005 = vmul.f32 %v4496, %v4496
        %v5006 = vmul.f32 %v4497, %v4497
        %v5007 = vmul.f32 %v4498, %v4498
        %v5008 = vmul.f32 %v4499, %v4499
        %v5009 = vmul.f32 %v4500, %v4500
        %v5010 = vmul.f32 %v4501, %v4501
        %v5011 = vmul.f32 %v4502, %v4502
        %v5012 = vmul.f32 %v4503, %v4503
        %v5013 = vmul.f32 %v4504, %v4504
        %v5014 = vmul.f32 %v4505, %v4505
        %v5015 = vmul.f32 %v4506, %v4506
        %v5016 = vmul.f32 %v4507, %v4507
        %v5017 = vmul.f32 %v4508, %v4508
        %v5018 = vmul.f32 %v4509, %v4509
        %v5019 = vmul.f32 %v4510, %v4510
        %v5020 = vmul.f32 %v4511, %v4511
        %v5021 = vmul.f32 %v4512, %v4512
        %v5022 = vmul.f32 %v4513, %v4513
        %v5023 = vmul.f32 %v4514, %v4514
        %v5024 = vmul.f32 %v4515, %v4515
        %v5025 = vmul.f32 %v4516, %v4516
        %v5026 = vmul.f32 %v4517, %v4517
        %v5027 = vmul.f32 %v4518, %v4518
        %v5028 = vmul.f32 %v4519, %v4519
        %v5029 = vmul.f32 %v4520, %v4520
        %v5030 = vmul.f32 %v4521, %v4521
        %v5031 = vmul.f32 %v4522, %v4522
        %v5032 = vmul.f32 %v4523, %v4523
        %v5033 = vmul.f32 %v4524, %v4524
        %v5034 = vmul.f32 %v4525, %v4525
        %v5035 = vmul.f32 %v4526, %v4526
        %v5036 = vmul.f32 %v4527, %v4527
        %v5037 = vmul.f32 %v4528, %v4528
        %v5038 = vmul.f32 %v4529, %v4529
        %v5039 = vmul.f32 %v4530, %v4530
        %v5040 = vmul.f32 %v4531, %v4531
        %v5041 = vmul.f32 %v4532, %v4532
        %v5042 = vmul.f32 %v4533, %v4533
        %v5043 = vmul.f32 %v4534, %v4534
        %v5044 = vmul.f32 %v4535, %v4535
        %v5045 = vmul.f32 %v4536, %v4536
        %v5046 = vmul.f32 %v4537, %v4537
        %v5047 = vmul.f32 %v4538, %v4538
        %v5048 = vmul.f32 %v4539, %v4539
        %v5049 = vmul.f32 %v4540, %v4540
        %v5050 = vmul.f32 %v4541, %v4541
        %v5051 = vmul.f32 %v4542, %v4542
        %v5052 = vmul.f32 %v4543, %v4543
        %v5053 = vmul.f32 %v4544, %v4544
        %v5054 = vmul.f32 %v4545, %v4545
        %v5055 = vmul.f32 %v4546, %v4546
        %v5056 = vmul.f32 %v4547, %v4547
        %v5057 = vmul.f32 %v4548, %v4548
        %v5058 = vmul.f32 %v4549, %v4549
        %v5059 = vmul.f32 %v4550, %v4550
        %v5060 = vmul.f32 %v4551, %v4551
        %v5061 = vmul.f32 %v4552, %v4552
        %v5062 = vmul.f32 %v4553, %v4553
        %v5063 = vmul.f32 %v4554, %v4554
        %v5064 = vmul.f32 %v4555, %v4555
        %v5065 = vmul.f32 %v4556, %v4556
        %v5066 = vmul.f32 %v4557, %v4557
        %v5067 = vmul.f32 %v4558, %v4558
        %v5068 = vmul.f32 %v4559, %v4559
        %v5069 = vmul.f32 %v4560, %v4560
        %v5070 = vmul.f32 %v4561, %v4561
        %v5071 = vmul.f32 %v4562, %v4562
        %v5072 = vmul.f32 %v4563, %v4563
        %v5073 = vmul.f32 %v4564, %v4564
        %v5074 = vmul.f32 %v4565, %v4565
        %v5075 = vmul.f32 %v4566, %v4566
        %v5076 = vmul.f32 %v4567, %v4567
        %v5077 = vmul.f32 %v4568, %v4568
        %v5078 = vmul.f32 %v4569, %v4569
        %v5079 = vmul.f32 %v4570, %v4570
        %v5080 = vmul.f32 %v4571, %v4571
        %v5081 = vmul.f32 %v4572, %v4572
        %v5082 = vmul.f32 %v4573, %v4573
        %v5083 = vmul.f32 %v4574, %v4574
        %v5084 = vmul.f32 %v4575, %v4575
        %v5085 = vmul.f32 %v4576, %v4576
        %v5086 = vmul.f32 %v4577, %v4577
        %v5087 = vmul.f32 %v4578, %v4578
        %v5088 = vmul.f32 %v4579, %v4579
        %v5089 = vmul.f32 %v4580, %v4580
        %v5090 = vmul.f32 %v4581, %v4581
        %v5091 = vmul.f32 %v4582, %v4582
        %v5092 = vmul.f32 %v4583, %v4583
        %v5093 = vmul.f32 %v4584, %v4584
        %v5094 = vmul.f32 %v4585, %v4585
        %v5095 = vmul.f32 %v4586, %v4586
        %v5096 = vmul.f32 %v4587, %v4587
        %v5097 = vmul.f32 %v4588, %v4588
        %v5098 = vmul.f32 %v4589, %v4589
        %v5099 = vmul.f32 %v4590, %v4590
        %v5100 = vmul.f32 %v4591, %v4591
        %v5101 = vmul.f32 %v4592, %v4592
        %v5102 = vmul.f32 %v4593, %v4593
        %v5103 = vmul.f32 %v4594, %v4594
        %v5104 = vmul.f32 %v4595, %v4595
        %v5105 = vmul.f32 %v4596, %v4596
        %v5106 = vmul.f32 %v4597, %v4597
        %v5107 = vmul.f32 %v4598, %v4598
        %v5108 = vmul.f32 %v4599, %v4599
        %v5109 = vmul.f32 %v4600, %v4600
        %v5110 = vsel %vm4606, %v4986, 0.0
        %v5111 = vsel %vm4606, %v4987, 0.0
        %v5112 = vadd.f32 %v5110, %v5111
        %v5113 = vsel %vm4606, %v4988, 0.0
        %v5114 = vadd.f32 %v5112, %v5113
        %v5115 = vsel %vm4606, %v4989, 0.0
        %v5116 = vadd.f32 %v5114, %v5115
        %v5117 = vsel %vm4606, %v4990, 0.0
        %v5118 = vadd.f32 %v5116, %v5117
        %v5119 = vsel %vm4606, %v4991, 0.0
        %v5120 = vadd.f32 %v5118, %v5119
        %v5121 = vsel %vm4606, %v4992, 0.0
        %v5122 = vadd.f32 %v5120, %v5121
        %v5123 = vsel %vm4606, %v4993, 0.0
        %v5124 = vadd.f32 %v5122, %v5123
        %v5125 = vsel %vm4606, %v4994, 0.0
        %v5126 = vadd.f32 %v5124, %v5125
        %v5127 = vsel %vm4606, %v4995, 0.0
        %v5128 = vadd.f32 %v5126, %v5127
        %v5129 = vsel %vm4606, %v4996, 0.0
        %v5130 = vadd.f32 %v5128, %v5129
        %v5131 = vsel %vm4606, %v4997, 0.0
        %v5132 = vadd.f32 %v5130, %v5131
        %v5133 = vsel %vm4606, %v4998, 0.0
        %v5134 = vadd.f32 %v5132, %v5133
        %v5135 = vsel %vm4606, %v4999, 0.0
        %v5136 = vadd.f32 %v5134, %v5135
        %v5137 = vsel %vm4606, %v5000, 0.0
        %v5138 = vadd.f32 %v5136, %v5137
        %v5139 = vsel %vm4606, %v5001, 0.0
        %v5140 = vadd.f32 %v5138, %v5139
        %v5141 = vsel %vm4606, %v5002, 0.0
        %v5142 = vadd.f32 %v5140, %v5141
        %v5143 = vsel %vm4606, %v5003, 0.0
        %v5144 = vadd.f32 %v5142, %v5143
        %v5145 = vsel %vm4606, %v5004, 0.0
        %v5146 = vadd.f32 %v5144, %v5145
        %v5147 = vsel %vm4606, %v5005, 0.0
        %v5148 = vadd.f32 %v5146, %v5147
        %v5149 = vsel %vm4606, %v5006, 0.0
        %v5150 = vadd.f32 %v5148, %v5149
        %v5151 = vsel %vm4606, %v5007, 0.0
        %v5152 = vadd.f32 %v5150, %v5151
        %v5153 = vsel %vm4606, %v5008, 0.0
        %v5154 = vadd.f32 %v5152, %v5153
        %v5155 = vsel %vm4606, %v5009, 0.0
        %v5156 = vadd.f32 %v5154, %v5155
        %v5157 = vsel %vm4606, %v5010, 0.0
        %v5158 = vadd.f32 %v5156, %v5157
        %v5159 = vsel %vm4606, %v5011, 0.0
        %v5160 = vadd.f32 %v5158, %v5159
        %v5161 = vsel %vm4606, %v5012, 0.0
        %v5162 = vadd.f32 %v5160, %v5161
        %v5163 = vsel %vm4606, %v5013, 0.0
        %v5164 = vadd.f32 %v5162, %v5163
        %v5165 = vsel %vm4606, %v5014, 0.0
        %v5166 = vadd.f32 %v5164, %v5165
        %v5167 = vsel %vm4606, %v5015, 0.0
        %v5168 = vadd.f32 %v5166, %v5167
        %v5169 = vsel %vm4606, %v5016, 0.0
        %v5170 = vadd.f32 %v5168, %v5169
        %v5171 = vsel %vm4606, %v5017, 0.0
        %v5172 = vadd.f32 %v5170, %v5171
        %v5173 = vsel %vm4606, %v5018, 0.0
        %v5174 = vadd.f32 %v5172, %v5173
        %v5175 = vsel %vm4606, %v5019, 0.0
        %v5176 = vadd.f32 %v5174, %v5175
        %v5177 = vsel %vm4606, %v5020, 0.0
        %v5178 = vadd.f32 %v5176, %v5177
        %v5179 = vsel %vm4606, %v5021, 0.0
        %v5180 = vadd.f32 %v5178, %v5179
        %v5181 = vsel %vm4606, %v5022, 0.0
        %v5182 = vadd.f32 %v5180, %v5181
        %v5183 = vsel %vm4606, %v5023, 0.0
        %v5184 = vadd.f32 %v5182, %v5183
        %v5185 = vsel %vm4606, %v5024, 0.0
        %v5186 = vadd.f32 %v5184, %v5185
        %v5187 = vsel %vm4606, %v5025, 0.0
        %v5188 = vadd.f32 %v5186, %v5187
        %v5189 = vsel %vm4606, %v5026, 0.0
        %v5190 = vadd.f32 %v5188, %v5189
        %v5191 = vsel %vm4606, %v5027, 0.0
        %v5192 = vadd.f32 %v5190, %v5191
        %v5193 = vsel %vm4606, %v5028, 0.0
        %v5194 = vadd.f32 %v5192, %v5193
        %v5195 = vsel %vm4606, %v5029, 0.0
        %v5196 = vadd.f32 %v5194, %v5195
        %v5197 = vsel %vm4606, %v5030, 0.0
        %v5198 = vadd.f32 %v5196, %v5197
        %v5199 = vsel %vm4606, %v5031, 0.0
        %v5200 = vadd.f32 %v5198, %v5199
        %v5201 = vsel %vm4606, %v5032, 0.0
        %v5202 = vadd.f32 %v5200, %v5201
        %v5203 = vsel %vm4606, %v5033, 0.0
        %v5204 = vadd.f32 %v5202, %v5203
        %v5205 = vsel %vm4606, %v5034, 0.0
        %v5206 = vadd.f32 %v5204, %v5205
        %v5207 = vsel %vm4606, %v5035, 0.0
        %v5208 = vadd.f32 %v5206, %v5207
        %v5209 = vsel %vm4606, %v5036, 0.0
        %v5210 = vadd.f32 %v5208, %v5209
        %v5211 = vsel %vm4606, %v5037, 0.0
        %v5212 = vadd.f32 %v5210, %v5211
        %v5213 = vsel %vm4606, %v5038, 0.0
        %v5214 = vadd.f32 %v5212, %v5213
        %v5215 = vsel %vm4606, %v5039, 0.0
        %v5216 = vadd.f32 %v5214, %v5215
        %v5217 = vsel %vm4606, %v5040, 0.0
        %v5218 = vadd.f32 %v5216, %v5217
        %v5219 = vsel %vm4606, %v5041, 0.0
        %v5220 = vadd.f32 %v5218, %v5219
        %v5221 = vsel %vm4606, %v5042, 0.0
        %v5222 = vadd.f32 %v5220, %v5221
        %v5223 = vsel %vm4606, %v5043, 0.0
        %v5224 = vadd.f32 %v5222, %v5223
        %v5225 = vsel %vm4606, %v5044, 0.0
        %v5226 = vadd.f32 %v5224, %v5225
        %v5227 = vsel %vm4606, %v5045, 0.0
        %v5228 = vadd.f32 %v5226, %v5227
        %v5229 = vsel %vm4606, %v5046, 0.0
        %v5230 = vadd.f32 %v5228, %v5229
        %v5231 = vsel %vm4606, %v5047, 0.0
        %v5232 = vadd.f32 %v5230, %v5231
        %v5233 = vsel %vm4606, %v5048, 0.0
        %v5234 = vadd.f32 %v5232, %v5233
        %v5235 = vsel %vm4606, %v5049, 0.0
        %v5236 = vadd.f32 %v5234, %v5235
        %v5237 = vsel %vm4606, %v5050, 0.0
        %v5238 = vadd.f32 %v5236, %v5237
        %v5239 = vsel %vm4606, %v5051, 0.0
        %v5240 = vadd.f32 %v5238, %v5239
        %v5241 = vsel %vm4606, %v5052, 0.0
        %v5242 = vadd.f32 %v5240, %v5241
        %v5243 = vsel %vm4606, %v5053, 0.0
        %v5244 = vadd.f32 %v5242, %v5243
        %v5245 = vsel %vm4606, %v5054, 0.0
        %v5246 = vadd.f32 %v5244, %v5245
        %v5247 = vsel %vm4606, %v5055, 0.0
        %v5248 = vadd.f32 %v5246, %v5247
        %v5249 = vsel %vm4606, %v5056, 0.0
        %v5250 = vadd.f32 %v5248, %v5249
        %v5251 = vsel %vm4606, %v5057, 0.0
        %v5252 = vadd.f32 %v5250, %v5251
        %v5253 = vsel %vm4606, %v5058, 0.0
        %v5254 = vadd.f32 %v5252, %v5253
        %v5255 = vsel %vm4606, %v5059, 0.0
        %v5256 = vadd.f32 %v5254, %v5255
        %v5257 = vsel %vm4606, %v5060, 0.0
        %v5258 = vadd.f32 %v5256, %v5257
        %v5259 = vsel %vm4606, %v5061, 0.0
        %v5260 = vadd.f32 %v5258, %v5259
        %v5261 = vsel %vm4606, %v5062, 0.0
        %v5262 = vadd.f32 %v5260, %v5261
        %v5263 = vsel %vm4606, %v5063, 0.0
        %v5264 = vadd.f32 %v5262, %v5263
        %v5265 = vsel %vm4606, %v5064, 0.0
        %v5266 = vadd.f32 %v5264, %v5265
        %v5267 = vsel %vm4606, %v5065, 0.0
        %v5268 = vadd.f32 %v5266, %v5267
        %v5269 = vsel %vm4606, %v5066, 0.0
        %v5270 = vadd.f32 %v5268, %v5269
        %v5271 = vsel %vm4606, %v5067, 0.0
        %v5272 = vadd.f32 %v5270, %v5271
        %v5273 = vsel %vm4606, %v5068, 0.0
        %v5274 = vadd.f32 %v5272, %v5273
        %v5275 = vsel %vm4606, %v5069, 0.0
        %v5276 = vadd.f32 %v5274, %v5275
        %v5277 = vsel %vm4606, %v5070, 0.0
        %v5278 = vadd.f32 %v5276, %v5277
        %v5279 = vsel %vm4606, %v5071, 0.0
        %v5280 = vadd.f32 %v5278, %v5279
        %v5281 = vsel %vm4606, %v5072, 0.0
        %v5282 = vadd.f32 %v5280, %v5281
        %v5283 = vsel %vm4606, %v5073, 0.0
        %v5284 = vadd.f32 %v5282, %v5283
        %v5285 = vsel %vm4606, %v5074, 0.0
        %v5286 = vadd.f32 %v5284, %v5285
        %v5287 = vsel %vm4606, %v5075, 0.0
        %v5288 = vadd.f32 %v5286, %v5287
        %v5289 = vsel %vm4606, %v5076, 0.0
        %v5290 = vadd.f32 %v5288, %v5289
        %v5291 = vsel %vm4606, %v5077, 0.0
        %v5292 = vadd.f32 %v5290, %v5291
        %v5293 = vsel %vm4606, %v5078, 0.0
        %v5294 = vadd.f32 %v5292, %v5293
        %v5295 = vsel %vm4606, %v5079, 0.0
        %v5296 = vadd.f32 %v5294, %v5295
        %v5297 = vsel %vm4606, %v5080, 0.0
        %v5298 = vadd.f32 %v5296, %v5297
        %v5299 = vsel %vm4606, %v5081, 0.0
        %v5300 = vadd.f32 %v5298, %v5299
        %v5301 = vsel %vm4606, %v5082, 0.0
        %v5302 = vadd.f32 %v5300, %v5301
        %v5303 = vsel %vm4606, %v5083, 0.0
        %v5304 = vadd.f32 %v5302, %v5303
        %v5305 = vsel %vm4606, %v5084, 0.0
        %v5306 = vadd.f32 %v5304, %v5305
        %v5307 = vsel %vm4606, %v5085, 0.0
        %v5308 = vadd.f32 %v5306, %v5307
        %v5309 = vsel %vm4606, %v5086, 0.0
        %v5310 = vadd.f32 %v5308, %v5309
        %v5311 = vsel %vm4606, %v5087, 0.0
        %v5312 = vadd.f32 %v5310, %v5311
        %v5313 = vsel %vm4606, %v5088, 0.0
        %v5314 = vadd.f32 %v5312, %v5313
        %v5315 = vsel %vm4606, %v5089, 0.0
        %v5316 = vadd.f32 %v5314, %v5315
        %v5317 = vsel %vm4606, %v5090, 0.0
        %v5318 = vadd.f32 %v5316, %v5317
        %v5319 = vsel %vm4606, %v5091, 0.0
        %v5320 = vadd.f32 %v5318, %v5319
        %v5321 = vsel %vm4606, %v5092, 0.0
        %v5322 = vadd.f32 %v5320, %v5321
        %v5323 = vsel %vm4606, %v5093, 0.0
        %v5324 = vadd.f32 %v5322, %v5323
        %v5325 = vsel %vm4606, %v5094, 0.0
        %v5326 = vadd.f32 %v5324, %v5325
        %v5327 = vsel %vm4606, %v5095, 0.0
        %v5328 = vadd.f32 %v5326, %v5327
        %v5329 = vsel %vm4606, %v5096, 0.0
        %v5330 = vadd.f32 %v5328, %v5329
        %v5331 = vsel %vm4606, %v5097, 0.0
        %v5332 = vadd.f32 %v5330, %v5331
        %v5333 = vsel %vm4606, %v5098, 0.0
        %v5334 = vadd.f32 %v5332, %v5333
        %v5335 = vsel %vm4606, %v5099, 0.0
        %v5336 = vadd.f32 %v5334, %v5335
        %v5337 = vsel %vm4606, %v5100, 0.0
        %v5338 = vadd.f32 %v5336, %v5337
        %v5339 = vsel %vm4606, %v5101, 0.0
        %v5340 = vadd.f32 %v5338, %v5339
        %v5341 = vsel %vm4606, %v5102, 0.0
        %v5342 = vadd.f32 %v5340, %v5341
        %v5343 = vsel %vm4606, %v5103, 0.0
        %v5344 = vadd.f32 %v5342, %v5343
        %v5345 = vsel %vm4606, %v5104, 0.0
        %v5346 = vadd.f32 %v5344, %v5345
        %v5347 = vsel %vm4606, %v5105, 0.0
        %v5348 = vadd.f32 %v5346, %v5347
        %v5349 = vsel %vm4606, %v5106, 0.0
        %v5350 = vadd.f32 %v5348, %v5349
        %v5351 = vsel %vm4606, %v5107, 0.0
        %v5352 = vadd.f32 %v5350, %v5351
        %v5353 = vsel %vm4606, %v5108, 0.0
        %v5354 = vadd.f32 %v5352, %v5353
        %v5355 = vsel %vm4606, %v5109, 0.0
        %v5356 = vadd.f32 %v5354, %v5355
        %v5357 = vrot.slane %v5356, 4
        %v5358 = vadd.f32 %v5356, %v5357
        %v5359 = vrot.slane %v5358, 2
        %v5360 = vadd.f32 %v5358, %v5359
        %v5361 = vrot.slane %v5360, 1
        %v5362 = vadd.f32 %v5360, %v5361
        %5363 = vst.msk [vmem:[%s423 + $0x1] sm:$0x1] %vm4984, %v5362
      $region52: #{edge_layer_forward.3} parent=47 // pred_fallthru
        _
      // Predicated region
      $region53: #{edge_layer_forward.3} parent=47 // pred_check
        %p5364 = pneg %p4601
      $region54: #{edge_layer_forward.3} parent=47 // pred_check_branch
        %5366 = sbr.rel (%p5364) target = $region56
      $region55: #{edge_layer_forward.3} parent=47 // pred_region
        %s5367 = smul.u32 %s20, 992
        %v5368 = vlaneseq
        %v5369 = vshrl.u32 %v5368, 7
        %v5370 = vadd.s32 %v5369, 8
        %v5371 = vadd.s32 %v5369, 16
        %v5372 = vadd.s32 %v5369, 24
        %v5373 = vadd.s32 %v5369, 32
        %v5374 = vadd.s32 %v5369, 40
        %v5375 = vadd.s32 %v5369, 48
        %v5376 = vadd.s32 %v5369, 56
        %v5377 = vadd.s32 %v5369, 64
        %v5378 = vadd.s32 %v5369, 72
        %v5379 = vadd.s32 %v5369, 80
        %v5380 = vadd.s32 %v5369, 88
        %v5381 = vadd.s32 %v5369, 96
        %v5382 = vadd.s32 %v5369, 104
        %v5383 = vadd.s32 %v5369, 112
        %v5384 = vadd.s32 %v5369, 120
        %v5385 = vadd.s32 %v5369, 128
        %v5386 = vadd.s32 %v5369, 136
        %v5387 = vadd.s32 %v5369, 144
        %v5388 = vadd.s32 %v5369, 152
        %v5389 = vadd.s32 %v5369, 160
        %v5390 = vadd.s32 %v5369, 168
        %v5391 = vadd.s32 %v5369, 176
        %v5392 = vadd.s32 %v5369, 184
        %v5393 = vadd.s32 %v5369, 192
        %v5394 = vadd.s32 %v5369, 200
        %v5395 = vadd.s32 %v5369, 208
        %v5396 = vadd.s32 %v5369, 216
        %v5397 = vadd.s32 %v5369, 224
        %v5398 = vadd.s32 %v5369, 232
        %v5399 = vadd.s32 %v5369, 240
        %v5400 = vadd.s32 %v5369, 248
        %v5401 = vadd.s32 %v5369, 256
        %v5402 = vadd.s32 %v5369, 264
        %v5403 = vadd.s32 %v5369, 272
        %v5404 = vadd.s32 %v5369, 280
        %v5405 = vadd.s32 %v5369, 288
        %v5406 = vadd.s32 %v5369, 296
        %v5407 = vadd.s32 %v5369, 304
        %v5408 = vadd.s32 %v5369, 312
        %v5409 = vadd.s32 %v5369, 320
        %v5410 = vadd.s32 %v5369, 328
        %v5411 = vadd.s32 %v5369, 336
        %v5412 = vadd.s32 %v5369, 344
        %v5413 = vadd.s32 %v5369, 352
        %v5414 = vadd.s32 %v5369, 360
        %v5415 = vadd.s32 %v5369, 368
        %v5416 = vadd.s32 %v5369, 376
        %v5417 = vadd.s32 %v5369, 384
        %v5418 = vadd.s32 %v5369, 392
        %v5419 = vadd.s32 %v5369, 400
        %v5420 = vadd.s32 %v5369, 408
        %v5421 = vadd.s32 %v5369, 416
        %v5422 = vadd.s32 %v5369, 424
        %v5423 = vadd.s32 %v5369, 432
        %v5424 = vadd.s32 %v5369, 440
        %v5425 = vadd.s32 %v5369, 448
        %v5426 = vadd.s32 %v5369, 456
        %v5427 = vadd.s32 %v5369, 464
        %v5428 = vadd.s32 %v5369, 472
        %v5429 = vadd.s32 %v5369, 480
        %v5430 = vadd.s32 %v5369, 488
        %v5431 = vadd.s32 %v5369, 496
        %v5432 = vadd.s32 %v5369, 504
        %v5433 = vadd.s32 %v5369, 512
        %v5434 = vadd.s32 %v5369, 520
        %v5435 = vadd.s32 %v5369, 528
        %v5436 = vadd.s32 %v5369, 536
        %v5437 = vadd.s32 %v5369, 544
        %v5438 = vadd.s32 %v5369, 552
        %v5439 = vadd.s32 %v5369, 560
        %v5440 = vadd.s32 %v5369, 568
        %v5441 = vadd.s32 %v5369, 576
        %v5442 = vadd.s32 %v5369, 584
        %v5443 = vadd.s32 %v5369, 592
        %v5444 = vadd.s32 %v5369, 600
        %v5445 = vadd.s32 %v5369, 608
        %v5446 = vadd.s32 %v5369, 616
        %v5447 = vadd.s32 %v5369, 624
        %v5448 = vadd.s32 %v5369, 632
        %v5449 = vadd.s32 %v5369, 640
        %v5450 = vadd.s32 %v5369, 648
        %v5451 = vadd.s32 %v5369, 656
        %v5452 = vadd.s32 %v5369, 664
        %v5453 = vadd.s32 %v5369, 672
        %v5454 = vadd.s32 %v5369, 680
        %v5455 = vadd.s32 %v5369, 688
        %v5456 = vadd.s32 %v5369, 696
        %v5457 = vadd.s32 %v5369, 704
        %v5458 = vadd.s32 %v5369, 712
        %v5459 = vadd.s32 %v5369, 720
        %v5460 = vadd.s32 %v5369, 728
        %v5461 = vadd.s32 %v5369, 736
        %v5462 = vadd.s32 %v5369, 744
        %v5463 = vadd.s32 %v5369, 752
        %v5464 = vadd.s32 %v5369, 760
        %v5465 = vadd.s32 %v5369, 768
        %v5466 = vadd.s32 %v5369, 776
        %v5467 = vadd.s32 %v5369, 784
        %v5468 = vadd.s32 %v5369, 792
        %v5469 = vadd.s32 %v5369, 800
        %v5470 = vadd.s32 %v5369, 808
        %v5471 = vadd.s32 %v5369, 816
        %v5472 = vadd.s32 %v5369, 824
        %v5473 = vadd.s32 %v5369, 832
        %v5474 = vadd.s32 %v5369, 840
        %v5475 = vadd.s32 %v5369, 848
        %v5476 = vadd.s32 %v5369, 856
        %v5477 = vadd.s32 %v5369, 864
        %v5478 = vadd.s32 %v5369, 872
        %v5479 = vadd.s32 %v5369, 880
        %v5480 = vadd.s32 %v5369, 888
        %v5481 = vadd.s32 %v5369, 896
        %v5482 = vadd.s32 %v5369, 904
        %v5483 = vadd.s32 %v5369, 912
        %v5484 = vadd.s32 %v5369, 920
        %v5485 = vadd.s32 %v5369, 928
        %v5486 = vadd.s32 %v5369, 936
        %v5487 = vadd.s32 %v5369, 944
        %v5488 = vadd.s32 %v5369, 952
        %v5489 = vadd.s32 %v5369, 960
        %v5490 = vadd.s32 %v5369, 968
        %v5491 = vadd.s32 %v5369, 976
        %v5492 = vadd.s32 %v5369, 984
        %v5493 = vstv %s5367
        %v5494 = vadd.s32 %v5493, %v5369
        %v5495 = vadd.s32 %v5493, %v5370
        %v5496 = vadd.s32 %v5493, %v5371
        %v5497 = vadd.s32 %v5493, %v5372
        %v5498 = vadd.s32 %v5493, %v5373
        %v5499 = vadd.s32 %v5493, %v5374
        %v5500 = vadd.s32 %v5493, %v5375
        %v5501 = vadd.s32 %v5493, %v5376
        %v5502 = vadd.s32 %v5493, %v5377
        %v5503 = vadd.s32 %v5493, %v5378
        %v5504 = vadd.s32 %v5493, %v5379
        %v5505 = vadd.s32 %v5493, %v5380
        %v5506 = vadd.s32 %v5493, %v5381
        %v5507 = vadd.s32 %v5493, %v5382
        %v5508 = vadd.s32 %v5493, %v5383
        %v5509 = vadd.s32 %v5493, %v5384
        %v5510 = vadd.s32 %v5493, %v5385
        %v5511 = vadd.s32 %v5493, %v5386
        %v5512 = vadd.s32 %v5493, %v5387
        %v5513 = vadd.s32 %v5493, %v5388
        %v5514 = vadd.s32 %v5493, %v5389
        %v5515 = vadd.s32 %v5493, %v5390
        %v5516 = vadd.s32 %v5493, %v5391
        %v5517 = vadd.s32 %v5493, %v5392
        %v5518 = vadd.s32 %v5493, %v5393
        %v5519 = vadd.s32 %v5493, %v5394
        %v5520 = vadd.s32 %v5493, %v5395
        %v5521 = vadd.s32 %v5493, %v5396
        %v5522 = vadd.s32 %v5493, %v5397
        %v5523 = vadd.s32 %v5493, %v5398
        %v5524 = vadd.s32 %v5493, %v5399
        %v5525 = vadd.s32 %v5493, %v5400
        %v5526 = vadd.s32 %v5493, %v5401
        %v5527 = vadd.s32 %v5493, %v5402
        %v5528 = vadd.s32 %v5493, %v5403
        %v5529 = vadd.s32 %v5493, %v5404
        %v5530 = vadd.s32 %v5493, %v5405
        %v5531 = vadd.s32 %v5493, %v5406
        %v5532 = vadd.s32 %v5493, %v5407
        %v5533 = vadd.s32 %v5493, %v5408
        %v5534 = vadd.s32 %v5493, %v5409
        %v5535 = vadd.s32 %v5493, %v5410
        %v5536 = vadd.s32 %v5493, %v5411
        %v5537 = vadd.s32 %v5493, %v5412
        %v5538 = vadd.s32 %v5493, %v5413
        %v5539 = vadd.s32 %v5493, %v5414
        %v5540 = vadd.s32 %v5493, %v5415
        %v5541 = vadd.s32 %v5493, %v5416
        %v5542 = vadd.s32 %v5493, %v5417
        %v5543 = vadd.s32 %v5493, %v5418
        %v5544 = vadd.s32 %v5493, %v5419
        %v5545 = vadd.s32 %v5493, %v5420
        %v5546 = vadd.s32 %v5493, %v5421
        %v5547 = vadd.s32 %v5493, %v5422
        %v5548 = vadd.s32 %v5493, %v5423
        %v5549 = vadd.s32 %v5493, %v5424
        %v5550 = vadd.s32 %v5493, %v5425
        %v5551 = vadd.s32 %v5493, %v5426
        %v5552 = vadd.s32 %v5493, %v5427
        %v5553 = vadd.s32 %v5493, %v5428
        %v5554 = vadd.s32 %v5493, %v5429
        %v5555 = vadd.s32 %v5493, %v5430
        %v5556 = vadd.s32 %v5493, %v5431
        %v5557 = vadd.s32 %v5493, %v5432
        %v5558 = vadd.s32 %v5493, %v5433
        %v5559 = vadd.s32 %v5493, %v5434
        %v5560 = vadd.s32 %v5493, %v5435
        %v5561 = vadd.s32 %v5493, %v5436
        %v5562 = vadd.s32 %v5493, %v5437
        %v5563 = vadd.s32 %v5493, %v5438
        %v5564 = vadd.s32 %v5493, %v5439
        %v5565 = vadd.s32 %v5493, %v5440
        %v5566 = vadd.s32 %v5493, %v5441
        %v5567 = vadd.s32 %v5493, %v5442
        %v5568 = vadd.s32 %v5493, %v5443
        %v5569 = vadd.s32 %v5493, %v5444
        %v5570 = vadd.s32 %v5493, %v5445
        %v5571 = vadd.s32 %v5493, %v5446
        %v5572 = vadd.s32 %v5493, %v5447
        %v5573 = vadd.s32 %v5493, %v5448
        %v5574 = vadd.s32 %v5493, %v5449
        %v5575 = vadd.s32 %v5493, %v5450
        %v5576 = vadd.s32 %v5493, %v5451
        %v5577 = vadd.s32 %v5493, %v5452
        %v5578 = vadd.s32 %v5493, %v5453
        %v5579 = vadd.s32 %v5493, %v5454
        %v5580 = vadd.s32 %v5493, %v5455
        %v5581 = vadd.s32 %v5493, %v5456
        %v5582 = vadd.s32 %v5493, %v5457
        %v5583 = vadd.s32 %v5493, %v5458
        %v5584 = vadd.s32 %v5493, %v5459
        %v5585 = vadd.s32 %v5493, %v5460
        %v5586 = vadd.s32 %v5493, %v5461
        %v5587 = vadd.s32 %v5493, %v5462
        %v5588 = vadd.s32 %v5493, %v5463
        %v5589 = vadd.s32 %v5493, %v5464
        %v5590 = vadd.s32 %v5493, %v5465
        %v5591 = vadd.s32 %v5493, %v5466
        %v5592 = vadd.s32 %v5493, %v5467
        %v5593 = vadd.s32 %v5493, %v5468
        %v5594 = vadd.s32 %v5493, %v5469
        %v5595 = vadd.s32 %v5493, %v5470
        %v5596 = vadd.s32 %v5493, %v5471
        %v5597 = vadd.s32 %v5493, %v5472
        %v5598 = vadd.s32 %v5493, %v5473
        %v5599 = vadd.s32 %v5493, %v5474
        %v5600 = vadd.s32 %v5493, %v5475
        %v5601 = vadd.s32 %v5493, %v5476
        %v5602 = vadd.s32 %v5493, %v5477
        %v5603 = vadd.s32 %v5493, %v5478
        %v5604 = vadd.s32 %v5493, %v5479
        %v5605 = vadd.s32 %v5493, %v5480
        %v5606 = vadd.s32 %v5493, %v5481
        %v5607 = vadd.s32 %v5493, %v5482
        %v5608 = vadd.s32 %v5493, %v5483
        %v5609 = vadd.s32 %v5493, %v5484
        %v5610 = vadd.s32 %v5493, %v5485
        %v5611 = vadd.s32 %v5493, %v5486
        %v5612 = vadd.s32 %v5493, %v5487
        %v5613 = vadd.s32 %v5493, %v5488
        %v5614 = vadd.s32 %v5493, %v5489
        %v5615 = vadd.s32 %v5493, %v5490
        %v5616 = vadd.s32 %v5493, %v5491
        %v5617 = vadd.s32 %v5493, %v5492
        %vm5618 = vcmp.lt.s32.totalorder %v5494, 1000
        %vm5619 = vcmp.lt.s32.totalorder %v5495, 1000
        %vm5620 = vcmp.lt.s32.totalorder %v5496, 1000
        %vm5621 = vcmp.lt.s32.totalorder %v5497, 1000
        %vm5622 = vcmp.lt.s32.totalorder %v5498, 1000
        %vm5623 = vcmp.lt.s32.totalorder %v5499, 1000
        %vm5624 = vcmp.lt.s32.totalorder %v5500, 1000
        %vm5625 = vcmp.lt.s32.totalorder %v5501, 1000
        %vm5626 = vcmp.lt.s32.totalorder %v5502, 1000
        %vm5627 = vcmp.lt.s32.totalorder %v5503, 1000
        %vm5628 = vcmp.lt.s32.totalorder %v5504, 1000
        %vm5629 = vcmp.lt.s32.totalorder %v5505, 1000
        %vm5630 = vcmp.lt.s32.totalorder %v5506, 1000
        %vm5631 = vcmp.lt.s32.totalorder %v5507, 1000
        %vm5632 = vcmp.lt.s32.totalorder %v5508, 1000
        %vm5633 = vcmp.lt.s32.totalorder %v5509, 1000
        %vm5634 = vcmp.lt.s32.totalorder %v5510, 1000
        %vm5635 = vcmp.lt.s32.totalorder %v5511, 1000
        %vm5636 = vcmp.lt.s32.totalorder %v5512, 1000
        %vm5637 = vcmp.lt.s32.totalorder %v5513, 1000
        %vm5638 = vcmp.lt.s32.totalorder %v5514, 1000
        %vm5639 = vcmp.lt.s32.totalorder %v5515, 1000
        %vm5640 = vcmp.lt.s32.totalorder %v5516, 1000
        %vm5641 = vcmp.lt.s32.totalorder %v5517, 1000
        %vm5642 = vcmp.lt.s32.totalorder %v5518, 1000
        %vm5643 = vcmp.lt.s32.totalorder %v5519, 1000
        %vm5644 = vcmp.lt.s32.totalorder %v5520, 1000
        %vm5645 = vcmp.lt.s32.totalorder %v5521, 1000
        %vm5646 = vcmp.lt.s32.totalorder %v5522, 1000
        %vm5647 = vcmp.lt.s32.totalorder %v5523, 1000
        %vm5648 = vcmp.lt.s32.totalorder %v5524, 1000
        %vm5649 = vcmp.lt.s32.totalorder %v5525, 1000
        %vm5650 = vcmp.lt.s32.totalorder %v5526, 1000
        %vm5651 = vcmp.lt.s32.totalorder %v5527, 1000
        %vm5652 = vcmp.lt.s32.totalorder %v5528, 1000
        %vm5653 = vcmp.lt.s32.totalorder %v5529, 1000
        %vm5654 = vcmp.lt.s32.totalorder %v5530, 1000
        %vm5655 = vcmp.lt.s32.totalorder %v5531, 1000
        %vm5656 = vcmp.lt.s32.totalorder %v5532, 1000
        %vm5657 = vcmp.lt.s32.totalorder %v5533, 1000
        %vm5658 = vcmp.lt.s32.totalorder %v5534, 1000
        %vm5659 = vcmp.lt.s32.totalorder %v5535, 1000
        %vm5660 = vcmp.lt.s32.totalorder %v5536, 1000
        %vm5661 = vcmp.lt.s32.totalorder %v5537, 1000
        %vm5662 = vcmp.lt.s32.totalorder %v5538, 1000
        %vm5663 = vcmp.lt.s32.totalorder %v5539, 1000
        %vm5664 = vcmp.lt.s32.totalorder %v5540, 1000
        %vm5665 = vcmp.lt.s32.totalorder %v5541, 1000
        %vm5666 = vcmp.lt.s32.totalorder %v5542, 1000
        %vm5667 = vcmp.lt.s32.totalorder %v5543, 1000
        %vm5668 = vcmp.lt.s32.totalorder %v5544, 1000
        %vm5669 = vcmp.lt.s32.totalorder %v5545, 1000
        %vm5670 = vcmp.lt.s32.totalorder %v5546, 1000
        %vm5671 = vcmp.lt.s32.totalorder %v5547, 1000
        %vm5672 = vcmp.lt.s32.totalorder %v5548, 1000
        %vm5673 = vcmp.lt.s32.totalorder %v5549, 1000
        %vm5674 = vcmp.lt.s32.totalorder %v5550, 1000
        %vm5675 = vcmp.lt.s32.totalorder %v5551, 1000
        %vm5676 = vcmp.lt.s32.totalorder %v5552, 1000
        %vm5677 = vcmp.lt.s32.totalorder %v5553, 1000
        %vm5678 = vcmp.lt.s32.totalorder %v5554, 1000
        %vm5679 = vcmp.lt.s32.totalorder %v5555, 1000
        %vm5680 = vcmp.lt.s32.totalorder %v5556, 1000
        %vm5681 = vcmp.lt.s32.totalorder %v5557, 1000
        %vm5682 = vcmp.lt.s32.totalorder %v5558, 1000
        %vm5683 = vcmp.lt.s32.totalorder %v5559, 1000
        %vm5684 = vcmp.lt.s32.totalorder %v5560, 1000
        %vm5685 = vcmp.lt.s32.totalorder %v5561, 1000
        %vm5686 = vcmp.lt.s32.totalorder %v5562, 1000
        %vm5687 = vcmp.lt.s32.totalorder %v5563, 1000
        %vm5688 = vcmp.lt.s32.totalorder %v5564, 1000
        %vm5689 = vcmp.lt.s32.totalorder %v5565, 1000
        %vm5690 = vcmp.lt.s32.totalorder %v5566, 1000
        %vm5691 = vcmp.lt.s32.totalorder %v5567, 1000
        %vm5692 = vcmp.lt.s32.totalorder %v5568, 1000
        %vm5693 = vcmp.lt.s32.totalorder %v5569, 1000
        %vm5694 = vcmp.lt.s32.totalorder %v5570, 1000
        %vm5695 = vcmp.lt.s32.totalorder %v5571, 1000
        %vm5696 = vcmp.lt.s32.totalorder %v5572, 1000
        %vm5697 = vcmp.lt.s32.totalorder %v5573, 1000
        %vm5698 = vcmp.lt.s32.totalorder %v5574, 1000
        %vm5699 = vcmp.lt.s32.totalorder %v5575, 1000
        %vm5700 = vcmp.lt.s32.totalorder %v5576, 1000
        %vm5701 = vcmp.lt.s32.totalorder %v5577, 1000
        %vm5702 = vcmp.lt.s32.totalorder %v5578, 1000
        %vm5703 = vcmp.lt.s32.totalorder %v5579, 1000
        %vm5704 = vcmp.lt.s32.totalorder %v5580, 1000
        %vm5705 = vcmp.lt.s32.totalorder %v5581, 1000
        %vm5706 = vcmp.lt.s32.totalorder %v5582, 1000
        %vm5707 = vcmp.lt.s32.totalorder %v5583, 1000
        %vm5708 = vcmp.lt.s32.totalorder %v5584, 1000
        %vm5709 = vcmp.lt.s32.totalorder %v5585, 1000
        %vm5710 = vcmp.lt.s32.totalorder %v5586, 1000
        %vm5711 = vcmp.lt.s32.totalorder %v5587, 1000
        %vm5712 = vcmp.lt.s32.totalorder %v5588, 1000
        %vm5713 = vcmp.lt.s32.totalorder %v5589, 1000
        %vm5714 = vcmp.lt.s32.totalorder %v5590, 1000
        %vm5715 = vcmp.lt.s32.totalorder %v5591, 1000
        %vm5716 = vcmp.lt.s32.totalorder %v5592, 1000
        %vm5717 = vcmp.lt.s32.totalorder %v5593, 1000
        %vm5718 = vcmp.lt.s32.totalorder %v5594, 1000
        %vm5719 = vcmp.lt.s32.totalorder %v5595, 1000
        %vm5720 = vcmp.lt.s32.totalorder %v5596, 1000
        %vm5721 = vcmp.lt.s32.totalorder %v5597, 1000
        %vm5722 = vcmp.lt.s32.totalorder %v5598, 1000
        %vm5723 = vcmp.lt.s32.totalorder %v5599, 1000
        %vm5724 = vcmp.lt.s32.totalorder %v5600, 1000
        %vm5725 = vcmp.lt.s32.totalorder %v5601, 1000
        %vm5726 = vcmp.lt.s32.totalorder %v5602, 1000
        %vm5727 = vcmp.lt.s32.totalorder %v5603, 1000
        %vm5728 = vcmp.lt.s32.totalorder %v5604, 1000
        %vm5729 = vcmp.lt.s32.totalorder %v5605, 1000
        %vm5730 = vcmp.lt.s32.totalorder %v5606, 1000
        %vm5731 = vcmp.lt.s32.totalorder %v5607, 1000
        %vm5732 = vcmp.lt.s32.totalorder %v5608, 1000
        %vm5733 = vcmp.lt.s32.totalorder %v5609, 1000
        %vm5734 = vcmp.lt.s32.totalorder %v5610, 1000
        %vm5735 = vcmp.lt.s32.totalorder %v5611, 1000
        %vm5736 = vcmp.lt.s32.totalorder %v5612, 1000
        %vm5737 = vcmp.lt.s32.totalorder %v5613, 1000
        %vm5738 = vcmp.lt.s32.totalorder %v5614, 1000
        %vm5739 = vcmp.lt.s32.totalorder %v5615, 1000
        %vm5740 = vcmp.lt.s32.totalorder %v5616, 1000
        %vm5741 = vcmp.lt.s32.totalorder %v5617, 1000
        %v5742 = vsel %vm5618, %v4477, 0.0
        %v5743 = vsel %vm5619, %v4478, 0.0
        %v5744 = vsel %vm5620, %v4479, 0.0
        %v5745 = vsel %vm5621, %v4480, 0.0
        %v5746 = vsel %vm5622, %v4481, 0.0
        %v5747 = vsel %vm5623, %v4482, 0.0
        %v5748 = vsel %vm5624, %v4483, 0.0
        %v5749 = vsel %vm5625, %v4484, 0.0
        %v5750 = vsel %vm5626, %v4485, 0.0
        %v5751 = vsel %vm5627, %v4486, 0.0
        %v5752 = vsel %vm5628, %v4487, 0.0
        %v5753 = vsel %vm5629, %v4488, 0.0
        %v5754 = vsel %vm5630, %v4489, 0.0
        %v5755 = vsel %vm5631, %v4490, 0.0
        %v5756 = vsel %vm5632, %v4491, 0.0
        %v5757 = vsel %vm5633, %v4492, 0.0
        %v5758 = vsel %vm5634, %v4493, 0.0
        %v5759 = vsel %vm5635, %v4494, 0.0
        %v5760 = vsel %vm5636, %v4495, 0.0
        %v5761 = vsel %vm5637, %v4496, 0.0
        %v5762 = vsel %vm5638, %v4497, 0.0
        %v5763 = vsel %vm5639, %v4498, 0.0
        %v5764 = vsel %vm5640, %v4499, 0.0
        %v5765 = vsel %vm5641, %v4500, 0.0
        %v5766 = vsel %vm5642, %v4501, 0.0
        %v5767 = vsel %vm5643, %v4502, 0.0
        %v5768 = vsel %vm5644, %v4503, 0.0
        %v5769 = vsel %vm5645, %v4504, 0.0
        %v5770 = vsel %vm5646, %v4505, 0.0
        %v5771 = vsel %vm5647, %v4506, 0.0
        %v5772 = vsel %vm5648, %v4507, 0.0
        %v5773 = vsel %vm5649, %v4508, 0.0
        %v5774 = vsel %vm5650, %v4509, 0.0
        %v5775 = vsel %vm5651, %v4510, 0.0
        %v5776 = vsel %vm5652, %v4511, 0.0
        %v5777 = vsel %vm5653, %v4512, 0.0
        %v5778 = vsel %vm5654, %v4513, 0.0
        %v5779 = vsel %vm5655, %v4514, 0.0
        %v5780 = vsel %vm5656, %v4515, 0.0
        %v5781 = vsel %vm5657, %v4516, 0.0
        %v5782 = vsel %vm5658, %v4517, 0.0
        %v5783 = vsel %vm5659, %v4518, 0.0
        %v5784 = vsel %vm5660, %v4519, 0.0
        %v5785 = vsel %vm5661, %v4520, 0.0
        %v5786 = vsel %vm5662, %v4521, 0.0
        %v5787 = vsel %vm5663, %v4522, 0.0
        %v5788 = vsel %vm5664, %v4523, 0.0
        %v5789 = vsel %vm5665, %v4524, 0.0
        %v5790 = vsel %vm5666, %v4525, 0.0
        %v5791 = vsel %vm5667, %v4526, 0.0
        %v5792 = vsel %vm5668, %v4527, 0.0
        %v5793 = vsel %vm5669, %v4528, 0.0
        %v5794 = vsel %vm5670, %v4529, 0.0
        %v5795 = vsel %vm5671, %v4530, 0.0
        %v5796 = vsel %vm5672, %v4531, 0.0
        %v5797 = vsel %vm5673, %v4532, 0.0
        %v5798 = vsel %vm5674, %v4533, 0.0
        %v5799 = vsel %vm5675, %v4534, 0.0
        %v5800 = vsel %vm5676, %v4535, 0.0
        %v5801 = vsel %vm5677, %v4536, 0.0
        %v5802 = vsel %vm5678, %v4537, 0.0
        %v5803 = vsel %vm5679, %v4538, 0.0
        %v5804 = vsel %vm5680, %v4539, 0.0
        %v5805 = vsel %vm5681, %v4540, 0.0
        %v5806 = vsel %vm5682, %v4541, 0.0
        %v5807 = vsel %vm5683, %v4542, 0.0
        %v5808 = vsel %vm5684, %v4543, 0.0
        %v5809 = vsel %vm5685, %v4544, 0.0
        %v5810 = vsel %vm5686, %v4545, 0.0
        %v5811 = vsel %vm5687, %v4546, 0.0
        %v5812 = vsel %vm5688, %v4547, 0.0
        %v5813 = vsel %vm5689, %v4548, 0.0
        %v5814 = vsel %vm5690, %v4549, 0.0
        %v5815 = vsel %vm5691, %v4550, 0.0
        %v5816 = vsel %vm5692, %v4551, 0.0
        %v5817 = vsel %vm5693, %v4552, 0.0
        %v5818 = vsel %vm5694, %v4553, 0.0
        %v5819 = vsel %vm5695, %v4554, 0.0
        %v5820 = vsel %vm5696, %v4555, 0.0
        %v5821 = vsel %vm5697, %v4556, 0.0
        %v5822 = vsel %vm5698, %v4557, 0.0
        %v5823 = vsel %vm5699, %v4558, 0.0
        %v5824 = vsel %vm5700, %v4559, 0.0
        %v5825 = vsel %vm5701, %v4560, 0.0
        %v5826 = vsel %vm5702, %v4561, 0.0
        %v5827 = vsel %vm5703, %v4562, 0.0
        %v5828 = vsel %vm5704, %v4563, 0.0
        %v5829 = vsel %vm5705, %v4564, 0.0
        %v5830 = vsel %vm5706, %v4565, 0.0
        %v5831 = vsel %vm5707, %v4566, 0.0
        %v5832 = vsel %vm5708, %v4567, 0.0
        %v5833 = vsel %vm5709, %v4568, 0.0
        %v5834 = vsel %vm5710, %v4569, 0.0
        %v5835 = vsel %vm5711, %v4570, 0.0
        %v5836 = vsel %vm5712, %v4571, 0.0
        %v5837 = vsel %vm5713, %v4572, 0.0
        %v5838 = vsel %vm5714, %v4573, 0.0
        %v5839 = vsel %vm5715, %v4574, 0.0
        %v5840 = vsel %vm5716, %v4575, 0.0
        %v5841 = vsel %vm5717, %v4576, 0.0
        %v5842 = vsel %vm5718, %v4577, 0.0
        %v5843 = vsel %vm5719, %v4578, 0.0
        %v5844 = vsel %vm5720, %v4579, 0.0
        %v5845 = vsel %vm5721, %v4580, 0.0
        %v5846 = vsel %vm5722, %v4581, 0.0
        %v5847 = vsel %vm5723, %v4582, 0.0
        %v5848 = vsel %vm5724, %v4583, 0.0
        %v5849 = vsel %vm5725, %v4584, 0.0
        %v5850 = vsel %vm5726, %v4585, 0.0
        %v5851 = vsel %vm5727, %v4586, 0.0
        %v5852 = vsel %vm5728, %v4587, 0.0
        %v5853 = vsel %vm5729, %v4588, 0.0
        %v5854 = vsel %vm5730, %v4589, 0.0
        %v5855 = vsel %vm5731, %v4590, 0.0
        %v5856 = vsel %vm5732, %v4591, 0.0
        %v5857 = vsel %vm5733, %v4592, 0.0
        %v5858 = vsel %vm5734, %v4593, 0.0
        %v5859 = vsel %vm5735, %v4594, 0.0
        %v5860 = vsel %vm5736, %v4595, 0.0
        %v5861 = vsel %vm5737, %v4596, 0.0
        %v5862 = vsel %vm5738, %v4597, 0.0
        %v5863 = vsel %vm5739, %v4598, 0.0
        %v5864 = vsel %vm5740, %v4599, 0.0
        %v5865 = vsel %vm5741, %v4600, 0.0
        %vm5866 = vcmask 261120
        %5867 = vst.msk [vmem:[%s418] sm:$0xff] %vm5866, %v5742
        %5868 = vst.msk [vmem:[%s418 + $0x8] sm:$0xff] %vm5866, %v5743
        %5869 = vst.msk [vmem:[%s418 + $0x10] sm:$0xff] %vm5866, %v5744
        %5870 = vst.msk [vmem:[%s418 + $0x18] sm:$0xff] %vm5866, %v5745
        %5871 = vst.msk [vmem:[%s418 + $0x20] sm:$0xff] %vm5866, %v5746
        %5872 = vst.msk [vmem:[%s418 + $0x28] sm:$0xff] %vm5866, %v5747
        %5873 = vst.msk [vmem:[%s418 + $0x30] sm:$0xff] %vm5866, %v5748
        %5874 = vst.msk [vmem:[%s418 + $0x38] sm:$0xff] %vm5866, %v5749
        %5875 = vst.msk [vmem:[%s418 + $0x40] sm:$0xff] %vm5866, %v5750
        %5876 = vst.msk [vmem:[%s418 + $0x48] sm:$0xff] %vm5866, %v5751
        %5877 = vst.msk [vmem:[%s418 + $0x50] sm:$0xff] %vm5866, %v5752
        %5878 = vst.msk [vmem:[%s418 + $0x58] sm:$0xff] %vm5866, %v5753
        %5879 = vst.msk [vmem:[%s418 + $0x60] sm:$0xff] %vm5866, %v5754
        %5880 = vst.msk [vmem:[%s418 + $0x68] sm:$0xff] %vm5866, %v5755
        %5881 = vst.msk [vmem:[%s418 + $0x70] sm:$0xff] %vm5866, %v5756
        %5882 = vst.msk [vmem:[%s418 + $0x78] sm:$0xff] %vm5866, %v5757
        %5883 = vst.msk [vmem:[%s418 + $0x80] sm:$0xff] %vm5866, %v5758
        %5884 = vst.msk [vmem:[%s418 + $0x88] sm:$0xff] %vm5866, %v5759
        %5885 = vst.msk [vmem:[%s418 + $0x90] sm:$0xff] %vm5866, %v5760
        %5886 = vst.msk [vmem:[%s418 + $0x98] sm:$0xff] %vm5866, %v5761
        %5887 = vst.msk [vmem:[%s418 + $0xa0] sm:$0xff] %vm5866, %v5762
        %5888 = vst.msk [vmem:[%s418 + $0xa8] sm:$0xff] %vm5866, %v5763
        %5889 = vst.msk [vmem:[%s418 + $0xb0] sm:$0xff] %vm5866, %v5764
        %5890 = vst.msk [vmem:[%s418 + $0xb8] sm:$0xff] %vm5866, %v5765
        %5891 = vst.msk [vmem:[%s418 + $0xc0] sm:$0xff] %vm5866, %v5766
        %5892 = vst.msk [vmem:[%s418 + $0xc8] sm:$0xff] %vm5866, %v5767
        %5893 = vst.msk [vmem:[%s418 + $0xd0] sm:$0xff] %vm5866, %v5768
        %5894 = vst.msk [vmem:[%s418 + $0xd8] sm:$0xff] %vm5866, %v5769
        %5895 = vst.msk [vmem:[%s418 + $0xe0] sm:$0xff] %vm5866, %v5770
        %5896 = vst.msk [vmem:[%s418 + $0xe8] sm:$0xff] %vm5866, %v5771
        %5897 = vst.msk [vmem:[%s418 + $0xf0] sm:$0xff] %vm5866, %v5772
        %5898 = vst.msk [vmem:[%s418 + $0xf8] sm:$0xff] %vm5866, %v5773
        %5899 = vst.msk [vmem:[%s418 + $0x100] sm:$0xff] %vm5866, %v5774
        %5900 = vst.msk [vmem:[%s418 + $0x108] sm:$0xff] %vm5866, %v5775
        %5901 = vst.msk [vmem:[%s418 + $0x110] sm:$0xff] %vm5866, %v5776
        %5902 = vst.msk [vmem:[%s418 + $0x118] sm:$0xff] %vm5866, %v5777
        %5903 = vst.msk [vmem:[%s418 + $0x120] sm:$0xff] %vm5866, %v5778
        %5904 = vst.msk [vmem:[%s418 + $0x128] sm:$0xff] %vm5866, %v5779
        %5905 = vst.msk [vmem:[%s418 + $0x130] sm:$0xff] %vm5866, %v5780
        %5906 = vst.msk [vmem:[%s418 + $0x138] sm:$0xff] %vm5866, %v5781
        %5907 = vst.msk [vmem:[%s418 + $0x140] sm:$0xff] %vm5866, %v5782
        %5908 = vst.msk [vmem:[%s418 + $0x148] sm:$0xff] %vm5866, %v5783
        %5909 = vst.msk [vmem:[%s418 + $0x150] sm:$0xff] %vm5866, %v5784
        %5910 = vst.msk [vmem:[%s418 + $0x158] sm:$0xff] %vm5866, %v5785
        %5911 = vst.msk [vmem:[%s418 + $0x160] sm:$0xff] %vm5866, %v5786
        %5912 = vst.msk [vmem:[%s418 + $0x168] sm:$0xff] %vm5866, %v5787
        %5913 = vst.msk [vmem:[%s418 + $0x170] sm:$0xff] %vm5866, %v5788
        %5914 = vst.msk [vmem:[%s418 + $0x178] sm:$0xff] %vm5866, %v5789
        %5915 = vst.msk [vmem:[%s418 + $0x180] sm:$0xff] %vm5866, %v5790
        %5916 = vst.msk [vmem:[%s418 + $0x188] sm:$0xff] %vm5866, %v5791
        %5917 = vst.msk [vmem:[%s418 + $0x190] sm:$0xff] %vm5866, %v5792
        %5918 = vst.msk [vmem:[%s418 + $0x198] sm:$0xff] %vm5866, %v5793
        %5919 = vst.msk [vmem:[%s418 + $0x1a0] sm:$0xff] %vm5866, %v5794
        %5920 = vst.msk [vmem:[%s418 + $0x1a8] sm:$0xff] %vm5866, %v5795
        %5921 = vst.msk [vmem:[%s418 + $0x1b0] sm:$0xff] %vm5866, %v5796
        %5922 = vst.msk [vmem:[%s418 + $0x1b8] sm:$0xff] %vm5866, %v5797
        %5923 = vst.msk [vmem:[%s418 + $0x1c0] sm:$0xff] %vm5866, %v5798
        %5924 = vst.msk [vmem:[%s418 + $0x1c8] sm:$0xff] %vm5866, %v5799
        %5925 = vst.msk [vmem:[%s418 + $0x1d0] sm:$0xff] %vm5866, %v5800
        %5926 = vst.msk [vmem:[%s418 + $0x1d8] sm:$0xff] %vm5866, %v5801
        %5927 = vst.msk [vmem:[%s418 + $0x1e0] sm:$0xff] %vm5866, %v5802
        %5928 = vst.msk [vmem:[%s418 + $0x1e8] sm:$0xff] %vm5866, %v5803
        %5929 = vst.msk [vmem:[%s418 + $0x1f0] sm:$0xff] %vm5866, %v5804
        %5930 = vst.msk [vmem:[%s418 + $0x1f8] sm:$0xff] %vm5866, %v5805
        %5931 = vst.msk [vmem:[%s418 + $0x200] sm:$0xff] %vm5866, %v5806
        %5932 = vst.msk [vmem:[%s418 + $0x208] sm:$0xff] %vm5866, %v5807
        %5933 = vst.msk [vmem:[%s418 + $0x210] sm:$0xff] %vm5866, %v5808
        %5934 = vst.msk [vmem:[%s418 + $0x218] sm:$0xff] %vm5866, %v5809
        %5935 = vst.msk [vmem:[%s418 + $0x220] sm:$0xff] %vm5866, %v5810
        %5936 = vst.msk [vmem:[%s418 + $0x228] sm:$0xff] %vm5866, %v5811
        %5937 = vst.msk [vmem:[%s418 + $0x230] sm:$0xff] %vm5866, %v5812
        %5938 = vst.msk [vmem:[%s418 + $0x238] sm:$0xff] %vm5866, %v5813
        %5939 = vst.msk [vmem:[%s418 + $0x240] sm:$0xff] %vm5866, %v5814
        %5940 = vst.msk [vmem:[%s418 + $0x248] sm:$0xff] %vm5866, %v5815
        %5941 = vst.msk [vmem:[%s418 + $0x250] sm:$0xff] %vm5866, %v5816
        %5942 = vst.msk [vmem:[%s418 + $0x258] sm:$0xff] %vm5866, %v5817
        %5943 = vst.msk [vmem:[%s418 + $0x260] sm:$0xff] %vm5866, %v5818
        %5944 = vst.msk [vmem:[%s418 + $0x268] sm:$0xff] %vm5866, %v5819
        %5945 = vst.msk [vmem:[%s418 + $0x270] sm:$0xff] %vm5866, %v5820
        %5946 = vst.msk [vmem:[%s418 + $0x278] sm:$0xff] %vm5866, %v5821
        %5947 = vst.msk [vmem:[%s418 + $0x280] sm:$0xff] %vm5866, %v5822
        %5948 = vst.msk [vmem:[%s418 + $0x288] sm:$0xff] %vm5866, %v5823
        %5949 = vst.msk [vmem:[%s418 + $0x290] sm:$0xff] %vm5866, %v5824
        %5950 = vst.msk [vmem:[%s418 + $0x298] sm:$0xff] %vm5866, %v5825
        %5951 = vst.msk [vmem:[%s418 + $0x2a0] sm:$0xff] %vm5866, %v5826
        %5952 = vst.msk [vmem:[%s418 + $0x2a8] sm:$0xff] %vm5866, %v5827
        %5953 = vst.msk [vmem:[%s418 + $0x2b0] sm:$0xff] %vm5866, %v5828
        %5954 = vst.msk [vmem:[%s418 + $0x2b8] sm:$0xff] %vm5866, %v5829
        %5955 = vst.msk [vmem:[%s418 + $0x2c0] sm:$0xff] %vm5866, %v5830
        %5956 = vst.msk [vmem:[%s418 + $0x2c8] sm:$0xff] %vm5866, %v5831
        %5957 = vst.msk [vmem:[%s418 + $0x2d0] sm:$0xff] %vm5866, %v5832
        %5958 = vst.msk [vmem:[%s418 + $0x2d8] sm:$0xff] %vm5866, %v5833
        %5959 = vst.msk [vmem:[%s418 + $0x2e0] sm:$0xff] %vm5866, %v5834
        %5960 = vst.msk [vmem:[%s418 + $0x2e8] sm:$0xff] %vm5866, %v5835
        %5961 = vst.msk [vmem:[%s418 + $0x2f0] sm:$0xff] %vm5866, %v5836
        %5962 = vst.msk [vmem:[%s418 + $0x2f8] sm:$0xff] %vm5866, %v5837
        %5963 = vst.msk [vmem:[%s418 + $0x300] sm:$0xff] %vm5866, %v5838
        %5964 = vst.msk [vmem:[%s418 + $0x308] sm:$0xff] %vm5866, %v5839
        %5965 = vst.msk [vmem:[%s418 + $0x310] sm:$0xff] %vm5866, %v5840
        %5966 = vst.msk [vmem:[%s418 + $0x318] sm:$0xff] %vm5866, %v5841
        %5967 = vst.msk [vmem:[%s418 + $0x320] sm:$0xff] %vm5866, %v5842
        %5968 = vst.msk [vmem:[%s418 + $0x328] sm:$0xff] %vm5866, %v5843
        %5969 = vst.msk [vmem:[%s418 + $0x330] sm:$0xff] %vm5866, %v5844
        %5970 = vst.msk [vmem:[%s418 + $0x338] sm:$0xff] %vm5866, %v5845
        %5971 = vst.msk [vmem:[%s418 + $0x340] sm:$0xff] %vm5866, %v5846
        %5972 = vst.msk [vmem:[%s418 + $0x348] sm:$0xff] %vm5866, %v5847
        %5973 = vst.msk [vmem:[%s418 + $0x350] sm:$0xff] %vm5866, %v5848
        %5974 = vst.msk [vmem:[%s418 + $0x358] sm:$0xff] %vm5866, %v5849
        %5975 = vst.msk [vmem:[%s418 + $0x360] sm:$0xff] %vm5866, %v5850
        %5976 = vst.msk [vmem:[%s418 + $0x368] sm:$0xff] %vm5866, %v5851
        %5977 = vst.msk [vmem:[%s418 + $0x370] sm:$0xff] %vm5866, %v5852
        %5978 = vst.msk [vmem:[%s418 + $0x378] sm:$0xff] %vm5866, %v5853
        %5979 = vst.msk [vmem:[%s418 + $0x380] sm:$0xff] %vm5866, %v5854
        %5980 = vst.msk [vmem:[%s418 + $0x388] sm:$0xff] %vm5866, %v5855
        %5981 = vst.msk [vmem:[%s418 + $0x390] sm:$0xff] %vm5866, %v5856
        %5982 = vst.msk [vmem:[%s418 + $0x398] sm:$0xff] %vm5866, %v5857
        %5983 = vst.msk [vmem:[%s418 + $0x3a0] sm:$0xff] %vm5866, %v5858
        %5984 = vst.msk [vmem:[%s418 + $0x3a8] sm:$0xff] %vm5866, %v5859
        %5985 = vst.msk [vmem:[%s418 + $0x3b0] sm:$0xff] %vm5866, %v5860
        %5986 = vst.msk [vmem:[%s418 + $0x3b8] sm:$0xff] %vm5866, %v5861
        %5987 = vst.msk [vmem:[%s418 + $0x3c0] sm:$0xff] %vm5866, %v5862
        %5988 = vst.msk [vmem:[%s418 + $0x3c8] sm:$0xff] %vm5866, %v5863
        %5989 = vst.msk [vmem:[%s418 + $0x3d0] sm:$0xff] %vm5866, %v5864
        %5990 = vst.msk [vmem:[%s418 + $0x3d8] sm:$0xff] %vm5866, %v5865
        %v5991 = vsel %vm5866, %v5742, 0.0
        %v5992 = vsel %vm5866, %v5743, 0.0
        %v5993 = vadd.f32 %v5991, %v5992
        %v5994 = vsel %vm5866, %v5744, 0.0
        %v5995 = vadd.f32 %v5993, %v5994
        %v5996 = vsel %vm5866, %v5745, 0.0
        %v5997 = vadd.f32 %v5995, %v5996
        %v5998 = vsel %vm5866, %v5746, 0.0
        %v5999 = vadd.f32 %v5997, %v5998
        %v6000 = vsel %vm5866, %v5747, 0.0
        %v6001 = vadd.f32 %v5999, %v6000
        %v6002 = vsel %vm5866, %v5748, 0.0
        %v6003 = vadd.f32 %v6001, %v6002
        %v6004 = vsel %vm5866, %v5749, 0.0
        %v6005 = vadd.f32 %v6003, %v6004
        %v6006 = vsel %vm5866, %v5750, 0.0
        %v6007 = vadd.f32 %v6005, %v6006
        %v6008 = vsel %vm5866, %v5751, 0.0
        %v6009 = vadd.f32 %v6007, %v6008
        %v6010 = vsel %vm5866, %v5752, 0.0
        %v6011 = vadd.f32 %v6009, %v6010
        %v6012 = vsel %vm5866, %v5753, 0.0
        %v6013 = vadd.f32 %v6011, %v6012
        %v6014 = vsel %vm5866, %v5754, 0.0
        %v6015 = vadd.f32 %v6013, %v6014
        %v6016 = vsel %vm5866, %v5755, 0.0
        %v6017 = vadd.f32 %v6015, %v6016
        %v6018 = vsel %vm5866, %v5756, 0.0
        %v6019 = vadd.f32 %v6017, %v6018
        %v6020 = vsel %vm5866, %v5757, 0.0
        %v6021 = vadd.f32 %v6019, %v6020
        %v6022 = vsel %vm5866, %v5758, 0.0
        %v6023 = vadd.f32 %v6021, %v6022
        %v6024 = vsel %vm5866, %v5759, 0.0
        %v6025 = vadd.f32 %v6023, %v6024
        %v6026 = vsel %vm5866, %v5760, 0.0
        %v6027 = vadd.f32 %v6025, %v6026
        %v6028 = vsel %vm5866, %v5761, 0.0
        %v6029 = vadd.f32 %v6027, %v6028
        %v6030 = vsel %vm5866, %v5762, 0.0
        %v6031 = vadd.f32 %v6029, %v6030
        %v6032 = vsel %vm5866, %v5763, 0.0
        %v6033 = vadd.f32 %v6031, %v6032
        %v6034 = vsel %vm5866, %v5764, 0.0
        %v6035 = vadd.f32 %v6033, %v6034
        %v6036 = vsel %vm5866, %v5765, 0.0
        %v6037 = vadd.f32 %v6035, %v6036
        %v6038 = vsel %vm5866, %v5766, 0.0
        %v6039 = vadd.f32 %v6037, %v6038
        %v6040 = vsel %vm5866, %v5767, 0.0
        %v6041 = vadd.f32 %v6039, %v6040
        %v6042 = vsel %vm5866, %v5768, 0.0
        %v6043 = vadd.f32 %v6041, %v6042
        %v6044 = vsel %vm5866, %v5769, 0.0
        %v6045 = vadd.f32 %v6043, %v6044
        %v6046 = vsel %vm5866, %v5770, 0.0
        %v6047 = vadd.f32 %v6045, %v6046
        %v6048 = vsel %vm5866, %v5771, 0.0
        %v6049 = vadd.f32 %v6047, %v6048
        %v6050 = vsel %vm5866, %v5772, 0.0
        %v6051 = vadd.f32 %v6049, %v6050
        %v6052 = vsel %vm5866, %v5773, 0.0
        %v6053 = vadd.f32 %v6051, %v6052
        %v6054 = vsel %vm5866, %v5774, 0.0
        %v6055 = vadd.f32 %v6053, %v6054
        %v6056 = vsel %vm5866, %v5775, 0.0
        %v6057 = vadd.f32 %v6055, %v6056
        %v6058 = vsel %vm5866, %v5776, 0.0
        %v6059 = vadd.f32 %v6057, %v6058
        %v6060 = vsel %vm5866, %v5777, 0.0
        %v6061 = vadd.f32 %v6059, %v6060
        %v6062 = vsel %vm5866, %v5778, 0.0
        %v6063 = vadd.f32 %v6061, %v6062
        %v6064 = vsel %vm5866, %v5779, 0.0
        %v6065 = vadd.f32 %v6063, %v6064
        %v6066 = vsel %vm5866, %v5780, 0.0
        %v6067 = vadd.f32 %v6065, %v6066
        %v6068 = vsel %vm5866, %v5781, 0.0
        %v6069 = vadd.f32 %v6067, %v6068
        %v6070 = vsel %vm5866, %v5782, 0.0
        %v6071 = vadd.f32 %v6069, %v6070
        %v6072 = vsel %vm5866, %v5783, 0.0
        %v6073 = vadd.f32 %v6071, %v6072
        %v6074 = vsel %vm5866, %v5784, 0.0
        %v6075 = vadd.f32 %v6073, %v6074
        %v6076 = vsel %vm5866, %v5785, 0.0
        %v6077 = vadd.f32 %v6075, %v6076
        %v6078 = vsel %vm5866, %v5786, 0.0
        %v6079 = vadd.f32 %v6077, %v6078
        %v6080 = vsel %vm5866, %v5787, 0.0
        %v6081 = vadd.f32 %v6079, %v6080
        %v6082 = vsel %vm5866, %v5788, 0.0
        %v6083 = vadd.f32 %v6081, %v6082
        %v6084 = vsel %vm5866, %v5789, 0.0
        %v6085 = vadd.f32 %v6083, %v6084
        %v6086 = vsel %vm5866, %v5790, 0.0
        %v6087 = vadd.f32 %v6085, %v6086
        %v6088 = vsel %vm5866, %v5791, 0.0
        %v6089 = vadd.f32 %v6087, %v6088
        %v6090 = vsel %vm5866, %v5792, 0.0
        %v6091 = vadd.f32 %v6089, %v6090
        %v6092 = vsel %vm5866, %v5793, 0.0
        %v6093 = vadd.f32 %v6091, %v6092
        %v6094 = vsel %vm5866, %v5794, 0.0
        %v6095 = vadd.f32 %v6093, %v6094
        %v6096 = vsel %vm5866, %v5795, 0.0
        %v6097 = vadd.f32 %v6095, %v6096
        %v6098 = vsel %vm5866, %v5796, 0.0
        %v6099 = vadd.f32 %v6097, %v6098
        %v6100 = vsel %vm5866, %v5797, 0.0
        %v6101 = vadd.f32 %v6099, %v6100
        %v6102 = vsel %vm5866, %v5798, 0.0
        %v6103 = vadd.f32 %v6101, %v6102
        %v6104 = vsel %vm5866, %v5799, 0.0
        %v6105 = vadd.f32 %v6103, %v6104
        %v6106 = vsel %vm5866, %v5800, 0.0
        %v6107 = vadd.f32 %v6105, %v6106
        %v6108 = vsel %vm5866, %v5801, 0.0
        %v6109 = vadd.f32 %v6107, %v6108
        %v6110 = vsel %vm5866, %v5802, 0.0
        %v6111 = vadd.f32 %v6109, %v6110
        %v6112 = vsel %vm5866, %v5803, 0.0
        %v6113 = vadd.f32 %v6111, %v6112
        %v6114 = vsel %vm5866, %v5804, 0.0
        %v6115 = vadd.f32 %v6113, %v6114
        %v6116 = vsel %vm5866, %v5805, 0.0
        %v6117 = vadd.f32 %v6115, %v6116
        %v6118 = vsel %vm5866, %v5806, 0.0
        %v6119 = vadd.f32 %v6117, %v6118
        %v6120 = vsel %vm5866, %v5807, 0.0
        %v6121 = vadd.f32 %v6119, %v6120
        %v6122 = vsel %vm5866, %v5808, 0.0
        %v6123 = vadd.f32 %v6121, %v6122
        %v6124 = vsel %vm5866, %v5809, 0.0
        %v6125 = vadd.f32 %v6123, %v6124
        %v6126 = vsel %vm5866, %v5810, 0.0
        %v6127 = vadd.f32 %v6125, %v6126
        %v6128 = vsel %vm5866, %v5811, 0.0
        %v6129 = vadd.f32 %v6127, %v6128
        %v6130 = vsel %vm5866, %v5812, 0.0
        %v6131 = vadd.f32 %v6129, %v6130
        %v6132 = vsel %vm5866, %v5813, 0.0
        %v6133 = vadd.f32 %v6131, %v6132
        %v6134 = vsel %vm5866, %v5814, 0.0
        %v6135 = vadd.f32 %v6133, %v6134
        %v6136 = vsel %vm5866, %v5815, 0.0
        %v6137 = vadd.f32 %v6135, %v6136
        %v6138 = vsel %vm5866, %v5816, 0.0
        %v6139 = vadd.f32 %v6137, %v6138
        %v6140 = vsel %vm5866, %v5817, 0.0
        %v6141 = vadd.f32 %v6139, %v6140
        %v6142 = vsel %vm5866, %v5818, 0.0
        %v6143 = vadd.f32 %v6141, %v6142
        %v6144 = vsel %vm5866, %v5819, 0.0
        %v6145 = vadd.f32 %v6143, %v6144
        %v6146 = vsel %vm5866, %v5820, 0.0
        %v6147 = vadd.f32 %v6145, %v6146
        %v6148 = vsel %vm5866, %v5821, 0.0
        %v6149 = vadd.f32 %v6147, %v6148
        %v6150 = vsel %vm5866, %v5822, 0.0
        %v6151 = vadd.f32 %v6149, %v6150
        %v6152 = vsel %vm5866, %v5823, 0.0
        %v6153 = vadd.f32 %v6151, %v6152
        %v6154 = vsel %vm5866, %v5824, 0.0
        %v6155 = vadd.f32 %v6153, %v6154
        %v6156 = vsel %vm5866, %v5825, 0.0
        %v6157 = vadd.f32 %v6155, %v6156
        %v6158 = vsel %vm5866, %v5826, 0.0
        %v6159 = vadd.f32 %v6157, %v6158
        %v6160 = vsel %vm5866, %v5827, 0.0
        %v6161 = vadd.f32 %v6159, %v6160
        %v6162 = vsel %vm5866, %v5828, 0.0
        %v6163 = vadd.f32 %v6161, %v6162
        %v6164 = vsel %vm5866, %v5829, 0.0
        %v6165 = vadd.f32 %v6163, %v6164
        %v6166 = vsel %vm5866, %v5830, 0.0
        %v6167 = vadd.f32 %v6165, %v6166
        %v6168 = vsel %vm5866, %v5831, 0.0
        %v6169 = vadd.f32 %v6167, %v6168
        %v6170 = vsel %vm5866, %v5832, 0.0
        %v6171 = vadd.f32 %v6169, %v6170
        %v6172 = vsel %vm5866, %v5833, 0.0
        %v6173 = vadd.f32 %v6171, %v6172
        %v6174 = vsel %vm5866, %v5834, 0.0
        %v6175 = vadd.f32 %v6173, %v6174
        %v6176 = vsel %vm5866, %v5835, 0.0
        %v6177 = vadd.f32 %v6175, %v6176
        %v6178 = vsel %vm5866, %v5836, 0.0
        %v6179 = vadd.f32 %v6177, %v6178
        %v6180 = vsel %vm5866, %v5837, 0.0
        %v6181 = vadd.f32 %v6179, %v6180
        %v6182 = vsel %vm5866, %v5838, 0.0
        %v6183 = vadd.f32 %v6181, %v6182
        %v6184 = vsel %vm5866, %v5839, 0.0
        %v6185 = vadd.f32 %v6183, %v6184
        %v6186 = vsel %vm5866, %v5840, 0.0
        %v6187 = vadd.f32 %v6185, %v6186
        %v6188 = vsel %vm5866, %v5841, 0.0
        %v6189 = vadd.f32 %v6187, %v6188
        %v6190 = vsel %vm5866, %v5842, 0.0
        %v6191 = vadd.f32 %v6189, %v6190
        %v6192 = vsel %vm5866, %v5843, 0.0
        %v6193 = vadd.f32 %v6191, %v6192
        %v6194 = vsel %vm5866, %v5844, 0.0
        %v6195 = vadd.f32 %v6193, %v6194
        %v6196 = vsel %vm5866, %v5845, 0.0
        %v6197 = vadd.f32 %v6195, %v6196
        %v6198 = vsel %vm5866, %v5846, 0.0
        %v6199 = vadd.f32 %v6197, %v6198
        %v6200 = vsel %vm5866, %v5847, 0.0
        %v6201 = vadd.f32 %v6199, %v6200
        %v6202 = vsel %vm5866, %v5848, 0.0
        %v6203 = vadd.f32 %v6201, %v6202
        %v6204 = vsel %vm5866, %v5849, 0.0
        %v6205 = vadd.f32 %v6203, %v6204
        %v6206 = vsel %vm5866, %v5850, 0.0
        %v6207 = vadd.f32 %v6205, %v6206
        %v6208 = vsel %vm5866, %v5851, 0.0
        %v6209 = vadd.f32 %v6207, %v6208
        %v6210 = vsel %vm5866, %v5852, 0.0
        %v6211 = vadd.f32 %v6209, %v6210
        %v6212 = vsel %vm5866, %v5853, 0.0
        %v6213 = vadd.f32 %v6211, %v6212
        %v6214 = vsel %vm5866, %v5854, 0.0
        %v6215 = vadd.f32 %v6213, %v6214
        %v6216 = vsel %vm5866, %v5855, 0.0
        %v6217 = vadd.f32 %v6215, %v6216
        %v6218 = vsel %vm5866, %v5856, 0.0
        %v6219 = vadd.f32 %v6217, %v6218
        %v6220 = vsel %vm5866, %v5857, 0.0
        %v6221 = vadd.f32 %v6219, %v6220
        %v6222 = vsel %vm5866, %v5858, 0.0
        %v6223 = vadd.f32 %v6221, %v6222
        %v6224 = vsel %vm5866, %v5859, 0.0
        %v6225 = vadd.f32 %v6223, %v6224
        %v6226 = vsel %vm5866, %v5860, 0.0
        %v6227 = vadd.f32 %v6225, %v6226
        %v6228 = vsel %vm5866, %v5861, 0.0
        %v6229 = vadd.f32 %v6227, %v6228
        %v6230 = vsel %vm5866, %v5862, 0.0
        %v6231 = vadd.f32 %v6229, %v6230
        %v6232 = vsel %vm5866, %v5863, 0.0
        %v6233 = vadd.f32 %v6231, %v6232
        %v6234 = vsel %vm5866, %v5864, 0.0
        %v6235 = vadd.f32 %v6233, %v6234
        %v6236 = vsel %vm5866, %v5865, 0.0
        %v6237 = vadd.f32 %v6235, %v6236
        %v6238 = vrot.slane %v6237, 4
        %v6239 = vadd.f32 %v6237, %v6238
        %v6240 = vrot.slane %v6239, 2
        %v6241 = vadd.f32 %v6239, %v6240
        %v6242 = vrot.slane %v6241, 1
        %v6243 = vadd.f32 %v6241, %v6242
        %vm6244 = vcmask 253952
        %6245 = vst.msk [vmem:[%s423] sm:$0x1] %vm6244, %v6243
        %v6246 = vmul.f32 %v5742, %v5742
        %v6247 = vmul.f32 %v5743, %v5743
        %v6248 = vmul.f32 %v5744, %v5744
        %v6249 = vmul.f32 %v5745, %v5745
        %v6250 = vmul.f32 %v5746, %v5746
        %v6251 = vmul.f32 %v5747, %v5747
        %v6252 = vmul.f32 %v5748, %v5748
        %v6253 = vmul.f32 %v5749, %v5749
        %v6254 = vmul.f32 %v5750, %v5750
        %v6255 = vmul.f32 %v5751, %v5751
        %v6256 = vmul.f32 %v5752, %v5752
        %v6257 = vmul.f32 %v5753, %v5753
        %v6258 = vmul.f32 %v5754, %v5754
        %v6259 = vmul.f32 %v5755, %v5755
        %v6260 = vmul.f32 %v5756, %v5756
        %v6261 = vmul.f32 %v5757, %v5757
        %v6262 = vmul.f32 %v5758, %v5758
        %v6263 = vmul.f32 %v5759, %v5759
        %v6264 = vmul.f32 %v5760, %v5760
        %v6265 = vmul.f32 %v5761, %v5761
        %v6266 = vmul.f32 %v5762, %v5762
        %v6267 = vmul.f32 %v5763, %v5763
        %v6268 = vmul.f32 %v5764, %v5764
        %v6269 = vmul.f32 %v5765, %v5765
        %v6270 = vmul.f32 %v5766, %v5766
        %v6271 = vmul.f32 %v5767, %v5767
        %v6272 = vmul.f32 %v5768, %v5768
        %v6273 = vmul.f32 %v5769, %v5769
        %v6274 = vmul.f32 %v5770, %v5770
        %v6275 = vmul.f32 %v5771, %v5771
        %v6276 = vmul.f32 %v5772, %v5772
        %v6277 = vmul.f32 %v5773, %v5773
        %v6278 = vmul.f32 %v5774, %v5774
        %v6279 = vmul.f32 %v5775, %v5775
        %v6280 = vmul.f32 %v5776, %v5776
        %v6281 = vmul.f32 %v5777, %v5777
        %v6282 = vmul.f32 %v5778, %v5778
        %v6283 = vmul.f32 %v5779, %v5779
        %v6284 = vmul.f32 %v5780, %v5780
        %v6285 = vmul.f32 %v5781, %v5781
        %v6286 = vmul.f32 %v5782, %v5782
        %v6287 = vmul.f32 %v5783, %v5783
        %v6288 = vmul.f32 %v5784, %v5784
        %v6289 = vmul.f32 %v5785, %v5785
        %v6290 = vmul.f32 %v5786, %v5786
        %v6291 = vmul.f32 %v5787, %v5787
        %v6292 = vmul.f32 %v5788, %v5788
        %v6293 = vmul.f32 %v5789, %v5789
        %v6294 = vmul.f32 %v5790, %v5790
        %v6295 = vmul.f32 %v5791, %v5791
        %v6296 = vmul.f32 %v5792, %v5792
        %v6297 = vmul.f32 %v5793, %v5793
        %v6298 = vmul.f32 %v5794, %v5794
        %v6299 = vmul.f32 %v5795, %v5795
        %v6300 = vmul.f32 %v5796, %v5796
        %v6301 = vmul.f32 %v5797, %v5797
        %v6302 = vmul.f32 %v5798, %v5798
        %v6303 = vmul.f32 %v5799, %v5799
        %v6304 = vmul.f32 %v5800, %v5800
        %v6305 = vmul.f32 %v5801, %v5801
        %v6306 = vmul.f32 %v5802, %v5802
        %v6307 = vmul.f32 %v5803, %v5803
        %v6308 = vmul.f32 %v5804, %v5804
        %v6309 = vmul.f32 %v5805, %v5805
        %v6310 = vmul.f32 %v5806, %v5806
        %v6311 = vmul.f32 %v5807, %v5807
        %v6312 = vmul.f32 %v5808, %v5808
        %v6313 = vmul.f32 %v5809, %v5809
        %v6314 = vmul.f32 %v5810, %v5810
        %v6315 = vmul.f32 %v5811, %v5811
        %v6316 = vmul.f32 %v5812, %v5812
        %v6317 = vmul.f32 %v5813, %v5813
        %v6318 = vmul.f32 %v5814, %v5814
        %v6319 = vmul.f32 %v5815, %v5815
        %v6320 = vmul.f32 %v5816, %v5816
        %v6321 = vmul.f32 %v5817, %v5817
        %v6322 = vmul.f32 %v5818, %v5818
        %v6323 = vmul.f32 %v5819, %v5819
        %v6324 = vmul.f32 %v5820, %v5820
        %v6325 = vmul.f32 %v5821, %v5821
        %v6326 = vmul.f32 %v5822, %v5822
        %v6327 = vmul.f32 %v5823, %v5823
        %v6328 = vmul.f32 %v5824, %v5824
        %v6329 = vmul.f32 %v5825, %v5825
        %v6330 = vmul.f32 %v5826, %v5826
        %v6331 = vmul.f32 %v5827, %v5827
        %v6332 = vmul.f32 %v5828, %v5828
        %v6333 = vmul.f32 %v5829, %v5829
        %v6334 = vmul.f32 %v5830, %v5830
        %v6335 = vmul.f32 %v5831, %v5831
        %v6336 = vmul.f32 %v5832, %v5832
        %v6337 = vmul.f32 %v5833, %v5833
        %v6338 = vmul.f32 %v5834, %v5834
        %v6339 = vmul.f32 %v5835, %v5835
        %v6340 = vmul.f32 %v5836, %v5836
        %v6341 = vmul.f32 %v5837, %v5837
        %v6342 = vmul.f32 %v5838, %v5838
        %v6343 = vmul.f32 %v5839, %v5839
        %v6344 = vmul.f32 %v5840, %v5840
        %v6345 = vmul.f32 %v5841, %v5841
        %v6346 = vmul.f32 %v5842, %v5842
        %v6347 = vmul.f32 %v5843, %v5843
        %v6348 = vmul.f32 %v5844, %v5844
        %v6349 = vmul.f32 %v5845, %v5845
        %v6350 = vmul.f32 %v5846, %v5846
        %v6351 = vmul.f32 %v5847, %v5847
        %v6352 = vmul.f32 %v5848, %v5848
        %v6353 = vmul.f32 %v5849, %v5849
        %v6354 = vmul.f32 %v5850, %v5850
        %v6355 = vmul.f32 %v5851, %v5851
        %v6356 = vmul.f32 %v5852, %v5852
        %v6357 = vmul.f32 %v5853, %v5853
        %v6358 = vmul.f32 %v5854, %v5854
        %v6359 = vmul.f32 %v5855, %v5855
        %v6360 = vmul.f32 %v5856, %v5856
        %v6361 = vmul.f32 %v5857, %v5857
        %v6362 = vmul.f32 %v5858, %v5858
        %v6363 = vmul.f32 %v5859, %v5859
        %v6364 = vmul.f32 %v5860, %v5860
        %v6365 = vmul.f32 %v5861, %v5861
        %v6366 = vmul.f32 %v5862, %v5862
        %v6367 = vmul.f32 %v5863, %v5863
        %v6368 = vmul.f32 %v5864, %v5864
        %v6369 = vmul.f32 %v5865, %v5865
        %v6370 = vsel %vm5866, %v6246, 0.0
        %v6371 = vsel %vm5866, %v6247, 0.0
        %v6372 = vadd.f32 %v6370, %v6371
        %v6373 = vsel %vm5866, %v6248, 0.0
        %v6374 = vadd.f32 %v6372, %v6373
        %v6375 = vsel %vm5866, %v6249, 0.0
        %v6376 = vadd.f32 %v6374, %v6375
        %v6377 = vsel %vm5866, %v6250, 0.0
        %v6378 = vadd.f32 %v6376, %v6377
        %v6379 = vsel %vm5866, %v6251, 0.0
        %v6380 = vadd.f32 %v6378, %v6379
        %v6381 = vsel %vm5866, %v6252, 0.0
        %v6382 = vadd.f32 %v6380, %v6381
        %v6383 = vsel %vm5866, %v6253, 0.0
        %v6384 = vadd.f32 %v6382, %v6383
        %v6385 = vsel %vm5866, %v6254, 0.0
        %v6386 = vadd.f32 %v6384, %v6385
        %v6387 = vsel %vm5866, %v6255, 0.0
        %v6388 = vadd.f32 %v6386, %v6387
        %v6389 = vsel %vm5866, %v6256, 0.0
        %v6390 = vadd.f32 %v6388, %v6389
        %v6391 = vsel %vm5866, %v6257, 0.0
        %v6392 = vadd.f32 %v6390, %v6391
        %v6393 = vsel %vm5866, %v6258, 0.0
        %v6394 = vadd.f32 %v6392, %v6393
        %v6395 = vsel %vm5866, %v6259, 0.0
        %v6396 = vadd.f32 %v6394, %v6395
        %v6397 = vsel %vm5866, %v6260, 0.0
        %v6398 = vadd.f32 %v6396, %v6397
        %v6399 = vsel %vm5866, %v6261, 0.0
        %v6400 = vadd.f32 %v6398, %v6399
        %v6401 = vsel %vm5866, %v6262, 0.0
        %v6402 = vadd.f32 %v6400, %v6401
        %v6403 = vsel %vm5866, %v6263, 0.0
        %v6404 = vadd.f32 %v6402, %v6403
        %v6405 = vsel %vm5866, %v6264, 0.0
        %v6406 = vadd.f32 %v6404, %v6405
        %v6407 = vsel %vm5866, %v6265, 0.0
        %v6408 = vadd.f32 %v6406, %v6407
        %v6409 = vsel %vm5866, %v6266, 0.0
        %v6410 = vadd.f32 %v6408, %v6409
        %v6411 = vsel %vm5866, %v6267, 0.0
        %v6412 = vadd.f32 %v6410, %v6411
        %v6413 = vsel %vm5866, %v6268, 0.0
        %v6414 = vadd.f32 %v6412, %v6413
        %v6415 = vsel %vm5866, %v6269, 0.0
        %v6416 = vadd.f32 %v6414, %v6415
        %v6417 = vsel %vm5866, %v6270, 0.0
        %v6418 = vadd.f32 %v6416, %v6417
        %v6419 = vsel %vm5866, %v6271, 0.0
        %v6420 = vadd.f32 %v6418, %v6419
        %v6421 = vsel %vm5866, %v6272, 0.0
        %v6422 = vadd.f32 %v6420, %v6421
        %v6423 = vsel %vm5866, %v6273, 0.0
        %v6424 = vadd.f32 %v6422, %v6423
        %v6425 = vsel %vm5866, %v6274, 0.0
        %v6426 = vadd.f32 %v6424, %v6425
        %v6427 = vsel %vm5866, %v6275, 0.0
        %v6428 = vadd.f32 %v6426, %v6427
        %v6429 = vsel %vm5866, %v6276, 0.0
        %v6430 = vadd.f32 %v6428, %v6429
        %v6431 = vsel %vm5866, %v6277, 0.0
        %v6432 = vadd.f32 %v6430, %v6431
        %v6433 = vsel %vm5866, %v6278, 0.0
        %v6434 = vadd.f32 %v6432, %v6433
        %v6435 = vsel %vm5866, %v6279, 0.0
        %v6436 = vadd.f32 %v6434, %v6435
        %v6437 = vsel %vm5866, %v6280, 0.0
        %v6438 = vadd.f32 %v6436, %v6437
        %v6439 = vsel %vm5866, %v6281, 0.0
        %v6440 = vadd.f32 %v6438, %v6439
        %v6441 = vsel %vm5866, %v6282, 0.0
        %v6442 = vadd.f32 %v6440, %v6441
        %v6443 = vsel %vm5866, %v6283, 0.0
        %v6444 = vadd.f32 %v6442, %v6443
        %v6445 = vsel %vm5866, %v6284, 0.0
        %v6446 = vadd.f32 %v6444, %v6445
        %v6447 = vsel %vm5866, %v6285, 0.0
        %v6448 = vadd.f32 %v6446, %v6447
        %v6449 = vsel %vm5866, %v6286, 0.0
        %v6450 = vadd.f32 %v6448, %v6449
        %v6451 = vsel %vm5866, %v6287, 0.0
        %v6452 = vadd.f32 %v6450, %v6451
        %v6453 = vsel %vm5866, %v6288, 0.0
        %v6454 = vadd.f32 %v6452, %v6453
        %v6455 = vsel %vm5866, %v6289, 0.0
        %v6456 = vadd.f32 %v6454, %v6455
        %v6457 = vsel %vm5866, %v6290, 0.0
        %v6458 = vadd.f32 %v6456, %v6457
        %v6459 = vsel %vm5866, %v6291, 0.0
        %v6460 = vadd.f32 %v6458, %v6459
        %v6461 = vsel %vm5866, %v6292, 0.0
        %v6462 = vadd.f32 %v6460, %v6461
        %v6463 = vsel %vm5866, %v6293, 0.0
        %v6464 = vadd.f32 %v6462, %v6463
        %v6465 = vsel %vm5866, %v6294, 0.0
        %v6466 = vadd.f32 %v6464, %v6465
        %v6467 = vsel %vm5866, %v6295, 0.0
        %v6468 = vadd.f32 %v6466, %v6467
        %v6469 = vsel %vm5866, %v6296, 0.0
        %v6470 = vadd.f32 %v6468, %v6469
        %v6471 = vsel %vm5866, %v6297, 0.0
        %v6472 = vadd.f32 %v6470, %v6471
        %v6473 = vsel %vm5866, %v6298, 0.0
        %v6474 = vadd.f32 %v6472, %v6473
        %v6475 = vsel %vm5866, %v6299, 0.0
        %v6476 = vadd.f32 %v6474, %v6475
        %v6477 = vsel %vm5866, %v6300, 0.0
        %v6478 = vadd.f32 %v6476, %v6477
        %v6479 = vsel %vm5866, %v6301, 0.0
        %v6480 = vadd.f32 %v6478, %v6479
        %v6481 = vsel %vm5866, %v6302, 0.0
        %v6482 = vadd.f32 %v6480, %v6481
        %v6483 = vsel %vm5866, %v6303, 0.0
        %v6484 = vadd.f32 %v6482, %v6483
        %v6485 = vsel %vm5866, %v6304, 0.0
        %v6486 = vadd.f32 %v6484, %v6485
        %v6487 = vsel %vm5866, %v6305, 0.0
        %v6488 = vadd.f32 %v6486, %v6487
        %v6489 = vsel %vm5866, %v6306, 0.0
        %v6490 = vadd.f32 %v6488, %v6489
        %v6491 = vsel %vm5866, %v6307, 0.0
        %v6492 = vadd.f32 %v6490, %v6491
        %v6493 = vsel %vm5866, %v6308, 0.0
        %v6494 = vadd.f32 %v6492, %v6493
        %v6495 = vsel %vm5866, %v6309, 0.0
        %v6496 = vadd.f32 %v6494, %v6495
        %v6497 = vsel %vm5866, %v6310, 0.0
        %v6498 = vadd.f32 %v6496, %v6497
        %v6499 = vsel %vm5866, %v6311, 0.0
        %v6500 = vadd.f32 %v6498, %v6499
        %v6501 = vsel %vm5866, %v6312, 0.0
        %v6502 = vadd.f32 %v6500, %v6501
        %v6503 = vsel %vm5866, %v6313, 0.0
        %v6504 = vadd.f32 %v6502, %v6503
        %v6505 = vsel %vm5866, %v6314, 0.0
        %v6506 = vadd.f32 %v6504, %v6505
        %v6507 = vsel %vm5866, %v6315, 0.0
        %v6508 = vadd.f32 %v6506, %v6507
        %v6509 = vsel %vm5866, %v6316, 0.0
        %v6510 = vadd.f32 %v6508, %v6509
        %v6511 = vsel %vm5866, %v6317, 0.0
        %v6512 = vadd.f32 %v6510, %v6511
        %v6513 = vsel %vm5866, %v6318, 0.0
        %v6514 = vadd.f32 %v6512, %v6513
        %v6515 = vsel %vm5866, %v6319, 0.0
        %v6516 = vadd.f32 %v6514, %v6515
        %v6517 = vsel %vm5866, %v6320, 0.0
        %v6518 = vadd.f32 %v6516, %v6517
        %v6519 = vsel %vm5866, %v6321, 0.0
        %v6520 = vadd.f32 %v6518, %v6519
        %v6521 = vsel %vm5866, %v6322, 0.0
        %v6522 = vadd.f32 %v6520, %v6521
        %v6523 = vsel %vm5866, %v6323, 0.0
        %v6524 = vadd.f32 %v6522, %v6523
        %v6525 = vsel %vm5866, %v6324, 0.0
        %v6526 = vadd.f32 %v6524, %v6525
        %v6527 = vsel %vm5866, %v6325, 0.0
        %v6528 = vadd.f32 %v6526, %v6527
        %v6529 = vsel %vm5866, %v6326, 0.0
        %v6530 = vadd.f32 %v6528, %v6529
        %v6531 = vsel %vm5866, %v6327, 0.0
        %v6532 = vadd.f32 %v6530, %v6531
        %v6533 = vsel %vm5866, %v6328, 0.0
        %v6534 = vadd.f32 %v6532, %v6533
        %v6535 = vsel %vm5866, %v6329, 0.0
        %v6536 = vadd.f32 %v6534, %v6535
        %v6537 = vsel %vm5866, %v6330, 0.0
        %v6538 = vadd.f32 %v6536, %v6537
        %v6539 = vsel %vm5866, %v6331, 0.0
        %v6540 = vadd.f32 %v6538, %v6539
        %v6541 = vsel %vm5866, %v6332, 0.0
        %v6542 = vadd.f32 %v6540, %v6541
        %v6543 = vsel %vm5866, %v6333, 0.0
        %v6544 = vadd.f32 %v6542, %v6543
        %v6545 = vsel %vm5866, %v6334, 0.0
        %v6546 = vadd.f32 %v6544, %v6545
        %v6547 = vsel %vm5866, %v6335, 0.0
        %v6548 = vadd.f32 %v6546, %v6547
        %v6549 = vsel %vm5866, %v6336, 0.0
        %v6550 = vadd.f32 %v6548, %v6549
        %v6551 = vsel %vm5866, %v6337, 0.0
        %v6552 = vadd.f32 %v6550, %v6551
        %v6553 = vsel %vm5866, %v6338, 0.0
        %v6554 = vadd.f32 %v6552, %v6553
        %v6555 = vsel %vm5866, %v6339, 0.0
        %v6556 = vadd.f32 %v6554, %v6555
        %v6557 = vsel %vm5866, %v6340, 0.0
        %v6558 = vadd.f32 %v6556, %v6557
        %v6559 = vsel %vm5866, %v6341, 0.0
        %v6560 = vadd.f32 %v6558, %v6559
        %v6561 = vsel %vm5866, %v6342, 0.0
        %v6562 = vadd.f32 %v6560, %v6561
        %v6563 = vsel %vm5866, %v6343, 0.0
        %v6564 = vadd.f32 %v6562, %v6563
        %v6565 = vsel %vm5866, %v6344, 0.0
        %v6566 = vadd.f32 %v6564, %v6565
        %v6567 = vsel %vm5866, %v6345, 0.0
        %v6568 = vadd.f32 %v6566, %v6567
        %v6569 = vsel %vm5866, %v6346, 0.0
        %v6570 = vadd.f32 %v6568, %v6569
        %v6571 = vsel %vm5866, %v6347, 0.0
        %v6572 = vadd.f32 %v6570, %v6571
        %v6573 = vsel %vm5866, %v6348, 0.0
        %v6574 = vadd.f32 %v6572, %v6573
        %v6575 = vsel %vm5866, %v6349, 0.0
        %v6576 = vadd.f32 %v6574, %v6575
        %v6577 = vsel %vm5866, %v6350, 0.0
        %v6578 = vadd.f32 %v6576, %v6577
        %v6579 = vsel %vm5866, %v6351, 0.0
        %v6580 = vadd.f32 %v6578, %v6579
        %v6581 = vsel %vm5866, %v6352, 0.0
        %v6582 = vadd.f32 %v6580, %v6581
        %v6583 = vsel %vm5866, %v6353, 0.0
        %v6584 = vadd.f32 %v6582, %v6583
        %v6585 = vsel %vm5866, %v6354, 0.0
        %v6586 = vadd.f32 %v6584, %v6585
        %v6587 = vsel %vm5866, %v6355, 0.0
        %v6588 = vadd.f32 %v6586, %v6587
        %v6589 = vsel %vm5866, %v6356, 0.0
        %v6590 = vadd.f32 %v6588, %v6589
        %v6591 = vsel %vm5866, %v6357, 0.0
        %v6592 = vadd.f32 %v6590, %v6591
        %v6593 = vsel %vm5866, %v6358, 0.0
        %v6594 = vadd.f32 %v6592, %v6593
        %v6595 = vsel %vm5866, %v6359, 0.0
        %v6596 = vadd.f32 %v6594, %v6595
        %v6597 = vsel %vm5866, %v6360, 0.0
        %v6598 = vadd.f32 %v6596, %v6597
        %v6599 = vsel %vm5866, %v6361, 0.0
        %v6600 = vadd.f32 %v6598, %v6599
        %v6601 = vsel %vm5866, %v6362, 0.0
        %v6602 = vadd.f32 %v6600, %v6601
        %v6603 = vsel %vm5866, %v6363, 0.0
        %v6604 = vadd.f32 %v6602, %v6603
        %v6605 = vsel %vm5866, %v6364, 0.0
        %v6606 = vadd.f32 %v6604, %v6605
        %v6607 = vsel %vm5866, %v6365, 0.0
        %v6608 = vadd.f32 %v6606, %v6607
        %v6609 = vsel %vm5866, %v6366, 0.0
        %v6610 = vadd.f32 %v6608, %v6609
        %v6611 = vsel %vm5866, %v6367, 0.0
        %v6612 = vadd.f32 %v6610, %v6611
        %v6613 = vsel %vm5866, %v6368, 0.0
        %v6614 = vadd.f32 %v6612, %v6613
        %v6615 = vsel %vm5866, %v6369, 0.0
        %v6616 = vadd.f32 %v6614, %v6615
        %v6617 = vrot.slane %v6616, 4
        %v6618 = vadd.f32 %v6616, %v6617
        %v6619 = vrot.slane %v6618, 2
        %v6620 = vadd.f32 %v6618, %v6619
        %v6621 = vrot.slane %v6620, 1
        %v6622 = vadd.f32 %v6620, %v6621
        %6623 = vst.msk [vmem:[%s423 + $0x1] sm:$0x1] %vm6244, %v6622
      $region56: #{edge_layer_forward.3} parent=47 // pred_fallthru
        _
      %s6624 = smul.u32 124, %s20
      %p6625 = scmp.lt.s32.totalorder %s6624, 247
      %s6626 = scalar_select %p6625, %s6624, 247
      %s6627 = smul.addr %s6626, 8
      %s6628 = scalar_lea.vmem %s7, %s6627
      %p6629 = scmp.lt.s32.totalorder %s20, 1
      %s6630 = scalar_select %p6629, %s20, 1
      %s6631 = smul.addr %s6630, 2
      %s6632 = scalar_lea.vmem %s8, %s6631
      // Predicated region
      $region57: #{edge_layer_forward.3} parent=47 // pred_check
        %p6633 = pneg %p200
      $region58: #{edge_layer_forward.3} parent=47 // pred_check_branch
        %6635 = sbr.rel (%p6633) target = $region60
      $region59: #{edge_layer_forward.3} parent=47 // pred_region
        %s6636 = smul.u32 124, %s20
      $region60: #{edge_layer_forward.3} parent=47 // pred_fallthru
        _
      // Predicated region
      $region61: #{edge_layer_forward.3} parent=47 // pred_check
        %p6637 = pneg %p226
      $region62: #{edge_layer_forward.3} parent=47 // pred_check_branch
        %6639 = sbr.rel (%p6637) target = $region64
      $region63: #{edge_layer_forward.3} parent=47 // pred_region
        _
      $region64: #{edge_layer_forward.3} parent=47 // pred_fallthru
        _
    $region48: #{edge_layer_forward.3} parent=5 // pred_fallthru
      _
    %p6640 = scmp.le.s32.totalorder 2, %s15
    // Predicated region
    $region65: #{edge_layer_forward.3} parent=5 // pred_check
      %p6641 = pneg %p6640
    $region66: #{edge_layer_forward.3} parent=5 // pred_check_branch
      %6643 = sbr.rel (%p6641) target = $region68
    $region67: #{edge_layer_forward.3} parent=5 // pred_region
      %s6644 = ssub.s32 %s15, 2
      // Predicated region
      $region69: #{edge_layer_forward.3} parent=67 // pred_check
        %p6645 = pneg %p206
      $region70: #{edge_layer_forward.3} parent=67 // pred_check_branch
        %6647 = sbr.rel (%p6645) target = $region72
      $region71: #{edge_layer_forward.3} parent=67 // pred_region
        %s6648 = smul.u32 124, %s21
        %p6649 = scmp.lt.s32.totalorder %s6648, 247
        %s6650 = scalar_select %p6649, %s6648, 247
        %s6651 = smul.addr %s6650, 8
        %s6652 = scalar_lea.vmem %s7, %s6651
      $region72: #{edge_layer_forward.3} parent=67 // pred_fallthru
        _
      // Predicated region
      $region73: #{edge_layer_forward.3} parent=67 // pred_check
        %p6653 = pneg %p232
      $region74: #{edge_layer_forward.3} parent=67 // pred_check_branch
        %6655 = sbr.rel (%p6653) target = $region76
      $region75: #{edge_layer_forward.3} parent=67 // pred_region
        %p6656 = scmp.lt.s32.totalorder %s21, 1
        %s6657 = scalar_select %p6656, %s21, 1
        %s6658 = smul.addr %s6657, 2
        %s6659 = scalar_lea.vmem %s8, %s6658
      $region76: #{edge_layer_forward.3} parent=67 // pred_fallthru
        _
    $region68: #{edge_layer_forward.3} parent=5 // pred_fallthru
      _
  $region6: #{edge_layer_forward.3} parent=0 // loop_footer
    %s19 = sadd.s32 1, %s15
  $region7: #{edge_layer_forward.3} parent=0 // loop_footer_branch
    %14 = sbr.rel target = $region3
  $region8: #{edge_layer_forward.3} parent=0 // loop_exit
    _

</llo_original>
